<compile_context>
chip_gen: v6e
topology: v6e:2x2x1
jax: 0.10.0
libtpu: 0.0.40
codegen_flags: <defaults>
</compile_context>

<pallas_src>
import jax
import jax.numpy as jnp
from jax import lax
from jax.experimental import pallas as pl
from jax.experimental.pallas import tpu as pltpu

GROWTH_RATE = 32
BN_EPS = 1e-5


def _choose_row_tile(m, min_steps=4):
    """Largest row tile dividing m that yields >= min_steps grid steps
    (falls back to >= 2 steps, then a single step, then cdiv + masked tail)."""
    candidates = (1024, 512, 256, 128, 64, 32, 16, 8)
    for want in (min_steps, 2):
        for t in candidates:
            if m % t == 0 and m // t >= want:
                return t, False
    if m <= 1024:
        return m, False
    return 512, True


# ----------------------------- Pallas kernels ------------------------------- #

def bn_relu_conv1x1(x2d, scale, shift, w, b):
    """Fused BN -> ReLU -> 1x1 conv (+ fused partial stats of the output).

    x2d (M, K) bf16, scale/shift (1, K) f32 (zero for inactive channels),
    w (K, Cout) bf16 (zero rows for inactive channels), b (1, Cout) f32.
    Returns y (M, Cout) bf16, mean_y (1, Cout) f32, E[y^2] (1, Cout) f32
    (stats taken from the f32 accumulator before the bf16 store).
    """
    m, k = x2d.shape
    cout = w.shape[1]
    tm, masked = _choose_row_tile(m)
    gm = pl.cdiv(m, tm)

    def kernel(x_ref, sc_ref, sh_ref, w_ref, b_ref, y_ref, s_ref, q_ref):
        a = jnp.maximum(
            x_ref[...].astype(jnp.float32) * sc_ref[...] + sh_ref[...], 0.0)
        y = jnp.dot(a.astype(jnp.bfloat16), w_ref[...],
                    preferred_element_type=jnp.float32) + b_ref[...]
        y_ref[...] = y.astype(jnp.bfloat16)
        if masked:
            rows = pl.program_id(0) * tm + lax.broadcasted_iota(
                jnp.int32, (tm, 1), 0)
            y = jnp.where(rows < m, y, 0.0)
        s_ref[0] = jnp.sum(y, axis=0, keepdims=True)
        q_ref[0] = jnp.sum(y * y, axis=0, keepdims=True)

    y, s, q = pl.pallas_call(
        kernel,
        out_shape=(jax.ShapeDtypeStruct((m, cout), jnp.bfloat16),
                   jax.ShapeDtypeStruct((gm, 1, cout), jnp.float32),
                   jax.ShapeDtypeStruct((gm, 1, cout), jnp.float32)),
        grid=(gm,),
        in_specs=[
            pl.BlockSpec((tm, k), lambda i: (i, 0)),
            pl.BlockSpec((1, k), lambda i: (0, 0)),
            pl.BlockSpec((1, k), lambda i: (0, 0)),
            pl.BlockSpec((k, cout), lambda i: (0, 0)),
            pl.BlockSpec((1, cout), lambda i: (0, 0)),
        ],
        out_specs=(
            pl.BlockSpec((tm, cout), lambda i: (i, 0)),
            pl.BlockSpec((1, 1, cout), lambda i: (i, 0, 0)),
            pl.BlockSpec((1, 1, cout), lambda i: (i, 0, 0)),
        ),
        compiler_params=pltpu.CompilerParams(
            dimension_semantics=("parallel",)),
    )(x2d, scale, shift, w, b)
    mean = jnp.sum(s, axis=0) / m
    ex2 = jnp.sum(q, axis=0) / m
    return y, mean, ex2


def bn_relu_conv3x3(y, scale, shift, w9, b):
    """Fused BN -> ReLU -> 3x3 conv (pad=1): zero-halo VMEM scratch + in-VMEM
    im2col + a single K=9*Cmid MXU dot (+ fused partial stats of the output).

    y (N, H, W, Cmid) bf16 (unpadded), scale/shift (1, Cmid) f32,
    w9 (9*Cmid, Cout) bf16 with tap order (dy, dx, ci) row-major,
    b (1, Cout) f32.
    Returns out (N, H*W, Cout) bf16, mean (1, Cout), E[x^2] (1, Cout).
    """
    n, h, wd, cmid = y.shape
    cout = w9.shape[-1]
    hp, wp = h + 2, wd + 2

    def kernel(y_ref, sc_ref, sh_ref, w_ref, b_ref, o_ref, s_ref, q_ref,
               a_pad):
        # BN + ReLU exactly once per pixel; zero halo == PyTorch's zero
        # padding of the post-BN/ReLU activation feeding the conv.
        a_pad[...] = jnp.zeros((hp, wp, cmid), jnp.float32)
        a_pad[1:h + 1, 1:wd + 1, :] = jnp.maximum(
            y_ref[0].astype(jnp.float32) * sc_ref[...] + sh_ref[...], 0.0)
        # In-VMEM im2col: 9 shifted windows -> one (H*W, 9*Cmid) bf16 operand.
        cols = []
        for dy in range(3):
            for dx in range(3):
                win = a_pad[dy:dy + h, dx:dx + wd, :]         # (h, wd, cmid)
                cols.append(win.reshape(h * wd, cmid).astype(jnp.bfloat16))
        stage = jnp.concatenate(cols, axis=-1)                # (h*wd, 9*cmid)
        out = jnp.dot(stage, w_ref[...],
                      preferred_element_type=jnp.float32) + b_ref[...]
        s_ref[0] = jnp.sum(out, axis=0, keepdims=True)
        q_ref[0] = jnp.sum(out * out, axis=0, keepdims=True)
        o_ref[0] = out.astype(jnp.bfloat16)

    out, s, q = pl.pallas_call(
        kernel,
        out_shape=(jax.ShapeDtypeStruct((n, h * wd, cout), jnp.bfloat16),
                   jax.ShapeDtypeStruct((n, 1, cout), jnp.float32),
                   jax.ShapeDtypeStruct((n, 1, cout), jnp.float32)),
        grid=(n,),
        in_specs=[
            pl.BlockSpec((1, h, wd, cmid), lambda i: (i, 0, 0, 0)),
            pl.BlockSpec((1, cmid), lambda i: (0, 0)),
            pl.BlockSpec((1, cmid), lambda i: (0, 0)),
            pl.BlockSpec((9 * cmid, cout), lambda i: (0, 0)),
            pl.BlockSpec((1, cout), lambda i: (0, 0)),
        ],
        out_specs=(
            pl.BlockSpec((1, h * wd, cout), lambda i: (i, 0, 0)),
            pl.BlockSpec((1, 1, cout), lambda i: (i, 0, 0)),
            pl.BlockSpec((1, 1, cout), lambda i: (i, 0, 0)),
        ),
        scratch_shapes=[pltpu.VMEM((hp, wp, cmid), jnp.float32)],
        compiler_params=pltpu.CompilerParams(
            dimension_semantics=("parallel",)),
    )(y, scale, shift, w9, b)
    m = n * h * wd
    mean = jnp.sum(s, axis=0) / m
    ex2 = jnp.sum(q, axis=0) / m
    return out, mean, ex2


# --------------------------- DenseBlock in JAX/Pallas ----------------------- #

def _scale_shift(mean, ex2):
    var = jnp.maximum(ex2 - mean * mean, 0.0)      # biased variance (train BN)
    scale = lax.rsqrt(var + BN_EPS)
    shift = -mean * scale
    return scale, shift


def dense_block_forward(x_nchw, params):
    """DenseBlock forward. NCHW at the boundary (PyTorch); NHWC rows x a
    preallocated bf16 channel slab (torch cat order, filled back-to-front)
    internally."""
    x = jnp.transpose(x_nchw, (0, 2, 3, 1)).astype(jnp.float32)
    n, h, w, c_in = x.shape
    m = n * h * w
    r_total = len(params)
    c_final = c_in + GROWTH_RATE * r_total
    orig_off = GROWTH_RATE * r_total

    x2d = x.reshape(m, c_in)
    # Channel slab in torch cat order [new_R, ..., new_1, original]; in-place
    # dynamic_update_slice writes replace the O(R^2) concatenate traffic.
    slab = jnp.zeros((m, c_final), jnp.bfloat16)
    slab = lax.dynamic_update_slice(slab, x2d.astype(jnp.bfloat16),
                                    (0, orig_off))

    # Running per-channel stats of the feature map: pass-through channels keep
    # their values across repeats so their stats are reused; new channels'
    # stats come fused out of the kernels that produce them.  The tiny
    # C_in-wide input stats are plain JAX (a Pallas launch isn't worth it).
    mean_all = jnp.zeros((1, c_final), jnp.float32)
    ex2_all = jnp.zeros((1, c_final), jnp.float32)
    mean_all = lax.dynamic_update_slice(
        mean_all, jnp.mean(x2d, axis=0, keepdims=True), (0, orig_off))
    ex2_all = lax.dynamic_update_slice(
        ex2_all, jnp.mean(x2d * x2d, axis=0, keepdims=True), (0, orig_off))

    chan = jnp.arange(c_final)[None, :]
    for ridx, (w1, b1, w2, b2) in enumerate(params):
        active_start = GROWTH_RATE * (r_total - ridx)   # active = [start, end)
        # Inactive (not-yet-written, all-zero) channels get scale=shift=0 and
        # zero weight rows, so they contribute exactly 0 to the 1x1 matmul.
        scale1, shift1 = _scale_shift(mean_all, ex2_all)
        active = chan >= active_start
        scale1 = jnp.where(active, scale1, 0.0)
        shift1 = jnp.where(active, shift1, 0.0)
        cmid = w1.shape[1]
        w1_full = jnp.zeros((c_final, cmid), jnp.bfloat16)
        w1_full = lax.dynamic_update_slice(w1_full, w1, (active_start, 0))

        y2d, mean_y, ex2_y = bn_relu_conv1x1(
            slab, scale1, shift1, w1_full, b1.reshape(1, -1))
        scale2, shift2 = _scale_shift(mean_y, ex2_y)

        y = y2d.reshape(n, h, w, cmid)
        w9 = w2.reshape(9 * cmid, w2.shape[-1])
        new, mean_new, ex2_new = bn_relu_conv3x3(
            y, scale2, shift2, w9, b2.reshape(1, -1))
        new2d = new.reshape(m, GROWTH_RATE)

        # torch.cat((new, old), dim=1): this repeat's channels go just below
        # the previously written ones.
        new_off = GROWTH_RATE * (r_total - 1 - ridx)
        slab = lax.dynamic_update_slice(slab, new2d, (0, new_off))
        mean_all = lax.dynamic_update_slice(mean_all, mean_new, (0, new_off))
        ex2_all = lax.dynamic_update_slice(ex2_all, ex2_new, (0, new_off))

    out = slab.astype(jnp.float32).reshape(n, h, w, c_final)
    return jnp.transpose(out, (0, 3, 1, 2))


def init_dense_block_params(key, in_channels, num_repeats):
    # NOTE: the PyTorch module re-instantiates CnnBlock (fresh random weights)
    # on every forward; here weights are sampled once, deterministically, and
    # stored in bf16 (both the kernels and the f32 reference use these values).
    params = []
    c = in_channels
    mid = 4 * GROWTH_RATE
    for _ in range(num_repeats):
        key, k1, k2, k3, k4 = jax.random.split(key, 5)
        w1 = (jax.random.normal(k1, (c, mid), jnp.float32)
              / jnp.sqrt(float(c))).astype(jnp.bfloat16)
        b1 = jax.random.normal(k2, (mid,), jnp.float32) * 0.01
        w2 = (jax.random.normal(k3, (3, 3, mid, GROWTH_RATE), jnp.float32)
              / jnp.sqrt(float(9 * mid))).astype(jnp.bfloat16)
        b2 = jax.random.normal(k4, (GROWTH_RATE,), jnp.float32) * 0.01
        params.append((w1, b1, w2, b2))
        c += GROWTH_RATE
    return params


# ------------------------------ Pure-JAX reference -------------------------- #

def _ref_bn_relu(x):
    mean = jnp.mean(x, axis=(0, 1, 2), keepdims=True)
    var = jnp.mean(jnp.square(x - mean), axis=(0, 1, 2), keepdims=True)
    return jnp.maximum((x - mean) / jnp.sqrt(var + BN_EPS), 0.0)


def dense_block_reference(x_nchw, params):
    x = jnp.transpose(x_nchw, (0, 2, 3, 1)).astype(jnp.float32)
    for (w1, b1, w2, b2) in params:
        inp = x
        y = _ref_bn_relu(x)
        y = jnp.einsum("nhwc,co->nhwo", y, w1.astype(jnp.float32),
                       precision=lax.Precision.HIGHEST) + b1
        z = _ref_bn_relu(y)
        z = lax.conv_general_dilated(
            z, w2.astype(jnp.float32), window_strides=(1, 1), padding="SAME",
            dimension_numbers=("NHWC", "HWIO", "NHWC"),
            precision=lax.Precision.HIGHEST) + b2
        x = jnp.concatenate([z, inp], axis=-1)
    return jnp.transpose(x, (0, 3, 1, 2))


# ------------------------------------ Main ---------------------------------- #

if __name__ == "__main__":
    key = jax.random.PRNGKey(0)
    kx, kp = jax.random.split(key)

    N, C, H, W = 2, 4, 16, 16
    num_repeats = 2

    x = jax.random.normal(kx, (N, C, H, W), jnp.float32)
    params = init_dense_block_params(kp, C, num_repeats)

    fwd = jax.jit(dense_block_forward)
    out = jax.block_until_ready(fwd(x, params))
    ref = jax.block_until_ready(dense_block_reference(x, params))

    assert out.shape == (N, C + num_repeats * GROWTH_RATE, H, W), out.shape
    max_err = float(jnp.max(jnp.abs(out - ref)))
    assert jnp.allclose(out, ref, atol=5e-2, rtol=5e-2), max_err

    print("KERNEL_OK")
</pallas_src>

<mosaic_0001>
module attributes {stable_mosaic.version = 11 : i64} {
  func.func @kernel(%arg0: i32, %arg1: memref<128x68xbf16, #tpu.memory_space<vmem>>, %arg2: memref<1x68xf32, #tpu.memory_space<vmem>>, %arg3: memref<1x68xf32, #tpu.memory_space<vmem>>, %arg4: memref<68x128xbf16, #tpu.memory_space<vmem>>, %arg5: memref<1x128xf32, #tpu.memory_space<vmem>>, %arg6: memref<128x128xbf16, #tpu.memory_space<vmem>>, %arg7: memref<1x1x128xf32, #tpu.memory_space<vmem>>, %arg8: memref<1x1x128xf32, #tpu.memory_space<vmem>>) attributes {dimension_semantics = [#tpu.dimension_semantics<parallel>], iteration_bounds = array<i64: 4>, scalar_prefetch = 0 : i64, scratch_operands = 0 : i64, tpu.core_type = #tpu.core_type<tc>, window_params = [{transform_indices = @transform_0, window_bounds = array<i64: 128, 68>}, {pipeline_mode = #tpu.pipeline_mode<synchronous>, transform_indices = @transform_1, window_bounds = array<i64: 1, 68>}, {pipeline_mode = #tpu.pipeline_mode<synchronous>, transform_indices = @transform_2, window_bounds = array<i64: 1, 68>}, {pipeline_mode = #tpu.pipeline_mode<synchronous>, transform_indices = @transform_3, window_bounds = array<i64: 68, 128>}, {pipeline_mode = #tpu.pipeline_mode<synchronous>, transform_indices = @transform_4, window_bounds = array<i64: 1, 128>}, {transform_indices = @transform_5, window_bounds = array<i64: 128, 128>}, {transform_indices = @transform_6, window_bounds = array<i64: 1, 1, 128>}, {transform_indices = @transform_7, window_bounds = array<i64: 1, 1, 128>}]} {
    %c0 = arith.constant 0 : index
    %c0_0 = arith.constant 0 : index
    %0 = vector.load %arg1[%c0, %c0_0] : memref<128x68xbf16, #tpu.memory_space<vmem>>, vector<128x68xbf16>
    %1 = arith.extf %0 : vector<128x68xbf16> to vector<128x68xf32>
    %c0_1 = arith.constant 0 : index
    %c0_2 = arith.constant 0 : index
    %2 = vector.load %arg2[%c0_1, %c0_2] : memref<1x68xf32, #tpu.memory_space<vmem>>, vector<1x68xf32>
    %3 = vector.broadcast %2 : vector<1x68xf32> to vector<128x68xf32>
    %4 = arith.mulf %1, %3 : vector<128x68xf32>
    %c0_3 = arith.constant 0 : index
    %c0_4 = arith.constant 0 : index
    %5 = vector.load %arg3[%c0_3, %c0_4] : memref<1x68xf32, #tpu.memory_space<vmem>>, vector<1x68xf32>
    %6 = vector.broadcast %5 : vector<1x68xf32> to vector<128x68xf32>
    %7 = arith.addf %4, %6 : vector<128x68xf32>
    %cst = arith.constant 0.000000e+00 : f32
    %8 = vector.broadcast %cst : f32 to vector<128x68xf32>
    %9 = arith.maximumf %7, %8 : vector<128x68xf32>
    %10 = arith.truncf %9 : vector<128x68xf32> to vector<128x68xbf16>
    %c0_5 = arith.constant 0 : index
    %c0_6 = arith.constant 0 : index
    %11 = vector.load %arg4[%c0_5, %c0_6] : memref<68x128xbf16, #tpu.memory_space<vmem>>, vector<68x128xbf16>
    %cst_7 = arith.constant dense<0.000000e+00> : vector<128x128xf32>
    %12 = tpu.matmul %10, %11, %cst_7 {dimension_numbers = #tpu.dot_dimension_numbers<[1], [0], [0], [1], [0, 0, 1, 1], [], []>} : vector<128x68xbf16>, vector<68x128xbf16>, vector<128x128xf32> -> vector<128x128xf32>
    %c0_8 = arith.constant 0 : index
    %c0_9 = arith.constant 0 : index
    %13 = vector.load %arg5[%c0_8, %c0_9] : memref<1x128xf32, #tpu.memory_space<vmem>>, vector<1x128xf32>
    %14 = vector.broadcast %13 : vector<1x128xf32> to vector<128x128xf32>
    %15 = arith.addf %12, %14 : vector<128x128xf32>
    %16 = arith.truncf %15 : vector<128x128xf32> to vector<128x128xbf16>
    %c0_10 = arith.constant 0 : index
    %c0_11 = arith.constant 0 : index
    %17 = vector.load %arg6[%c0_10, %c0_11] : memref<128x128xbf16, #tpu.memory_space<vmem>>, vector<128x128xbf16>
    tpu.vector_store %arg6[%c0_10, %c0_11], %16 {strides = array<i32>} : memref<128x128xbf16, #tpu.memory_space<vmem>>, vector<128x128xbf16>,
    %cst_12 = arith.constant dense<0.000000e+00> : vector<128xf32>
    %18 = vector.multi_reduction <add>, %15, %cst_12 [0] : vector<128x128xf32> to vector<128xf32>
    %19 = vector.shape_cast %18 : vector<128xf32> to vector<1x128xf32>
    %c0_13 = arith.constant 0 : index
    %c0_14 = arith.constant 0 : index
    %c0_15 = arith.constant 0 : index
    %20 = vector.load %arg7[%c0_13, %c0_14, %c0_15] : memref<1x1x128xf32, #tpu.memory_space<vmem>>, vector<1x1x128xf32>
    %21 = vector.shape_cast %20 : vector<1x1x128xf32> to vector<1x128xf32>
    %22 = vector.shape_cast %19 : vector<1x128xf32> to vector<1x1x128xf32>
    tpu.vector_store %arg7[%c0_13, %c0_14, %c0_15], %22 {strides = array<i32>} : memref<1x1x128xf32, #tpu.memory_space<vmem>>, vector<1x1x128xf32>,
    %23 = arith.mulf %15, %15 : vector<128x128xf32>
    %cst_16 = arith.constant dense<0.000000e+00> : vector<128xf32>
    %24 = vector.multi_reduction <add>, %23, %cst_16 [0] : vector<128x128xf32> to vector<128xf32>
    %25 = vector.shape_cast %24 : vector<128xf32> to vector<1x128xf32>
    %c0_17 = arith.constant 0 : index
    %c0_18 = arith.constant 0 : index
    %c0_19 = arith.constant 0 : index
    %26 = vector.load %arg8[%c0_17, %c0_18, %c0_19] : memref<1x1x128xf32, #tpu.memory_space<vmem>>, vector<1x1x128xf32>
    %27 = vector.shape_cast %26 : vector<1x1x128xf32> to vector<1x128xf32>
    %28 = vector.shape_cast %25 : vector<1x128xf32> to vector<1x1x128xf32>
    tpu.vector_store %arg8[%c0_17, %c0_18, %c0_19], %28 {strides = array<i32>} : memref<1x1x128xf32, #tpu.memory_space<vmem>>, vector<1x1x128xf32>,
    return
  }
  func.func @transform_0(%arg0: i32) -> (i32, i32) {
    %c0_i32 = arith.constant 0 : i32
    %c0_i32_0 = arith.constant 0 : i32
    return %arg0, %c0_i32 : i32, i32
  }
  func.func @transform_1(%arg0: i32) -> (i32, i32) {
    %c0_i32 = arith.constant 0 : i32
    %c0_i32_0 = arith.constant 0 : i32
    %c0_i32_1 = arith.constant 0 : i32
    return %c0_i32, %c0_i32_0 : i32, i32
  }
  func.func @transform_2(%arg0: i32) -> (i32, i32) {
    %c0_i32 = arith.constant 0 : i32
    %c0_i32_0 = arith.constant 0 : i32
    %c0_i32_1 = arith.constant 0 : i32
    return %c0_i32, %c0_i32_0 : i32, i32
  }
  func.func @transform_3(%arg0: i32) -> (i32, i32) {
    %c0_i32 = arith.constant 0 : i32
    %c0_i32_0 = arith.constant 0 : i32
    %c0_i32_1 = arith.constant 0 : i32
    return %c0_i32, %c0_i32_0 : i32, i32
  }
  func.func @transform_4(%arg0: i32) -> (i32, i32) {
    %c0_i32 = arith.constant 0 : i32
    %c0_i32_0 = arith.constant 0 : i32
    %c0_i32_1 = arith.constant 0 : i32
    return %c0_i32, %c0_i32_0 : i32, i32
  }
  func.func @transform_5(%arg0: i32) -> (i32, i32) {
    %c0_i32 = arith.constant 0 : i32
    %c0_i32_0 = arith.constant 0 : i32
    return %arg0, %c0_i32 : i32, i32
  }
  func.func @transform_6(%arg0: i32) -> (i32, i32, i32) {
    %c0_i32 = arith.constant 0 : i32
    %c0_i32_0 = arith.constant 0 : i32
    %c0_i32_1 = arith.constant 0 : i32
    return %arg0, %c0_i32, %c0_i32_0 : i32, i32, i32
  }
  func.func @transform_7(%arg0: i32) -> (i32, i32, i32) {
    %c0_i32 = arith.constant 0 : i32
    %c0_i32_0 = arith.constant 0 : i32
    %c0_i32_1 = arith.constant 0 : i32
    return %arg0, %c0_i32, %c0_i32_0 : i32, i32, i32
  }
}

module attributes {stable_mosaic.version = 11 : i64} {
  func.func @kernel(%arg0: i32, %arg1: memref<1x16x16x128xbf16, #tpu.memory_space<vmem>>, %arg2: memref<1x128xf32, #tpu.memory_space<vmem>>, %arg3: memref<1x128xf32, #tpu.memory_space<vmem>>, %arg4: memref<1152x32xbf16, #tpu.memory_space<vmem>>, %arg5: memref<1x32xf32, #tpu.memory_space<vmem>>, %arg6: memref<1x256x32xbf16, #tpu.memory_space<vmem>>, %arg7: memref<1x1x32xf32, #tpu.memory_space<vmem>>, %arg8: memref<1x1x32xf32, #tpu.memory_space<vmem>>, %arg9: memref<18x18x128xf32, #tpu.memory_space<vmem>>) attributes {dimension_semantics = [#tpu.dimension_semantics<parallel>], iteration_bounds = array<i64: 2>, scalar_prefetch = 0 : i64, scratch_operands = 1 : i64, tpu.core_type = #tpu.core_type<tc>, window_params = [{transform_indices = @transform_0, window_bounds = array<i64: 1, 16, 16, 128>}, {pipeline_mode = #tpu.pipeline_mode<synchronous>, transform_indices = @transform_1, window_bounds = array<i64: 1, 128>}, {pipeline_mode = #tpu.pipeline_mode<synchronous>, transform_indices = @transform_2, window_bounds = array<i64: 1, 128>}, {pipeline_mode = #tpu.pipeline_mode<synchronous>, transform_indices = @transform_3, window_bounds = array<i64: 1152, 32>}, {pipeline_mode = #tpu.pipeline_mode<synchronous>, transform_indices = @transform_4, window_bounds = array<i64: 1, 32>}, {transform_indices = @transform_5, window_bounds = array<i64: 1, 256, 32>}, {transform_indices = @transform_6, window_bounds = array<i64: 1, 1, 32>}, {transform_indices = @transform_7, window_bounds = array<i64: 1, 1, 32>}]} {
    %cst = arith.constant 0.000000e+00 : f32
    %0 = vector.broadcast %cst : f32 to vector<18x18x128xf32>
    %c0 = arith.constant 0 : index
    %c0_0 = arith.constant 0 : index
    %c0_1 = arith.constant 0 : index
    %1 = vector.load %arg9[%c0, %c0_0, %c0_1] : memref<18x18x128xf32, #tpu.memory_space<vmem>>, vector<18x18x128xf32>
    tpu.vector_store %arg9[%c0, %c0_0, %c0_1], %0 {strides = array<i32>} : memref<18x18x128xf32, #tpu.memory_space<vmem>>, vector<18x18x128xf32>,
    %c0_2 = arith.constant 0 : index
    %c0_3 = arith.constant 0 : index
    %c0_4 = arith.constant 0 : index
    %c0_5 = arith.constant 0 : index
    %2 = vector.load %arg1[%c0_2, %c0_3, %c0_4, %c0_5] : memref<1x16x16x128xbf16, #tpu.memory_space<vmem>>, vector<1x16x16x128xbf16>
    %3 = vector.shape_cast %2 : vector<1x16x16x128xbf16> to vector<16x16x128xbf16>
    %4 = arith.extf %3 : vector<16x16x128xbf16> to vector<16x16x128xf32>
    %c0_6 = arith.constant 0 : index
    %c0_7 = arith.constant 0 : index
    %5 = vector.load %arg2[%c0_6, %c0_7] : memref<1x128xf32, #tpu.memory_space<vmem>>, vector<1x128xf32>
    %6 = vector.shape_cast %5 : vector<1x128xf32> to vector<1x1x128xf32>
    %7 = vector.broadcast %6 : vector<1x1x128xf32> to vector<16x16x128xf32>
    %8 = arith.mulf %4, %7 : vector<16x16x128xf32>
    %c0_8 = arith.constant 0 : index
    %c0_9 = arith.constant 0 : index
    %9 = vector.load %arg3[%c0_8, %c0_9] : memref<1x128xf32, #tpu.memory_space<vmem>>, vector<1x128xf32>
    %10 = vector.shape_cast %9 : vector<1x128xf32> to vector<1x1x128xf32>
    %11 = vector.broadcast %10 : vector<1x1x128xf32> to vector<16x16x128xf32>
    %12 = arith.addf %8, %11 : vector<16x16x128xf32>
    %cst_10 = arith.constant 0.000000e+00 : f32
    %13 = vector.broadcast %cst_10 : f32 to vector<16x16x128xf32>
    %14 = arith.maximumf %12, %13 : vector<16x16x128xf32>
    %c1 = arith.constant 1 : index
    %c1_11 = arith.constant 1 : index
    %c0_12 = arith.constant 0 : index
    %15 = vector.load %arg9[%c1, %c1_11, %c0_12] : memref<18x18x128xf32, #tpu.memory_space<vmem>>, vector<16x16x128xf32>
    tpu.vector_store %arg9[%c1, %c1_11, %c0_12], %14 {strides = array<i32>} : memref<18x18x128xf32, #tpu.memory_space<vmem>>, vector<16x16x128xf32>,
    %c0_13 = arith.constant 0 : index
    %c0_14 = arith.constant 0 : index
    %c0_15 = arith.constant 0 : index
    %16 = vector.load %arg9[%c0_13, %c0_14, %c0_15] : memref<18x18x128xf32, #tpu.memory_space<vmem>>, vector<16x16x128xf32>
    %17 = vector.shape_cast %16 : vector<16x16x128xf32> to vector<256x128xf32>
    %18 = arith.truncf %17 : vector<256x128xf32> to vector<256x128xbf16>
    %c0_16 = arith.constant 0 : index
    %c1_17 = arith.constant 1 : index
    %c0_18 = arith.constant 0 : index
    %19 = vector.load %arg9[%c0_16, %c1_17, %c0_18] : memref<18x18x128xf32, #tpu.memory_space<vmem>>, vector<16x16x128xf32>
    %20 = vector.shape_cast %19 : vector<16x16x128xf32> to vector<256x128xf32>
    %21 = arith.truncf %20 : vector<256x128xf32> to vector<256x128xbf16>
    %c0_19 = arith.constant 0 : index
    %c2 = arith.constant 2 : index
    %c0_20 = arith.constant 0 : index
    %22 = vector.load %arg9[%c0_19, %c2, %c0_20] : memref<18x18x128xf32, #tpu.memory_space<vmem>>, vector<16x16x128xf32>
    %23 = vector.shape_cast %22 : vector<16x16x128xf32> to vector<256x128xf32>
    %24 = arith.truncf %23 : vector<256x128xf32> to vector<256x128xbf16>
    %c1_21 = arith.constant 1 : index
    %c0_22 = arith.constant 0 : index
    %c0_23 = arith.constant 0 : index
    %25 = vector.load %arg9[%c1_21, %c0_22, %c0_23] : memref<18x18x128xf32, #tpu.memory_space<vmem>>, vector<16x16x128xf32>
    %26 = vector.shape_cast %25 : vector<16x16x128xf32> to vector<256x128xf32>
    %27 = arith.truncf %26 : vector<256x128xf32> to vector<256x128xbf16>
    %c1_24 = arith.constant 1 : index
    %c1_25 = arith.constant 1 : index
    %c0_26 = arith.constant 0 : index
    %28 = vector.load %arg9[%c1_24, %c1_25, %c0_26] : memref<18x18x128xf32, #tpu.memory_space<vmem>>, vector<16x16x128xf32>
    %29 = vector.shape_cast %28 : vector<16x16x128xf32> to vector<256x128xf32>
    %30 = arith.truncf %29 : vector<256x128xf32> to vector<256x128xbf16>
    %c1_27 = arith.constant 1 : index
    %c2_28 = arith.constant 2 : index
    %c0_29 = arith.constant 0 : index
    %31 = vector.load %arg9[%c1_27, %c2_28, %c0_29] : memref<18x18x128xf32, #tpu.memory_space<vmem>>, vector<16x16x128xf32>
    %32 = vector.shape_cast %31 : vector<16x16x128xf32> to vector<256x128xf32>
    %33 = arith.truncf %32 : vector<256x128xf32> to vector<256x128xbf16>
    %c2_30 = arith.constant 2 : index
    %c0_31 = arith.constant 0 : index
    %c0_32 = arith.constant 0 : index
    %34 = vector.load %arg9[%c2_30, %c0_31, %c0_32] : memref<18x18x128xf32, #tpu.memory_space<vmem>>, vector<16x16x128xf32>
    %35 = vector.shape_cast %34 : vector<16x16x128xf32> to vector<256x128xf32>
    %36 = arith.truncf %35 : vector<256x128xf32> to vector<256x128xbf16>
    %c2_33 = arith.constant 2 : index
    %c1_34 = arith.constant 1 : index
    %c0_35 = arith.constant 0 : index
    %37 = vector.load %arg9[%c2_33, %c1_34, %c0_35] : memref<18x18x128xf32, #tpu.memory_space<vmem>>, vector<16x16x128xf32>
    %38 = vector.shape_cast %37 : vector<16x16x128xf32> to vector<256x128xf32>
    %39 = arith.truncf %38 : vector<256x128xf32> to vector<256x128xbf16>
    %c2_36 = arith.constant 2 : index
    %c2_37 = arith.constant 2 : index
    %c0_38 = arith.constant 0 : index
    %40 = vector.load %arg9[%c2_36, %c2_37, %c0_38] : memref<18x18x128xf32, #tpu.memory_space<vmem>>, vector<16x16x128xf32>
    %41 = vector.shape_cast %40 : vector<16x16x128xf32> to vector<256x128xf32>
    %42 = arith.truncf %41 : vector<256x128xf32> to vector<256x128xbf16>
    %43 = tpu.concatenate %18, %21, %24, %27, %30, %33, %36, %39, %42 in 1 : vector<256x128xbf16>, vector<256x128xbf16>, vector<256x128xbf16>, vector<256x128xbf16>, vector<256x128xbf16>, vector<256x128xbf16>, vector<256x128xbf16>, vector<256x128xbf16>, vector<256x128xbf16> -> vector<256x1152xbf16>
    %c0_39 = arith.constant 0 : index
    %c0_40 = arith.constant 0 : index
    %44 = vector.load %arg4[%c0_39, %c0_40] : memref<1152x32xbf16, #tpu.memory_space<vmem>>, vector<1152x32xbf16>
    %cst_41 = arith.constant dense<0.000000e+00> : vector<256x32xf32>
    %45 = tpu.matmul %43, %44, %cst_41 {dimension_numbers = #tpu.dot_dimension_numbers<[1], [0], [0], [1], [0, 0, 1, 1], [], []>} : vector<256x1152xbf16>, vector<1152x32xbf16>, vector<256x32xf32> -> vector<256x32xf32>
    %c0_42 = arith.constant 0 : index
    %c0_43 = arith.constant 0 : index
    %46 = vector.load %arg5[%c0_42, %c0_43] : memref<1x32xf32, #tpu.memory_space<vmem>>, vector<1x32xf32>
    %47 = vector.broadcast %46 : vector<1x32xf32> to vector<256x32xf32>
    %48 = arith.addf %45, %47 : vector<256x32xf32>
    %cst_44 = arith.constant dense<0.000000e+00> : vector<32xf32>
    %49 = vector.multi_reduction <add>, %48, %cst_44 [0] : vector<256x32xf32> to vector<32xf32>
    %50 = vector.shape_cast %49 : vector<32xf32> to vector<1x32xf32>
    %c0_45 = arith.constant 0 : index
    %c0_46 = arith.constant 0 : index
    %c0_47 = arith.constant 0 : index
    %51 = vector.load %arg7[%c0_45, %c0_46, %c0_47] : memref<1x1x32xf32, #tpu.memory_space<vmem>>, vector<1x1x32xf32>
    %52 = vector.shape_cast %51 : vector<1x1x32xf32> to vector<1x32xf32>
    %53 = vector.shape_cast %50 : vector<1x32xf32> to vector<1x1x32xf32>
    tpu.vector_store %arg7[%c0_45, %c0_46, %c0_47], %53 {strides = array<i32>} : memref<1x1x32xf32, #tpu.memory_space<vmem>>, vector<1x1x32xf32>,
    %54 = arith.mulf %48, %48 : vector<256x32xf32>
    %cst_48 = arith.constant dense<0.000000e+00> : vector<32xf32>
    %55 = vector.multi_reduction <add>, %54, %cst_48 [0] : vector<256x32xf32> to vector<32xf32>
    %56 = vector.shape_cast %55 : vector<32xf32> to vector<1x32xf32>
    %c0_49 = arith.constant 0 : index
    %c0_50 = arith.constant 0 : index
    %c0_51 = arith.constant 0 : index
    %57 = vector.load %arg8[%c0_49, %c0_50, %c0_51] : memref<1x1x32xf32, #tpu.memory_space<vmem>>, vector<1x1x32xf32>
    %58 = vector.shape_cast %57 : vector<1x1x32xf32> to vector<1x32xf32>
    %59 = vector.shape_cast %56 : vector<1x32xf32> to vector<1x1x32xf32>
    tpu.vector_store %arg8[%c0_49, %c0_50, %c0_51], %59 {strides = array<i32>} : memref<1x1x32xf32, #tpu.memory_space<vmem>>, vector<1x1x32xf32>,
    %60 = arith.truncf %48 : vector<256x32xf32> to vector<256x32xbf16>
    %c0_52 = arith.constant 0 : index
    %c0_53 = arith.constant 0 : index
    %c0_54 = arith.constant 0 : index
    %61 = vector.load %arg6[%c0_52, %c0_53, %c0_54] : memref<1x256x32xbf16, #tpu.memory_space<vmem>>, vector<1x256x32xbf16>
    %62 = vector.shape_cast %61 : vector<1x256x32xbf16> to vector<256x32xbf16>
    %63 = vector.shape_cast %60 : vector<256x32xbf16> to vector<1x256x32xbf16>
    tpu.vector_store %arg6[%c0_52, %c0_53, %c0_54], %63 {strides = array<i32>} : memref<1x256x32xbf16, #tpu.memory_space<vmem>>, vector<1x256x32xbf16>,
    return
  }
  func.func @transform_0(%arg0: i32) -> (i32, i32, i32, i32) {
    %c0_i32 = arith.constant 0 : i32
    %c0_i32_0 = arith.constant 0 : i32
    %c0_i32_1 = arith.constant 0 : i32
    %c0_i32_2 = arith.constant 0 : i32
    return %arg0, %c0_i32, %c0_i32_0, %c0_i32_1 : i32, i32, i32, i32
  }
  func.func @transform_1(%arg0: i32) -> (i32, i32) {
    %c0_i32 = arith.constant 0 : i32
    %c0_i32_0 = arith.constant 0 : i32
    %c0_i32_1 = arith.constant 0 : i32
    return %c0_i32, %c0_i32_0 : i32, i32
  }
  func.func @transform_2(%arg0: i32) -> (i32, i32) {
    %c0_i32 = arith.constant 0 : i32
    %c0_i32_0 = arith.constant 0 : i32
    %c0_i32_1 = arith.constant 0 : i32
    return %c0_i32, %c0_i32_0 : i32, i32
  }
  func.func @transform_3(%arg0: i32) -> (i32, i32) {
    %c0_i32 = arith.constant 0 : i32
    %c0_i32_0 = arith.constant 0 : i32
    %c0_i32_1 = arith.constant 0 : i32
    return %c0_i32, %c0_i32_0 : i32, i32
  }
  func.func @transform_4(%arg0: i32) -> (i32, i32) {
    %c0_i32 = arith.constant 0 : i32
    %c0_i32_0 = arith.constant 0 : i32
    %c0_i32_1 = arith.constant 0 : i32
    return %c0_i32, %c0_i32_0 : i32, i32
  }
  func.func @transform_5(%arg0: i32) -> (i32, i32, i32) {
    %c0_i32 = arith.constant 0 : i32
    %c0_i32_0 = arith.constant 0 : i32
    %c0_i32_1 = arith.constant 0 : i32
    return %arg0, %c0_i32, %c0_i32_0 : i32, i32, i32
  }
  func.func @transform_6(%arg0: i32) -> (i32, i32, i32) {
    %c0_i32 = arith.constant 0 : i32
    %c0_i32_0 = arith.constant 0 : i32
    %c0_i32_1 = arith.constant 0 : i32
    return %arg0, %c0_i32, %c0_i32_0 : i32, i32, i32
  }
  func.func @transform_7(%arg0: i32) -> (i32, i32, i32) {
    %c0_i32 = arith.constant 0 : i32
    %c0_i32_0 = arith.constant 0 : i32
    %c0_i32_1 = arith.constant 0 : i32
    return %arg0, %c0_i32, %c0_i32_0 : i32, i32, i32
  }
}

module attributes {stable_mosaic.version = 11 : i64} {
  func.func @kernel(%arg0: i32, %arg1: memref<1x16x16x128xbf16, #tpu.memory_space<vmem>>, %arg2: memref<1x128xf32, #tpu.memory_space<vmem>>, %arg3: memref<1x128xf32, #tpu.memory_space<vmem>>, %arg4: memref<1152x32xbf16, #tpu.memory_space<vmem>>, %arg5: memref<1x32xf32, #tpu.memory_space<vmem>>, %arg6: memref<1x256x32xbf16, #tpu.memory_space<vmem>>, %arg7: memref<1x1x32xf32, #tpu.memory_space<vmem>>, %arg8: memref<1x1x32xf32, #tpu.memory_space<vmem>>, %arg9: memref<18x18x128xf32, #tpu.memory_space<vmem>>) attributes {dimension_semantics = [#tpu.dimension_semantics<parallel>], iteration_bounds = array<i64: 2>, scalar_prefetch = 0 : i64, scratch_operands = 1 : i64, tpu.core_type = #tpu.core_type<tc>, window_params = [{transform_indices = @transform_0, window_bounds = array<i64: 1, 16, 16, 128>}, {pipeline_mode = #tpu.pipeline_mode<synchronous>, transform_indices = @transform_1, window_bounds = array<i64: 1, 128>}, {pipeline_mode = #tpu.pipeline_mode<synchronous>, transform_indices = @transform_2, window_bounds = array<i64: 1, 128>}, {pipeline_mode = #tpu.pipeline_mode<synchronous>, transform_indices = @transform_3, window_bounds = array<i64: 1152, 32>}, {pipeline_mode = #tpu.pipeline_mode<synchronous>, transform_indices = @transform_4, window_bounds = array<i64: 1, 32>}, {transform_indices = @transform_5, window_bounds = array<i64: 1, 256, 32>}, {transform_indices = @transform_6, window_bounds = array<i64: 1, 1, 32>}, {transform_indices = @transform_7, window_bounds = array<i64: 1, 1, 32>}]} {
    %cst = arith.constant 0.000000e+00 : f32
    %0 = vector.broadcast %cst : f32 to vector<18x18x128xf32>
    %c0 = arith.constant 0 : index
    %c0_0 = arith.constant 0 : index
    %c0_1 = arith.constant 0 : index
    %1 = vector.load %arg9[%c0, %c0_0, %c0_1] : memref<18x18x128xf32, #tpu.memory_space<vmem>>, vector<18x18x128xf32>
    tpu.vector_store %arg9[%c0, %c0_0, %c0_1], %0 {strides = array<i32>} : memref<18x18x128xf32, #tpu.memory_space<vmem>>, vector<18x18x128xf32>,
    %c0_2 = arith.constant 0 : index
    %c0_3 = arith.constant 0 : index
    %c0_4 = arith.constant 0 : index
    %c0_5 = arith.constant 0 : index
    %2 = vector.load %arg1[%c0_2, %c0_3, %c0_4, %c0_5] : memref<1x16x16x128xbf16, #tpu.memory_space<vmem>>, vector<1x16x16x128xbf16>
    %3 = vector.shape_cast %2 : vector<1x16x16x128xbf16> to vector<16x16x128xbf16>
    %4 = arith.extf %3 : vector<16x16x128xbf16> to vector<16x16x128xf32>
    %c0_6 = arith.constant 0 : index
    %c0_7 = arith.constant 0 : index
    %5 = vector.load %arg2[%c0_6, %c0_7] : memref<1x128xf32, #tpu.memory_space<vmem>>, vector<1x128xf32>
    %6 = vector.shape_cast %5 : vector<1x128xf32> to vector<1x1x128xf32>
    %7 = vector.broadcast %6 : vector<1x1x128xf32> to vector<16x16x128xf32>
    %8 = arith.mulf %4, %7 : vector<16x16x128xf32>
    %c0_8 = arith.constant 0 : index
    %c0_9 = arith.constant 0 : index
    %9 = vector.load %arg3[%c0_8, %c0_9] : memref<1x128xf32, #tpu.memory_space<vmem>>, vector<1x128xf32>
    %10 = vector.shape_cast %9 : vector<1x128xf32> to vector<1x1x128xf32>
    %11 = vector.broadcast %10 : vector<1x1x128xf32> to vector<16x16x128xf32>
    %12 = arith.addf %8, %11 : vector<16x16x128xf32>
    %cst_10 = arith.constant 0.000000e+00 : f32
    %13 = vector.broadcast %cst_10 : f32 to vector<16x16x128xf32>
    %14 = arith.maximumf %12, %13 : vector<16x16x128xf32>
    %c1 = arith.constant 1 : index
    %c1_11 = arith.constant 1 : index
    %c0_12 = arith.constant 0 : index
    %15 = vector.load %arg9[%c1, %c1_11, %c0_12] : memref<18x18x128xf32, #tpu.memory_space<vmem>>, vector<16x16x128xf32>
    tpu.vector_store %arg9[%c1, %c1_11, %c0_12], %14 {strides = array<i32>} : memref<18x18x128xf32, #tpu.memory_space<vmem>>, vector<16x16x128xf32>,
    %c0_13 = arith.constant 0 : index
    %c0_14 = arith.constant 0 : index
    %c0_15 = arith.constant 0 : index
    %16 = vector.load %arg9[%c0_13, %c0_14, %c0_15] : memref<18x18x128xf32, #tpu.memory_space<vmem>>, vector<16x16x128xf32>
    %17 = vector.shape_cast %16 : vector<16x16x128xf32> to vector<256x128xf32>
    %18 = arith.truncf %17 : vector<256x128xf32> to vector<256x128xbf16>
    %c0_16 = arith.constant 0 : index
    %c1_17 = arith.constant 1 : index
    %c0_18 = arith.constant 0 : index
    %19 = vector.load %arg9[%c0_16, %c1_17, %c0_18] : memref<18x18x128xf32, #tpu.memory_space<vmem>>, vector<16x16x128xf32>
    %20 = vector.shape_cast %19 : vector<16x16x128xf32> to vector<256x128xf32>
    %21 = arith.truncf %20 : vector<256x128xf32> to vector<256x128xbf16>
    %c0_19 = arith.constant 0 : index
    %c2 = arith.constant 2 : index
    %c0_20 = arith.constant 0 : index
    %22 = vector.load %arg9[%c0_19, %c2, %c0_20] : memref<18x18x128xf32, #tpu.memory_space<vmem>>, vector<16x16x128xf32>
    %23 = vector.shape_cast %22 : vector<16x16x128xf32> to vector<256x128xf32>
    %24 = arith.truncf %23 : vector<256x128xf32> to vector<256x128xbf16>
    %c1_21 = arith.constant 1 : index
    %c0_22 = arith.constant 0 : index
    %c0_23 = arith.constant 0 : index
    %25 = vector.load %arg9[%c1_21, %c0_22, %c0_23] : memref<18x18x128xf32, #tpu.memory_space<vmem>>, vector<16x16x128xf32>
    %26 = vector.shape_cast %25 : vector<16x16x128xf32> to vector<256x128xf32>
    %27 = arith.truncf %26 : vector<256x128xf32> to vector<256x128xbf16>
    %c1_24 = arith.constant 1 : index
    %c1_25 = arith.constant 1 : index
    %c0_26 = arith.constant 0 : index
    %28 = vector.load %arg9[%c1_24, %c1_25, %c0_26] : memref<18x18x128xf32, #tpu.memory_space<vmem>>, vector<16x16x128xf32>
    %29 = vector.shape_cast %28 : vector<16x16x128xf32> to vector<256x128xf32>
    %30 = arith.truncf %29 : vector<256x128xf32> to vector<256x128xbf16>
    %c1_27 = arith.constant 1 : index
    %c2_28 = arith.constant 2 : index
    %c0_29 = arith.constant 0 : index
    %31 = vector.load %arg9[%c1_27, %c2_28, %c0_29] : memref<18x18x128xf32, #tpu.memory_space<vmem>>, vector<16x16x128xf32>
    %32 = vector.shape_cast %31 : vector<16x16x128xf32> to vector<256x128xf32>
    %33 = arith.truncf %32 : vector<256x128xf32> to vector<256x128xbf16>
    %c2_30 = arith.constant 2 : index
    %c0_31 = arith.constant 0 : index
    %c0_32 = arith.constant 0 : index
    %34 = vector.load %arg9[%c2_30, %c0_31, %c0_32] : memref<18x18x128xf32, #tpu.memory_space<vmem>>, vector<16x16x128xf32>
    %35 = vector.shape_cast %34 : vector<16x16x128xf32> to vector<256x128xf32>
    %36 = arith.truncf %35 : vector<256x128xf32> to vector<256x128xbf16>
    %c2_33 = arith.constant 2 : index
    %c1_34 = arith.constant 1 : index
    %c0_35 = arith.constant 0 : index
    %37 = vector.load %arg9[%c2_33, %c1_34, %c0_35] : memref<18x18x128xf32, #tpu.memory_space<vmem>>, vector<16x16x128xf32>
    %38 = vector.shape_cast %37 : vector<16x16x128xf32> to vector<256x128xf32>
    %39 = arith.truncf %38 : vector<256x128xf32> to vector<256x128xbf16>
    %c2_36 = arith.constant 2 : index
    %c2_37 = arith.constant 2 : index
    %c0_38 = arith.constant 0 : index
    %40 = vector.load %arg9[%c2_36, %c2_37, %c0_38] : memref<18x18x128xf32, #tpu.memory_space<vmem>>, vector<16x16x128xf32>
    %41 = vector.shape_cast %40 : vector<16x16x128xf32> to vector<256x128xf32>
    %42 = arith.truncf %41 : vector<256x128xf32> to vector<256x128xbf16>
    %43 = tpu.concatenate %18, %21, %24, %27, %30, %33, %36, %39, %42 in 1 : vector<256x128xbf16>, vector<256x128xbf16>, vector<256x128xbf16>, vector<256x128xbf16>, vector<256x128xbf16>, vector<256x128xbf16>, vector<256x128xbf16>, vector<256x128xbf16>, vector<256x128xbf16> -> vector<256x1152xbf16>
    %c0_39 = arith.constant 0 : index
    %c0_40 = arith.constant 0 : index
    %44 = vector.load %arg4[%c0_39, %c0_40] : memref<1152x32xbf16, #tpu.memory_space<vmem>>, vector<1152x32xbf16>
    %cst_41 = arith.constant dense<0.000000e+00> : vector<256x32xf32>
    %45 = tpu.matmul %43, %44, %cst_41 {dimension_numbers = #tpu.dot_dimension_numbers<[1], [0], [0], [1], [0, 0, 1, 1], [], []>} : vector<256x1152xbf16>, vector<1152x32xbf16>, vector<256x32xf32> -> vector<256x32xf32>
    %c0_42 = arith.constant 0 : index
    %c0_43 = arith.constant 0 : index
    %46 = vector.load %arg5[%c0_42, %c0_43] : memref<1x32xf32, #tpu.memory_space<vmem>>, vector<1x32xf32>
    %47 = vector.broadcast %46 : vector<1x32xf32> to vector<256x32xf32>
    %48 = arith.addf %45, %47 : vector<256x32xf32>
    %cst_44 = arith.constant dense<0.000000e+00> : vector<32xf32>
    %49 = vector.multi_reduction <add>, %48, %cst_44 [0] : vector<256x32xf32> to vector<32xf32>
    %50 = vector.shape_cast %49 : vector<32xf32> to vector<1x32xf32>
    %c0_45 = arith.constant 0 : index
    %c0_46 = arith.constant 0 : index
    %c0_47 = arith.constant 0 : index
    %51 = vector.load %arg7[%c0_45, %c0_46, %c0_47] : memref<1x1x32xf32, #tpu.memory_space<vmem>>, vector<1x1x32xf32>
    %52 = vector.shape_cast %51 : vector<1x1x32xf32> to vector<1x32xf32>
    %53 = vector.shape_cast %50 : vector<1x32xf32> to vector<1x1x32xf32>
    tpu.vector_store %arg7[%c0_45, %c0_46, %c0_47], %53 {strides = array<i32>} : memref<1x1x32xf32, #tpu.memory_space<vmem>>, vector<1x1x32xf32>,
    %54 = arith.mulf %48, %48 : vector<256x32xf32>
    %cst_48 = arith.constant dense<0.000000e+00> : vector<32xf32>
    %55 = vector.multi_reduction <add>, %54, %cst_48 [0] : vector<256x32xf32> to vector<32xf32>
    %56 = vector.shape_cast %55 : vector<32xf32> to vector<1x32xf32>
    %c0_49 = arith.constant 0 : index
    %c0_50 = arith.constant 0 : index
    %c0_51 = arith.constant 0 : index
    %57 = vector.load %arg8[%c0_49, %c0_50, %c0_51] : memref<1x1x32xf32, #tpu.memory_space<vmem>>, vector<1x1x32xf32>
    %58 = vector.shape_cast %57 : vector<1x1x32xf32> to vector<1x32xf32>
    %59 = vector.shape_cast %56 : vector<1x32xf32> to vector<1x1x32xf32>
    tpu.vector_store %arg8[%c0_49, %c0_50, %c0_51], %59 {strides = array<i32>} : memref<1x1x32xf32, #tpu.memory_space<vmem>>, vector<1x1x32xf32>,
    %60 = arith.truncf %48 : vector<256x32xf32> to vector<256x32xbf16>
    %c0_52 = arith.constant 0 : index
    %c0_53 = arith.constant 0 : index
    %c0_54 = arith.constant 0 : index
    %61 = vector.load %arg6[%c0_52, %c0_53, %c0_54] : memref<1x256x32xbf16, #tpu.memory_space<vmem>>, vector<1x256x32xbf16>
    %62 = vector.shape_cast %61 : vector<1x256x32xbf16> to vector<256x32xbf16>
    %63 = vector.shape_cast %60 : vector<256x32xbf16> to vector<1x256x32xbf16>
    tpu.vector_store %arg6[%c0_52, %c0_53, %c0_54], %63 {strides = array<i32>} : memref<1x256x32xbf16, #tpu.memory_space<vmem>>, vector<1x256x32xbf16>,
    return
  }
  func.func @transform_0(%arg0: i32) -> (i32, i32, i32, i32) {
    %c0_i32 = arith.constant 0 : i32
    %c0_i32_0 = arith.constant 0 : i32
    %c0_i32_1 = arith.constant 0 : i32
    %c0_i32_2 = arith.constant 0 : i32
    return %arg0, %c0_i32, %c0_i32_0, %c0_i32_1 : i32, i32, i32, i32
  }
  func.func @transform_1(%arg0: i32) -> (i32, i32) {
    %c0_i32 = arith.constant 0 : i32
    %c0_i32_0 = arith.constant 0 : i32
    %c0_i32_1 = arith.constant 0 : i32
    return %c0_i32, %c0_i32_0 : i32, i32
  }
  func.func @transform_2(%arg0: i32) -> (i32, i32) {
    %c0_i32 = arith.constant 0 : i32
    %c0_i32_0 = arith.constant 0 : i32
    %c0_i32_1 = arith.constant 0 : i32
    return %c0_i32, %c0_i32_0 : i32, i32
  }
  func.func @transform_3(%arg0: i32) -> (i32, i32) {
    %c0_i32 = arith.constant 0 : i32
    %c0_i32_0 = arith.constant 0 : i32
    %c0_i32_1 = arith.constant 0 : i32
    return %c0_i32, %c0_i32_0 : i32, i32
  }
  func.func @transform_4(%arg0: i32) -> (i32, i32) {
    %c0_i32 = arith.constant 0 : i32
    %c0_i32_0 = arith.constant 0 : i32
    %c0_i32_1 = arith.constant 0 : i32
    return %c0_i32, %c0_i32_0 : i32, i32
  }
  func.func @transform_5(%arg0: i32) -> (i32, i32, i32) {
    %c0_i32 = arith.constant 0 : i32
    %c0_i32_0 = arith.constant 0 : i32
    %c0_i32_1 = arith.constant 0 : i32
    return %arg0, %c0_i32, %c0_i32_0 : i32, i32, i32
  }
  func.func @transform_6(%arg0: i32) -> (i32, i32, i32) {
    %c0_i32 = arith.constant 0 : i32
    %c0_i32_0 = arith.constant 0 : i32
    %c0_i32_1 = arith.constant 0 : i32
    return %arg0, %c0_i32, %c0_i32_0 : i32, i32, i32
  }
  func.func @transform_7(%arg0: i32) -> (i32, i32, i32) {
    %c0_i32 = arith.constant 0 : i32
    %c0_i32_0 = arith.constant 0 : i32
    %c0_i32_1 = arith.constant 0 : i32
    return %arg0, %c0_i32, %c0_i32_0 : i32, i32, i32
  }
}

</mosaic_0001>

<llo_original>
// kernel: dense_block_forward.4
$region0: #{dense_block_forward.4}
  #allocation0 [shape = 'u32[]', space=smem, size = 0x4, offset = 0x4, fixed_abs, tag = 'smem constant byte address 0x4 - core index']
  #allocation1 [shape = 'u32[144,128]{1,0:T(1,128)}', space=vmem, size = 0x12000, scoped, tag = 'internal scratch']
  %s0 = inlined_call_operand.vmem [shape: bf16[512,68], index: 0, kind: input, shape index: {}]
  %s1 = inlined_call_operand.vmem [shape: f32[1,68], index: 1, kind: input, shape index: {}]
  %s2 = inlined_call_operand.vmem [shape: f32[1,68], index: 2, kind: input, shape index: {}]
  %s3 = inlined_call_operand.vmem [shape: bf16[68,128], index: 3, kind: input, shape index: {}]
  %s4 = inlined_call_operand.vmem [shape: f32[1,128], index: 4, kind: input, shape index: {}]
  %s5 = inlined_call_operand.vmem [shape: bf16[512,128], index: 5, kind: output, shape index: {0}]
  %s6 = inlined_call_operand.vmem [shape: f32[4,1,128], index: 6, kind: output, shape index: {1}]
  %s7 = inlined_call_operand.vmem [shape: f32[4,1,128], index: 7, kind: output, shape index: {2}]
  %8 = xla_tuple %s5, %s6, %s7
  %s9 = sld [smem:[#allocation0]]
  $region69: #{dense_block_forward.4} parent=0
    _
  %s11 = ssub.s32 1, %s9
  %s12 = scalar_select 0, %s11, %s9
  loop: start=0, step=1, limit=6
  $region2: #{dense_block_forward.4} parent=0 // loop_pre_header
    _
  $region3: #{dense_block_forward.4} parent=0 // loop_header
    %s14 = sphi 0, %s18
    %p15 = scmp.ge.s32.totalorder %s14, 6
    %s24 = sphi 0, %s26
    %s27 = sphi 0, %s24
    %s28 = sphi 0, %s27
    %s44 = sphi 0, %s28
    %s48 = sphi 0, %s48
    %s50 = sphi 0, %s48
    %s51 = sphi 0, %s50
    %s65 = sphi 0, %s51
    %s69 = sphi 0, %s69
    %s71 = sphi 0, %s69
    %s72 = sphi 0, %s71
    %s86 = sphi 0, %s72
    %s90 = sphi 0, %s90
    %s92 = sphi 0, %s90
    %s93 = sphi 0, %s92
    %s107 = sphi 0, %s93
    %s111 = sphi 0, %s111
    %s113 = sphi 0, %s111
    %s114 = sphi 0, %s113
    %s128 = sphi 0, %s114
    %s134 = sphi 0, %s136
    %s137 = sphi 0, %s134
    %s138 = sphi 0, %s137
    %s154 = sphi 0, %s138
    %s160 = sphi 0, %s162
    %s163 = sphi 0, %s160
    %s164 = sphi 0, %s163
    %s180 = sphi 0, %s164
    %s186 = sphi 0, %s188
    %s189 = sphi 0, %s186
    %s190 = sphi 0, %s189
    %s206 = sphi 0, %s190
  $region4: #{dense_block_forward.4} parent=0 // loop_header_branch
    %17 = sbr.rel (%p15) target = $region8
  $region5: #{dense_block_forward.4} parent=0 // loop_body
    %s19 = ssub.s32 %s14, 1
    %s20 = ssub.s32 %s14, 2
    %s21 = sadd.s32 %s14, 1
    %s22 = ssub.s32 %s14, %s21
    %p23 = scmp.eq.s32.totalorder %s22, 0
    %s25 = sadd.s32 %s24, 1
    %s26 = scalar_select %p23, %s24, %s25
    %p29 = pneg %p23
    %p30 = scmp.eq.s32.totalorder %s14, 3
    %p31 = por %p29, %p30
    %p32 = scmp.ne.s32.totalorder %s24, %s27
    %p33 = scmp.eq.s32.totalorder %s14, 0
    %p34 = por %p32, %p33
    %p35 = scmp.ne.s32.totalorder %s24, %s27
    %p36 = scmp.eq.s32.totalorder %s19, 3
    %p37 = por %p35, %p36
    %p38 = scmp.ne.s32.totalorder %s27, %s28
    %p39 = scmp.eq.s32.totalorder %s19, 0
    %p40 = por %p38, %p39
    %p41 = scmp.ne.s32.totalorder %s27, %s28
    %p42 = scmp.eq.s32.totalorder %s20, 3
    %p43 = por %p41, %p42
    %p45 = scmp.ne.s32.totalorder %s28, %s44
    %p46 = scmp.eq.s32.totalorder %s20, 0
    %p47 = por %p45, %p46
    %s49 = sadd.s32 %s48, 1
    %p52 = scmp.eq.s32.totalorder %s14, 3
    %p53 = scmp.ne.s32.totalorder %s48, %s50
    %p54 = scmp.eq.s32.totalorder %s14, 0
    %p55 = por %p53, %p54
    %p56 = scmp.ne.s32.totalorder %s48, %s50
    %p57 = scmp.eq.s32.totalorder %s19, 3
    %p58 = por %p56, %p57
    %p59 = scmp.ne.s32.totalorder %s50, %s51
    %p60 = scmp.eq.s32.totalorder %s19, 0
    %p61 = por %p59, %p60
    %p62 = scmp.ne.s32.totalorder %s50, %s51
    %p63 = scmp.eq.s32.totalorder %s20, 3
    %p64 = por %p62, %p63
    %p66 = scmp.ne.s32.totalorder %s51, %s65
    %p67 = scmp.eq.s32.totalorder %s20, 0
    %p68 = por %p66, %p67
    %s70 = sadd.s32 %s69, 1
    %p73 = scmp.eq.s32.totalorder %s14, 3
    %p74 = scmp.ne.s32.totalorder %s69, %s71
    %p75 = scmp.eq.s32.totalorder %s14, 0
    %p76 = por %p74, %p75
    %p77 = scmp.ne.s32.totalorder %s69, %s71
    %p78 = scmp.eq.s32.totalorder %s19, 3
    %p79 = por %p77, %p78
    %p80 = scmp.ne.s32.totalorder %s71, %s72
    %p81 = scmp.eq.s32.totalorder %s19, 0
    %p82 = por %p80, %p81
    %p83 = scmp.ne.s32.totalorder %s71, %s72
    %p84 = scmp.eq.s32.totalorder %s20, 3
    %p85 = por %p83, %p84
    %p87 = scmp.ne.s32.totalorder %s72, %s86
    %p88 = scmp.eq.s32.totalorder %s20, 0
    %p89 = por %p87, %p88
    %s91 = sadd.s32 %s90, 1
    %p94 = scmp.eq.s32.totalorder %s14, 3
    %p95 = scmp.ne.s32.totalorder %s90, %s92
    %p96 = scmp.eq.s32.totalorder %s14, 0
    %p97 = por %p95, %p96
    %p98 = scmp.ne.s32.totalorder %s90, %s92
    %p99 = scmp.eq.s32.totalorder %s19, 3
    %p100 = por %p98, %p99
    %p101 = scmp.ne.s32.totalorder %s92, %s93
    %p102 = scmp.eq.s32.totalorder %s19, 0
    %p103 = por %p101, %p102
    %p104 = scmp.ne.s32.totalorder %s92, %s93
    %p105 = scmp.eq.s32.totalorder %s20, 3
    %p106 = por %p104, %p105
    %p108 = scmp.ne.s32.totalorder %s93, %s107
    %p109 = scmp.eq.s32.totalorder %s20, 0
    %p110 = por %p108, %p109
    %s112 = sadd.s32 %s111, 1
    %p115 = scmp.eq.s32.totalorder %s14, 3
    %p116 = scmp.ne.s32.totalorder %s111, %s113
    %p117 = scmp.eq.s32.totalorder %s14, 0
    %p118 = por %p116, %p117
    %p119 = scmp.ne.s32.totalorder %s111, %s113
    %p120 = scmp.eq.s32.totalorder %s19, 3
    %p121 = por %p119, %p120
    %p122 = scmp.ne.s32.totalorder %s113, %s114
    %p123 = scmp.eq.s32.totalorder %s19, 0
    %p124 = por %p122, %p123
    %p125 = scmp.ne.s32.totalorder %s113, %s114
    %p126 = scmp.eq.s32.totalorder %s20, 3
    %p127 = por %p125, %p126
    %p129 = scmp.ne.s32.totalorder %s114, %s128
    %p130 = scmp.eq.s32.totalorder %s20, 0
    %p131 = por %p129, %p130
    %s132 = ssub.s32 %s14, %s21
    %p133 = scmp.eq.s32.totalorder %s132, 0
    %s135 = sadd.s32 %s134, 1
    %s136 = scalar_select %p133, %s134, %s135
    %p139 = pneg %p133
    %p140 = scmp.eq.s32.totalorder %s14, 3
    %p141 = por %p139, %p140
    %p142 = scmp.ne.s32.totalorder %s134, %s137
    %p143 = scmp.eq.s32.totalorder %s14, 0
    %p144 = por %p142, %p143
    %p145 = scmp.ne.s32.totalorder %s134, %s137
    %p146 = scmp.eq.s32.totalorder %s19, 3
    %p147 = por %p145, %p146
    %p148 = scmp.ne.s32.totalorder %s137, %s138
    %p149 = scmp.eq.s32.totalorder %s19, 0
    %p150 = por %p148, %p149
    %p151 = scmp.ne.s32.totalorder %s137, %s138
    %p152 = scmp.eq.s32.totalorder %s20, 3
    %p153 = por %p151, %p152
    %p155 = scmp.ne.s32.totalorder %s138, %s154
    %p156 = scmp.eq.s32.totalorder %s20, 0
    %p157 = por %p155, %p156
    %s158 = ssub.s32 %s14, %s21
    %p159 = scmp.eq.s32.totalorder %s158, 0
    %s161 = sadd.s32 %s160, 1
    %s162 = scalar_select %p159, %s160, %s161
    %p165 = pneg %p159
    %p166 = scmp.eq.s32.totalorder %s14, 3
    %p167 = por %p165, %p166
    %p168 = scmp.ne.s32.totalorder %s160, %s163
    %p169 = scmp.eq.s32.totalorder %s14, 0
    %p170 = por %p168, %p169
    %p171 = scmp.ne.s32.totalorder %s160, %s163
    %p172 = scmp.eq.s32.totalorder %s19, 3
    %p173 = por %p171, %p172
    %p174 = scmp.ne.s32.totalorder %s163, %s164
    %p175 = scmp.eq.s32.totalorder %s19, 0
    %p176 = por %p174, %p175
    %p177 = scmp.ne.s32.totalorder %s163, %s164
    %p178 = scmp.eq.s32.totalorder %s20, 3
    %p179 = por %p177, %p178
    %p181 = scmp.ne.s32.totalorder %s164, %s180
    %p182 = scmp.eq.s32.totalorder %s20, 0
    %p183 = por %p181, %p182
    %s184 = ssub.s32 %s14, %s21
    %p185 = scmp.eq.s32.totalorder %s184, 0
    %s187 = sadd.s32 %s186, 1
    %s188 = scalar_select %p185, %s186, %s187
    %p191 = pneg %p185
    %p192 = scmp.eq.s32.totalorder %s14, 3
    %p193 = por %p191, %p192
    %p194 = scmp.ne.s32.totalorder %s186, %s189
    %p195 = scmp.eq.s32.totalorder %s14, 0
    %p196 = por %p194, %p195
    %p197 = scmp.ne.s32.totalorder %s186, %s189
    %p198 = scmp.eq.s32.totalorder %s19, 3
    %p199 = por %p197, %p198
    %p200 = scmp.ne.s32.totalorder %s189, %s190
    %p201 = scmp.eq.s32.totalorder %s19, 0
    %p202 = por %p200, %p201
    %p203 = scmp.ne.s32.totalorder %s189, %s190
    %p204 = scmp.eq.s32.totalorder %s20, 3
    %p205 = por %p203, %p204
    %p207 = scmp.ne.s32.totalorder %s190, %s206
    %p208 = scmp.eq.s32.totalorder %s20, 0
    %p209 = por %p207, %p208
    %p210 = scmp.le.s32.totalorder 1, %s14
    %p211 = scmp.lt.s32.totalorder %s14, 5
    %p212 = pnand %p210, %p211
    %p213 = pneg %p212
    // Predicated region
    $region9: #{dense_block_forward.4} parent=5 // pred_check
      _
    $region10: #{dense_block_forward.4} parent=5 // pred_check_branch
      %215 = sbr.rel (%p212) target = $region12
    $region11: #{dense_block_forward.4} parent=5 // pred_region
      %s216 = ssub.s32 %s14, 1
      // Predicated region
      $region13: #{dense_block_forward.4} parent=11 // pred_check
        %p217 = pneg %p61
      $region14: #{dense_block_forward.4} parent=11 // pred_check_branch
        %219 = sbr.rel (%p217) target = $region16
      $region15: #{dense_block_forward.4} parent=11 // pred_region
        _
      $region16: #{dense_block_forward.4} parent=11 // pred_fallthru
        _
      // Predicated region
      $region17: #{dense_block_forward.4} parent=11 // pred_check
        %p220 = pneg %p82
      $region18: #{dense_block_forward.4} parent=11 // pred_check_branch
        %222 = sbr.rel (%p220) target = $region20
      $region19: #{dense_block_forward.4} parent=11 // pred_region
        _
      $region20: #{dense_block_forward.4} parent=11 // pred_fallthru
        _
      // Predicated region
      $region21: #{dense_block_forward.4} parent=11 // pred_check
        %p223 = pneg %p103
      $region22: #{dense_block_forward.4} parent=11 // pred_check_branch
        %225 = sbr.rel (%p223) target = $region24
      $region23: #{dense_block_forward.4} parent=11 // pred_region
        _
      $region24: #{dense_block_forward.4} parent=11 // pred_fallthru
        _
      // Predicated region
      $region25: #{dense_block_forward.4} parent=11 // pred_check
        %p226 = pneg %p124
      $region26: #{dense_block_forward.4} parent=11 // pred_check_branch
        %228 = sbr.rel (%p226) target = $region28
      $region27: #{dense_block_forward.4} parent=11 // pred_region
        _
      $region28: #{dense_block_forward.4} parent=11 // pred_fallthru
        _
    $region12: #{dense_block_forward.4} parent=5 // pred_fallthru
      _
    %p229 = scmp.lt.s32.totalorder %s14, 4
    // Predicated region
    $region29: #{dense_block_forward.4} parent=5 // pred_check
      %p230 = pneg %p229
    $region30: #{dense_block_forward.4} parent=5 // pred_check_branch
      %232 = sbr.rel (%p230) target = $region32
    $region31: #{dense_block_forward.4} parent=5 // pred_region
      // Predicated region
      $region33: #{dense_block_forward.4} parent=31 // pred_check
        %p233 = pneg %p34
      $region34: #{dense_block_forward.4} parent=31 // pred_check_branch
        %235 = sbr.rel (%p233) target = $region36
      $region35: #{dense_block_forward.4} parent=31 // pred_region
        %s236 = smul.u32 16, %s14
        %p237 = scmp.lt.s32.totalorder %s236, 63
        %s238 = scalar_select %p237, %s236, 63
        %s239 = smul.addr %s238, 4
        %s240 = scalar_lea.vmem %s0, %s239
        %s241 = smul.u32 16, %s14
      $region36: #{dense_block_forward.4} parent=31 // pred_fallthru
        _
    $region32: #{dense_block_forward.4} parent=5 // pred_fallthru
      _
    %p242 = scmp.le.s32.totalorder 1, %s14
    %p243 = scmp.lt.s32.totalorder %s14, 5
    %p244 = pnand %p242, %p243
    %p245 = pneg %p244
    // Predicated region
    $region37: #{dense_block_forward.4} parent=5 // pred_check
      _
    $region38: #{dense_block_forward.4} parent=5 // pred_check_branch
      %247 = sbr.rel (%p244) target = $region40
    $region39: #{dense_block_forward.4} parent=5 // pred_region
      %s248 = ssub.s32 %s14, 1
      %s249 = smul.u32 16, %s19
      %p250 = scmp.lt.s32.totalorder %s249, 63
      %s251 = scalar_select %p250, %s249, 63
      %s252 = smul.addr %s251, 4
      %s253 = scalar_lea.vmem %s0, %s252
      %p254 = pneg %p40
      %p255 = pneg %p37
      %p256 = pneg %p61
      %p257 = pneg %p58
      %p258 = pneg %p82
      %p259 = pneg %p79
      %p260 = pneg %p103
      %p261 = pneg %p100
      %p262 = pneg %p124
      %p263 = pneg %p121
      %p264 = pneg %p150
      %p265 = pneg %p147
      %s266 = smul.u32 16, %s19
      %p267 = scmp.lt.s32.totalorder %s266, 63
      %s268 = scalar_select %p267, %s266, 63
      %s269 = smul.addr %s268, 4
      %s270 = scalar_lea.vmem %s5, %s269
      %p271 = pneg %p176
      %p272 = pneg %p173
      %p273 = scmp.lt.s32.totalorder %s19, 3
      %s274 = scalar_select %p273, %s19, 3
      %s275 = scalar_lea.vmem %s6, %s274
      %p276 = pneg %p202
      %p277 = pneg %p199
      %p278 = scmp.lt.s32.totalorder %s19, 3
      %s279 = scalar_select %p278, %s19, 3
      %s280 = scalar_lea.vmem %s7, %s279
      %s281 = smul.u32 16, %s19
      %p282 = scmp.lt.s32.totalorder %s281, 63
      %s283 = scalar_select %p282, %s281, 63
      %s284 = smul.addr %s283, 4
      %s285 = scalar_lea.vmem %s0, %s284
      %s286 = smul.u32 16, %s19
      %s287 = smul.u32 16, %s19
      %p288 = scmp.lt.s32.totalorder %s287, 63
      %s289 = scalar_select %p288, %s287, 63
      %s290 = smul.addr %s289, 4
      %s291 = scalar_lea.vmem %s5, %s290
      %s292 = smul.u32 16, %s19
      %p293 = scmp.lt.s32.totalorder %s19, 3
      %s294 = scalar_select %p293, %s19, 3
      %s295 = scalar_lea.vmem %s6, %s294
      %p296 = scmp.lt.s32.totalorder %s19, 3
      %s297 = scalar_select %p296, %s19, 3
      %s298 = scalar_lea.vmem %s7, %s297
      %v300 = vld [vmem:[%s285] sm:$0xf]
      %v301 = vld [vmem:[%s285 + $0x4] sm:$0xf]
      %v302 = vld [vmem:[%s285 + $0x8] sm:$0xf]
      %v303 = vld [vmem:[%s285 + $0xc] sm:$0xf]
      %v304 = vld [vmem:[%s285 + $0x10] sm:$0xf]
      %v305 = vld [vmem:[%s285 + $0x14] sm:$0xf]
      %v306 = vld [vmem:[%s285 + $0x18] sm:$0xf]
      %v307 = vld [vmem:[%s285 + $0x1c] sm:$0xf]
      %v308 = vld [vmem:[%s285 + $0x20] sm:$0xf]
      %v309 = vld [vmem:[%s285 + $0x24] sm:$0xf]
      %v310 = vld [vmem:[%s285 + $0x28] sm:$0xf]
      %v311 = vld [vmem:[%s285 + $0x2c] sm:$0xf]
      %v312 = vld [vmem:[%s285 + $0x30] sm:$0xf]
      %v313 = vld [vmem:[%s285 + $0x34] sm:$0xf]
      %v314 = vld [vmem:[%s285 + $0x38] sm:$0xf]
      %v315 = vld [vmem:[%s285 + $0x3c] sm:$0xf]
      %v316 = vunpack.c.l.bf16 %v300
      %v317 = vunpack.c.l.bf16 %v301
      %v318 = vunpack.c.l.bf16 %v302
      %v319 = vunpack.c.l.bf16 %v303
      %v320 = vunpack.c.l.bf16 %v304
      %v321 = vunpack.c.l.bf16 %v305
      %v322 = vunpack.c.l.bf16 %v306
      %v323 = vunpack.c.l.bf16 %v307
      %v324 = vunpack.c.l.bf16 %v308
      %v325 = vunpack.c.l.bf16 %v309
      %v326 = vunpack.c.l.bf16 %v310
      %v327 = vunpack.c.l.bf16 %v311
      %v328 = vunpack.c.l.bf16 %v312
      %v329 = vunpack.c.l.bf16 %v313
      %v330 = vunpack.c.l.bf16 %v314
      %v331 = vunpack.c.l.bf16 %v315
      %v332 = vld [vmem:[%s1] sm:$0x1]
      %v334 = vlaneseq
      %v335 = vshrl.u32 %v334, 7
      %v336 = vsub.s32 0, %v335
      %v337 = vrot.slane %v332, %v336
      %v339 = vmul.f32 %v316, %v337
      %v340 = vmul.f32 %v317, %v337
      %v341 = vmul.f32 %v318, %v337
      %v342 = vmul.f32 %v319, %v337
      %v343 = vmul.f32 %v320, %v337
      %v344 = vmul.f32 %v321, %v337
      %v345 = vmul.f32 %v322, %v337
      %v346 = vmul.f32 %v323, %v337
      %v347 = vmul.f32 %v324, %v337
      %v348 = vmul.f32 %v325, %v337
      %v349 = vmul.f32 %v326, %v337
      %v350 = vmul.f32 %v327, %v337
      %v351 = vmul.f32 %v328, %v337
      %v352 = vmul.f32 %v329, %v337
      %v353 = vmul.f32 %v330, %v337
      %v354 = vmul.f32 %v331, %v337
      %v355 = vld [vmem:[%s2] sm:$0x1]
      %v357 = vlaneseq
      %v358 = vshrl.u32 %v357, 7
      %v359 = vsub.s32 0, %v358
      %v360 = vrot.slane %v355, %v359
      %v362 = vadd.f32 %v339, %v360
      %v363 = vadd.f32 %v340, %v360
      %v364 = vadd.f32 %v341, %v360
      %v365 = vadd.f32 %v342, %v360
      %v366 = vadd.f32 %v343, %v360
      %v367 = vadd.f32 %v344, %v360
      %v368 = vadd.f32 %v345, %v360
      %v369 = vadd.f32 %v346, %v360
      %v370 = vadd.f32 %v347, %v360
      %v371 = vadd.f32 %v348, %v360
      %v372 = vadd.f32 %v349, %v360
      %v373 = vadd.f32 %v350, %v360
      %v374 = vadd.f32 %v351, %v360
      %v375 = vadd.f32 %v352, %v360
      %v376 = vadd.f32 %v353, %v360
      %v377 = vadd.f32 %v354, %v360
      %v378 = vmax.f32 %v362, 0.0
      %v379 = vmax.f32 %v363, 0.0
      %v380 = vmax.f32 %v364, 0.0
      %v381 = vmax.f32 %v365, 0.0
      %v382 = vmax.f32 %v366, 0.0
      %v383 = vmax.f32 %v367, 0.0
      %v384 = vmax.f32 %v368, 0.0
      %v385 = vmax.f32 %v369, 0.0
      %v386 = vmax.f32 %v370, 0.0
      %v387 = vmax.f32 %v371, 0.0
      %v388 = vmax.f32 %v372, 0.0
      %v389 = vmax.f32 %v373, 0.0
      %v390 = vmax.f32 %v374, 0.0
      %v391 = vmax.f32 %v375, 0.0
      %v392 = vmax.f32 %v376, 0.0
      %v393 = vmax.f32 %v377, 0.0
      %v394 = vpack.c.bf16 %v379, %v378
      %v395 = vpack.c.bf16 %v381, %v380
      %v396 = vpack.c.bf16 %v383, %v382
      %v397 = vpack.c.bf16 %v385, %v384
      %v398 = vpack.c.bf16 %v387, %v386
      %v399 = vpack.c.bf16 %v389, %v388
      %v400 = vpack.c.bf16 %v391, %v390
      %v401 = vpack.c.bf16 %v393, %v392
      %v402 = vld [vmem:[%s3] sm:$0xf]
      %v403 = vld [vmem:[%s3 + $0x4] sm:$0xf]
      %v404 = vld [vmem:[%s3 + $0x8] sm:$0xf]
      %v405 = vld [vmem:[%s3 + $0xc] sm:$0xf]
      %v406 = vld [vmem:[%s3 + $0x10] sm:$0xf]
      %v407 = vld [vmem:[%s3 + $0x14] sm:$0xf]
      %v408 = vld [vmem:[%s3 + $0x18] sm:$0xf]
      %v409 = vld [vmem:[%s3 + $0x1c] sm:$0xf]
      %v410 = vld [vmem:[%s3 + $0x20] sm:$0x3]
      %v411 = vld [vmem:[%s4] sm:$0x1]
      %v413 = vlaneseq
      %v414 = vshrl.u32 %v413, 7
      %v415 = vsub.s32 0, %v414
      %v416 = vrot.slane %v411, %v415
      %v427 = vunpack.c.l.b16 %v402
      %v428 = vunpack.c.l.b16 %v403
      %v429 = vunpack.c.l.b16 %v404
      %v430 = vunpack.c.l.b16 %v405
      %v431 = vunpack.c.l.b16 %v406
      %v432 = vunpack.c.l.b16 %v407
      %v433 = vunpack.c.l.b16 %v408
      %v434 = vunpack.c.l.b16 %v409
      %v435 = vunpack.c.l.b16 %v410
      %v436 = vpack.c.b16 %v428, %v427
      %v437 = vpack.c.b16 %v430, %v429
      %v438 = vpack.c.b16 %v432, %v431
      %v439 = vpack.c.b16 %v434, %v433
      %v440 = vpack.c.b16 %v435, %v435
      %vm445 = vcmask 556032
      %v447 = vsel %vm445, %v394, 0
      %v450 = vsel %vm445, %v395, 0
      %v453 = vsel %vm445, %v396, 0
      %v456 = vsel %vm445, %v397, 0
      %v459 = vsel %vm445, %v398, 0
      %v462 = vsel %vm445, %v399, 0
      %v465 = vsel %vm445, %v400, 0
      %v468 = vsel %vm445, %v401, 0
      %vm470 = vcmask 1041408
      %v472 = vsel %vm470, %v440, 0
      %474 = vmatprep.subr.bf16.mxu0 0
      %475 = vmatpush1.bf16.msra.mxu0 0
      %476 = vmatprep.subr.bf16.mxu0 0
      %477 = vmatpush1.bf16.msra.mxu0 0
      %478 = vmatprep.subr.bf16.mxu0 0
      %479 = vmatpush1.bf16.msra.mxu0 0
      %480 = vmatprep.subr.bf16.mxu0 0
      %481 = vmatpush1.bf16.msra.mxu0 %v472
      %482 = vmatprep.subr.bf16.mxu0 0
      %483 = vmatpush1.bf16.msra.mxu0 %v439
      %484 = vmatprep.subr.bf16.mxu0 0
      %485 = vmatpush1.bf16.msra.mxu0 %v438
      %486 = vmatprep.subr.bf16.mxu0 0
      %487 = vmatpush1.bf16.msra.mxu0 %v437
      %488 = vmatprep.subr.bf16.mxu0 0
      %489 = vmatpush1.bf16.msra.mxu0 %v436
      %490 = vmatprep.subr.bf16.mxu0 0
      %491 = vmatpush2.bf16.msra.mxu0 0
      %492 = vmatprep.subr.bf16.mxu0 0
      %493 = vmatpush2.bf16.msra.mxu0 0
      %494 = vmatprep.subr.bf16.mxu0 0
      %495 = vmatpush2.bf16.msra.mxu0 0
      %496 = vmatprep.subr.bf16.mxu0 0
      %497 = vmatpush2.bf16.msra.mxu0 0
      %498 = vmatprep.subr.bf16.mxu0 0
      %499 = vmatpush2.bf16.msra.mxu0 0
      %500 = vmatprep.subr.bf16.mxu0 0
      %501 = vmatpush2.bf16.msra.mxu0 0
      %502 = vmatprep.subr.bf16.mxu0 0
      %503 = vmatpush2.bf16.msra.mxu0 0
      %504 = vmatprep.subr.bf16.mxu0 0
      %505 = vmatpush2.bf16.msra.mxu0 0
      %506 = vmatprep.mubr.bf16.mxu0 0
      %507 = vmatmul.mubr.bf16.gmra.mxu0 %v447
      %v508 = vpop.f32.mrf.mxu0
      %v509 = vadd.f32 %v416, %v508
      %v510 = vpop.f32.mrf.mxu0
      %v511 = vpop.f32.mrf.mxu0
      %v512 = vadd.f32 %v416, %v511
      %v513 = vpop.f32.mrf.mxu0
      %514 = vmatprep.mubr.bf16.mxu0 0
      %515 = vmatmul.mubr.bf16.gmra.mxu0 %v450
      %v516 = vpop.f32.mrf.mxu0
      %v517 = vadd.f32 %v416, %v516
      %v518 = vpop.f32.mrf.mxu0
      %v519 = vpop.f32.mrf.mxu0
      %v520 = vadd.f32 %v416, %v519
      %v521 = vpop.f32.mrf.mxu0
      %522 = vmatprep.mubr.bf16.mxu0 0
      %523 = vmatmul.mubr.bf16.gmra.mxu0 %v453
      %v524 = vpop.f32.mrf.mxu0
      %v525 = vadd.f32 %v416, %v524
      %v526 = vpop.f32.mrf.mxu0
      %v527 = vpop.f32.mrf.mxu0
      %v528 = vadd.f32 %v416, %v527
      %v529 = vpop.f32.mrf.mxu0
      %530 = vmatprep.mubr.bf16.mxu0 0
      %531 = vmatmul.mubr.bf16.gmra.mxu0 %v456
      %v532 = vpop.f32.mrf.mxu0
      %v533 = vadd.f32 %v416, %v532
      %v534 = vpop.f32.mrf.mxu0
      %v535 = vpop.f32.mrf.mxu0
      %v536 = vadd.f32 %v416, %v535
      %v537 = vpop.f32.mrf.mxu0
      %538 = vmatprep.mubr.bf16.mxu0 0
      %539 = vmatmul.mubr.bf16.gmra.mxu0 %v459
      %v540 = vpop.f32.mrf.mxu0
      %v541 = vadd.f32 %v416, %v540
      %v542 = vpop.f32.mrf.mxu0
      %v543 = vpop.f32.mrf.mxu0
      %v544 = vadd.f32 %v416, %v543
      %v545 = vpop.f32.mrf.mxu0
      %546 = vmatprep.mubr.bf16.mxu0 0
      %547 = vmatmul.mubr.bf16.gmra.mxu0 %v462
      %v548 = vpop.f32.mrf.mxu0
      %v549 = vadd.f32 %v416, %v548
      %v550 = vpop.f32.mrf.mxu0
      %v551 = vpop.f32.mrf.mxu0
      %v552 = vadd.f32 %v416, %v551
      %v553 = vpop.f32.mrf.mxu0
      %554 = vmatprep.mubr.bf16.mxu0 0
      %555 = vmatmul.mubr.bf16.gmra.mxu0 %v465
      %v556 = vpop.f32.mrf.mxu0
      %v557 = vadd.f32 %v416, %v556
      %v558 = vpop.f32.mrf.mxu0
      %v559 = vpop.f32.mrf.mxu0
      %v560 = vadd.f32 %v416, %v559
      %v561 = vpop.f32.mrf.mxu0
      %562 = vmatprep.mubr.bf16.mxu0 0
      %563 = vmatmul.mubr.bf16.gmra.mxu0 %v468
      %v564 = vpop.f32.mrf.mxu0
      %v565 = vadd.f32 %v416, %v564
      %v566 = vpop.f32.mrf.mxu0
      %v567 = vpop.f32.mrf.mxu0
      %v568 = vadd.f32 %v416, %v567
      %v569 = vpop.f32.mrf.mxu0
      %570 = vdwg.mxu0
      %v571 = vpack.c.bf16 %v512, %v509
      %v572 = vpack.c.bf16 %v520, %v517
      %v573 = vpack.c.bf16 %v528, %v525
      %v574 = vpack.c.bf16 %v536, %v533
      %v575 = vpack.c.bf16 %v544, %v541
      %v576 = vpack.c.bf16 %v552, %v549
      %v577 = vpack.c.bf16 %v560, %v557
      %v578 = vpack.c.bf16 %v568, %v565
      %v587 = vunpack.c.l.b16 %v571
      %v588 = vunpack.c.h.b16 %v571
      %v589 = vunpack.c.l.b16 %v572
      %v590 = vunpack.c.h.b16 %v572
      %v591 = vunpack.c.l.b16 %v573
      %v592 = vunpack.c.h.b16 %v573
      %v593 = vunpack.c.l.b16 %v574
      %v594 = vunpack.c.h.b16 %v574
      %v595 = vunpack.c.l.b16 %v575
      %v596 = vunpack.c.h.b16 %v575
      %v597 = vunpack.c.l.b16 %v576
      %v598 = vunpack.c.h.b16 %v576
      %v599 = vunpack.c.l.b16 %v577
      %v600 = vunpack.c.h.b16 %v577
      %v601 = vunpack.c.l.b16 %v578
      %v602 = vunpack.c.h.b16 %v578
      %v603 = vpack.c.b16 %v587, %v587
      %v604 = vpack.c.b16 %v588, %v588
      %v605 = vpack.c.b16 %v589, %v589
      %v606 = vpack.c.b16 %v590, %v590
      %v607 = vpack.c.b16 %v591, %v591
      %v608 = vpack.c.b16 %v592, %v592
      %v609 = vpack.c.b16 %v593, %v593
      %v610 = vpack.c.b16 %v594, %v594
      %v611 = vpack.c.b16 %v595, %v595
      %v612 = vpack.c.b16 %v596, %v596
      %v613 = vpack.c.b16 %v597, %v597
      %v614 = vpack.c.b16 %v598, %v598
      %v615 = vpack.c.b16 %v599, %v599
      %v616 = vpack.c.b16 %v600, %v600
      %v617 = vpack.c.b16 %v601, %v601
      %v618 = vpack.c.b16 %v602, %v602
      %635 = vst [vmem:[%s291] sm:$0xf] %v603
      %636 = vst [vmem:[%s291 + $0x4] sm:$0xf] %v604
      %637 = vst [vmem:[%s291 + $0x8] sm:$0xf] %v605
      %638 = vst [vmem:[%s291 + $0xc] sm:$0xf] %v606
      %639 = vst [vmem:[%s291 + $0x10] sm:$0xf] %v607
      %640 = vst [vmem:[%s291 + $0x14] sm:$0xf] %v608
      %641 = vst [vmem:[%s291 + $0x18] sm:$0xf] %v609
      %642 = vst [vmem:[%s291 + $0x1c] sm:$0xf] %v610
      %643 = vst [vmem:[%s291 + $0x20] sm:$0xf] %v611
      %644 = vst [vmem:[%s291 + $0x24] sm:$0xf] %v612
      %645 = vst [vmem:[%s291 + $0x28] sm:$0xf] %v613
      %646 = vst [vmem:[%s291 + $0x2c] sm:$0xf] %v614
      %647 = vst [vmem:[%s291 + $0x30] sm:$0xf] %v615
      %648 = vst [vmem:[%s291 + $0x34] sm:$0xf] %v616
      %649 = vst [vmem:[%s291 + $0x38] sm:$0xf] %v617
      %650 = vst [vmem:[%s291 + $0x3c] sm:$0xf] %v618
      %v651 = vadd.f32 %v509, %v512
      %v652 = vadd.f32 %v651, %v517
      %v653 = vadd.f32 %v652, %v520
      %v654 = vadd.f32 %v653, %v525
      %v655 = vadd.f32 %v654, %v528
      %v656 = vadd.f32 %v655, %v533
      %v657 = vadd.f32 %v656, %v536
      %v658 = vadd.f32 %v657, %v541
      %v659 = vadd.f32 %v658, %v544
      %v660 = vadd.f32 %v659, %v549
      %v661 = vadd.f32 %v660, %v552
      %v662 = vadd.f32 %v661, %v557
      %v663 = vadd.f32 %v662, %v560
      %v664 = vadd.f32 %v663, %v565
      %v665 = vadd.f32 %v664, %v568
      %v666 = vrot.slane %v665, 4
      %v667 = vadd.f32 %v665, %v666
      %v668 = vrot.slane %v667, 2
      %v669 = vadd.f32 %v667, %v668
      %v670 = vrot.slane %v669, 1
      %v671 = vadd.f32 %v669, %v670
      %672 = vst [vmem:[%s295] sm:$0x1] %v671
      %v673 = vmul.f32 %v509, %v509
      %v674 = vmul.f32 %v512, %v512
      %v675 = vmul.f32 %v517, %v517
      %v676 = vmul.f32 %v520, %v520
      %v677 = vmul.f32 %v525, %v525
      %v678 = vmul.f32 %v528, %v528
      %v679 = vmul.f32 %v533, %v533
      %v680 = vmul.f32 %v536, %v536
      %v681 = vmul.f32 %v541, %v541
      %v682 = vmul.f32 %v544, %v544
      %v683 = vmul.f32 %v549, %v549
      %v684 = vmul.f32 %v552, %v552
      %v685 = vmul.f32 %v557, %v557
      %v686 = vmul.f32 %v560, %v560
      %v687 = vmul.f32 %v565, %v565
      %v688 = vmul.f32 %v568, %v568
      %v689 = vadd.f32 %v673, %v674
      %v690 = vadd.f32 %v689, %v675
      %v691 = vadd.f32 %v690, %v676
      %v692 = vadd.f32 %v691, %v677
      %v693 = vadd.f32 %v692, %v678
      %v694 = vadd.f32 %v693, %v679
      %v695 = vadd.f32 %v694, %v680
      %v696 = vadd.f32 %v695, %v681
      %v697 = vadd.f32 %v696, %v682
      %v698 = vadd.f32 %v697, %v683
      %v699 = vadd.f32 %v698, %v684
      %v700 = vadd.f32 %v699, %v685
      %v701 = vadd.f32 %v700, %v686
      %v702 = vadd.f32 %v701, %v687
      %v703 = vadd.f32 %v702, %v688
      %v704 = vrot.slane %v703, 4
      %v705 = vadd.f32 %v703, %v704
      %v706 = vrot.slane %v705, 2
      %v707 = vadd.f32 %v705, %v706
      %v708 = vrot.slane %v707, 1
      %v709 = vadd.f32 %v707, %v708
      %710 = vst [vmem:[%s298] sm:$0x1] %v709
      %s711 = smul.u32 16, %s19
      %p712 = scmp.lt.s32.totalorder %s711, 63
      %s713 = scalar_select %p712, %s711, 63
      %s714 = smul.addr %s713, 4
      %s715 = scalar_lea.vmem %s5, %s714
      %p716 = scmp.lt.s32.totalorder %s19, 3
      %s717 = scalar_select %p716, %s19, 3
      %s718 = scalar_lea.vmem %s6, %s717
      %p719 = scmp.lt.s32.totalorder %s19, 3
      %s720 = scalar_select %p719, %s19, 3
      %s721 = scalar_lea.vmem %s7, %s720
      // Predicated region
      $region41: #{dense_block_forward.4} parent=39 // pred_check
        %p722 = pneg %p147
      $region42: #{dense_block_forward.4} parent=39 // pred_check_branch
        %724 = sbr.rel (%p722) target = $region44
      $region43: #{dense_block_forward.4} parent=39 // pred_region
        %s725 = smul.u32 16, %s19
      $region44: #{dense_block_forward.4} parent=39 // pred_fallthru
        _
      // Predicated region
      $region45: #{dense_block_forward.4} parent=39 // pred_check
        %p726 = pneg %p173
      $region46: #{dense_block_forward.4} parent=39 // pred_check_branch
        %728 = sbr.rel (%p726) target = $region48
      $region47: #{dense_block_forward.4} parent=39 // pred_region
        _
      $region48: #{dense_block_forward.4} parent=39 // pred_fallthru
        _
      // Predicated region
      $region49: #{dense_block_forward.4} parent=39 // pred_check
        %p729 = pneg %p199
      $region50: #{dense_block_forward.4} parent=39 // pred_check_branch
        %731 = sbr.rel (%p729) target = $region52
      $region51: #{dense_block_forward.4} parent=39 // pred_region
        _
      $region52: #{dense_block_forward.4} parent=39 // pred_fallthru
        _
    $region40: #{dense_block_forward.4} parent=5 // pred_fallthru
      _
    %p732 = scmp.le.s32.totalorder 2, %s14
    // Predicated region
    $region53: #{dense_block_forward.4} parent=5 // pred_check
      %p733 = pneg %p732
    $region54: #{dense_block_forward.4} parent=5 // pred_check_branch
      %735 = sbr.rel (%p733) target = $region56
    $region55: #{dense_block_forward.4} parent=5 // pred_region
      %s736 = ssub.s32 %s14, 2
      // Predicated region
      $region57: #{dense_block_forward.4} parent=55 // pred_check
        %p737 = pneg %p153
      $region58: #{dense_block_forward.4} parent=55 // pred_check_branch
        %739 = sbr.rel (%p737) target = $region60
      $region59: #{dense_block_forward.4} parent=55 // pred_region
        %s740 = smul.u32 16, %s20
        %p741 = scmp.lt.s32.totalorder %s740, 63
        %s742 = scalar_select %p741, %s740, 63
        %s743 = smul.addr %s742, 4
        %s744 = scalar_lea.vmem %s5, %s743
      $region60: #{dense_block_forward.4} parent=55 // pred_fallthru
        _
      // Predicated region
      $region61: #{dense_block_forward.4} parent=55 // pred_check
        %p745 = pneg %p179
      $region62: #{dense_block_forward.4} parent=55 // pred_check_branch
        %747 = sbr.rel (%p745) target = $region64
      $region63: #{dense_block_forward.4} parent=55 // pred_region
        %p748 = scmp.lt.s32.totalorder %s20, 3
        %s749 = scalar_select %p748, %s20, 3
        %s750 = scalar_lea.vmem %s6, %s749
      $region64: #{dense_block_forward.4} parent=55 // pred_fallthru
        _
      // Predicated region
      $region65: #{dense_block_forward.4} parent=55 // pred_check
        %p751 = pneg %p205
      $region66: #{dense_block_forward.4} parent=55 // pred_check_branch
        %753 = sbr.rel (%p751) target = $region68
      $region67: #{dense_block_forward.4} parent=55 // pred_region
        %p754 = scmp.lt.s32.totalorder %s20, 3
        %s755 = scalar_select %p754, %s20, 3
        %s756 = scalar_lea.vmem %s7, %s755
      $region68: #{dense_block_forward.4} parent=55 // pred_fallthru
        _
    $region56: #{dense_block_forward.4} parent=5 // pred_fallthru
      _
  $region6: #{dense_block_forward.4} parent=0 // loop_footer
    %s18 = sadd.s32 1, %s14
  $region7: #{dense_block_forward.4} parent=0 // loop_footer_branch
    %13 = sbr.rel target = $region3
  $region8: #{dense_block_forward.4} parent=0 // loop_exit
    _

// kernel: dense_block_forward.5
$region0: #{dense_block_forward.5}
  #allocation0 [shape = 'u32[]', space=smem, size = 0x4, offset = 0x4, fixed_abs, tag = 'smem constant byte address 0x4 - core index']
  #allocation1 [shape = 'u32[144,128]{1,0:T(1,128)}', space=vmem, size = 0x12000, scoped, tag = 'internal scratch']
  #allocation2 [shape = 'f32[18,18,128]{2,1,0:T(8,128)}', space=vmem, size = 0x36000, scoped, tag = 'scratch operand']
  %s0 = inlined_call_operand.vmem [shape: bf16[2,16,16,128], index: 0, kind: input, shape index: {}]
  %s1 = inlined_call_operand.vmem [shape: f32[1,128], index: 1, kind: input, shape index: {}]
  %s2 = inlined_call_operand.vmem [shape: f32[1,128], index: 2, kind: input, shape index: {}]
  %s3 = inlined_call_operand.vmem [shape: bf16[1152,32], index: 3, kind: input, shape index: {}]
  %s4 = inlined_call_operand.vmem [shape: f32[1,32], index: 4, kind: input, shape index: {}]
  %s5 = inlined_call_operand.vmem [shape: bf16[2,256,32], index: 5, kind: output, shape index: {0}]
  %s6 = inlined_call_operand.vmem [shape: f32[2,1,32], index: 6, kind: output, shape index: {1}]
  %s7 = inlined_call_operand.vmem [shape: f32[2,1,32], index: 7, kind: output, shape index: {2}]
  %8 = xla_tuple %s5, %s6, %s7
  %s9 = sld [smem:[#allocation0]]
  $region69: #{dense_block_forward.5} parent=0
    _
  %s11 = ssub.s32 1, %s9
  %s12 = scalar_select 0, %s11, %s9
  loop: start=0, step=1, limit=4
  $region2: #{dense_block_forward.5} parent=0 // loop_pre_header
    _
  $region3: #{dense_block_forward.5} parent=0 // loop_header
    %s14 = sphi 0, %s18
    %p15 = scmp.ge.s32.totalorder %s14, 4
    %s24 = sphi 0, %s26
    %s27 = sphi 0, %s24
    %s28 = sphi 0, %s27
    %s44 = sphi 0, %s28
    %s48 = sphi 0, %s48
    %s50 = sphi 0, %s48
    %s51 = sphi 0, %s50
    %s65 = sphi 0, %s51
    %s69 = sphi 0, %s69
    %s71 = sphi 0, %s69
    %s72 = sphi 0, %s71
    %s86 = sphi 0, %s72
    %s90 = sphi 0, %s90
    %s92 = sphi 0, %s90
    %s93 = sphi 0, %s92
    %s107 = sphi 0, %s93
    %s111 = sphi 0, %s111
    %s113 = sphi 0, %s111
    %s114 = sphi 0, %s113
    %s128 = sphi 0, %s114
    %s134 = sphi 0, %s136
    %s137 = sphi 0, %s134
    %s138 = sphi 0, %s137
    %s154 = sphi 0, %s138
    %s160 = sphi 0, %s162
    %s163 = sphi 0, %s160
    %s164 = sphi 0, %s163
    %s180 = sphi 0, %s164
    %s186 = sphi 0, %s188
    %s189 = sphi 0, %s186
    %s190 = sphi 0, %s189
    %s206 = sphi 0, %s190
  $region4: #{dense_block_forward.5} parent=0 // loop_header_branch
    %17 = sbr.rel (%p15) target = $region8
  $region5: #{dense_block_forward.5} parent=0 // loop_body
    %s19 = ssub.s32 %s14, 1
    %s20 = ssub.s32 %s14, 2
    %s21 = sadd.s32 %s14, 1
    %s22 = ssub.s32 %s14, %s21
    %p23 = scmp.eq.s32.totalorder %s22, 0
    %s25 = sadd.s32 %s24, 1
    %s26 = scalar_select %p23, %s24, %s25
    %p29 = pneg %p23
    %p30 = scmp.eq.s32.totalorder %s14, 1
    %p31 = por %p29, %p30
    %p32 = scmp.ne.s32.totalorder %s24, %s27
    %p33 = scmp.eq.s32.totalorder %s14, 0
    %p34 = por %p32, %p33
    %p35 = scmp.ne.s32.totalorder %s24, %s27
    %p36 = scmp.eq.s32.totalorder %s19, 1
    %p37 = por %p35, %p36
    %p38 = scmp.ne.s32.totalorder %s27, %s28
    %p39 = scmp.eq.s32.totalorder %s19, 0
    %p40 = por %p38, %p39
    %p41 = scmp.ne.s32.totalorder %s27, %s28
    %p42 = scmp.eq.s32.totalorder %s20, 1
    %p43 = por %p41, %p42
    %p45 = scmp.ne.s32.totalorder %s28, %s44
    %p46 = scmp.eq.s32.totalorder %s20, 0
    %p47 = por %p45, %p46
    %s49 = sadd.s32 %s48, 1
    %p52 = scmp.eq.s32.totalorder %s14, 1
    %p53 = scmp.ne.s32.totalorder %s48, %s50
    %p54 = scmp.eq.s32.totalorder %s14, 0
    %p55 = por %p53, %p54
    %p56 = scmp.ne.s32.totalorder %s48, %s50
    %p57 = scmp.eq.s32.totalorder %s19, 1
    %p58 = por %p56, %p57
    %p59 = scmp.ne.s32.totalorder %s50, %s51
    %p60 = scmp.eq.s32.totalorder %s19, 0
    %p61 = por %p59, %p60
    %p62 = scmp.ne.s32.totalorder %s50, %s51
    %p63 = scmp.eq.s32.totalorder %s20, 1
    %p64 = por %p62, %p63
    %p66 = scmp.ne.s32.totalorder %s51, %s65
    %p67 = scmp.eq.s32.totalorder %s20, 0
    %p68 = por %p66, %p67
    %s70 = sadd.s32 %s69, 1
    %p73 = scmp.eq.s32.totalorder %s14, 1
    %p74 = scmp.ne.s32.totalorder %s69, %s71
    %p75 = scmp.eq.s32.totalorder %s14, 0
    %p76 = por %p74, %p75
    %p77 = scmp.ne.s32.totalorder %s69, %s71
    %p78 = scmp.eq.s32.totalorder %s19, 1
    %p79 = por %p77, %p78
    %p80 = scmp.ne.s32.totalorder %s71, %s72
    %p81 = scmp.eq.s32.totalorder %s19, 0
    %p82 = por %p80, %p81
    %p83 = scmp.ne.s32.totalorder %s71, %s72
    %p84 = scmp.eq.s32.totalorder %s20, 1
    %p85 = por %p83, %p84
    %p87 = scmp.ne.s32.totalorder %s72, %s86
    %p88 = scmp.eq.s32.totalorder %s20, 0
    %p89 = por %p87, %p88
    %s91 = sadd.s32 %s90, 1
    %p94 = scmp.eq.s32.totalorder %s14, 1
    %p95 = scmp.ne.s32.totalorder %s90, %s92
    %p96 = scmp.eq.s32.totalorder %s14, 0
    %p97 = por %p95, %p96
    %p98 = scmp.ne.s32.totalorder %s90, %s92
    %p99 = scmp.eq.s32.totalorder %s19, 1
    %p100 = por %p98, %p99
    %p101 = scmp.ne.s32.totalorder %s92, %s93
    %p102 = scmp.eq.s32.totalorder %s19, 0
    %p103 = por %p101, %p102
    %p104 = scmp.ne.s32.totalorder %s92, %s93
    %p105 = scmp.eq.s32.totalorder %s20, 1
    %p106 = por %p104, %p105
    %p108 = scmp.ne.s32.totalorder %s93, %s107
    %p109 = scmp.eq.s32.totalorder %s20, 0
    %p110 = por %p108, %p109
    %s112 = sadd.s32 %s111, 1
    %p115 = scmp.eq.s32.totalorder %s14, 1
    %p116 = scmp.ne.s32.totalorder %s111, %s113
    %p117 = scmp.eq.s32.totalorder %s14, 0
    %p118 = por %p116, %p117
    %p119 = scmp.ne.s32.totalorder %s111, %s113
    %p120 = scmp.eq.s32.totalorder %s19, 1
    %p121 = por %p119, %p120
    %p122 = scmp.ne.s32.totalorder %s113, %s114
    %p123 = scmp.eq.s32.totalorder %s19, 0
    %p124 = por %p122, %p123
    %p125 = scmp.ne.s32.totalorder %s113, %s114
    %p126 = scmp.eq.s32.totalorder %s20, 1
    %p127 = por %p125, %p126
    %p129 = scmp.ne.s32.totalorder %s114, %s128
    %p130 = scmp.eq.s32.totalorder %s20, 0
    %p131 = por %p129, %p130
    %s132 = ssub.s32 %s14, %s21
    %p133 = scmp.eq.s32.totalorder %s132, 0
    %s135 = sadd.s32 %s134, 1
    %s136 = scalar_select %p133, %s134, %s135
    %p139 = pneg %p133
    %p140 = scmp.eq.s32.totalorder %s14, 1
    %p141 = por %p139, %p140
    %p142 = scmp.ne.s32.totalorder %s134, %s137
    %p143 = scmp.eq.s32.totalorder %s14, 0
    %p144 = por %p142, %p143
    %p145 = scmp.ne.s32.totalorder %s134, %s137
    %p146 = scmp.eq.s32.totalorder %s19, 1
    %p147 = por %p145, %p146
    %p148 = scmp.ne.s32.totalorder %s137, %s138
    %p149 = scmp.eq.s32.totalorder %s19, 0
    %p150 = por %p148, %p149
    %p151 = scmp.ne.s32.totalorder %s137, %s138
    %p152 = scmp.eq.s32.totalorder %s20, 1
    %p153 = por %p151, %p152
    %p155 = scmp.ne.s32.totalorder %s138, %s154
    %p156 = scmp.eq.s32.totalorder %s20, 0
    %p157 = por %p155, %p156
    %s158 = ssub.s32 %s14, %s21
    %p159 = scmp.eq.s32.totalorder %s158, 0
    %s161 = sadd.s32 %s160, 1
    %s162 = scalar_select %p159, %s160, %s161
    %p165 = pneg %p159
    %p166 = scmp.eq.s32.totalorder %s14, 1
    %p167 = por %p165, %p166
    %p168 = scmp.ne.s32.totalorder %s160, %s163
    %p169 = scmp.eq.s32.totalorder %s14, 0
    %p170 = por %p168, %p169
    %p171 = scmp.ne.s32.totalorder %s160, %s163
    %p172 = scmp.eq.s32.totalorder %s19, 1
    %p173 = por %p171, %p172
    %p174 = scmp.ne.s32.totalorder %s163, %s164
    %p175 = scmp.eq.s32.totalorder %s19, 0
    %p176 = por %p174, %p175
    %p177 = scmp.ne.s32.totalorder %s163, %s164
    %p178 = scmp.eq.s32.totalorder %s20, 1
    %p179 = por %p177, %p178
    %p181 = scmp.ne.s32.totalorder %s164, %s180
    %p182 = scmp.eq.s32.totalorder %s20, 0
    %p183 = por %p181, %p182
    %s184 = ssub.s32 %s14, %s21
    %p185 = scmp.eq.s32.totalorder %s184, 0
    %s187 = sadd.s32 %s186, 1
    %s188 = scalar_select %p185, %s186, %s187
    %p191 = pneg %p185
    %p192 = scmp.eq.s32.totalorder %s14, 1
    %p193 = por %p191, %p192
    %p194 = scmp.ne.s32.totalorder %s186, %s189
    %p195 = scmp.eq.s32.totalorder %s14, 0
    %p196 = por %p194, %p195
    %p197 = scmp.ne.s32.totalorder %s186, %s189
    %p198 = scmp.eq.s32.totalorder %s19, 1
    %p199 = por %p197, %p198
    %p200 = scmp.ne.s32.totalorder %s189, %s190
    %p201 = scmp.eq.s32.totalorder %s19, 0
    %p202 = por %p200, %p201
    %p203 = scmp.ne.s32.totalorder %s189, %s190
    %p204 = scmp.eq.s32.totalorder %s20, 1
    %p205 = por %p203, %p204
    %p207 = scmp.ne.s32.totalorder %s190, %s206
    %p208 = scmp.eq.s32.totalorder %s20, 0
    %p209 = por %p207, %p208
    %p210 = scmp.le.s32.totalorder 1, %s14
    %p211 = scmp.lt.s32.totalorder %s14, 3
    %p212 = pnand %p210, %p211
    %p213 = pneg %p212
    // Predicated region
    $region9: #{dense_block_forward.5} parent=5 // pred_check
      _
    $region10: #{dense_block_forward.5} parent=5 // pred_check_branch
      %215 = sbr.rel (%p212) target = $region12
    $region11: #{dense_block_forward.5} parent=5 // pred_region
      %s216 = ssub.s32 %s14, 1
      // Predicated region
      $region13: #{dense_block_forward.5} parent=11 // pred_check
        %p217 = pneg %p61
      $region14: #{dense_block_forward.5} parent=11 // pred_check_branch
        %219 = sbr.rel (%p217) target = $region16
      $region15: #{dense_block_forward.5} parent=11 // pred_region
        _
      $region16: #{dense_block_forward.5} parent=11 // pred_fallthru
        _
      // Predicated region
      $region17: #{dense_block_forward.5} parent=11 // pred_check
        %p220 = pneg %p82
      $region18: #{dense_block_forward.5} parent=11 // pred_check_branch
        %222 = sbr.rel (%p220) target = $region20
      $region19: #{dense_block_forward.5} parent=11 // pred_region
        _
      $region20: #{dense_block_forward.5} parent=11 // pred_fallthru
        _
      // Predicated region
      $region21: #{dense_block_forward.5} parent=11 // pred_check
        %p223 = pneg %p103
      $region22: #{dense_block_forward.5} parent=11 // pred_check_branch
        %225 = sbr.rel (%p223) target = $region24
      $region23: #{dense_block_forward.5} parent=11 // pred_region
        _
      $region24: #{dense_block_forward.5} parent=11 // pred_fallthru
        _
      // Predicated region
      $region25: #{dense_block_forward.5} parent=11 // pred_check
        %p226 = pneg %p124
      $region26: #{dense_block_forward.5} parent=11 // pred_check_branch
        %228 = sbr.rel (%p226) target = $region28
      $region27: #{dense_block_forward.5} parent=11 // pred_region
        _
      $region28: #{dense_block_forward.5} parent=11 // pred_fallthru
        _
    $region12: #{dense_block_forward.5} parent=5 // pred_fallthru
      _
    %p229 = scmp.lt.s32.totalorder %s14, 2
    // Predicated region
    $region29: #{dense_block_forward.5} parent=5 // pred_check
      %p230 = pneg %p229
    $region30: #{dense_block_forward.5} parent=5 // pred_check_branch
      %232 = sbr.rel (%p230) target = $region32
    $region31: #{dense_block_forward.5} parent=5 // pred_region
      // Predicated region
      $region33: #{dense_block_forward.5} parent=31 // pred_check
        %p233 = pneg %p34
      $region34: #{dense_block_forward.5} parent=31 // pred_check_branch
        %235 = sbr.rel (%p233) target = $region36
      $region35: #{dense_block_forward.5} parent=31 // pred_region
        %p236 = scmp.lt.s32.totalorder %s14, 1
        %s237 = scalar_select %p236, %s14, 1
        %s238 = smul.addr %s237, 32
        %s239 = smul.addr %s238, 4
        %s240 = scalar_lea.vmem %s0, %s239
      $region36: #{dense_block_forward.5} parent=31 // pred_fallthru
        _
    $region32: #{dense_block_forward.5} parent=5 // pred_fallthru
      _
    %p241 = scmp.le.s32.totalorder 1, %s14
    %p242 = scmp.lt.s32.totalorder %s14, 3
    %p243 = pnand %p241, %p242
    %p244 = pneg %p243
    // Predicated region
    $region37: #{dense_block_forward.5} parent=5 // pred_check
      _
    $region38: #{dense_block_forward.5} parent=5 // pred_check_branch
      %246 = sbr.rel (%p243) target = $region40
    $region39: #{dense_block_forward.5} parent=5 // pred_region
      %s247 = ssub.s32 %s14, 1
      %p248 = scmp.lt.s32.totalorder %s19, 1
      %s249 = scalar_select %p248, %s19, 1
      %s250 = smul.addr %s249, 32
      %s251 = smul.addr %s250, 4
      %s252 = scalar_lea.vmem %s0, %s251
      %p253 = pneg %p40
      %p254 = pneg %p37
      %p255 = pneg %p61
      %p256 = pneg %p58
      %p257 = pneg %p82
      %p258 = pneg %p79
      %p259 = pneg %p103
      %p260 = pneg %p100
      %p261 = pneg %p124
      %p262 = pneg %p121
      %p263 = pneg %p150
      %p264 = pneg %p147
      %p265 = scmp.lt.s32.totalorder %s19, 1
      %s266 = scalar_select %p265, %s19, 1
      %s267 = smul.addr %s266, 32
      %s268 = smul.addr %s267, 4
      %s269 = scalar_lea.vmem %s5, %s268
      %p270 = pneg %p176
      %p271 = pneg %p173
      %p272 = scmp.lt.s32.totalorder %s19, 1
      %s273 = scalar_select %p272, %s19, 1
      %s274 = scalar_lea.vmem %s6, %s273
      %p275 = pneg %p202
      %p276 = pneg %p199
      %p277 = scmp.lt.s32.totalorder %s19, 1
      %s278 = scalar_select %p277, %s19, 1
      %s279 = scalar_lea.vmem %s7, %s278
      %p280 = scmp.lt.s32.totalorder %s19, 1
      %s281 = scalar_select %p280, %s19, 1
      %s282 = smul.addr %s281, 32
      %s283 = smul.addr %s282, 4
      %s284 = scalar_lea.vmem %s0, %s283
      %p285 = scmp.lt.s32.totalorder %s19, 1
      %s286 = scalar_select %p285, %s19, 1
      %s287 = smul.addr %s286, 32
      %s288 = smul.addr %s287, 4
      %s289 = scalar_lea.vmem %s5, %s288
      %p290 = scmp.lt.s32.totalorder %s19, 1
      %s291 = scalar_select %p290, %s19, 1
      %s292 = scalar_lea.vmem %s6, %s291
      %p293 = scmp.lt.s32.totalorder %s19, 1
      %s294 = scalar_select %p293, %s19, 1
      %s295 = scalar_lea.vmem %s7, %s294
      %297 = vst [vmem:[#allocation2] sm:$0xff] 0.0
      %298 = vst [vmem:[#allocation2 + $0x8] sm:$0xff] 0.0
      %299 = vst [vmem:[#allocation2 + $0x10] sm:$0x3] 0.0
      %300 = vst [vmem:[#allocation2 + $0x18] sm:$0xff] 0.0
      %301 = vst [vmem:[#allocation2 + $0x20] sm:$0xff] 0.0
      %302 = vst [vmem:[#allocation2 + $0x28] sm:$0x3] 0.0
      %303 = vst [vmem:[#allocation2 + $0x30] sm:$0xff] 0.0
      %304 = vst [vmem:[#allocation2 + $0x38] sm:$0xff] 0.0
      %305 = vst [vmem:[#allocation2 + $0x40] sm:$0x3] 0.0
      %306 = vst [vmem:[#allocation2 + $0x48] sm:$0xff] 0.0
      %307 = vst [vmem:[#allocation2 + $0x50] sm:$0xff] 0.0
      %308 = vst [vmem:[#allocation2 + $0x58] sm:$0x3] 0.0
      %309 = vst [vmem:[#allocation2 + $0x60] sm:$0xff] 0.0
      %310 = vst [vmem:[#allocation2 + $0x68] sm:$0xff] 0.0
      %311 = vst [vmem:[#allocation2 + $0x70] sm:$0x3] 0.0
      %312 = vst [vmem:[#allocation2 + $0x78] sm:$0xff] 0.0
      %313 = vst [vmem:[#allocation2 + $0x80] sm:$0xff] 0.0
      %314 = vst [vmem:[#allocation2 + $0x88] sm:$0x3] 0.0
      %315 = vst [vmem:[#allocation2 + $0x90] sm:$0xff] 0.0
      %316 = vst [vmem:[#allocation2 + $0x98] sm:$0xff] 0.0
      %317 = vst [vmem:[#allocation2 + $0xa0] sm:$0x3] 0.0
      %318 = vst [vmem:[#allocation2 + $0xa8] sm:$0xff] 0.0
      %319 = vst [vmem:[#allocation2 + $0xb0] sm:$0xff] 0.0
      %320 = vst [vmem:[#allocation2 + $0xb8] sm:$0x3] 0.0
      %321 = vst [vmem:[#allocation2 + $0xc0] sm:$0xff] 0.0
      %322 = vst [vmem:[#allocation2 + $0xc8] sm:$0xff] 0.0
      %323 = vst [vmem:[#allocation2 + $0xd0] sm:$0x3] 0.0
      %324 = vst [vmem:[#allocation2 + $0xd8] sm:$0xff] 0.0
      %325 = vst [vmem:[#allocation2 + $0xe0] sm:$0xff] 0.0
      %326 = vst [vmem:[#allocation2 + $0xe8] sm:$0x3] 0.0
      %327 = vst [vmem:[#allocation2 + $0xf0] sm:$0xff] 0.0
      %328 = vst [vmem:[#allocation2 + $0xf8] sm:$0xff] 0.0
      %329 = vst [vmem:[#allocation2 + $0x100] sm:$0x3] 0.0
      %330 = vst [vmem:[#allocation2 + $0x108] sm:$0xff] 0.0
      %331 = vst [vmem:[#allocation2 + $0x110] sm:$0xff] 0.0
      %332 = vst [vmem:[#allocation2 + $0x118] sm:$0x3] 0.0
      %333 = vst [vmem:[#allocation2 + $0x120] sm:$0xff] 0.0
      %334 = vst [vmem:[#allocation2 + $0x128] sm:$0xff] 0.0
      %335 = vst [vmem:[#allocation2 + $0x130] sm:$0x3] 0.0
      %336 = vst [vmem:[#allocation2 + $0x138] sm:$0xff] 0.0
      %337 = vst [vmem:[#allocation2 + $0x140] sm:$0xff] 0.0
      %338 = vst [vmem:[#allocation2 + $0x148] sm:$0x3] 0.0
      %339 = vst [vmem:[#allocation2 + $0x150] sm:$0xff] 0.0
      %340 = vst [vmem:[#allocation2 + $0x158] sm:$0xff] 0.0
      %341 = vst [vmem:[#allocation2 + $0x160] sm:$0x3] 0.0
      %342 = vst [vmem:[#allocation2 + $0x168] sm:$0xff] 0.0
      %343 = vst [vmem:[#allocation2 + $0x170] sm:$0xff] 0.0
      %344 = vst [vmem:[#allocation2 + $0x178] sm:$0x3] 0.0
      %345 = vst [vmem:[#allocation2 + $0x180] sm:$0xff] 0.0
      %346 = vst [vmem:[#allocation2 + $0x188] sm:$0xff] 0.0
      %347 = vst [vmem:[#allocation2 + $0x190] sm:$0x3] 0.0
      %348 = vst [vmem:[#allocation2 + $0x198] sm:$0xff] 0.0
      %349 = vst [vmem:[#allocation2 + $0x1a0] sm:$0xff] 0.0
      %350 = vst [vmem:[#allocation2 + $0x1a8] sm:$0x3] 0.0
      %v351 = vld [vmem:[%s284] sm:$0xf]
      %v352 = vld [vmem:[%s284 + $0x4] sm:$0xf]
      %v353 = vld [vmem:[%s284 + $0x8] sm:$0xf]
      %v354 = vld [vmem:[%s284 + $0xc] sm:$0xf]
      %v355 = vld [vmem:[%s284 + $0x10] sm:$0xf]
      %v356 = vld [vmem:[%s284 + $0x14] sm:$0xf]
      %v357 = vld [vmem:[%s284 + $0x18] sm:$0xf]
      %v358 = vld [vmem:[%s284 + $0x1c] sm:$0xf]
      %v359 = vld [vmem:[%s284 + $0x20] sm:$0xf]
      %v360 = vld [vmem:[%s284 + $0x24] sm:$0xf]
      %v361 = vld [vmem:[%s284 + $0x28] sm:$0xf]
      %v362 = vld [vmem:[%s284 + $0x2c] sm:$0xf]
      %v363 = vld [vmem:[%s284 + $0x30] sm:$0xf]
      %v364 = vld [vmem:[%s284 + $0x34] sm:$0xf]
      %v365 = vld [vmem:[%s284 + $0x38] sm:$0xf]
      %v366 = vld [vmem:[%s284 + $0x3c] sm:$0xf]
      %v367 = vld [vmem:[%s284 + $0x40] sm:$0xf]
      %v368 = vld [vmem:[%s284 + $0x44] sm:$0xf]
      %v369 = vld [vmem:[%s284 + $0x48] sm:$0xf]
      %v370 = vld [vmem:[%s284 + $0x4c] sm:$0xf]
      %v371 = vld [vmem:[%s284 + $0x50] sm:$0xf]
      %v372 = vld [vmem:[%s284 + $0x54] sm:$0xf]
      %v373 = vld [vmem:[%s284 + $0x58] sm:$0xf]
      %v374 = vld [vmem:[%s284 + $0x5c] sm:$0xf]
      %v375 = vld [vmem:[%s284 + $0x60] sm:$0xf]
      %v376 = vld [vmem:[%s284 + $0x64] sm:$0xf]
      %v377 = vld [vmem:[%s284 + $0x68] sm:$0xf]
      %v378 = vld [vmem:[%s284 + $0x6c] sm:$0xf]
      %v379 = vld [vmem:[%s284 + $0x70] sm:$0xf]
      %v380 = vld [vmem:[%s284 + $0x74] sm:$0xf]
      %v381 = vld [vmem:[%s284 + $0x78] sm:$0xf]
      %v382 = vld [vmem:[%s284 + $0x7c] sm:$0xf]
      %v383 = vunpack.c.l.bf16 %v351
      %v384 = vunpack.c.l.bf16 %v352
      %v385 = vunpack.c.l.bf16 %v353
      %v386 = vunpack.c.l.bf16 %v354
      %v387 = vunpack.c.l.bf16 %v355
      %v388 = vunpack.c.l.bf16 %v356
      %v389 = vunpack.c.l.bf16 %v357
      %v390 = vunpack.c.l.bf16 %v358
      %v391 = vunpack.c.l.bf16 %v359
      %v392 = vunpack.c.l.bf16 %v360
      %v393 = vunpack.c.l.bf16 %v361
      %v394 = vunpack.c.l.bf16 %v362
      %v395 = vunpack.c.l.bf16 %v363
      %v396 = vunpack.c.l.bf16 %v364
      %v397 = vunpack.c.l.bf16 %v365
      %v398 = vunpack.c.l.bf16 %v366
      %v399 = vunpack.c.l.bf16 %v367
      %v400 = vunpack.c.l.bf16 %v368
      %v401 = vunpack.c.l.bf16 %v369
      %v402 = vunpack.c.l.bf16 %v370
      %v403 = vunpack.c.l.bf16 %v371
      %v404 = vunpack.c.l.bf16 %v372
      %v405 = vunpack.c.l.bf16 %v373
      %v406 = vunpack.c.l.bf16 %v374
      %v407 = vunpack.c.l.bf16 %v375
      %v408 = vunpack.c.l.bf16 %v376
      %v409 = vunpack.c.l.bf16 %v377
      %v410 = vunpack.c.l.bf16 %v378
      %v411 = vunpack.c.l.bf16 %v379
      %v412 = vunpack.c.l.bf16 %v380
      %v413 = vunpack.c.l.bf16 %v381
      %v414 = vunpack.c.l.bf16 %v382
      %v415 = vld [vmem:[%s1] sm:$0x1]
      %v417 = vlaneseq
      %v418 = vshrl.u32 %v417, 7
      %v419 = vsub.s32 0, %v418
      %v420 = vrot.slane %v415, %v419
      %v422 = vmul.f32 %v383, %v420
      %v423 = vmul.f32 %v384, %v420
      %v424 = vmul.f32 %v385, %v420
      %v425 = vmul.f32 %v386, %v420
      %v426 = vmul.f32 %v387, %v420
      %v427 = vmul.f32 %v388, %v420
      %v428 = vmul.f32 %v389, %v420
      %v429 = vmul.f32 %v390, %v420
      %v430 = vmul.f32 %v391, %v420
      %v431 = vmul.f32 %v392, %v420
      %v432 = vmul.f32 %v393, %v420
      %v433 = vmul.f32 %v394, %v420
      %v434 = vmul.f32 %v395, %v420
      %v435 = vmul.f32 %v396, %v420
      %v436 = vmul.f32 %v397, %v420
      %v437 = vmul.f32 %v398, %v420
      %v438 = vmul.f32 %v399, %v420
      %v439 = vmul.f32 %v400, %v420
      %v440 = vmul.f32 %v401, %v420
      %v441 = vmul.f32 %v402, %v420
      %v442 = vmul.f32 %v403, %v420
      %v443 = vmul.f32 %v404, %v420
      %v444 = vmul.f32 %v405, %v420
      %v445 = vmul.f32 %v406, %v420
      %v446 = vmul.f32 %v407, %v420
      %v447 = vmul.f32 %v408, %v420
      %v448 = vmul.f32 %v409, %v420
      %v449 = vmul.f32 %v410, %v420
      %v450 = vmul.f32 %v411, %v420
      %v451 = vmul.f32 %v412, %v420
      %v452 = vmul.f32 %v413, %v420
      %v453 = vmul.f32 %v414, %v420
      %v454 = vld [vmem:[%s2] sm:$0x1]
      %v456 = vlaneseq
      %v457 = vshrl.u32 %v456, 7
      %v458 = vsub.s32 0, %v457
      %v459 = vrot.slane %v454, %v458
      %v461 = vadd.f32 %v422, %v459
      %v462 = vadd.f32 %v423, %v459
      %v463 = vadd.f32 %v424, %v459
      %v464 = vadd.f32 %v425, %v459
      %v465 = vadd.f32 %v426, %v459
      %v466 = vadd.f32 %v427, %v459
      %v467 = vadd.f32 %v428, %v459
      %v468 = vadd.f32 %v429, %v459
      %v469 = vadd.f32 %v430, %v459
      %v470 = vadd.f32 %v431, %v459
      %v471 = vadd.f32 %v432, %v459
      %v472 = vadd.f32 %v433, %v459
      %v473 = vadd.f32 %v434, %v459
      %v474 = vadd.f32 %v435, %v459
      %v475 = vadd.f32 %v436, %v459
      %v476 = vadd.f32 %v437, %v459
      %v477 = vadd.f32 %v438, %v459
      %v478 = vadd.f32 %v439, %v459
      %v479 = vadd.f32 %v440, %v459
      %v480 = vadd.f32 %v441, %v459
      %v481 = vadd.f32 %v442, %v459
      %v482 = vadd.f32 %v443, %v459
      %v483 = vadd.f32 %v444, %v459
      %v484 = vadd.f32 %v445, %v459
      %v485 = vadd.f32 %v446, %v459
      %v486 = vadd.f32 %v447, %v459
      %v487 = vadd.f32 %v448, %v459
      %v488 = vadd.f32 %v449, %v459
      %v489 = vadd.f32 %v450, %v459
      %v490 = vadd.f32 %v451, %v459
      %v491 = vadd.f32 %v452, %v459
      %v492 = vadd.f32 %v453, %v459
      %v493 = vmax.f32 %v461, 0.0
      %v494 = vmax.f32 %v462, 0.0
      %v495 = vmax.f32 %v463, 0.0
      %v496 = vmax.f32 %v464, 0.0
      %v497 = vmax.f32 %v465, 0.0
      %v498 = vmax.f32 %v466, 0.0
      %v499 = vmax.f32 %v467, 0.0
      %v500 = vmax.f32 %v468, 0.0
      %v501 = vmax.f32 %v469, 0.0
      %v502 = vmax.f32 %v470, 0.0
      %v503 = vmax.f32 %v471, 0.0
      %v504 = vmax.f32 %v472, 0.0
      %v505 = vmax.f32 %v473, 0.0
      %v506 = vmax.f32 %v474, 0.0
      %v507 = vmax.f32 %v475, 0.0
      %v508 = vmax.f32 %v476, 0.0
      %v509 = vmax.f32 %v477, 0.0
      %v510 = vmax.f32 %v478, 0.0
      %v511 = vmax.f32 %v479, 0.0
      %v512 = vmax.f32 %v480, 0.0
      %v513 = vmax.f32 %v481, 0.0
      %v514 = vmax.f32 %v482, 0.0
      %v515 = vmax.f32 %v483, 0.0
      %v516 = vmax.f32 %v484, 0.0
      %v517 = vmax.f32 %v485, 0.0
      %v518 = vmax.f32 %v486, 0.0
      %v519 = vmax.f32 %v487, 0.0
      %v520 = vmax.f32 %v488, 0.0
      %v521 = vmax.f32 %v489, 0.0
      %v522 = vmax.f32 %v490, 0.0
      %v523 = vmax.f32 %v491, 0.0
      %v524 = vmax.f32 %v492, 0.0
      %s525 = scalar_lea.vmem [#allocation2], 24
      %526 = vst [vmem:[%s525 + $0x1] sm:$0xff] %v493
      %527 = vst [vmem:[%s525 + $0x9] sm:$0xff] %v494
      %528 = vst [vmem:[%s525 + $0x19] sm:$0xff] %v495
      %529 = vst [vmem:[%s525 + $0x21] sm:$0xff] %v496
      %530 = vst [vmem:[%s525 + $0x31] sm:$0xff] %v497
      %531 = vst [vmem:[%s525 + $0x39] sm:$0xff] %v498
      %532 = vst [vmem:[%s525 + $0x49] sm:$0xff] %v499
      %533 = vst [vmem:[%s525 + $0x51] sm:$0xff] %v500
      %534 = vst [vmem:[%s525 + $0x61] sm:$0xff] %v501
      %535 = vst [vmem:[%s525 + $0x69] sm:$0xff] %v502
      %536 = vst [vmem:[%s525 + $0x79] sm:$0xff] %v503
      %537 = vst [vmem:[%s525 + $0x81] sm:$0xff] %v504
      %538 = vst [vmem:[%s525 + $0x91] sm:$0xff] %v505
      %539 = vst [vmem:[%s525 + $0x99] sm:$0xff] %v506
      %540 = vst [vmem:[%s525 + $0xa9] sm:$0xff] %v507
      %541 = vst [vmem:[%s525 + $0xb1] sm:$0xff] %v508
      %542 = vst [vmem:[%s525 + $0xc1] sm:$0xff] %v509
      %543 = vst [vmem:[%s525 + $0xc9] sm:$0xff] %v510
      %544 = vst [vmem:[%s525 + $0xd9] sm:$0xff] %v511
      %545 = vst [vmem:[%s525 + $0xe1] sm:$0xff] %v512
      %546 = vst [vmem:[%s525 + $0xf1] sm:$0xff] %v513
      %547 = vst [vmem:[%s525 + $0xf9] sm:$0xff] %v514
      %548 = vst [vmem:[%s525 + $0x109] sm:$0xff] %v515
      %549 = vst [vmem:[%s525 + $0x111] sm:$0xff] %v516
      %550 = vst [vmem:[%s525 + $0x121] sm:$0xff] %v517
      %551 = vst [vmem:[%s525 + $0x129] sm:$0xff] %v518
      %552 = vst [vmem:[%s525 + $0x139] sm:$0xff] %v519
      %553 = vst [vmem:[%s525 + $0x141] sm:$0xff] %v520
      %554 = vst [vmem:[%s525 + $0x151] sm:$0xff] %v521
      %555 = vst [vmem:[%s525 + $0x159] sm:$0xff] %v522
      %556 = vst [vmem:[%s525 + $0x169] sm:$0xff] %v523
      %557 = vst [vmem:[%s525 + $0x171] sm:$0xff] %v524
      %v558 = vld [vmem:[#allocation2] sm:$0xff]
      %v559 = vld [vmem:[#allocation2 + $0x8] sm:$0xff]
      %v560 = vld [vmem:[#allocation2 + $0x18] sm:$0xff]
      %v561 = vld [vmem:[#allocation2 + $0x20] sm:$0xff]
      %v562 = vld [vmem:[#allocation2 + $0x30] sm:$0xff]
      %v563 = vld [vmem:[#allocation2 + $0x38] sm:$0xff]
      %v564 = vld [vmem:[#allocation2 + $0x48] sm:$0xff]
      %v565 = vld [vmem:[#allocation2 + $0x50] sm:$0xff]
      %v566 = vld [vmem:[#allocation2 + $0x60] sm:$0xff]
      %v567 = vld [vmem:[#allocation2 + $0x68] sm:$0xff]
      %v568 = vld [vmem:[#allocation2 + $0x78] sm:$0xff]
      %v569 = vld [vmem:[#allocation2 + $0x80] sm:$0xff]
      %v570 = vld [vmem:[#allocation2 + $0x90] sm:$0xff]
      %v571 = vld [vmem:[#allocation2 + $0x98] sm:$0xff]
      %v572 = vld [vmem:[#allocation2 + $0xa8] sm:$0xff]
      %v573 = vld [vmem:[#allocation2 + $0xb0] sm:$0xff]
      %v574 = vld [vmem:[#allocation2 + $0xc0] sm:$0xff]
      %v575 = vld [vmem:[#allocation2 + $0xc8] sm:$0xff]
      %v576 = vld [vmem:[#allocation2 + $0xd8] sm:$0xff]
      %v577 = vld [vmem:[#allocation2 + $0xe0] sm:$0xff]
      %v578 = vld [vmem:[#allocation2 + $0xf0] sm:$0xff]
      %v579 = vld [vmem:[#allocation2 + $0xf8] sm:$0xff]
      %v580 = vld [vmem:[#allocation2 + $0x108] sm:$0xff]
      %v581 = vld [vmem:[#allocation2 + $0x110] sm:$0xff]
      %v582 = vld [vmem:[#allocation2 + $0x120] sm:$0xff]
      %v583 = vld [vmem:[#allocation2 + $0x128] sm:$0xff]
      %v584 = vld [vmem:[#allocation2 + $0x138] sm:$0xff]
      %v585 = vld [vmem:[#allocation2 + $0x140] sm:$0xff]
      %v586 = vld [vmem:[#allocation2 + $0x150] sm:$0xff]
      %v587 = vld [vmem:[#allocation2 + $0x158] sm:$0xff]
      %v588 = vld [vmem:[#allocation2 + $0x168] sm:$0xff]
      %v589 = vld [vmem:[#allocation2 + $0x170] sm:$0xff]
      %v590 = vpack.c.bf16 %v559, %v558
      %v591 = vpack.c.bf16 %v561, %v560
      %v592 = vpack.c.bf16 %v563, %v562
      %v593 = vpack.c.bf16 %v565, %v564
      %v594 = vpack.c.bf16 %v567, %v566
      %v595 = vpack.c.bf16 %v569, %v568
      %v596 = vpack.c.bf16 %v571, %v570
      %v597 = vpack.c.bf16 %v573, %v572
      %v598 = vpack.c.bf16 %v575, %v574
      %v599 = vpack.c.bf16 %v577, %v576
      %v600 = vpack.c.bf16 %v579, %v578
      %v601 = vpack.c.bf16 %v581, %v580
      %v602 = vpack.c.bf16 %v583, %v582
      %v603 = vpack.c.bf16 %v585, %v584
      %v604 = vpack.c.bf16 %v587, %v586
      %v605 = vpack.c.bf16 %v589, %v588
      %v606 = vld [vmem:[#allocation2 + $0x1] sm:$0xff]
      %v607 = vld [vmem:[#allocation2 + $0x9] sm:$0xff]
      %v608 = vld [vmem:[#allocation2 + $0x19] sm:$0xff]
      %v609 = vld [vmem:[#allocation2 + $0x21] sm:$0xff]
      %v610 = vld [vmem:[#allocation2 + $0x31] sm:$0xff]
      %v611 = vld [vmem:[#allocation2 + $0x39] sm:$0xff]
      %v612 = vld [vmem:[#allocation2 + $0x49] sm:$0xff]
      %v613 = vld [vmem:[#allocation2 + $0x51] sm:$0xff]
      %v614 = vld [vmem:[#allocation2 + $0x61] sm:$0xff]
      %v615 = vld [vmem:[#allocation2 + $0x69] sm:$0xff]
      %v616 = vld [vmem:[#allocation2 + $0x79] sm:$0xff]
      %v617 = vld [vmem:[#allocation2 + $0x81] sm:$0xff]
      %v618 = vld [vmem:[#allocation2 + $0x91] sm:$0xff]
      %v619 = vld [vmem:[#allocation2 + $0x99] sm:$0xff]
      %v620 = vld [vmem:[#allocation2 + $0xa9] sm:$0xff]
      %v621 = vld [vmem:[#allocation2 + $0xb1] sm:$0xff]
      %v622 = vld [vmem:[#allocation2 + $0xc1] sm:$0xff]
      %v623 = vld [vmem:[#allocation2 + $0xc9] sm:$0xff]
      %v624 = vld [vmem:[#allocation2 + $0xd9] sm:$0xff]
      %v625 = vld [vmem:[#allocation2 + $0xe1] sm:$0xff]
      %v626 = vld [vmem:[#allocation2 + $0xf1] sm:$0xff]
      %v627 = vld [vmem:[#allocation2 + $0xf9] sm:$0xff]
      %v628 = vld [vmem:[#allocation2 + $0x109] sm:$0xff]
      %v629 = vld [vmem:[#allocation2 + $0x111] sm:$0xff]
      %v630 = vld [vmem:[#allocation2 + $0x121] sm:$0xff]
      %v631 = vld [vmem:[#allocation2 + $0x129] sm:$0xff]
      %v632 = vld [vmem:[#allocation2 + $0x139] sm:$0xff]
      %v633 = vld [vmem:[#allocation2 + $0x141] sm:$0xff]
      %v634 = vld [vmem:[#allocation2 + $0x151] sm:$0xff]
      %v635 = vld [vmem:[#allocation2 + $0x159] sm:$0xff]
      %v636 = vld [vmem:[#allocation2 + $0x169] sm:$0xff]
      %v637 = vld [vmem:[#allocation2 + $0x171] sm:$0xff]
      %v638 = vpack.c.bf16 %v607, %v606
      %v639 = vpack.c.bf16 %v609, %v608
      %v640 = vpack.c.bf16 %v611, %v610
      %v641 = vpack.c.bf16 %v613, %v612
      %v642 = vpack.c.bf16 %v615, %v614
      %v643 = vpack.c.bf16 %v617, %v616
      %v644 = vpack.c.bf16 %v619, %v618
      %v645 = vpack.c.bf16 %v621, %v620
      %v646 = vpack.c.bf16 %v623, %v622
      %v647 = vpack.c.bf16 %v625, %v624
      %v648 = vpack.c.bf16 %v627, %v626
      %v649 = vpack.c.bf16 %v629, %v628
      %v650 = vpack.c.bf16 %v631, %v630
      %v651 = vpack.c.bf16 %v633, %v632
      %v652 = vpack.c.bf16 %v635, %v634
      %v653 = vpack.c.bf16 %v637, %v636
      %v654 = vld [vmem:[#allocation2 + $0x2] sm:$0xff]
      %v655 = vld [vmem:[#allocation2 + $0xa] sm:$0xff]
      %v656 = vld [vmem:[#allocation2 + $0x1a] sm:$0xff]
      %v657 = vld [vmem:[#allocation2 + $0x22] sm:$0xff]
      %v658 = vld [vmem:[#allocation2 + $0x32] sm:$0xff]
      %v659 = vld [vmem:[#allocation2 + $0x3a] sm:$0xff]
      %v660 = vld [vmem:[#allocation2 + $0x4a] sm:$0xff]
      %v661 = vld [vmem:[#allocation2 + $0x52] sm:$0xff]
      %v662 = vld [vmem:[#allocation2 + $0x62] sm:$0xff]
      %v663 = vld [vmem:[#allocation2 + $0x6a] sm:$0xff]
      %v664 = vld [vmem:[#allocation2 + $0x7a] sm:$0xff]
      %v665 = vld [vmem:[#allocation2 + $0x82] sm:$0xff]
      %v666 = vld [vmem:[#allocation2 + $0x92] sm:$0xff]
      %v667 = vld [vmem:[#allocation2 + $0x9a] sm:$0xff]
      %v668 = vld [vmem:[#allocation2 + $0xaa] sm:$0xff]
      %v669 = vld [vmem:[#allocation2 + $0xb2] sm:$0xff]
      %v670 = vld [vmem:[#allocation2 + $0xc2] sm:$0xff]
      %v671 = vld [vmem:[#allocation2 + $0xca] sm:$0xff]
      %v672 = vld [vmem:[#allocation2 + $0xda] sm:$0xff]
      %v673 = vld [vmem:[#allocation2 + $0xe2] sm:$0xff]
      %v674 = vld [vmem:[#allocation2 + $0xf2] sm:$0xff]
      %v675 = vld [vmem:[#allocation2 + $0xfa] sm:$0xff]
      %v676 = vld [vmem:[#allocation2 + $0x10a] sm:$0xff]
      %v677 = vld [vmem:[#allocation2 + $0x112] sm:$0xff]
      %v678 = vld [vmem:[#allocation2 + $0x122] sm:$0xff]
      %v679 = vld [vmem:[#allocation2 + $0x12a] sm:$0xff]
      %v680 = vld [vmem:[#allocation2 + $0x13a] sm:$0xff]
      %v681 = vld [vmem:[#allocation2 + $0x142] sm:$0xff]
      %v682 = vld [vmem:[#allocation2 + $0x152] sm:$0xff]
      %v683 = vld [vmem:[#allocation2 + $0x15a] sm:$0xff]
      %v684 = vld [vmem:[#allocation2 + $0x16a] sm:$0xff]
      %v685 = vld [vmem:[#allocation2 + $0x172] sm:$0xff]
      %v686 = vpack.c.bf16 %v655, %v654
      %v687 = vpack.c.bf16 %v657, %v656
      %v688 = vpack.c.bf16 %v659, %v658
      %v689 = vpack.c.bf16 %v661, %v660
      %v690 = vpack.c.bf16 %v663, %v662
      %v691 = vpack.c.bf16 %v665, %v664
      %v692 = vpack.c.bf16 %v667, %v666
      %v693 = vpack.c.bf16 %v669, %v668
      %v694 = vpack.c.bf16 %v671, %v670
      %v695 = vpack.c.bf16 %v673, %v672
      %v696 = vpack.c.bf16 %v675, %v674
      %v697 = vpack.c.bf16 %v677, %v676
      %v698 = vpack.c.bf16 %v679, %v678
      %v699 = vpack.c.bf16 %v681, %v680
      %v700 = vpack.c.bf16 %v683, %v682
      %v701 = vpack.c.bf16 %v685, %v684
      %v702 = vld [vmem:[%s525] sm:$0xff]
      %v703 = vld [vmem:[%s525 + $0x8] sm:$0xff]
      %v704 = vld [vmem:[%s525 + $0x18] sm:$0xff]
      %v705 = vld [vmem:[%s525 + $0x20] sm:$0xff]
      %v706 = vld [vmem:[%s525 + $0x30] sm:$0xff]
      %v707 = vld [vmem:[%s525 + $0x38] sm:$0xff]
      %v708 = vld [vmem:[%s525 + $0x48] sm:$0xff]
      %v709 = vld [vmem:[%s525 + $0x50] sm:$0xff]
      %v710 = vld [vmem:[%s525 + $0x60] sm:$0xff]
      %v711 = vld [vmem:[%s525 + $0x68] sm:$0xff]
      %v712 = vld [vmem:[%s525 + $0x78] sm:$0xff]
      %v713 = vld [vmem:[%s525 + $0x80] sm:$0xff]
      %v714 = vld [vmem:[%s525 + $0x90] sm:$0xff]
      %v715 = vld [vmem:[%s525 + $0x98] sm:$0xff]
      %v716 = vld [vmem:[%s525 + $0xa8] sm:$0xff]
      %v717 = vld [vmem:[%s525 + $0xb0] sm:$0xff]
      %v718 = vld [vmem:[%s525 + $0xc0] sm:$0xff]
      %v719 = vld [vmem:[%s525 + $0xc8] sm:$0xff]
      %v720 = vld [vmem:[%s525 + $0xd8] sm:$0xff]
      %v721 = vld [vmem:[%s525 + $0xe0] sm:$0xff]
      %v722 = vld [vmem:[%s525 + $0xf0] sm:$0xff]
      %v723 = vld [vmem:[%s525 + $0xf8] sm:$0xff]
      %v724 = vld [vmem:[%s525 + $0x108] sm:$0xff]
      %v725 = vld [vmem:[%s525 + $0x110] sm:$0xff]
      %v726 = vld [vmem:[%s525 + $0x120] sm:$0xff]
      %v727 = vld [vmem:[%s525 + $0x128] sm:$0xff]
      %v728 = vld [vmem:[%s525 + $0x138] sm:$0xff]
      %v729 = vld [vmem:[%s525 + $0x140] sm:$0xff]
      %v730 = vld [vmem:[%s525 + $0x150] sm:$0xff]
      %v731 = vld [vmem:[%s525 + $0x158] sm:$0xff]
      %v732 = vld [vmem:[%s525 + $0x168] sm:$0xff]
      %v733 = vld [vmem:[%s525 + $0x170] sm:$0xff]
      %v734 = vpack.c.bf16 %v703, %v702
      %v735 = vpack.c.bf16 %v705, %v704
      %v736 = vpack.c.bf16 %v707, %v706
      %v737 = vpack.c.bf16 %v709, %v708
      %v738 = vpack.c.bf16 %v711, %v710
      %v739 = vpack.c.bf16 %v713, %v712
      %v740 = vpack.c.bf16 %v715, %v714
      %v741 = vpack.c.bf16 %v717, %v716
      %v742 = vpack.c.bf16 %v719, %v718
      %v743 = vpack.c.bf16 %v721, %v720
      %v744 = vpack.c.bf16 %v723, %v722
      %v745 = vpack.c.bf16 %v725, %v724
      %v746 = vpack.c.bf16 %v727, %v726
      %v747 = vpack.c.bf16 %v729, %v728
      %v748 = vpack.c.bf16 %v731, %v730
      %v749 = vpack.c.bf16 %v733, %v732
      %v750 = vld [vmem:[%s525 + $0x1] sm:$0xff]
      %v751 = vld [vmem:[%s525 + $0x9] sm:$0xff]
      %v752 = vld [vmem:[%s525 + $0x19] sm:$0xff]
      %v753 = vld [vmem:[%s525 + $0x21] sm:$0xff]
      %v754 = vld [vmem:[%s525 + $0x31] sm:$0xff]
      %v755 = vld [vmem:[%s525 + $0x39] sm:$0xff]
      %v756 = vld [vmem:[%s525 + $0x49] sm:$0xff]
      %v757 = vld [vmem:[%s525 + $0x51] sm:$0xff]
      %v758 = vld [vmem:[%s525 + $0x61] sm:$0xff]
      %v759 = vld [vmem:[%s525 + $0x69] sm:$0xff]
      %v760 = vld [vmem:[%s525 + $0x79] sm:$0xff]
      %v761 = vld [vmem:[%s525 + $0x81] sm:$0xff]
      %v762 = vld [vmem:[%s525 + $0x91] sm:$0xff]
      %v763 = vld [vmem:[%s525 + $0x99] sm:$0xff]
      %v764 = vld [vmem:[%s525 + $0xa9] sm:$0xff]
      %v765 = vld [vmem:[%s525 + $0xb1] sm:$0xff]
      %v766 = vld [vmem:[%s525 + $0xc1] sm:$0xff]
      %v767 = vld [vmem:[%s525 + $0xc9] sm:$0xff]
      %v768 = vld [vmem:[%s525 + $0xd9] sm:$0xff]
      %v769 = vld [vmem:[%s525 + $0xe1] sm:$0xff]
      %v770 = vld [vmem:[%s525 + $0xf1] sm:$0xff]
      %v771 = vld [vmem:[%s525 + $0xf9] sm:$0xff]
      %v772 = vld [vmem:[%s525 + $0x109] sm:$0xff]
      %v773 = vld [vmem:[%s525 + $0x111] sm:$0xff]
      %v774 = vld [vmem:[%s525 + $0x121] sm:$0xff]
      %v775 = vld [vmem:[%s525 + $0x129] sm:$0xff]
      %v776 = vld [vmem:[%s525 + $0x139] sm:$0xff]
      %v777 = vld [vmem:[%s525 + $0x141] sm:$0xff]
      %v778 = vld [vmem:[%s525 + $0x151] sm:$0xff]
      %v779 = vld [vmem:[%s525 + $0x159] sm:$0xff]
      %v780 = vld [vmem:[%s525 + $0x169] sm:$0xff]
      %v781 = vld [vmem:[%s525 + $0x171] sm:$0xff]
      %v782 = vpack.c.bf16 %v751, %v750
      %v783 = vpack.c.bf16 %v753, %v752
      %v784 = vpack.c.bf16 %v755, %v754
      %v785 = vpack.c.bf16 %v757, %v756
      %v786 = vpack.c.bf16 %v759, %v758
      %v787 = vpack.c.bf16 %v761, %v760
      %v788 = vpack.c.bf16 %v763, %v762
      %v789 = vpack.c.bf16 %v765, %v764
      %v790 = vpack.c.bf16 %v767, %v766
      %v791 = vpack.c.bf16 %v769, %v768
      %v792 = vpack.c.bf16 %v771, %v770
      %v793 = vpack.c.bf16 %v773, %v772
      %v794 = vpack.c.bf16 %v775, %v774
      %v795 = vpack.c.bf16 %v777, %v776
      %v796 = vpack.c.bf16 %v779, %v778
      %v797 = vpack.c.bf16 %v781, %v780
      %v798 = vld [vmem:[%s525 + $0x2] sm:$0xff]
      %v799 = vld [vmem:[%s525 + $0xa] sm:$0xff]
      %v800 = vld [vmem:[%s525 + $0x1a] sm:$0xff]
      %v801 = vld [vmem:[%s525 + $0x22] sm:$0xff]
      %v802 = vld [vmem:[%s525 + $0x32] sm:$0xff]
      %v803 = vld [vmem:[%s525 + $0x3a] sm:$0xff]
      %v804 = vld [vmem:[%s525 + $0x4a] sm:$0xff]
      %v805 = vld [vmem:[%s525 + $0x52] sm:$0xff]
      %v806 = vld [vmem:[%s525 + $0x62] sm:$0xff]
      %v807 = vld [vmem:[%s525 + $0x6a] sm:$0xff]
      %v808 = vld [vmem:[%s525 + $0x7a] sm:$0xff]
      %v809 = vld [vmem:[%s525 + $0x82] sm:$0xff]
      %v810 = vld [vmem:[%s525 + $0x92] sm:$0xff]
      %v811 = vld [vmem:[%s525 + $0x9a] sm:$0xff]
      %v812 = vld [vmem:[%s525 + $0xaa] sm:$0xff]
      %v813 = vld [vmem:[%s525 + $0xb2] sm:$0xff]
      %v814 = vld [vmem:[%s525 + $0xc2] sm:$0xff]
      %v815 = vld [vmem:[%s525 + $0xca] sm:$0xff]
      %v816 = vld [vmem:[%s525 + $0xda] sm:$0xff]
      %v817 = vld [vmem:[%s525 + $0xe2] sm:$0xff]
      %v818 = vld [vmem:[%s525 + $0xf2] sm:$0xff]
      %v819 = vld [vmem:[%s525 + $0xfa] sm:$0xff]
      %v820 = vld [vmem:[%s525 + $0x10a] sm:$0xff]
      %v821 = vld [vmem:[%s525 + $0x112] sm:$0xff]
      %v822 = vld [vmem:[%s525 + $0x122] sm:$0xff]
      %v823 = vld [vmem:[%s525 + $0x12a] sm:$0xff]
      %v824 = vld [vmem:[%s525 + $0x13a] sm:$0xff]
      %v825 = vld [vmem:[%s525 + $0x142] sm:$0xff]
      %v826 = vld [vmem:[%s525 + $0x152] sm:$0xff]
      %v827 = vld [vmem:[%s525 + $0x15a] sm:$0xff]
      %v828 = vld [vmem:[%s525 + $0x16a] sm:$0xff]
      %v829 = vld [vmem:[%s525 + $0x172] sm:$0xff]
      %v830 = vpack.c.bf16 %v799, %v798
      %v831 = vpack.c.bf16 %v801, %v800
      %v832 = vpack.c.bf16 %v803, %v802
      %v833 = vpack.c.bf16 %v805, %v804
      %v834 = vpack.c.bf16 %v807, %v806
      %v835 = vpack.c.bf16 %v809, %v808
      %v836 = vpack.c.bf16 %v811, %v810
      %v837 = vpack.c.bf16 %v813, %v812
      %v838 = vpack.c.bf16 %v815, %v814
      %v839 = vpack.c.bf16 %v817, %v816
      %v840 = vpack.c.bf16 %v819, %v818
      %v841 = vpack.c.bf16 %v821, %v820
      %v842 = vpack.c.bf16 %v823, %v822
      %v843 = vpack.c.bf16 %v825, %v824
      %v844 = vpack.c.bf16 %v827, %v826
      %v845 = vpack.c.bf16 %v829, %v828
      %s846 = scalar_lea.vmem [#allocation2], 48
      %v847 = vld [vmem:[%s846] sm:$0xff]
      %v848 = vld [vmem:[%s846 + $0x8] sm:$0xff]
      %v849 = vld [vmem:[%s846 + $0x18] sm:$0xff]
      %v850 = vld [vmem:[%s846 + $0x20] sm:$0xff]
      %v851 = vld [vmem:[%s846 + $0x30] sm:$0xff]
      %v852 = vld [vmem:[%s846 + $0x38] sm:$0xff]
      %v853 = vld [vmem:[%s846 + $0x48] sm:$0xff]
      %v854 = vld [vmem:[%s846 + $0x50] sm:$0xff]
      %v855 = vld [vmem:[%s846 + $0x60] sm:$0xff]
      %v856 = vld [vmem:[%s846 + $0x68] sm:$0xff]
      %v857 = vld [vmem:[%s846 + $0x78] sm:$0xff]
      %v858 = vld [vmem:[%s846 + $0x80] sm:$0xff]
      %v859 = vld [vmem:[%s846 + $0x90] sm:$0xff]
      %v860 = vld [vmem:[%s846 + $0x98] sm:$0xff]
      %v861 = vld [vmem:[%s846 + $0xa8] sm:$0xff]
      %v862 = vld [vmem:[%s846 + $0xb0] sm:$0xff]
      %v863 = vld [vmem:[%s846 + $0xc0] sm:$0xff]
      %v864 = vld [vmem:[%s846 + $0xc8] sm:$0xff]
      %v865 = vld [vmem:[%s846 + $0xd8] sm:$0xff]
      %v866 = vld [vmem:[%s846 + $0xe0] sm:$0xff]
      %v867 = vld [vmem:[%s846 + $0xf0] sm:$0xff]
      %v868 = vld [vmem:[%s846 + $0xf8] sm:$0xff]
      %v869 = vld [vmem:[%s846 + $0x108] sm:$0xff]
      %v870 = vld [vmem:[%s846 + $0x110] sm:$0xff]
      %v871 = vld [vmem:[%s846 + $0x120] sm:$0xff]
      %v872 = vld [vmem:[%s846 + $0x128] sm:$0xff]
      %v873 = vld [vmem:[%s846 + $0x138] sm:$0xff]
      %v874 = vld [vmem:[%s846 + $0x140] sm:$0xff]
      %v875 = vld [vmem:[%s846 + $0x150] sm:$0xff]
      %v876 = vld [vmem:[%s846 + $0x158] sm:$0xff]
      %v877 = vld [vmem:[%s846 + $0x168] sm:$0xff]
      %v878 = vld [vmem:[%s846 + $0x170] sm:$0xff]
      %v879 = vpack.c.bf16 %v848, %v847
      %v880 = vpack.c.bf16 %v850, %v849
      %v881 = vpack.c.bf16 %v852, %v851
      %v882 = vpack.c.bf16 %v854, %v853
      %v883 = vpack.c.bf16 %v856, %v855
      %v884 = vpack.c.bf16 %v858, %v857
      %v885 = vpack.c.bf16 %v860, %v859
      %v886 = vpack.c.bf16 %v862, %v861
      %v887 = vpack.c.bf16 %v864, %v863
      %v888 = vpack.c.bf16 %v866, %v865
      %v889 = vpack.c.bf16 %v868, %v867
      %v890 = vpack.c.bf16 %v870, %v869
      %v891 = vpack.c.bf16 %v872, %v871
      %v892 = vpack.c.bf16 %v874, %v873
      %v893 = vpack.c.bf16 %v876, %v875
      %v894 = vpack.c.bf16 %v878, %v877
      %v895 = vld [vmem:[%s846 + $0x1] sm:$0xff]
      %v896 = vld [vmem:[%s846 + $0x9] sm:$0xff]
      %v897 = vld [vmem:[%s846 + $0x19] sm:$0xff]
      %v898 = vld [vmem:[%s846 + $0x21] sm:$0xff]
      %v899 = vld [vmem:[%s846 + $0x31] sm:$0xff]
      %v900 = vld [vmem:[%s846 + $0x39] sm:$0xff]
      %v901 = vld [vmem:[%s846 + $0x49] sm:$0xff]
      %v902 = vld [vmem:[%s846 + $0x51] sm:$0xff]
      %v903 = vld [vmem:[%s846 + $0x61] sm:$0xff]
      %v904 = vld [vmem:[%s846 + $0x69] sm:$0xff]
      %v905 = vld [vmem:[%s846 + $0x79] sm:$0xff]
      %v906 = vld [vmem:[%s846 + $0x81] sm:$0xff]
      %v907 = vld [vmem:[%s846 + $0x91] sm:$0xff]
      %v908 = vld [vmem:[%s846 + $0x99] sm:$0xff]
      %v909 = vld [vmem:[%s846 + $0xa9] sm:$0xff]
      %v910 = vld [vmem:[%s846 + $0xb1] sm:$0xff]
      %v911 = vld [vmem:[%s846 + $0xc1] sm:$0xff]
      %v912 = vld [vmem:[%s846 + $0xc9] sm:$0xff]
      %v913 = vld [vmem:[%s846 + $0xd9] sm:$0xff]
      %v914 = vld [vmem:[%s846 + $0xe1] sm:$0xff]
      %v915 = vld [vmem:[%s846 + $0xf1] sm:$0xff]
      %v916 = vld [vmem:[%s846 + $0xf9] sm:$0xff]
      %v917 = vld [vmem:[%s846 + $0x109] sm:$0xff]
      %v918 = vld [vmem:[%s846 + $0x111] sm:$0xff]
      %v919 = vld [vmem:[%s846 + $0x121] sm:$0xff]
      %v920 = vld [vmem:[%s846 + $0x129] sm:$0xff]
      %v921 = vld [vmem:[%s846 + $0x139] sm:$0xff]
      %v922 = vld [vmem:[%s846 + $0x141] sm:$0xff]
      %v923 = vld [vmem:[%s846 + $0x151] sm:$0xff]
      %v924 = vld [vmem:[%s846 + $0x159] sm:$0xff]
      %v925 = vld [vmem:[%s846 + $0x169] sm:$0xff]
      %v926 = vld [vmem:[%s846 + $0x171] sm:$0xff]
      %v927 = vpack.c.bf16 %v896, %v895
      %v928 = vpack.c.bf16 %v898, %v897
      %v929 = vpack.c.bf16 %v900, %v899
      %v930 = vpack.c.bf16 %v902, %v901
      %v931 = vpack.c.bf16 %v904, %v903
      %v932 = vpack.c.bf16 %v906, %v905
      %v933 = vpack.c.bf16 %v908, %v907
      %v934 = vpack.c.bf16 %v910, %v909
      %v935 = vpack.c.bf16 %v912, %v911
      %v936 = vpack.c.bf16 %v914, %v913
      %v937 = vpack.c.bf16 %v916, %v915
      %v938 = vpack.c.bf16 %v918, %v917
      %v939 = vpack.c.bf16 %v920, %v919
      %v940 = vpack.c.bf16 %v922, %v921
      %v941 = vpack.c.bf16 %v924, %v923
      %v942 = vpack.c.bf16 %v926, %v925
      %v943 = vld [vmem:[%s846 + $0x2] sm:$0xff]
      %v944 = vld [vmem:[%s846 + $0xa] sm:$0xff]
      %v945 = vld [vmem:[%s846 + $0x1a] sm:$0xff]
      %v946 = vld [vmem:[%s846 + $0x22] sm:$0xff]
      %v947 = vld [vmem:[%s846 + $0x32] sm:$0xff]
      %v948 = vld [vmem:[%s846 + $0x3a] sm:$0xff]
      %v949 = vld [vmem:[%s846 + $0x4a] sm:$0xff]
      %v950 = vld [vmem:[%s846 + $0x52] sm:$0xff]
      %v951 = vld [vmem:[%s846 + $0x62] sm:$0xff]
      %v952 = vld [vmem:[%s846 + $0x6a] sm:$0xff]
      %v953 = vld [vmem:[%s846 + $0x7a] sm:$0xff]
      %v954 = vld [vmem:[%s846 + $0x82] sm:$0xff]
      %v955 = vld [vmem:[%s846 + $0x92] sm:$0xff]
      %v956 = vld [vmem:[%s846 + $0x9a] sm:$0xff]
      %v957 = vld [vmem:[%s846 + $0xaa] sm:$0xff]
      %v958 = vld [vmem:[%s846 + $0xb2] sm:$0xff]
      %v959 = vld [vmem:[%s846 + $0xc2] sm:$0xff]
      %v960 = vld [vmem:[%s846 + $0xca] sm:$0xff]
      %v961 = vld [vmem:[%s846 + $0xda] sm:$0xff]
      %v962 = vld [vmem:[%s846 + $0xe2] sm:$0xff]
      %v963 = vld [vmem:[%s846 + $0xf2] sm:$0xff]
      %v964 = vld [vmem:[%s846 + $0xfa] sm:$0xff]
      %v965 = vld [vmem:[%s846 + $0x10a] sm:$0xff]
      %v966 = vld [vmem:[%s846 + $0x112] sm:$0xff]
      %v967 = vld [vmem:[%s846 + $0x122] sm:$0xff]
      %v968 = vld [vmem:[%s846 + $0x12a] sm:$0xff]
      %v969 = vld [vmem:[%s846 + $0x13a] sm:$0xff]
      %v970 = vld [vmem:[%s846 + $0x142] sm:$0xff]
      %v971 = vld [vmem:[%s846 + $0x152] sm:$0xff]
      %v972 = vld [vmem:[%s846 + $0x15a] sm:$0xff]
      %v973 = vld [vmem:[%s846 + $0x16a] sm:$0xff]
      %v974 = vld [vmem:[%s846 + $0x172] sm:$0xff]
      %v975 = vpack.c.bf16 %v944, %v943
      %v976 = vpack.c.bf16 %v946, %v945
      %v977 = vpack.c.bf16 %v948, %v947
      %v978 = vpack.c.bf16 %v950, %v949
      %v979 = vpack.c.bf16 %v952, %v951
      %v980 = vpack.c.bf16 %v954, %v953
      %v981 = vpack.c.bf16 %v956, %v955
      %v982 = vpack.c.bf16 %v958, %v957
      %v983 = vpack.c.bf16 %v960, %v959
      %v984 = vpack.c.bf16 %v962, %v961
      %v985 = vpack.c.bf16 %v964, %v963
      %v986 = vpack.c.bf16 %v966, %v965
      %v987 = vpack.c.bf16 %v968, %v967
      %v988 = vpack.c.bf16 %v970, %v969
      %v989 = vpack.c.bf16 %v972, %v971
      %v990 = vpack.c.bf16 %v974, %v973
      %v991 = vld [vmem:[%s3] sm:$0xf]
      %v992 = vld [vmem:[%s3 + $0x4] sm:$0xf]
      %v993 = vld [vmem:[%s3 + $0x8] sm:$0xf]
      %v994 = vld [vmem:[%s3 + $0xc] sm:$0xf]
      %v995 = vld [vmem:[%s3 + $0x10] sm:$0xf]
      %v996 = vld [vmem:[%s3 + $0x14] sm:$0xf]
      %v997 = vld [vmem:[%s3 + $0x18] sm:$0xf]
      %v998 = vld [vmem:[%s3 + $0x1c] sm:$0xf]
      %v999 = vld [vmem:[%s3 + $0x20] sm:$0xf]
      %v1000 = vld [vmem:[%s3 + $0x24] sm:$0xf]
      %v1001 = vld [vmem:[%s3 + $0x28] sm:$0xf]
      %v1002 = vld [vmem:[%s3 + $0x2c] sm:$0xf]
      %v1003 = vld [vmem:[%s3 + $0x30] sm:$0xf]
      %v1004 = vld [vmem:[%s3 + $0x34] sm:$0xf]
      %v1005 = vld [vmem:[%s3 + $0x38] sm:$0xf]
      %v1006 = vld [vmem:[%s3 + $0x3c] sm:$0xf]
      %v1007 = vld [vmem:[%s3 + $0x40] sm:$0xf]
      %v1008 = vld [vmem:[%s3 + $0x44] sm:$0xf]
      %v1009 = vld [vmem:[%s3 + $0x48] sm:$0xf]
      %v1010 = vld [vmem:[%s3 + $0x4c] sm:$0xf]
      %v1011 = vld [vmem:[%s3 + $0x50] sm:$0xf]
      %v1012 = vld [vmem:[%s3 + $0x54] sm:$0xf]
      %v1013 = vld [vmem:[%s3 + $0x58] sm:$0xf]
      %v1014 = vld [vmem:[%s3 + $0x5c] sm:$0xf]
      %v1015 = vld [vmem:[%s3 + $0x60] sm:$0xf]
      %v1016 = vld [vmem:[%s3 + $0x64] sm:$0xf]
      %v1017 = vld [vmem:[%s3 + $0x68] sm:$0xf]
      %v1018 = vld [vmem:[%s3 + $0x6c] sm:$0xf]
      %v1019 = vld [vmem:[%s3 + $0x70] sm:$0xf]
      %v1020 = vld [vmem:[%s3 + $0x74] sm:$0xf]
      %v1021 = vld [vmem:[%s3 + $0x78] sm:$0xf]
      %v1022 = vld [vmem:[%s3 + $0x7c] sm:$0xf]
      %v1023 = vld [vmem:[%s3 + $0x80] sm:$0xf]
      %v1024 = vld [vmem:[%s3 + $0x84] sm:$0xf]
      %v1025 = vld [vmem:[%s3 + $0x88] sm:$0xf]
      %v1026 = vld [vmem:[%s3 + $0x8c] sm:$0xf]
      %v1027 = vld [vmem:[%s3 + $0x90] sm:$0xf]
      %v1028 = vld [vmem:[%s3 + $0x94] sm:$0xf]
      %v1029 = vld [vmem:[%s3 + $0x98] sm:$0xf]
      %v1030 = vld [vmem:[%s3 + $0x9c] sm:$0xf]
      %v1031 = vld [vmem:[%s3 + $0xa0] sm:$0xf]
      %v1032 = vld [vmem:[%s3 + $0xa4] sm:$0xf]
      %v1033 = vld [vmem:[%s3 + $0xa8] sm:$0xf]
      %v1034 = vld [vmem:[%s3 + $0xac] sm:$0xf]
      %v1035 = vld [vmem:[%s3 + $0xb0] sm:$0xf]
      %v1036 = vld [vmem:[%s3 + $0xb4] sm:$0xf]
      %v1037 = vld [vmem:[%s3 + $0xb8] sm:$0xf]
      %v1038 = vld [vmem:[%s3 + $0xbc] sm:$0xf]
      %v1039 = vld [vmem:[%s3 + $0xc0] sm:$0xf]
      %v1040 = vld [vmem:[%s3 + $0xc4] sm:$0xf]
      %v1041 = vld [vmem:[%s3 + $0xc8] sm:$0xf]
      %v1042 = vld [vmem:[%s3 + $0xcc] sm:$0xf]
      %v1043 = vld [vmem:[%s3 + $0xd0] sm:$0xf]
      %v1044 = vld [vmem:[%s3 + $0xd4] sm:$0xf]
      %v1045 = vld [vmem:[%s3 + $0xd8] sm:$0xf]
      %v1046 = vld [vmem:[%s3 + $0xdc] sm:$0xf]
      %v1047 = vld [vmem:[%s3 + $0xe0] sm:$0xf]
      %v1048 = vld [vmem:[%s3 + $0xe4] sm:$0xf]
      %v1049 = vld [vmem:[%s3 + $0xe8] sm:$0xf]
      %v1050 = vld [vmem:[%s3 + $0xec] sm:$0xf]
      %v1051 = vld [vmem:[%s3 + $0xf0] sm:$0xf]
      %v1052 = vld [vmem:[%s3 + $0xf4] sm:$0xf]
      %v1053 = vld [vmem:[%s3 + $0xf8] sm:$0xf]
      %v1054 = vld [vmem:[%s3 + $0xfc] sm:$0xf]
      %v1055 = vld [vmem:[%s3 + $0x100] sm:$0xf]
      %v1056 = vld [vmem:[%s3 + $0x104] sm:$0xf]
      %v1057 = vld [vmem:[%s3 + $0x108] sm:$0xf]
      %v1058 = vld [vmem:[%s3 + $0x10c] sm:$0xf]
      %v1059 = vld [vmem:[%s3 + $0x110] sm:$0xf]
      %v1060 = vld [vmem:[%s3 + $0x114] sm:$0xf]
      %v1061 = vld [vmem:[%s3 + $0x118] sm:$0xf]
      %v1062 = vld [vmem:[%s3 + $0x11c] sm:$0xf]
      %v1063 = vld [vmem:[%s3 + $0x120] sm:$0xf]
      %v1064 = vld [vmem:[%s3 + $0x124] sm:$0xf]
      %v1065 = vld [vmem:[%s3 + $0x128] sm:$0xf]
      %v1066 = vld [vmem:[%s3 + $0x12c] sm:$0xf]
      %v1067 = vld [vmem:[%s3 + $0x130] sm:$0xf]
      %v1068 = vld [vmem:[%s3 + $0x134] sm:$0xf]
      %v1069 = vld [vmem:[%s3 + $0x138] sm:$0xf]
      %v1070 = vld [vmem:[%s3 + $0x13c] sm:$0xf]
      %v1071 = vld [vmem:[%s3 + $0x140] sm:$0xf]
      %v1072 = vld [vmem:[%s3 + $0x144] sm:$0xf]
      %v1073 = vld [vmem:[%s3 + $0x148] sm:$0xf]
      %v1074 = vld [vmem:[%s3 + $0x14c] sm:$0xf]
      %v1075 = vld [vmem:[%s3 + $0x150] sm:$0xf]
      %v1076 = vld [vmem:[%s3 + $0x154] sm:$0xf]
      %v1077 = vld [vmem:[%s3 + $0x158] sm:$0xf]
      %v1078 = vld [vmem:[%s3 + $0x15c] sm:$0xf]
      %v1079 = vld [vmem:[%s3 + $0x160] sm:$0xf]
      %v1080 = vld [vmem:[%s3 + $0x164] sm:$0xf]
      %v1081 = vld [vmem:[%s3 + $0x168] sm:$0xf]
      %v1082 = vld [vmem:[%s3 + $0x16c] sm:$0xf]
      %v1083 = vld [vmem:[%s3 + $0x170] sm:$0xf]
      %v1084 = vld [vmem:[%s3 + $0x174] sm:$0xf]
      %v1085 = vld [vmem:[%s3 + $0x178] sm:$0xf]
      %v1086 = vld [vmem:[%s3 + $0x17c] sm:$0xf]
      %v1087 = vld [vmem:[%s3 + $0x180] sm:$0xf]
      %v1088 = vld [vmem:[%s3 + $0x184] sm:$0xf]
      %v1089 = vld [vmem:[%s3 + $0x188] sm:$0xf]
      %v1090 = vld [vmem:[%s3 + $0x18c] sm:$0xf]
      %v1091 = vld [vmem:[%s3 + $0x190] sm:$0xf]
      %v1092 = vld [vmem:[%s3 + $0x194] sm:$0xf]
      %v1093 = vld [vmem:[%s3 + $0x198] sm:$0xf]
      %v1094 = vld [vmem:[%s3 + $0x19c] sm:$0xf]
      %v1095 = vld [vmem:[%s3 + $0x1a0] sm:$0xf]
      %v1096 = vld [vmem:[%s3 + $0x1a4] sm:$0xf]
      %v1097 = vld [vmem:[%s3 + $0x1a8] sm:$0xf]
      %v1098 = vld [vmem:[%s3 + $0x1ac] sm:$0xf]
      %v1099 = vld [vmem:[%s3 + $0x1b0] sm:$0xf]
      %v1100 = vld [vmem:[%s3 + $0x1b4] sm:$0xf]
      %v1101 = vld [vmem:[%s3 + $0x1b8] sm:$0xf]
      %v1102 = vld [vmem:[%s3 + $0x1bc] sm:$0xf]
      %v1103 = vld [vmem:[%s3 + $0x1c0] sm:$0xf]
      %v1104 = vld [vmem:[%s3 + $0x1c4] sm:$0xf]
      %v1105 = vld [vmem:[%s3 + $0x1c8] sm:$0xf]
      %v1106 = vld [vmem:[%s3 + $0x1cc] sm:$0xf]
      %v1107 = vld [vmem:[%s3 + $0x1d0] sm:$0xf]
      %v1108 = vld [vmem:[%s3 + $0x1d4] sm:$0xf]
      %v1109 = vld [vmem:[%s3 + $0x1d8] sm:$0xf]
      %v1110 = vld [vmem:[%s3 + $0x1dc] sm:$0xf]
      %v1111 = vld [vmem:[%s3 + $0x1e0] sm:$0xf]
      %v1112 = vld [vmem:[%s3 + $0x1e4] sm:$0xf]
      %v1113 = vld [vmem:[%s3 + $0x1e8] sm:$0xf]
      %v1114 = vld [vmem:[%s3 + $0x1ec] sm:$0xf]
      %v1115 = vld [vmem:[%s3 + $0x1f0] sm:$0xf]
      %v1116 = vld [vmem:[%s3 + $0x1f4] sm:$0xf]
      %v1117 = vld [vmem:[%s3 + $0x1f8] sm:$0xf]
      %v1118 = vld [vmem:[%s3 + $0x1fc] sm:$0xf]
      %v1119 = vld [vmem:[%s3 + $0x200] sm:$0xf]
      %v1120 = vld [vmem:[%s3 + $0x204] sm:$0xf]
      %v1121 = vld [vmem:[%s3 + $0x208] sm:$0xf]
      %v1122 = vld [vmem:[%s3 + $0x20c] sm:$0xf]
      %v1123 = vld [vmem:[%s3 + $0x210] sm:$0xf]
      %v1124 = vld [vmem:[%s3 + $0x214] sm:$0xf]
      %v1125 = vld [vmem:[%s3 + $0x218] sm:$0xf]
      %v1126 = vld [vmem:[%s3 + $0x21c] sm:$0xf]
      %v1127 = vld [vmem:[%s3 + $0x220] sm:$0xf]
      %v1128 = vld [vmem:[%s3 + $0x224] sm:$0xf]
      %v1129 = vld [vmem:[%s3 + $0x228] sm:$0xf]
      %v1130 = vld [vmem:[%s3 + $0x22c] sm:$0xf]
      %v1131 = vld [vmem:[%s3 + $0x230] sm:$0xf]
      %v1132 = vld [vmem:[%s3 + $0x234] sm:$0xf]
      %v1133 = vld [vmem:[%s3 + $0x238] sm:$0xf]
      %v1134 = vld [vmem:[%s3 + $0x23c] sm:$0xf]
      %v1135 = vld [vmem:[%s4] sm:$0x1]
      %v1137 = vlaneseq
      %v1138 = vshrl.u32 %v1137, 7
      %v1139 = vsub.s32 0, %v1138
      %v1140 = vrot.slane %v1135, %v1139
      %v1286 = vunpack.c.l.b16 %v991
      %v1287 = vunpack.c.l.b16 %v992
      %v1288 = vunpack.c.l.b16 %v993
      %v1289 = vunpack.c.l.b16 %v994
      %v1290 = vunpack.c.l.b16 %v995
      %v1291 = vunpack.c.l.b16 %v996
      %v1292 = vunpack.c.l.b16 %v997
      %v1293 = vunpack.c.l.b16 %v998
      %v1294 = vunpack.c.l.b16 %v999
      %v1295 = vunpack.c.l.b16 %v1000
      %v1296 = vunpack.c.l.b16 %v1001
      %v1297 = vunpack.c.l.b16 %v1002
      %v1298 = vunpack.c.l.b16 %v1003
      %v1299 = vunpack.c.l.b16 %v1004
      %v1300 = vunpack.c.l.b16 %v1005
      %v1301 = vunpack.c.l.b16 %v1006
      %v1302 = vunpack.c.l.b16 %v1007
      %v1303 = vunpack.c.l.b16 %v1008
      %v1304 = vunpack.c.l.b16 %v1009
      %v1305 = vunpack.c.l.b16 %v1010
      %v1306 = vunpack.c.l.b16 %v1011
      %v1307 = vunpack.c.l.b16 %v1012
      %v1308 = vunpack.c.l.b16 %v1013
      %v1309 = vunpack.c.l.b16 %v1014
      %v1310 = vunpack.c.l.b16 %v1015
      %v1311 = vunpack.c.l.b16 %v1016
      %v1312 = vunpack.c.l.b16 %v1017
      %v1313 = vunpack.c.l.b16 %v1018
      %v1314 = vunpack.c.l.b16 %v1019
      %v1315 = vunpack.c.l.b16 %v1020
      %v1316 = vunpack.c.l.b16 %v1021
      %v1317 = vunpack.c.l.b16 %v1022
      %v1318 = vunpack.c.l.b16 %v1023
      %v1319 = vunpack.c.l.b16 %v1024
      %v1320 = vunpack.c.l.b16 %v1025
      %v1321 = vunpack.c.l.b16 %v1026
      %v1322 = vunpack.c.l.b16 %v1027
      %v1323 = vunpack.c.l.b16 %v1028
      %v1324 = vunpack.c.l.b16 %v1029
      %v1325 = vunpack.c.l.b16 %v1030
      %v1326 = vunpack.c.l.b16 %v1031
      %v1327 = vunpack.c.l.b16 %v1032
      %v1328 = vunpack.c.l.b16 %v1033
      %v1329 = vunpack.c.l.b16 %v1034
      %v1330 = vunpack.c.l.b16 %v1035
      %v1331 = vunpack.c.l.b16 %v1036
      %v1332 = vunpack.c.l.b16 %v1037
      %v1333 = vunpack.c.l.b16 %v1038
      %v1334 = vunpack.c.l.b16 %v1039
      %v1335 = vunpack.c.l.b16 %v1040
      %v1336 = vunpack.c.l.b16 %v1041
      %v1337 = vunpack.c.l.b16 %v1042
      %v1338 = vunpack.c.l.b16 %v1043
      %v1339 = vunpack.c.l.b16 %v1044
      %v1340 = vunpack.c.l.b16 %v1045
      %v1341 = vunpack.c.l.b16 %v1046
      %v1342 = vunpack.c.l.b16 %v1047
      %v1343 = vunpack.c.l.b16 %v1048
      %v1344 = vunpack.c.l.b16 %v1049
      %v1345 = vunpack.c.l.b16 %v1050
      %v1346 = vunpack.c.l.b16 %v1051
      %v1347 = vunpack.c.l.b16 %v1052
      %v1348 = vunpack.c.l.b16 %v1053
      %v1349 = vunpack.c.l.b16 %v1054
      %v1350 = vunpack.c.l.b16 %v1055
      %v1351 = vunpack.c.l.b16 %v1056
      %v1352 = vunpack.c.l.b16 %v1057
      %v1353 = vunpack.c.l.b16 %v1058
      %v1354 = vunpack.c.l.b16 %v1059
      %v1355 = vunpack.c.l.b16 %v1060
      %v1356 = vunpack.c.l.b16 %v1061
      %v1357 = vunpack.c.l.b16 %v1062
      %v1358 = vunpack.c.l.b16 %v1063
      %v1359 = vunpack.c.l.b16 %v1064
      %v1360 = vunpack.c.l.b16 %v1065
      %v1361 = vunpack.c.l.b16 %v1066
      %v1362 = vunpack.c.l.b16 %v1067
      %v1363 = vunpack.c.l.b16 %v1068
      %v1364 = vunpack.c.l.b16 %v1069
      %v1365 = vunpack.c.l.b16 %v1070
      %v1366 = vunpack.c.l.b16 %v1071
      %v1367 = vunpack.c.l.b16 %v1072
      %v1368 = vunpack.c.l.b16 %v1073
      %v1369 = vunpack.c.l.b16 %v1074
      %v1370 = vunpack.c.l.b16 %v1075
      %v1371 = vunpack.c.l.b16 %v1076
      %v1372 = vunpack.c.l.b16 %v1077
      %v1373 = vunpack.c.l.b16 %v1078
      %v1374 = vunpack.c.l.b16 %v1079
      %v1375 = vunpack.c.l.b16 %v1080
      %v1376 = vunpack.c.l.b16 %v1081
      %v1377 = vunpack.c.l.b16 %v1082
      %v1378 = vunpack.c.l.b16 %v1083
      %v1379 = vunpack.c.l.b16 %v1084
      %v1380 = vunpack.c.l.b16 %v1085
      %v1381 = vunpack.c.l.b16 %v1086
      %v1382 = vunpack.c.l.b16 %v1087
      %v1383 = vunpack.c.l.b16 %v1088
      %v1384 = vunpack.c.l.b16 %v1089
      %v1385 = vunpack.c.l.b16 %v1090
      %v1386 = vunpack.c.l.b16 %v1091
      %v1387 = vunpack.c.l.b16 %v1092
      %v1388 = vunpack.c.l.b16 %v1093
      %v1389 = vunpack.c.l.b16 %v1094
      %v1390 = vunpack.c.l.b16 %v1095
      %v1391 = vunpack.c.l.b16 %v1096
      %v1392 = vunpack.c.l.b16 %v1097
      %v1393 = vunpack.c.l.b16 %v1098
      %v1394 = vunpack.c.l.b16 %v1099
      %v1395 = vunpack.c.l.b16 %v1100
      %v1396 = vunpack.c.l.b16 %v1101
      %v1397 = vunpack.c.l.b16 %v1102
      %v1398 = vunpack.c.l.b16 %v1103
      %v1399 = vunpack.c.l.b16 %v1104
      %v1400 = vunpack.c.l.b16 %v1105
      %v1401 = vunpack.c.l.b16 %v1106
      %v1402 = vunpack.c.l.b16 %v1107
      %v1403 = vunpack.c.l.b16 %v1108
      %v1404 = vunpack.c.l.b16 %v1109
      %v1405 = vunpack.c.l.b16 %v1110
      %v1406 = vunpack.c.l.b16 %v1111
      %v1407 = vunpack.c.l.b16 %v1112
      %v1408 = vunpack.c.l.b16 %v1113
      %v1409 = vunpack.c.l.b16 %v1114
      %v1410 = vunpack.c.l.b16 %v1115
      %v1411 = vunpack.c.l.b16 %v1116
      %v1412 = vunpack.c.l.b16 %v1117
      %v1413 = vunpack.c.l.b16 %v1118
      %v1414 = vunpack.c.l.b16 %v1119
      %v1415 = vunpack.c.l.b16 %v1120
      %v1416 = vunpack.c.l.b16 %v1121
      %v1417 = vunpack.c.l.b16 %v1122
      %v1418 = vunpack.c.l.b16 %v1123
      %v1419 = vunpack.c.l.b16 %v1124
      %v1420 = vunpack.c.l.b16 %v1125
      %v1421 = vunpack.c.l.b16 %v1126
      %v1422 = vunpack.c.l.b16 %v1127
      %v1423 = vunpack.c.l.b16 %v1128
      %v1424 = vunpack.c.l.b16 %v1129
      %v1425 = vunpack.c.l.b16 %v1130
      %v1426 = vunpack.c.l.b16 %v1131
      %v1427 = vunpack.c.l.b16 %v1132
      %v1428 = vunpack.c.l.b16 %v1133
      %v1429 = vunpack.c.l.b16 %v1134
      %v1430 = vpack.c.b16 %v1287, %v1286
      %v1431 = vpack.c.b16 %v1289, %v1288
      %v1432 = vpack.c.b16 %v1291, %v1290
      %v1433 = vpack.c.b16 %v1293, %v1292
      %v1434 = vpack.c.b16 %v1295, %v1294
      %v1435 = vpack.c.b16 %v1297, %v1296
      %v1436 = vpack.c.b16 %v1299, %v1298
      %v1437 = vpack.c.b16 %v1301, %v1300
      %v1438 = vpack.c.b16 %v1303, %v1302
      %v1439 = vpack.c.b16 %v1305, %v1304
      %v1440 = vpack.c.b16 %v1307, %v1306
      %v1441 = vpack.c.b16 %v1309, %v1308
      %v1442 = vpack.c.b16 %v1311, %v1310
      %v1443 = vpack.c.b16 %v1313, %v1312
      %v1444 = vpack.c.b16 %v1315, %v1314
      %v1445 = vpack.c.b16 %v1317, %v1316
      %v1446 = vpack.c.b16 %v1319, %v1318
      %v1447 = vpack.c.b16 %v1321, %v1320
      %v1448 = vpack.c.b16 %v1323, %v1322
      %v1449 = vpack.c.b16 %v1325, %v1324
      %v1450 = vpack.c.b16 %v1327, %v1326
      %v1451 = vpack.c.b16 %v1329, %v1328
      %v1452 = vpack.c.b16 %v1331, %v1330
      %v1453 = vpack.c.b16 %v1333, %v1332
      %v1454 = vpack.c.b16 %v1335, %v1334
      %v1455 = vpack.c.b16 %v1337, %v1336
      %v1456 = vpack.c.b16 %v1339, %v1338
      %v1457 = vpack.c.b16 %v1341, %v1340
      %v1458 = vpack.c.b16 %v1343, %v1342
      %v1459 = vpack.c.b16 %v1345, %v1344
      %v1460 = vpack.c.b16 %v1347, %v1346
      %v1461 = vpack.c.b16 %v1349, %v1348
      %v1462 = vpack.c.b16 %v1351, %v1350
      %v1463 = vpack.c.b16 %v1353, %v1352
      %v1464 = vpack.c.b16 %v1355, %v1354
      %v1465 = vpack.c.b16 %v1357, %v1356
      %v1466 = vpack.c.b16 %v1359, %v1358
      %v1467 = vpack.c.b16 %v1361, %v1360
      %v1468 = vpack.c.b16 %v1363, %v1362
      %v1469 = vpack.c.b16 %v1365, %v1364
      %v1470 = vpack.c.b16 %v1367, %v1366
      %v1471 = vpack.c.b16 %v1369, %v1368
      %v1472 = vpack.c.b16 %v1371, %v1370
      %v1473 = vpack.c.b16 %v1373, %v1372
      %v1474 = vpack.c.b16 %v1375, %v1374
      %v1475 = vpack.c.b16 %v1377, %v1376
      %v1476 = vpack.c.b16 %v1379, %v1378
      %v1477 = vpack.c.b16 %v1381, %v1380
      %v1478 = vpack.c.b16 %v1383, %v1382
      %v1479 = vpack.c.b16 %v1385, %v1384
      %v1480 = vpack.c.b16 %v1387, %v1386
      %v1481 = vpack.c.b16 %v1389, %v1388
      %v1482 = vpack.c.b16 %v1391, %v1390
      %v1483 = vpack.c.b16 %v1393, %v1392
      %v1484 = vpack.c.b16 %v1395, %v1394
      %v1485 = vpack.c.b16 %v1397, %v1396
      %v1486 = vpack.c.b16 %v1399, %v1398
      %v1487 = vpack.c.b16 %v1401, %v1400
      %v1488 = vpack.c.b16 %v1403, %v1402
      %v1489 = vpack.c.b16 %v1405, %v1404
      %v1490 = vpack.c.b16 %v1407, %v1406
      %v1491 = vpack.c.b16 %v1409, %v1408
      %v1492 = vpack.c.b16 %v1411, %v1410
      %v1493 = vpack.c.b16 %v1413, %v1412
      %v1494 = vpack.c.b16 %v1415, %v1414
      %v1495 = vpack.c.b16 %v1417, %v1416
      %v1496 = vpack.c.b16 %v1419, %v1418
      %v1497 = vpack.c.b16 %v1421, %v1420
      %v1498 = vpack.c.b16 %v1423, %v1422
      %v1499 = vpack.c.b16 %v1425, %v1424
      %v1500 = vpack.c.b16 %v1427, %v1426
      %v1501 = vpack.c.b16 %v1429, %v1428
      %1574 = vmatprep.subr.bf16.mxu0 0
      %1575 = vmatpush1.bf16.msra.mxu0 %v1437
      %1576 = vmatprep.subr.bf16.mxu0 0
      %1577 = vmatpush1.bf16.msra.mxu0 %v1436
      %1578 = vmatprep.subr.bf16.mxu0 0
      %1579 = vmatpush1.bf16.msra.mxu0 %v1435
      %1580 = vmatprep.subr.bf16.mxu0 0
      %1581 = vmatpush1.bf16.msra.mxu0 %v1434
      %1582 = vmatprep.subr.bf16.mxu0 0
      %1583 = vmatpush1.bf16.msra.mxu0 %v1433
      %1584 = vmatprep.subr.bf16.mxu0 0
      %1585 = vmatpush1.bf16.msra.mxu0 %v1432
      %1586 = vmatprep.subr.bf16.mxu0 0
      %1587 = vmatpush1.bf16.msra.mxu0 %v1431
      %1588 = vmatprep.subr.bf16.mxu0 0
      %1589 = vmatpush1.bf16.msra.mxu0 %v1430
      %1590 = vmatprep.subr.bf16.mxu0 0
      %1591 = vmatpush2.bf16.msra.mxu0 %v1445
      %1592 = vmatprep.subr.bf16.mxu0 0
      %1593 = vmatpush2.bf16.msra.mxu0 %v1444
      %1594 = vmatprep.subr.bf16.mxu0 0
      %1595 = vmatpush2.bf16.msra.mxu0 %v1443
      %1596 = vmatprep.subr.bf16.mxu0 0
      %1597 = vmatpush2.bf16.msra.mxu0 %v1442
      %1598 = vmatprep.subr.bf16.mxu0 0
      %1599 = vmatpush2.bf16.msra.mxu0 %v1441
      %1600 = vmatprep.subr.bf16.mxu0 0
      %1601 = vmatpush2.bf16.msra.mxu0 %v1440
      %1602 = vmatprep.subr.bf16.mxu0 0
      %1603 = vmatpush2.bf16.msra.mxu0 %v1439
      %1604 = vmatprep.subr.bf16.mxu0 0
      %1605 = vmatpush2.bf16.msra.mxu0 %v1438
      %1606 = vmatprep.mubr.bf16.mxu0 %v638
      %1607 = vmatmul.mubr.bf16.gmra.mxu0 %v590
      %v1608 = vpop.f32.mrf.mxu0
      %v1609 = vadd.f32 %v1140, %v1608
      %v1610 = vpop.f32.mrf.mxu0
      %v1611 = vpop.f32.mrf.mxu0
      %v1612 = vadd.f32 %v1140, %v1611
      %v1613 = vpop.f32.mrf.mxu0
      %1614 = vmatprep.mubr.bf16.mxu0 %v639
      %1615 = vmatmul.mubr.bf16.gmra.mxu0 %v591
      %v1616 = vpop.f32.mrf.mxu0
      %v1617 = vadd.f32 %v1140, %v1616
      %v1618 = vpop.f32.mrf.mxu0
      %v1619 = vpop.f32.mrf.mxu0
      %v1620 = vadd.f32 %v1140, %v1619
      %v1621 = vpop.f32.mrf.mxu0
      %1622 = vmatprep.mubr.bf16.mxu0 %v640
      %1623 = vmatmul.mubr.bf16.gmra.mxu0 %v592
      %v1624 = vpop.f32.mrf.mxu0
      %v1625 = vadd.f32 %v1140, %v1624
      %v1626 = vpop.f32.mrf.mxu0
      %v1627 = vpop.f32.mrf.mxu0
      %v1628 = vadd.f32 %v1140, %v1627
      %v1629 = vpop.f32.mrf.mxu0
      %1630 = vmatprep.mubr.bf16.mxu0 %v641
      %1631 = vmatmul.mubr.bf16.gmra.mxu0 %v593
      %v1632 = vpop.f32.mrf.mxu0
      %v1633 = vadd.f32 %v1140, %v1632
      %v1634 = vpop.f32.mrf.mxu0
      %v1635 = vpop.f32.mrf.mxu0
      %v1636 = vadd.f32 %v1140, %v1635
      %v1637 = vpop.f32.mrf.mxu0
      %1638 = vmatprep.mubr.bf16.mxu0 %v642
      %1639 = vmatmul.mubr.bf16.gmra.mxu0 %v594
      %v1640 = vpop.f32.mrf.mxu0
      %v1641 = vadd.f32 %v1140, %v1640
      %v1642 = vpop.f32.mrf.mxu0
      %v1643 = vpop.f32.mrf.mxu0
      %v1644 = vadd.f32 %v1140, %v1643
      %v1645 = vpop.f32.mrf.mxu0
      %1646 = vmatprep.mubr.bf16.mxu0 %v643
      %1647 = vmatmul.mubr.bf16.gmra.mxu0 %v595
      %v1648 = vpop.f32.mrf.mxu0
      %v1649 = vadd.f32 %v1140, %v1648
      %v1650 = vpop.f32.mrf.mxu0
      %v1651 = vpop.f32.mrf.mxu0
      %v1652 = vadd.f32 %v1140, %v1651
      %v1653 = vpop.f32.mrf.mxu0
      %1654 = vmatprep.mubr.bf16.mxu0 %v644
      %1655 = vmatmul.mubr.bf16.gmra.mxu0 %v596
      %v1656 = vpop.f32.mrf.mxu0
      %v1657 = vadd.f32 %v1140, %v1656
      %v1658 = vpop.f32.mrf.mxu0
      %v1659 = vpop.f32.mrf.mxu0
      %v1660 = vadd.f32 %v1140, %v1659
      %v1661 = vpop.f32.mrf.mxu0
      %1662 = vmatprep.mubr.bf16.mxu0 %v645
      %1663 = vmatmul.mubr.bf16.gmra.mxu0 %v597
      %v1664 = vpop.f32.mrf.mxu0
      %v1665 = vadd.f32 %v1140, %v1664
      %v1666 = vpop.f32.mrf.mxu0
      %v1667 = vpop.f32.mrf.mxu0
      %v1668 = vadd.f32 %v1140, %v1667
      %v1669 = vpop.f32.mrf.mxu0
      %1670 = vmatprep.mubr.bf16.mxu0 %v646
      %1671 = vmatmul.mubr.bf16.gmra.mxu0 %v598
      %v1672 = vpop.f32.mrf.mxu0
      %v1673 = vadd.f32 %v1140, %v1672
      %v1674 = vpop.f32.mrf.mxu0
      %v1675 = vpop.f32.mrf.mxu0
      %v1676 = vadd.f32 %v1140, %v1675
      %v1677 = vpop.f32.mrf.mxu0
      %1678 = vmatprep.mubr.bf16.mxu0 %v647
      %1679 = vmatmul.mubr.bf16.gmra.mxu0 %v599
      %v1680 = vpop.f32.mrf.mxu0
      %v1681 = vadd.f32 %v1140, %v1680
      %v1682 = vpop.f32.mrf.mxu0
      %v1683 = vpop.f32.mrf.mxu0
      %v1684 = vadd.f32 %v1140, %v1683
      %v1685 = vpop.f32.mrf.mxu0
      %1686 = vmatprep.mubr.bf16.mxu0 %v648
      %1687 = vmatmul.mubr.bf16.gmra.mxu0 %v600
      %v1688 = vpop.f32.mrf.mxu0
      %v1689 = vadd.f32 %v1140, %v1688
      %v1690 = vpop.f32.mrf.mxu0
      %v1691 = vpop.f32.mrf.mxu0
      %v1692 = vadd.f32 %v1140, %v1691
      %v1693 = vpop.f32.mrf.mxu0
      %1694 = vmatprep.mubr.bf16.mxu0 %v649
      %1695 = vmatmul.mubr.bf16.gmra.mxu0 %v601
      %v1696 = vpop.f32.mrf.mxu0
      %v1697 = vadd.f32 %v1140, %v1696
      %v1698 = vpop.f32.mrf.mxu0
      %v1699 = vpop.f32.mrf.mxu0
      %v1700 = vadd.f32 %v1140, %v1699
      %v1701 = vpop.f32.mrf.mxu0
      %1702 = vmatprep.mubr.bf16.mxu0 %v650
      %1703 = vmatmul.mubr.bf16.gmra.mxu0 %v602
      %v1704 = vpop.f32.mrf.mxu0
      %v1705 = vadd.f32 %v1140, %v1704
      %v1706 = vpop.f32.mrf.mxu0
      %v1707 = vpop.f32.mrf.mxu0
      %v1708 = vadd.f32 %v1140, %v1707
      %v1709 = vpop.f32.mrf.mxu0
      %1710 = vmatprep.mubr.bf16.mxu0 %v651
      %1711 = vmatmul.mubr.bf16.gmra.mxu0 %v603
      %v1712 = vpop.f32.mrf.mxu0
      %v1713 = vadd.f32 %v1140, %v1712
      %v1714 = vpop.f32.mrf.mxu0
      %v1715 = vpop.f32.mrf.mxu0
      %v1716 = vadd.f32 %v1140, %v1715
      %v1717 = vpop.f32.mrf.mxu0
      %1718 = vmatprep.mubr.bf16.mxu0 %v652
      %1719 = vmatmul.mubr.bf16.gmra.mxu0 %v604
      %v1720 = vpop.f32.mrf.mxu0
      %v1721 = vadd.f32 %v1140, %v1720
      %v1722 = vpop.f32.mrf.mxu0
      %v1723 = vpop.f32.mrf.mxu0
      %v1724 = vadd.f32 %v1140, %v1723
      %v1725 = vpop.f32.mrf.mxu0
      %1726 = vmatprep.mubr.bf16.mxu0 %v653
      %1727 = vmatmul.mubr.bf16.gmra.mxu0 %v605
      %v1728 = vpop.f32.mrf.mxu0
      %v1729 = vadd.f32 %v1140, %v1728
      %v1730 = vpop.f32.mrf.mxu0
      %v1731 = vpop.f32.mrf.mxu0
      %v1732 = vadd.f32 %v1140, %v1731
      %v1733 = vpop.f32.mrf.mxu0
      %1734 = vdwg.mxu0
      %1735 = vmatprep.subr.bf16.mxu0 0
      %1736 = vmatpush1.bf16.msra.mxu0 %v1453
      %1737 = vmatprep.subr.bf16.mxu0 0
      %1738 = vmatpush1.bf16.msra.mxu0 %v1452
      %1739 = vmatprep.subr.bf16.mxu0 0
      %1740 = vmatpush1.bf16.msra.mxu0 %v1451
      %1741 = vmatprep.subr.bf16.mxu0 0
      %1742 = vmatpush1.bf16.msra.mxu0 %v1450
      %1743 = vmatprep.subr.bf16.mxu0 0
      %1744 = vmatpush1.bf16.msra.mxu0 %v1449
      %1745 = vmatprep.subr.bf16.mxu0 0
      %1746 = vmatpush1.bf16.msra.mxu0 %v1448
      %1747 = vmatprep.subr.bf16.mxu0 0
      %1748 = vmatpush1.bf16.msra.mxu0 %v1447
      %1749 = vmatprep.subr.bf16.mxu0 0
      %1750 = vmatpush1.bf16.msra.mxu0 %v1446
      %1751 = vmatprep.subr.bf16.mxu0 0
      %1752 = vmatpush2.bf16.msra.mxu0 %v1461
      %1753 = vmatprep.subr.bf16.mxu0 0
      %1754 = vmatpush2.bf16.msra.mxu0 %v1460
      %1755 = vmatprep.subr.bf16.mxu0 0
      %1756 = vmatpush2.bf16.msra.mxu0 %v1459
      %1757 = vmatprep.subr.bf16.mxu0 0
      %1758 = vmatpush2.bf16.msra.mxu0 %v1458
      %1759 = vmatprep.subr.bf16.mxu0 0
      %1760 = vmatpush2.bf16.msra.mxu0 %v1457
      %1761 = vmatprep.subr.bf16.mxu0 0
      %1762 = vmatpush2.bf16.msra.mxu0 %v1456
      %1763 = vmatprep.subr.bf16.mxu0 0
      %1764 = vmatpush2.bf16.msra.mxu0 %v1455
      %1765 = vmatprep.subr.bf16.mxu0 0
      %1766 = vmatpush2.bf16.msra.mxu0 %v1454
      %1767 = vmatprep.mubr.bf16.mxu0 %v734
      %1768 = vmatmul.mubr.bf16.gmra.mxu0 %v686
      %v1769 = vpop.f32.mrf.mxu0
      %v1770 = vadd.f32 %v1609, %v1769
      %v1771 = vpop.f32.mrf.mxu0
      %v1772 = vpop.f32.mrf.mxu0
      %v1773 = vadd.f32 %v1612, %v1772
      %v1774 = vpop.f32.mrf.mxu0
      %1775 = vmatprep.mubr.bf16.mxu0 %v735
      %1776 = vmatmul.mubr.bf16.gmra.mxu0 %v687
      %v1777 = vpop.f32.mrf.mxu0
      %v1778 = vadd.f32 %v1617, %v1777
      %v1779 = vpop.f32.mrf.mxu0
      %v1780 = vpop.f32.mrf.mxu0
      %v1781 = vadd.f32 %v1620, %v1780
      %v1782 = vpop.f32.mrf.mxu0
      %1783 = vmatprep.mubr.bf16.mxu0 %v736
      %1784 = vmatmul.mubr.bf16.gmra.mxu0 %v688
      %v1785 = vpop.f32.mrf.mxu0
      %v1786 = vadd.f32 %v1625, %v1785
      %v1787 = vpop.f32.mrf.mxu0
      %v1788 = vpop.f32.mrf.mxu0
      %v1789 = vadd.f32 %v1628, %v1788
      %v1790 = vpop.f32.mrf.mxu0
      %1791 = vmatprep.mubr.bf16.mxu0 %v737
      %1792 = vmatmul.mubr.bf16.gmra.mxu0 %v689
      %v1793 = vpop.f32.mrf.mxu0
      %v1794 = vadd.f32 %v1633, %v1793
      %v1795 = vpop.f32.mrf.mxu0
      %v1796 = vpop.f32.mrf.mxu0
      %v1797 = vadd.f32 %v1636, %v1796
      %v1798 = vpop.f32.mrf.mxu0
      %1799 = vmatprep.mubr.bf16.mxu0 %v738
      %1800 = vmatmul.mubr.bf16.gmra.mxu0 %v690
      %v1801 = vpop.f32.mrf.mxu0
      %v1802 = vadd.f32 %v1641, %v1801
      %v1803 = vpop.f32.mrf.mxu0
      %v1804 = vpop.f32.mrf.mxu0
      %v1805 = vadd.f32 %v1644, %v1804
      %v1806 = vpop.f32.mrf.mxu0
      %1807 = vmatprep.mubr.bf16.mxu0 %v739
      %1808 = vmatmul.mubr.bf16.gmra.mxu0 %v691
      %v1809 = vpop.f32.mrf.mxu0
      %v1810 = vadd.f32 %v1649, %v1809
      %v1811 = vpop.f32.mrf.mxu0
      %v1812 = vpop.f32.mrf.mxu0
      %v1813 = vadd.f32 %v1652, %v1812
      %v1814 = vpop.f32.mrf.mxu0
      %1815 = vmatprep.mubr.bf16.mxu0 %v740
      %1816 = vmatmul.mubr.bf16.gmra.mxu0 %v692
      %v1817 = vpop.f32.mrf.mxu0
      %v1818 = vadd.f32 %v1657, %v1817
      %v1819 = vpop.f32.mrf.mxu0
      %v1820 = vpop.f32.mrf.mxu0
      %v1821 = vadd.f32 %v1660, %v1820
      %v1822 = vpop.f32.mrf.mxu0
      %1823 = vmatprep.mubr.bf16.mxu0 %v741
      %1824 = vmatmul.mubr.bf16.gmra.mxu0 %v693
      %v1825 = vpop.f32.mrf.mxu0
      %v1826 = vadd.f32 %v1665, %v1825
      %v1827 = vpop.f32.mrf.mxu0
      %v1828 = vpop.f32.mrf.mxu0
      %v1829 = vadd.f32 %v1668, %v1828
      %v1830 = vpop.f32.mrf.mxu0
      %1831 = vmatprep.mubr.bf16.mxu0 %v742
      %1832 = vmatmul.mubr.bf16.gmra.mxu0 %v694
      %v1833 = vpop.f32.mrf.mxu0
      %v1834 = vadd.f32 %v1673, %v1833
      %v1835 = vpop.f32.mrf.mxu0
      %v1836 = vpop.f32.mrf.mxu0
      %v1837 = vadd.f32 %v1676, %v1836
      %v1838 = vpop.f32.mrf.mxu0
      %1839 = vmatprep.mubr.bf16.mxu0 %v743
      %1840 = vmatmul.mubr.bf16.gmra.mxu0 %v695
      %v1841 = vpop.f32.mrf.mxu0
      %v1842 = vadd.f32 %v1681, %v1841
      %v1843 = vpop.f32.mrf.mxu0
      %v1844 = vpop.f32.mrf.mxu0
      %v1845 = vadd.f32 %v1684, %v1844
      %v1846 = vpop.f32.mrf.mxu0
      %1847 = vmatprep.mubr.bf16.mxu0 %v744
      %1848 = vmatmul.mubr.bf16.gmra.mxu0 %v696
      %v1849 = vpop.f32.mrf.mxu0
      %v1850 = vadd.f32 %v1689, %v1849
      %v1851 = vpop.f32.mrf.mxu0
      %v1852 = vpop.f32.mrf.mxu0
      %v1853 = vadd.f32 %v1692, %v1852
      %v1854 = vpop.f32.mrf.mxu0
      %1855 = vmatprep.mubr.bf16.mxu0 %v745
      %1856 = vmatmul.mubr.bf16.gmra.mxu0 %v697
      %v1857 = vpop.f32.mrf.mxu0
      %v1858 = vadd.f32 %v1697, %v1857
      %v1859 = vpop.f32.mrf.mxu0
      %v1860 = vpop.f32.mrf.mxu0
      %v1861 = vadd.f32 %v1700, %v1860
      %v1862 = vpop.f32.mrf.mxu0
      %1863 = vmatprep.mubr.bf16.mxu0 %v746
      %1864 = vmatmul.mubr.bf16.gmra.mxu0 %v698
      %v1865 = vpop.f32.mrf.mxu0
      %v1866 = vadd.f32 %v1705, %v1865
      %v1867 = vpop.f32.mrf.mxu0
      %v1868 = vpop.f32.mrf.mxu0
      %v1869 = vadd.f32 %v1708, %v1868
      %v1870 = vpop.f32.mrf.mxu0
      %1871 = vmatprep.mubr.bf16.mxu0 %v747
      %1872 = vmatmul.mubr.bf16.gmra.mxu0 %v699
      %v1873 = vpop.f32.mrf.mxu0
      %v1874 = vadd.f32 %v1713, %v1873
      %v1875 = vpop.f32.mrf.mxu0
      %v1876 = vpop.f32.mrf.mxu0
      %v1877 = vadd.f32 %v1716, %v1876
      %v1878 = vpop.f32.mrf.mxu0
      %1879 = vmatprep.mubr.bf16.mxu0 %v748
      %1880 = vmatmul.mubr.bf16.gmra.mxu0 %v700
      %v1881 = vpop.f32.mrf.mxu0
      %v1882 = vadd.f32 %v1721, %v1881
      %v1883 = vpop.f32.mrf.mxu0
      %v1884 = vpop.f32.mrf.mxu0
      %v1885 = vadd.f32 %v1724, %v1884
      %v1886 = vpop.f32.mrf.mxu0
      %1887 = vmatprep.mubr.bf16.mxu0 %v749
      %1888 = vmatmul.mubr.bf16.gmra.mxu0 %v701
      %v1889 = vpop.f32.mrf.mxu0
      %v1890 = vadd.f32 %v1729, %v1889
      %v1891 = vpop.f32.mrf.mxu0
      %v1892 = vpop.f32.mrf.mxu0
      %v1893 = vadd.f32 %v1732, %v1892
      %v1894 = vpop.f32.mrf.mxu0
      %1895 = vdwg.mxu0
      %1896 = vmatprep.subr.bf16.mxu0 0
      %1897 = vmatpush1.bf16.msra.mxu0 %v1469
      %1898 = vmatprep.subr.bf16.mxu0 0
      %1899 = vmatpush1.bf16.msra.mxu0 %v1468
      %1900 = vmatprep.subr.bf16.mxu0 0
      %1901 = vmatpush1.bf16.msra.mxu0 %v1467
      %1902 = vmatprep.subr.bf16.mxu0 0
      %1903 = vmatpush1.bf16.msra.mxu0 %v1466
      %1904 = vmatprep.subr.bf16.mxu0 0
      %1905 = vmatpush1.bf16.msra.mxu0 %v1465
      %1906 = vmatprep.subr.bf16.mxu0 0
      %1907 = vmatpush1.bf16.msra.mxu0 %v1464
      %1908 = vmatprep.subr.bf16.mxu0 0
      %1909 = vmatpush1.bf16.msra.mxu0 %v1463
      %1910 = vmatprep.subr.bf16.mxu0 0
      %1911 = vmatpush1.bf16.msra.mxu0 %v1462
      %1912 = vmatprep.subr.bf16.mxu0 0
      %1913 = vmatpush2.bf16.msra.mxu0 %v1477
      %1914 = vmatprep.subr.bf16.mxu0 0
      %1915 = vmatpush2.bf16.msra.mxu0 %v1476
      %1916 = vmatprep.subr.bf16.mxu0 0
      %1917 = vmatpush2.bf16.msra.mxu0 %v1475
      %1918 = vmatprep.subr.bf16.mxu0 0
      %1919 = vmatpush2.bf16.msra.mxu0 %v1474
      %1920 = vmatprep.subr.bf16.mxu0 0
      %1921 = vmatpush2.bf16.msra.mxu0 %v1473
      %1922 = vmatprep.subr.bf16.mxu0 0
      %1923 = vmatpush2.bf16.msra.mxu0 %v1472
      %1924 = vmatprep.subr.bf16.mxu0 0
      %1925 = vmatpush2.bf16.msra.mxu0 %v1471
      %1926 = vmatprep.subr.bf16.mxu0 0
      %1927 = vmatpush2.bf16.msra.mxu0 %v1470
      %1928 = vmatprep.mubr.bf16.mxu0 %v830
      %1929 = vmatmul.mubr.bf16.gmra.mxu0 %v782
      %v1930 = vpop.f32.mrf.mxu0
      %v1931 = vadd.f32 %v1770, %v1930
      %v1932 = vpop.f32.mrf.mxu0
      %v1933 = vpop.f32.mrf.mxu0
      %v1934 = vadd.f32 %v1773, %v1933
      %v1935 = vpop.f32.mrf.mxu0
      %1936 = vmatprep.mubr.bf16.mxu0 %v831
      %1937 = vmatmul.mubr.bf16.gmra.mxu0 %v783
      %v1938 = vpop.f32.mrf.mxu0
      %v1939 = vadd.f32 %v1778, %v1938
      %v1940 = vpop.f32.mrf.mxu0
      %v1941 = vpop.f32.mrf.mxu0
      %v1942 = vadd.f32 %v1781, %v1941
      %v1943 = vpop.f32.mrf.mxu0
      %1944 = vmatprep.mubr.bf16.mxu0 %v832
      %1945 = vmatmul.mubr.bf16.gmra.mxu0 %v784
      %v1946 = vpop.f32.mrf.mxu0
      %v1947 = vadd.f32 %v1786, %v1946
      %v1948 = vpop.f32.mrf.mxu0
      %v1949 = vpop.f32.mrf.mxu0
      %v1950 = vadd.f32 %v1789, %v1949
      %v1951 = vpop.f32.mrf.mxu0
      %1952 = vmatprep.mubr.bf16.mxu0 %v833
      %1953 = vmatmul.mubr.bf16.gmra.mxu0 %v785
      %v1954 = vpop.f32.mrf.mxu0
      %v1955 = vadd.f32 %v1794, %v1954
      %v1956 = vpop.f32.mrf.mxu0
      %v1957 = vpop.f32.mrf.mxu0
      %v1958 = vadd.f32 %v1797, %v1957
      %v1959 = vpop.f32.mrf.mxu0
      %1960 = vmatprep.mubr.bf16.mxu0 %v834
      %1961 = vmatmul.mubr.bf16.gmra.mxu0 %v786
      %v1962 = vpop.f32.mrf.mxu0
      %v1963 = vadd.f32 %v1802, %v1962
      %v1964 = vpop.f32.mrf.mxu0
      %v1965 = vpop.f32.mrf.mxu0
      %v1966 = vadd.f32 %v1805, %v1965
      %v1967 = vpop.f32.mrf.mxu0
      %1968 = vmatprep.mubr.bf16.mxu0 %v835
      %1969 = vmatmul.mubr.bf16.gmra.mxu0 %v787
      %v1970 = vpop.f32.mrf.mxu0
      %v1971 = vadd.f32 %v1810, %v1970
      %v1972 = vpop.f32.mrf.mxu0
      %v1973 = vpop.f32.mrf.mxu0
      %v1974 = vadd.f32 %v1813, %v1973
      %v1975 = vpop.f32.mrf.mxu0
      %1976 = vmatprep.mubr.bf16.mxu0 %v836
      %1977 = vmatmul.mubr.bf16.gmra.mxu0 %v788
      %v1978 = vpop.f32.mrf.mxu0
      %v1979 = vadd.f32 %v1818, %v1978
      %v1980 = vpop.f32.mrf.mxu0
      %v1981 = vpop.f32.mrf.mxu0
      %v1982 = vadd.f32 %v1821, %v1981
      %v1983 = vpop.f32.mrf.mxu0
      %1984 = vmatprep.mubr.bf16.mxu0 %v837
      %1985 = vmatmul.mubr.bf16.gmra.mxu0 %v789
      %v1986 = vpop.f32.mrf.mxu0
      %v1987 = vadd.f32 %v1826, %v1986
      %v1988 = vpop.f32.mrf.mxu0
      %v1989 = vpop.f32.mrf.mxu0
      %v1990 = vadd.f32 %v1829, %v1989
      %v1991 = vpop.f32.mrf.mxu0
      %1992 = vmatprep.mubr.bf16.mxu0 %v838
      %1993 = vmatmul.mubr.bf16.gmra.mxu0 %v790
      %v1994 = vpop.f32.mrf.mxu0
      %v1995 = vadd.f32 %v1834, %v1994
      %v1996 = vpop.f32.mrf.mxu0
      %v1997 = vpop.f32.mrf.mxu0
      %v1998 = vadd.f32 %v1837, %v1997
      %v1999 = vpop.f32.mrf.mxu0
      %2000 = vmatprep.mubr.bf16.mxu0 %v839
      %2001 = vmatmul.mubr.bf16.gmra.mxu0 %v791
      %v2002 = vpop.f32.mrf.mxu0
      %v2003 = vadd.f32 %v1842, %v2002
      %v2004 = vpop.f32.mrf.mxu0
      %v2005 = vpop.f32.mrf.mxu0
      %v2006 = vadd.f32 %v1845, %v2005
      %v2007 = vpop.f32.mrf.mxu0
      %2008 = vmatprep.mubr.bf16.mxu0 %v840
      %2009 = vmatmul.mubr.bf16.gmra.mxu0 %v792
      %v2010 = vpop.f32.mrf.mxu0
      %v2011 = vadd.f32 %v1850, %v2010
      %v2012 = vpop.f32.mrf.mxu0
      %v2013 = vpop.f32.mrf.mxu0
      %v2014 = vadd.f32 %v1853, %v2013
      %v2015 = vpop.f32.mrf.mxu0
      %2016 = vmatprep.mubr.bf16.mxu0 %v841
      %2017 = vmatmul.mubr.bf16.gmra.mxu0 %v793
      %v2018 = vpop.f32.mrf.mxu0
      %v2019 = vadd.f32 %v1858, %v2018
      %v2020 = vpop.f32.mrf.mxu0
      %v2021 = vpop.f32.mrf.mxu0
      %v2022 = vadd.f32 %v1861, %v2021
      %v2023 = vpop.f32.mrf.mxu0
      %2024 = vmatprep.mubr.bf16.mxu0 %v842
      %2025 = vmatmul.mubr.bf16.gmra.mxu0 %v794
      %v2026 = vpop.f32.mrf.mxu0
      %v2027 = vadd.f32 %v1866, %v2026
      %v2028 = vpop.f32.mrf.mxu0
      %v2029 = vpop.f32.mrf.mxu0
      %v2030 = vadd.f32 %v1869, %v2029
      %v2031 = vpop.f32.mrf.mxu0
      %2032 = vmatprep.mubr.bf16.mxu0 %v843
      %2033 = vmatmul.mubr.bf16.gmra.mxu0 %v795
      %v2034 = vpop.f32.mrf.mxu0
      %v2035 = vadd.f32 %v1874, %v2034
      %v2036 = vpop.f32.mrf.mxu0
      %v2037 = vpop.f32.mrf.mxu0
      %v2038 = vadd.f32 %v1877, %v2037
      %v2039 = vpop.f32.mrf.mxu0
      %2040 = vmatprep.mubr.bf16.mxu0 %v844
      %2041 = vmatmul.mubr.bf16.gmra.mxu0 %v796
      %v2042 = vpop.f32.mrf.mxu0
      %v2043 = vadd.f32 %v1882, %v2042
      %v2044 = vpop.f32.mrf.mxu0
      %v2045 = vpop.f32.mrf.mxu0
      %v2046 = vadd.f32 %v1885, %v2045
      %v2047 = vpop.f32.mrf.mxu0
      %2048 = vmatprep.mubr.bf16.mxu0 %v845
      %2049 = vmatmul.mubr.bf16.gmra.mxu0 %v797
      %v2050 = vpop.f32.mrf.mxu0
      %v2051 = vadd.f32 %v1890, %v2050
      %v2052 = vpop.f32.mrf.mxu0
      %v2053 = vpop.f32.mrf.mxu0
      %v2054 = vadd.f32 %v1893, %v2053
      %v2055 = vpop.f32.mrf.mxu0
      %2056 = vdwg.mxu0
      %2057 = vmatprep.subr.bf16.mxu0 0
      %2058 = vmatpush1.bf16.msra.mxu0 %v1485
      %2059 = vmatprep.subr.bf16.mxu0 0
      %2060 = vmatpush1.bf16.msra.mxu0 %v1484
      %2061 = vmatprep.subr.bf16.mxu0 0
      %2062 = vmatpush1.bf16.msra.mxu0 %v1483
      %2063 = vmatprep.subr.bf16.mxu0 0
      %2064 = vmatpush1.bf16.msra.mxu0 %v1482
      %2065 = vmatprep.subr.bf16.mxu0 0
      %2066 = vmatpush1.bf16.msra.mxu0 %v1481
      %2067 = vmatprep.subr.bf16.mxu0 0
      %2068 = vmatpush1.bf16.msra.mxu0 %v1480
      %2069 = vmatprep.subr.bf16.mxu0 0
      %2070 = vmatpush1.bf16.msra.mxu0 %v1479
      %2071 = vmatprep.subr.bf16.mxu0 0
      %2072 = vmatpush1.bf16.msra.mxu0 %v1478
      %2073 = vmatprep.subr.bf16.mxu0 0
      %2074 = vmatpush2.bf16.msra.mxu0 %v1493
      %2075 = vmatprep.subr.bf16.mxu0 0
      %2076 = vmatpush2.bf16.msra.mxu0 %v1492
      %2077 = vmatprep.subr.bf16.mxu0 0
      %2078 = vmatpush2.bf16.msra.mxu0 %v1491
      %2079 = vmatprep.subr.bf16.mxu0 0
      %2080 = vmatpush2.bf16.msra.mxu0 %v1490
      %2081 = vmatprep.subr.bf16.mxu0 0
      %2082 = vmatpush2.bf16.msra.mxu0 %v1489
      %2083 = vmatprep.subr.bf16.mxu0 0
      %2084 = vmatpush2.bf16.msra.mxu0 %v1488
      %2085 = vmatprep.subr.bf16.mxu0 0
      %2086 = vmatpush2.bf16.msra.mxu0 %v1487
      %2087 = vmatprep.subr.bf16.mxu0 0
      %2088 = vmatpush2.bf16.msra.mxu0 %v1486
      %2089 = vmatprep.mubr.bf16.mxu0 %v927
      %2090 = vmatmul.mubr.bf16.gmra.mxu0 %v879
      %v2091 = vpop.f32.mrf.mxu0
      %v2092 = vadd.f32 %v1931, %v2091
      %v2093 = vpop.f32.mrf.mxu0
      %v2094 = vpop.f32.mrf.mxu0
      %v2095 = vadd.f32 %v1934, %v2094
      %v2096 = vpop.f32.mrf.mxu0
      %2097 = vmatprep.mubr.bf16.mxu0 %v928
      %2098 = vmatmul.mubr.bf16.gmra.mxu0 %v880
      %v2099 = vpop.f32.mrf.mxu0
      %v2100 = vadd.f32 %v1939, %v2099
      %v2101 = vpop.f32.mrf.mxu0
      %v2102 = vpop.f32.mrf.mxu0
      %v2103 = vadd.f32 %v1942, %v2102
      %v2104 = vpop.f32.mrf.mxu0
      %2105 = vmatprep.mubr.bf16.mxu0 %v929
      %2106 = vmatmul.mubr.bf16.gmra.mxu0 %v881
      %v2107 = vpop.f32.mrf.mxu0
      %v2108 = vadd.f32 %v1947, %v2107
      %v2109 = vpop.f32.mrf.mxu0
      %v2110 = vpop.f32.mrf.mxu0
      %v2111 = vadd.f32 %v1950, %v2110
      %v2112 = vpop.f32.mrf.mxu0
      %2113 = vmatprep.mubr.bf16.mxu0 %v930
      %2114 = vmatmul.mubr.bf16.gmra.mxu0 %v882
      %v2115 = vpop.f32.mrf.mxu0
      %v2116 = vadd.f32 %v1955, %v2115
      %v2117 = vpop.f32.mrf.mxu0
      %v2118 = vpop.f32.mrf.mxu0
      %v2119 = vadd.f32 %v1958, %v2118
      %v2120 = vpop.f32.mrf.mxu0
      %2121 = vmatprep.mubr.bf16.mxu0 %v931
      %2122 = vmatmul.mubr.bf16.gmra.mxu0 %v883
      %v2123 = vpop.f32.mrf.mxu0
      %v2124 = vadd.f32 %v1963, %v2123
      %v2125 = vpop.f32.mrf.mxu0
      %v2126 = vpop.f32.mrf.mxu0
      %v2127 = vadd.f32 %v1966, %v2126
      %v2128 = vpop.f32.mrf.mxu0
      %2129 = vmatprep.mubr.bf16.mxu0 %v932
      %2130 = vmatmul.mubr.bf16.gmra.mxu0 %v884
      %v2131 = vpop.f32.mrf.mxu0
      %v2132 = vadd.f32 %v1971, %v2131
      %v2133 = vpop.f32.mrf.mxu0
      %v2134 = vpop.f32.mrf.mxu0
      %v2135 = vadd.f32 %v1974, %v2134
      %v2136 = vpop.f32.mrf.mxu0
      %2137 = vmatprep.mubr.bf16.mxu0 %v933
      %2138 = vmatmul.mubr.bf16.gmra.mxu0 %v885
      %v2139 = vpop.f32.mrf.mxu0
      %v2140 = vadd.f32 %v1979, %v2139
      %v2141 = vpop.f32.mrf.mxu0
      %v2142 = vpop.f32.mrf.mxu0
      %v2143 = vadd.f32 %v1982, %v2142
      %v2144 = vpop.f32.mrf.mxu0
      %2145 = vmatprep.mubr.bf16.mxu0 %v934
      %2146 = vmatmul.mubr.bf16.gmra.mxu0 %v886
      %v2147 = vpop.f32.mrf.mxu0
      %v2148 = vadd.f32 %v1987, %v2147
      %v2149 = vpop.f32.mrf.mxu0
      %v2150 = vpop.f32.mrf.mxu0
      %v2151 = vadd.f32 %v1990, %v2150
      %v2152 = vpop.f32.mrf.mxu0
      %2153 = vmatprep.mubr.bf16.mxu0 %v935
      %2154 = vmatmul.mubr.bf16.gmra.mxu0 %v887
      %v2155 = vpop.f32.mrf.mxu0
      %v2156 = vadd.f32 %v1995, %v2155
      %v2157 = vpop.f32.mrf.mxu0
      %v2158 = vpop.f32.mrf.mxu0
      %v2159 = vadd.f32 %v1998, %v2158
      %v2160 = vpop.f32.mrf.mxu0
      %2161 = vmatprep.mubr.bf16.mxu0 %v936
      %2162 = vmatmul.mubr.bf16.gmra.mxu0 %v888
      %v2163 = vpop.f32.mrf.mxu0
      %v2164 = vadd.f32 %v2003, %v2163
      %v2165 = vpop.f32.mrf.mxu0
      %v2166 = vpop.f32.mrf.mxu0
      %v2167 = vadd.f32 %v2006, %v2166
      %v2168 = vpop.f32.mrf.mxu0
      %2169 = vmatprep.mubr.bf16.mxu0 %v937
      %2170 = vmatmul.mubr.bf16.gmra.mxu0 %v889
      %v2171 = vpop.f32.mrf.mxu0
      %v2172 = vadd.f32 %v2011, %v2171
      %v2173 = vpop.f32.mrf.mxu0
      %v2174 = vpop.f32.mrf.mxu0
      %v2175 = vadd.f32 %v2014, %v2174
      %v2176 = vpop.f32.mrf.mxu0
      %2177 = vmatprep.mubr.bf16.mxu0 %v938
      %2178 = vmatmul.mubr.bf16.gmra.mxu0 %v890
      %v2179 = vpop.f32.mrf.mxu0
      %v2180 = vadd.f32 %v2019, %v2179
      %v2181 = vpop.f32.mrf.mxu0
      %v2182 = vpop.f32.mrf.mxu0
      %v2183 = vadd.f32 %v2022, %v2182
      %v2184 = vpop.f32.mrf.mxu0
      %2185 = vmatprep.mubr.bf16.mxu0 %v939
      %2186 = vmatmul.mubr.bf16.gmra.mxu0 %v891
      %v2187 = vpop.f32.mrf.mxu0
      %v2188 = vadd.f32 %v2027, %v2187
      %v2189 = vpop.f32.mrf.mxu0
      %v2190 = vpop.f32.mrf.mxu0
      %v2191 = vadd.f32 %v2030, %v2190
      %v2192 = vpop.f32.mrf.mxu0
      %2193 = vmatprep.mubr.bf16.mxu0 %v940
      %2194 = vmatmul.mubr.bf16.gmra.mxu0 %v892
      %v2195 = vpop.f32.mrf.mxu0
      %v2196 = vadd.f32 %v2035, %v2195
      %v2197 = vpop.f32.mrf.mxu0
      %v2198 = vpop.f32.mrf.mxu0
      %v2199 = vadd.f32 %v2038, %v2198
      %v2200 = vpop.f32.mrf.mxu0
      %2201 = vmatprep.mubr.bf16.mxu0 %v941
      %2202 = vmatmul.mubr.bf16.gmra.mxu0 %v893
      %v2203 = vpop.f32.mrf.mxu0
      %v2204 = vadd.f32 %v2043, %v2203
      %v2205 = vpop.f32.mrf.mxu0
      %v2206 = vpop.f32.mrf.mxu0
      %v2207 = vadd.f32 %v2046, %v2206
      %v2208 = vpop.f32.mrf.mxu0
      %2209 = vmatprep.mubr.bf16.mxu0 %v942
      %2210 = vmatmul.mubr.bf16.gmra.mxu0 %v894
      %v2211 = vpop.f32.mrf.mxu0
      %v2212 = vadd.f32 %v2051, %v2211
      %v2213 = vpop.f32.mrf.mxu0
      %v2214 = vpop.f32.mrf.mxu0
      %v2215 = vadd.f32 %v2054, %v2214
      %v2216 = vpop.f32.mrf.mxu0
      %2217 = vdwg.mxu0
      %2218 = vmatprep.subr.bf16.mxu0 0
      %2219 = vmatpush1.bf16.msra.mxu0 %v1501
      %2220 = vmatprep.subr.bf16.mxu0 0
      %2221 = vmatpush1.bf16.msra.mxu0 %v1500
      %2222 = vmatprep.subr.bf16.mxu0 0
      %2223 = vmatpush1.bf16.msra.mxu0 %v1499
      %2224 = vmatprep.subr.bf16.mxu0 0
      %2225 = vmatpush1.bf16.msra.mxu0 %v1498
      %2226 = vmatprep.subr.bf16.mxu0 0
      %2227 = vmatpush1.bf16.msra.mxu0 %v1497
      %2228 = vmatprep.subr.bf16.mxu0 0
      %2229 = vmatpush1.bf16.msra.mxu0 %v1496
      %2230 = vmatprep.subr.bf16.mxu0 0
      %2231 = vmatpush1.bf16.msra.mxu0 %v1495
      %2232 = vmatprep.subr.bf16.mxu0 0
      %2233 = vmatpush1.bf16.msra.mxu0 %v1494
      %2234 = vmatprep.subr.bf16.mxu0 0
      %2235 = vmatpush2.bf16.msra.mxu0 0
      %2236 = vmatprep.subr.bf16.mxu0 0
      %2237 = vmatpush2.bf16.msra.mxu0 0
      %2238 = vmatprep.subr.bf16.mxu0 0
      %2239 = vmatpush2.bf16.msra.mxu0 0
      %2240 = vmatprep.subr.bf16.mxu0 0
      %2241 = vmatpush2.bf16.msra.mxu0 0
      %2242 = vmatprep.subr.bf16.mxu0 0
      %2243 = vmatpush2.bf16.msra.mxu0 0
      %2244 = vmatprep.subr.bf16.mxu0 0
      %2245 = vmatpush2.bf16.msra.mxu0 0
      %2246 = vmatprep.subr.bf16.mxu0 0
      %2247 = vmatpush2.bf16.msra.mxu0 0
      %2248 = vmatprep.subr.bf16.mxu0 0
      %2249 = vmatpush2.bf16.msra.mxu0 0
      %2250 = vmatprep.mubr.bf16.mxu0 0
      %2251 = vmatmul.mubr.bf16.gmra.mxu0 %v975
      %v2252 = vpop.f32.mrf.mxu0
      %v2253 = vadd.f32 %v2092, %v2252
      %v2254 = vpop.f32.mrf.mxu0
      %v2255 = vpop.f32.mrf.mxu0
      %v2256 = vadd.f32 %v2095, %v2255
      %v2257 = vpop.f32.mrf.mxu0
      %2258 = vmatprep.mubr.bf16.mxu0 0
      %2259 = vmatmul.mubr.bf16.gmra.mxu0 %v976
      %v2260 = vpop.f32.mrf.mxu0
      %v2261 = vadd.f32 %v2100, %v2260
      %v2262 = vpop.f32.mrf.mxu0
      %v2263 = vpop.f32.mrf.mxu0
      %v2264 = vadd.f32 %v2103, %v2263
      %v2265 = vpop.f32.mrf.mxu0
      %2266 = vmatprep.mubr.bf16.mxu0 0
      %2267 = vmatmul.mubr.bf16.gmra.mxu0 %v977
      %v2268 = vpop.f32.mrf.mxu0
      %v2269 = vadd.f32 %v2108, %v2268
      %v2270 = vpop.f32.mrf.mxu0
      %v2271 = vpop.f32.mrf.mxu0
      %v2272 = vadd.f32 %v2111, %v2271
      %v2273 = vpop.f32.mrf.mxu0
      %2274 = vmatprep.mubr.bf16.mxu0 0
      %2275 = vmatmul.mubr.bf16.gmra.mxu0 %v978
      %v2276 = vpop.f32.mrf.mxu0
      %v2277 = vadd.f32 %v2116, %v2276
      %v2278 = vpop.f32.mrf.mxu0
      %v2279 = vpop.f32.mrf.mxu0
      %v2280 = vadd.f32 %v2119, %v2279
      %v2281 = vpop.f32.mrf.mxu0
      %2282 = vmatprep.mubr.bf16.mxu0 0
      %2283 = vmatmul.mubr.bf16.gmra.mxu0 %v979
      %v2284 = vpop.f32.mrf.mxu0
      %v2285 = vadd.f32 %v2124, %v2284
      %v2286 = vpop.f32.mrf.mxu0
      %v2287 = vpop.f32.mrf.mxu0
      %v2288 = vadd.f32 %v2127, %v2287
      %v2289 = vpop.f32.mrf.mxu0
      %2290 = vmatprep.mubr.bf16.mxu0 0
      %2291 = vmatmul.mubr.bf16.gmra.mxu0 %v980
      %v2292 = vpop.f32.mrf.mxu0
      %v2293 = vadd.f32 %v2132, %v2292
      %v2294 = vpop.f32.mrf.mxu0
      %v2295 = vpop.f32.mrf.mxu0
      %v2296 = vadd.f32 %v2135, %v2295
      %v2297 = vpop.f32.mrf.mxu0
      %2298 = vmatprep.mubr.bf16.mxu0 0
      %2299 = vmatmul.mubr.bf16.gmra.mxu0 %v981
      %v2300 = vpop.f32.mrf.mxu0
      %v2301 = vadd.f32 %v2140, %v2300
      %v2302 = vpop.f32.mrf.mxu0
      %v2303 = vpop.f32.mrf.mxu0
      %v2304 = vadd.f32 %v2143, %v2303
      %v2305 = vpop.f32.mrf.mxu0
      %2306 = vmatprep.mubr.bf16.mxu0 0
      %2307 = vmatmul.mubr.bf16.gmra.mxu0 %v982
      %v2308 = vpop.f32.mrf.mxu0
      %v2309 = vadd.f32 %v2148, %v2308
      %v2310 = vpop.f32.mrf.mxu0
      %v2311 = vpop.f32.mrf.mxu0
      %v2312 = vadd.f32 %v2151, %v2311
      %v2313 = vpop.f32.mrf.mxu0
      %2314 = vmatprep.mubr.bf16.mxu0 0
      %2315 = vmatmul.mubr.bf16.gmra.mxu0 %v983
      %v2316 = vpop.f32.mrf.mxu0
      %v2317 = vadd.f32 %v2156, %v2316
      %v2318 = vpop.f32.mrf.mxu0
      %v2319 = vpop.f32.mrf.mxu0
      %v2320 = vadd.f32 %v2159, %v2319
      %v2321 = vpop.f32.mrf.mxu0
      %2322 = vmatprep.mubr.bf16.mxu0 0
      %2323 = vmatmul.mubr.bf16.gmra.mxu0 %v984
      %v2324 = vpop.f32.mrf.mxu0
      %v2325 = vadd.f32 %v2164, %v2324
      %v2326 = vpop.f32.mrf.mxu0
      %v2327 = vpop.f32.mrf.mxu0
      %v2328 = vadd.f32 %v2167, %v2327
      %v2329 = vpop.f32.mrf.mxu0
      %2330 = vmatprep.mubr.bf16.mxu0 0
      %2331 = vmatmul.mubr.bf16.gmra.mxu0 %v985
      %v2332 = vpop.f32.mrf.mxu0
      %v2333 = vadd.f32 %v2172, %v2332
      %v2334 = vpop.f32.mrf.mxu0
      %v2335 = vpop.f32.mrf.mxu0
      %v2336 = vadd.f32 %v2175, %v2335
      %v2337 = vpop.f32.mrf.mxu0
      %2338 = vmatprep.mubr.bf16.mxu0 0
      %2339 = vmatmul.mubr.bf16.gmra.mxu0 %v986
      %v2340 = vpop.f32.mrf.mxu0
      %v2341 = vadd.f32 %v2180, %v2340
      %v2342 = vpop.f32.mrf.mxu0
      %v2343 = vpop.f32.mrf.mxu0
      %v2344 = vadd.f32 %v2183, %v2343
      %v2345 = vpop.f32.mrf.mxu0
      %2346 = vmatprep.mubr.bf16.mxu0 0
      %2347 = vmatmul.mubr.bf16.gmra.mxu0 %v987
      %v2348 = vpop.f32.mrf.mxu0
      %v2349 = vadd.f32 %v2188, %v2348
      %v2350 = vpop.f32.mrf.mxu0
      %v2351 = vpop.f32.mrf.mxu0
      %v2352 = vadd.f32 %v2191, %v2351
      %v2353 = vpop.f32.mrf.mxu0
      %2354 = vmatprep.mubr.bf16.mxu0 0
      %2355 = vmatmul.mubr.bf16.gmra.mxu0 %v988
      %v2356 = vpop.f32.mrf.mxu0
      %v2357 = vadd.f32 %v2196, %v2356
      %v2358 = vpop.f32.mrf.mxu0
      %v2359 = vpop.f32.mrf.mxu0
      %v2360 = vadd.f32 %v2199, %v2359
      %v2361 = vpop.f32.mrf.mxu0
      %2362 = vmatprep.mubr.bf16.mxu0 0
      %2363 = vmatmul.mubr.bf16.gmra.mxu0 %v989
      %v2364 = vpop.f32.mrf.mxu0
      %v2365 = vadd.f32 %v2204, %v2364
      %v2366 = vpop.f32.mrf.mxu0
      %v2367 = vpop.f32.mrf.mxu0
      %v2368 = vadd.f32 %v2207, %v2367
      %v2369 = vpop.f32.mrf.mxu0
      %2370 = vmatprep.mubr.bf16.mxu0 0
      %2371 = vmatmul.mubr.bf16.gmra.mxu0 %v990
      %v2372 = vpop.f32.mrf.mxu0
      %v2373 = vadd.f32 %v2212, %v2372
      %v2374 = vpop.f32.mrf.mxu0
      %v2375 = vpop.f32.mrf.mxu0
      %v2376 = vadd.f32 %v2215, %v2375
      %v2377 = vpop.f32.mrf.mxu0
      %2378 = vdwg.mxu0
      %vm2379 = vcmask 261120
      %v2380 = vsel %vm2379, %v2253, 0.0
      %v2381 = vsel %vm2379, %v2256, 0.0
      %v2382 = vadd.f32 %v2380, %v2381
      %v2383 = vsel %vm2379, %v2261, 0.0
      %v2384 = vadd.f32 %v2382, %v2383
      %v2385 = vsel %vm2379, %v2264, 0.0
      %v2386 = vadd.f32 %v2384, %v2385
      %v2387 = vsel %vm2379, %v2269, 0.0
      %v2388 = vadd.f32 %v2386, %v2387
      %v2389 = vsel %vm2379, %v2272, 0.0
      %v2390 = vadd.f32 %v2388, %v2389
      %v2391 = vsel %vm2379, %v2277, 0.0
      %v2392 = vadd.f32 %v2390, %v2391
      %v2393 = vsel %vm2379, %v2280, 0.0
      %v2394 = vadd.f32 %v2392, %v2393
      %v2395 = vsel %vm2379, %v2285, 0.0
      %v2396 = vadd.f32 %v2394, %v2395
      %v2397 = vsel %vm2379, %v2288, 0.0
      %v2398 = vadd.f32 %v2396, %v2397
      %v2399 = vsel %vm2379, %v2293, 0.0
      %v2400 = vadd.f32 %v2398, %v2399
      %v2401 = vsel %vm2379, %v2296, 0.0
      %v2402 = vadd.f32 %v2400, %v2401
      %v2403 = vsel %vm2379, %v2301, 0.0
      %v2404 = vadd.f32 %v2402, %v2403
      %v2405 = vsel %vm2379, %v2304, 0.0
      %v2406 = vadd.f32 %v2404, %v2405
      %v2407 = vsel %vm2379, %v2309, 0.0
      %v2408 = vadd.f32 %v2406, %v2407
      %v2409 = vsel %vm2379, %v2312, 0.0
      %v2410 = vadd.f32 %v2408, %v2409
      %v2411 = vsel %vm2379, %v2317, 0.0
      %v2412 = vadd.f32 %v2410, %v2411
      %v2413 = vsel %vm2379, %v2320, 0.0
      %v2414 = vadd.f32 %v2412, %v2413
      %v2415 = vsel %vm2379, %v2325, 0.0
      %v2416 = vadd.f32 %v2414, %v2415
      %v2417 = vsel %vm2379, %v2328, 0.0
      %v2418 = vadd.f32 %v2416, %v2417
      %v2419 = vsel %vm2379, %v2333, 0.0
      %v2420 = vadd.f32 %v2418, %v2419
      %v2421 = vsel %vm2379, %v2336, 0.0
      %v2422 = vadd.f32 %v2420, %v2421
      %v2423 = vsel %vm2379, %v2341, 0.0
      %v2424 = vadd.f32 %v2422, %v2423
      %v2425 = vsel %vm2379, %v2344, 0.0
      %v2426 = vadd.f32 %v2424, %v2425
      %v2427 = vsel %vm2379, %v2349, 0.0
      %v2428 = vadd.f32 %v2426, %v2427
      %v2429 = vsel %vm2379, %v2352, 0.0
      %v2430 = vadd.f32 %v2428, %v2429
      %v2431 = vsel %vm2379, %v2357, 0.0
      %v2432 = vadd.f32 %v2430, %v2431
      %v2433 = vsel %vm2379, %v2360, 0.0
      %v2434 = vadd.f32 %v2432, %v2433
      %v2435 = vsel %vm2379, %v2365, 0.0
      %v2436 = vadd.f32 %v2434, %v2435
      %v2437 = vsel %vm2379, %v2368, 0.0
      %v2438 = vadd.f32 %v2436, %v2437
      %v2439 = vsel %vm2379, %v2373, 0.0
      %v2440 = vadd.f32 %v2438, %v2439
      %v2441 = vsel %vm2379, %v2376, 0.0
      %v2442 = vadd.f32 %v2440, %v2441
      %v2443 = vrot.slane %v2442, 4
      %v2444 = vadd.f32 %v2442, %v2443
      %v2445 = vrot.slane %v2444, 2
      %v2446 = vadd.f32 %v2444, %v2445
      %v2447 = vrot.slane %v2446, 1
      %v2448 = vadd.f32 %v2446, %v2447
      %vm2449 = vcmask 253952
      %2450 = vst.msk [vmem:[%s292] sm:$0x1] %vm2449, %v2448
      %v2451 = vmul.f32 %v2253, %v2253
      %v2452 = vmul.f32 %v2256, %v2256
      %v2453 = vmul.f32 %v2261, %v2261
      %v2454 = vmul.f32 %v2264, %v2264
      %v2455 = vmul.f32 %v2269, %v2269
      %v2456 = vmul.f32 %v2272, %v2272
      %v2457 = vmul.f32 %v2277, %v2277
      %v2458 = vmul.f32 %v2280, %v2280
      %v2459 = vmul.f32 %v2285, %v2285
      %v2460 = vmul.f32 %v2288, %v2288
      %v2461 = vmul.f32 %v2293, %v2293
      %v2462 = vmul.f32 %v2296, %v2296
      %v2463 = vmul.f32 %v2301, %v2301
      %v2464 = vmul.f32 %v2304, %v2304
      %v2465 = vmul.f32 %v2309, %v2309
      %v2466 = vmul.f32 %v2312, %v2312
      %v2467 = vmul.f32 %v2317, %v2317
      %v2468 = vmul.f32 %v2320, %v2320
      %v2469 = vmul.f32 %v2325, %v2325
      %v2470 = vmul.f32 %v2328, %v2328
      %v2471 = vmul.f32 %v2333, %v2333
      %v2472 = vmul.f32 %v2336, %v2336
      %v2473 = vmul.f32 %v2341, %v2341
      %v2474 = vmul.f32 %v2344, %v2344
      %v2475 = vmul.f32 %v2349, %v2349
      %v2476 = vmul.f32 %v2352, %v2352
      %v2477 = vmul.f32 %v2357, %v2357
      %v2478 = vmul.f32 %v2360, %v2360
      %v2479 = vmul.f32 %v2365, %v2365
      %v2480 = vmul.f32 %v2368, %v2368
      %v2481 = vmul.f32 %v2373, %v2373
      %v2482 = vmul.f32 %v2376, %v2376
      %v2483 = vsel %vm2379, %v2451, 0.0
      %v2484 = vsel %vm2379, %v2452, 0.0
      %v2485 = vadd.f32 %v2483, %v2484
      %v2486 = vsel %vm2379, %v2453, 0.0
      %v2487 = vadd.f32 %v2485, %v2486
      %v2488 = vsel %vm2379, %v2454, 0.0
      %v2489 = vadd.f32 %v2487, %v2488
      %v2490 = vsel %vm2379, %v2455, 0.0
      %v2491 = vadd.f32 %v2489, %v2490
      %v2492 = vsel %vm2379, %v2456, 0.0
      %v2493 = vadd.f32 %v2491, %v2492
      %v2494 = vsel %vm2379, %v2457, 0.0
      %v2495 = vadd.f32 %v2493, %v2494
      %v2496 = vsel %vm2379, %v2458, 0.0
      %v2497 = vadd.f32 %v2495, %v2496
      %v2498 = vsel %vm2379, %v2459, 0.0
      %v2499 = vadd.f32 %v2497, %v2498
      %v2500 = vsel %vm2379, %v2460, 0.0
      %v2501 = vadd.f32 %v2499, %v2500
      %v2502 = vsel %vm2379, %v2461, 0.0
      %v2503 = vadd.f32 %v2501, %v2502
      %v2504 = vsel %vm2379, %v2462, 0.0
      %v2505 = vadd.f32 %v2503, %v2504
      %v2506 = vsel %vm2379, %v2463, 0.0
      %v2507 = vadd.f32 %v2505, %v2506
      %v2508 = vsel %vm2379, %v2464, 0.0
      %v2509 = vadd.f32 %v2507, %v2508
      %v2510 = vsel %vm2379, %v2465, 0.0
      %v2511 = vadd.f32 %v2509, %v2510
      %v2512 = vsel %vm2379, %v2466, 0.0
      %v2513 = vadd.f32 %v2511, %v2512
      %v2514 = vsel %vm2379, %v2467, 0.0
      %v2515 = vadd.f32 %v2513, %v2514
      %v2516 = vsel %vm2379, %v2468, 0.0
      %v2517 = vadd.f32 %v2515, %v2516
      %v2518 = vsel %vm2379, %v2469, 0.0
      %v2519 = vadd.f32 %v2517, %v2518
      %v2520 = vsel %vm2379, %v2470, 0.0
      %v2521 = vadd.f32 %v2519, %v2520
      %v2522 = vsel %vm2379, %v2471, 0.0
      %v2523 = vadd.f32 %v2521, %v2522
      %v2524 = vsel %vm2379, %v2472, 0.0
      %v2525 = vadd.f32 %v2523, %v2524
      %v2526 = vsel %vm2379, %v2473, 0.0
      %v2527 = vadd.f32 %v2525, %v2526
      %v2528 = vsel %vm2379, %v2474, 0.0
      %v2529 = vadd.f32 %v2527, %v2528
      %v2530 = vsel %vm2379, %v2475, 0.0
      %v2531 = vadd.f32 %v2529, %v2530
      %v2532 = vsel %vm2379, %v2476, 0.0
      %v2533 = vadd.f32 %v2531, %v2532
      %v2534 = vsel %vm2379, %v2477, 0.0
      %v2535 = vadd.f32 %v2533, %v2534
      %v2536 = vsel %vm2379, %v2478, 0.0
      %v2537 = vadd.f32 %v2535, %v2536
      %v2538 = vsel %vm2379, %v2479, 0.0
      %v2539 = vadd.f32 %v2537, %v2538
      %v2540 = vsel %vm2379, %v2480, 0.0
      %v2541 = vadd.f32 %v2539, %v2540
      %v2542 = vsel %vm2379, %v2481, 0.0
      %v2543 = vadd.f32 %v2541, %v2542
      %v2544 = vsel %vm2379, %v2482, 0.0
      %v2545 = vadd.f32 %v2543, %v2544
      %v2546 = vrot.slane %v2545, 4
      %v2547 = vadd.f32 %v2545, %v2546
      %v2548 = vrot.slane %v2547, 2
      %v2549 = vadd.f32 %v2547, %v2548
      %v2550 = vrot.slane %v2549, 1
      %v2551 = vadd.f32 %v2549, %v2550
      %2552 = vst.msk [vmem:[%s295] sm:$0x1] %vm2449, %v2551
      %v2553 = vpack.c.bf16 %v2256, %v2253
      %v2554 = vpack.c.bf16 %v2264, %v2261
      %v2555 = vpack.c.bf16 %v2272, %v2269
      %v2556 = vpack.c.bf16 %v2280, %v2277
      %v2557 = vpack.c.bf16 %v2288, %v2285
      %v2558 = vpack.c.bf16 %v2296, %v2293
      %v2559 = vpack.c.bf16 %v2304, %v2301
      %v2560 = vpack.c.bf16 %v2312, %v2309
      %v2561 = vpack.c.bf16 %v2320, %v2317
      %v2562 = vpack.c.bf16 %v2328, %v2325
      %v2563 = vpack.c.bf16 %v2336, %v2333
      %v2564 = vpack.c.bf16 %v2344, %v2341
      %v2565 = vpack.c.bf16 %v2352, %v2349
      %v2566 = vpack.c.bf16 %v2360, %v2357
      %v2567 = vpack.c.bf16 %v2368, %v2365
      %v2568 = vpack.c.bf16 %v2376, %v2373
      %v2585 = vunpack.c.l.b16 %v2553
      %v2586 = vunpack.c.h.b16 %v2553
      %v2587 = vunpack.c.l.b16 %v2554
      %v2588 = vunpack.c.h.b16 %v2554
      %v2589 = vunpack.c.l.b16 %v2555
      %v2590 = vunpack.c.h.b16 %v2555
      %v2591 = vunpack.c.l.b16 %v2556
      %v2592 = vunpack.c.h.b16 %v2556
      %v2593 = vunpack.c.l.b16 %v2557
      %v2594 = vunpack.c.h.b16 %v2557
      %v2595 = vunpack.c.l.b16 %v2558
      %v2596 = vunpack.c.h.b16 %v2558
      %v2597 = vunpack.c.l.b16 %v2559
      %v2598 = vunpack.c.h.b16 %v2559
      %v2599 = vunpack.c.l.b16 %v2560
      %v2600 = vunpack.c.h.b16 %v2560
      %v2601 = vunpack.c.l.b16 %v2561
      %v2602 = vunpack.c.h.b16 %v2561
      %v2603 = vunpack.c.l.b16 %v2562
      %v2604 = vunpack.c.h.b16 %v2562
      %v2605 = vunpack.c.l.b16 %v2563
      %v2606 = vunpack.c.h.b16 %v2563
      %v2607 = vunpack.c.l.b16 %v2564
      %v2608 = vunpack.c.h.b16 %v2564
      %v2609 = vunpack.c.l.b16 %v2565
      %v2610 = vunpack.c.h.b16 %v2565
      %v2611 = vunpack.c.l.b16 %v2566
      %v2612 = vunpack.c.h.b16 %v2566
      %v2613 = vunpack.c.l.b16 %v2567
      %v2614 = vunpack.c.h.b16 %v2567
      %v2615 = vunpack.c.l.b16 %v2568
      %v2616 = vunpack.c.h.b16 %v2568
      %v2617 = vpack.c.b16 %v2585, %v2585
      %v2618 = vpack.c.b16 %v2586, %v2586
      %v2619 = vpack.c.b16 %v2587, %v2587
      %v2620 = vpack.c.b16 %v2588, %v2588
      %v2621 = vpack.c.b16 %v2589, %v2589
      %v2622 = vpack.c.b16 %v2590, %v2590
      %v2623 = vpack.c.b16 %v2591, %v2591
      %v2624 = vpack.c.b16 %v2592, %v2592
      %v2625 = vpack.c.b16 %v2593, %v2593
      %v2626 = vpack.c.b16 %v2594, %v2594
      %v2627 = vpack.c.b16 %v2595, %v2595
      %v2628 = vpack.c.b16 %v2596, %v2596
      %v2629 = vpack.c.b16 %v2597, %v2597
      %v2630 = vpack.c.b16 %v2598, %v2598
      %v2631 = vpack.c.b16 %v2599, %v2599
      %v2632 = vpack.c.b16 %v2600, %v2600
      %v2633 = vpack.c.b16 %v2601, %v2601
      %v2634 = vpack.c.b16 %v2602, %v2602
      %v2635 = vpack.c.b16 %v2603, %v2603
      %v2636 = vpack.c.b16 %v2604, %v2604
      %v2637 = vpack.c.b16 %v2605, %v2605
      %v2638 = vpack.c.b16 %v2606, %v2606
      %v2639 = vpack.c.b16 %v2607, %v2607
      %v2640 = vpack.c.b16 %v2608, %v2608
      %v2641 = vpack.c.b16 %v2609, %v2609
      %v2642 = vpack.c.b16 %v2610, %v2610
      %v2643 = vpack.c.b16 %v2611, %v2611
      %v2644 = vpack.c.b16 %v2612, %v2612
      %v2645 = vpack.c.b16 %v2613, %v2613
      %v2646 = vpack.c.b16 %v2614, %v2614
      %v2647 = vpack.c.b16 %v2615, %v2615
      %v2648 = vpack.c.b16 %v2616, %v2616
      %vm2681 = vcmask 257024
      %2682 = vst.msk [vmem:[%s289] sm:$0xf] %vm2681, %v2617
      %2683 = vst.msk [vmem:[%s289 + $0x4] sm:$0xf] %vm2681, %v2618
      %2684 = vst.msk [vmem:[%s289 + $0x8] sm:$0xf] %vm2681, %v2619
      %2685 = vst.msk [vmem:[%s289 + $0xc] sm:$0xf] %vm2681, %v2620
      %2686 = vst.msk [vmem:[%s289 + $0x10] sm:$0xf] %vm2681, %v2621
      %2687 = vst.msk [vmem:[%s289 + $0x14] sm:$0xf] %vm2681, %v2622
      %2688 = vst.msk [vmem:[%s289 + $0x18] sm:$0xf] %vm2681, %v2623
      %2689 = vst.msk [vmem:[%s289 + $0x1c] sm:$0xf] %vm2681, %v2624
      %2690 = vst.msk [vmem:[%s289 + $0x20] sm:$0xf] %vm2681, %v2625
      %2691 = vst.msk [vmem:[%s289 + $0x24] sm:$0xf] %vm2681, %v2626
      %2692 = vst.msk [vmem:[%s289 + $0x28] sm:$0xf] %vm2681, %v2627
      %2693 = vst.msk [vmem:[%s289 + $0x2c] sm:$0xf] %vm2681, %v2628
      %2694 = vst.msk [vmem:[%s289 + $0x30] sm:$0xf] %vm2681, %v2629
      %2695 = vst.msk [vmem:[%s289 + $0x34] sm:$0xf] %vm2681, %v2630
      %2696 = vst.msk [vmem:[%s289 + $0x38] sm:$0xf] %vm2681, %v2631
      %2697 = vst.msk [vmem:[%s289 + $0x3c] sm:$0xf] %vm2681, %v2632
      %2698 = vst.msk [vmem:[%s289 + $0x40] sm:$0xf] %vm2681, %v2633
      %2699 = vst.msk [vmem:[%s289 + $0x44] sm:$0xf] %vm2681, %v2634
      %2700 = vst.msk [vmem:[%s289 + $0x48] sm:$0xf] %vm2681, %v2635
      %2701 = vst.msk [vmem:[%s289 + $0x4c] sm:$0xf] %vm2681, %v2636
      %2702 = vst.msk [vmem:[%s289 + $0x50] sm:$0xf] %vm2681, %v2637
      %2703 = vst.msk [vmem:[%s289 + $0x54] sm:$0xf] %vm2681, %v2638
      %2704 = vst.msk [vmem:[%s289 + $0x58] sm:$0xf] %vm2681, %v2639
      %2705 = vst.msk [vmem:[%s289 + $0x5c] sm:$0xf] %vm2681, %v2640
      %2706 = vst.msk [vmem:[%s289 + $0x60] sm:$0xf] %vm2681, %v2641
      %2707 = vst.msk [vmem:[%s289 + $0x64] sm:$0xf] %vm2681, %v2642
      %2708 = vst.msk [vmem:[%s289 + $0x68] sm:$0xf] %vm2681, %v2643
      %2709 = vst.msk [vmem:[%s289 + $0x6c] sm:$0xf] %vm2681, %v2644
      %2710 = vst.msk [vmem:[%s289 + $0x70] sm:$0xf] %vm2681, %v2645
      %2711 = vst.msk [vmem:[%s289 + $0x74] sm:$0xf] %vm2681, %v2646
      %2712 = vst.msk [vmem:[%s289 + $0x78] sm:$0xf] %vm2681, %v2647
      %2713 = vst.msk [vmem:[%s289 + $0x7c] sm:$0xf] %vm2681, %v2648
      %p2714 = scmp.lt.s32.totalorder %s19, 1
      %s2715 = scalar_select %p2714, %s19, 1
      %s2716 = smul.addr %s2715, 32
      %s2717 = smul.addr %s2716, 4
      %s2718 = scalar_lea.vmem %s5, %s2717
      %p2719 = scmp.lt.s32.totalorder %s19, 1
      %s2720 = scalar_select %p2719, %s19, 1
      %s2721 = scalar_lea.vmem %s6, %s2720
      %p2722 = scmp.lt.s32.totalorder %s19, 1
      %s2723 = scalar_select %p2722, %s19, 1
      %s2724 = scalar_lea.vmem %s7, %s2723
      // Predicated region
      $region41: #{dense_block_forward.5} parent=39 // pred_check
        %p2725 = pneg %p147
      $region42: #{dense_block_forward.5} parent=39 // pred_check_branch
        %2727 = sbr.rel (%p2725) target = $region44
      $region43: #{dense_block_forward.5} parent=39 // pred_region
        _
      $region44: #{dense_block_forward.5} parent=39 // pred_fallthru
        _
      // Predicated region
      $region45: #{dense_block_forward.5} parent=39 // pred_check
        %p2728 = pneg %p173
      $region46: #{dense_block_forward.5} parent=39 // pred_check_branch
        %2730 = sbr.rel (%p2728) target = $region48
      $region47: #{dense_block_forward.5} parent=39 // pred_region
        _
      $region48: #{dense_block_forward.5} parent=39 // pred_fallthru
        _
      // Predicated region
      $region49: #{dense_block_forward.5} parent=39 // pred_check
        %p2731 = pneg %p199
      $region50: #{dense_block_forward.5} parent=39 // pred_check_branch
        %2733 = sbr.rel (%p2731) target = $region52
      $region51: #{dense_block_forward.5} parent=39 // pred_region
        _
      $region52: #{dense_block_forward.5} parent=39 // pred_fallthru
        _
    $region40: #{dense_block_forward.5} parent=5 // pred_fallthru
      _
    %p2734 = scmp.le.s32.totalorder 2, %s14
    // Predicated region
    $region53: #{dense_block_forward.5} parent=5 // pred_check
      %p2735 = pneg %p2734
    $region54: #{dense_block_forward.5} parent=5 // pred_check_branch
      %2737 = sbr.rel (%p2735) target = $region56
    $region55: #{dense_block_forward.5} parent=5 // pred_region
      %s2738 = ssub.s32 %s14, 2
      // Predicated region
      $region57: #{dense_block_forward.5} parent=55 // pred_check
        %p2739 = pneg %p153
      $region58: #{dense_block_forward.5} parent=55 // pred_check_branch
        %2741 = sbr.rel (%p2739) target = $region60
      $region59: #{dense_block_forward.5} parent=55 // pred_region
        %p2742 = scmp.lt.s32.totalorder %s20, 1
        %s2743 = scalar_select %p2742, %s20, 1
        %s2744 = smul.addr %s2743, 32
        %s2745 = smul.addr %s2744, 4
        %s2746 = scalar_lea.vmem %s5, %s2745
      $region60: #{dense_block_forward.5} parent=55 // pred_fallthru
        _
      // Predicated region
      $region61: #{dense_block_forward.5} parent=55 // pred_check
        %p2747 = pneg %p179
      $region62: #{dense_block_forward.5} parent=55 // pred_check_branch
        %2749 = sbr.rel (%p2747) target = $region64
      $region63: #{dense_block_forward.5} parent=55 // pred_region
        %p2750 = scmp.lt.s32.totalorder %s20, 1
        %s2751 = scalar_select %p2750, %s20, 1
        %s2752 = scalar_lea.vmem %s6, %s2751
      $region64: #{dense_block_forward.5} parent=55 // pred_fallthru
        _
      // Predicated region
      $region65: #{dense_block_forward.5} parent=55 // pred_check
        %p2753 = pneg %p205
      $region66: #{dense_block_forward.5} parent=55 // pred_check_branch
        %2755 = sbr.rel (%p2753) target = $region68
      $region67: #{dense_block_forward.5} parent=55 // pred_region
        %p2756 = scmp.lt.s32.totalorder %s20, 1
        %s2757 = scalar_select %p2756, %s20, 1
        %s2758 = scalar_lea.vmem %s7, %s2757
      $region68: #{dense_block_forward.5} parent=55 // pred_fallthru
        _
    $region56: #{dense_block_forward.5} parent=5 // pred_fallthru
      _
  $region6: #{dense_block_forward.5} parent=0 // loop_footer
    %s18 = sadd.s32 1, %s14
  $region7: #{dense_block_forward.5} parent=0 // loop_footer_branch
    %13 = sbr.rel target = $region3
  $region8: #{dense_block_forward.5} parent=0 // loop_exit
    _

// kernel: dense_block_forward.7
$region0: #{dense_block_forward.7}
  #allocation0 [shape = 'u32[]', space=smem, size = 0x4, offset = 0x4, fixed_abs, tag = 'smem constant byte address 0x4 - core index']
  #allocation1 [shape = 'u32[144,128]{1,0:T(1,128)}', space=vmem, size = 0x12000, scoped, tag = 'internal scratch']
  #allocation2 [shape = 'f32[18,18,128]{2,1,0:T(8,128)}', space=vmem, size = 0x36000, scoped, tag = 'scratch operand']
  %s0 = inlined_call_operand.vmem [shape: bf16[2,16,16,128], index: 0, kind: input, shape index: {}]
  %s1 = inlined_call_operand.vmem [shape: f32[1,128], index: 1, kind: input, shape index: {}]
  %s2 = inlined_call_operand.vmem [shape: f32[1,128], index: 2, kind: input, shape index: {}]
  %s3 = inlined_call_operand.vmem [shape: bf16[1152,32], index: 3, kind: input, shape index: {}]
  %s4 = inlined_call_operand.vmem [shape: f32[1,32], index: 4, kind: input, shape index: {}]
  %s5 = inlined_call_operand.vmem [shape: bf16[2,256,32], index: 5, kind: output, shape index: {0}]
  %s6 = inlined_call_operand.hbm [shape: f32[2,1,32], index: 6, kind: output, shape index: {1}]
  %s7 = inlined_call_operand.hbm [shape: f32[2,1,32], index: 7, kind: output, shape index: {2}]
  %8 = xla_tuple %s5, %s6, %s7
  %s9 = sld [smem:[#allocation0]]
  $region69: #{dense_block_forward.7} parent=0
    _
  %s11 = ssub.s32 1, %s9
  %s12 = scalar_select 0, %s11, %s9
  $region1: #{dense_block_forward.7} parent=0
    #allocation3 [shape = 'u8[1024]{0}', space=vmem, size = 0x400, scoped, tag = 'output window, operand 1']
    #allocation4 [shape = 's32[2]{0}', space=sflag, size = 0x8, scoped, tag = 'scoped memory for dense_block_forward.7']
    #allocation5 [shape = 'u8[1024]{0}', space=vmem, size = 0x400, scoped, tag = 'output window, operand 2']
    #allocation6 [shape = 's32[2]{0}', space=sflag, size = 0x8, scoped, tag = 'scoped memory for dense_block_forward.7']
    %13 = vsyncpa [#allocation4], 0
    %s14 = scalar_lea.sflag [#allocation4], 1
    %15 = vsyncpa %s14, 0
    %16 = vsyncpa [#allocation6], 0
    %s17 = scalar_lea.sflag [#allocation6], 1
    %18 = vsyncpa %s17, 0
    loop: start=0, step=1, limit=4
    $region2: #{dense_block_forward.7} parent=1 // loop_pre_header
      _
    $region3: #{dense_block_forward.7} parent=1 // loop_header
      %s20 = sphi 0, %s24
      %p21 = scmp.ge.s32.totalorder %s20, 4
      %s30 = sphi 0, %s32
      %s33 = sphi 0, %s30
      %s34 = sphi 0, %s33
      %s50 = sphi 0, %s34
      %s54 = sphi 0, %s54
      %s56 = sphi 0, %s54
      %s57 = sphi 0, %s56
      %s71 = sphi 0, %s57
      %s75 = sphi 0, %s75
      %s77 = sphi 0, %s75
      %s78 = sphi 0, %s77
      %s92 = sphi 0, %s78
      %s96 = sphi 0, %s96
      %s98 = sphi 0, %s96
      %s99 = sphi 0, %s98
      %s113 = sphi 0, %s99
      %s117 = sphi 0, %s117
      %s119 = sphi 0, %s117
      %s120 = sphi 0, %s119
      %s134 = sphi 0, %s120
      %s140 = sphi 0, %s142
      %s143 = sphi 0, %s140
      %s144 = sphi 0, %s143
      %s160 = sphi 0, %s144
      %s166 = sphi 0, %s168
      %s169 = sphi 0, %s166
      %s170 = sphi 0, %s169
      %s186 = sphi 0, %s170
      %s192 = sphi 0, %s194
      %s195 = sphi 0, %s192
      %s196 = sphi 0, %s195
      %s212 = sphi 0, %s196
    $region4: #{dense_block_forward.7} parent=1 // loop_header_branch
      %23 = sbr.rel (%p21) target = $region8
    $region5: #{dense_block_forward.7} parent=1 // loop_body
      %s25 = ssub.s32 %s20, 1
      %s26 = ssub.s32 %s20, 2
      %s27 = sadd.s32 %s20, 1
      %s28 = ssub.s32 %s20, %s27
      %p29 = scmp.eq.s32.totalorder %s28, 0
      %s31 = sadd.s32 %s30, 1
      %s32 = scalar_select %p29, %s30, %s31
      %p35 = pneg %p29
      %p36 = scmp.eq.s32.totalorder %s20, 1
      %p37 = por %p35, %p36
      %p38 = scmp.ne.s32.totalorder %s30, %s33
      %p39 = scmp.eq.s32.totalorder %s20, 0
      %p40 = por %p38, %p39
      %p41 = scmp.ne.s32.totalorder %s30, %s33
      %p42 = scmp.eq.s32.totalorder %s25, 1
      %p43 = por %p41, %p42
      %p44 = scmp.ne.s32.totalorder %s33, %s34
      %p45 = scmp.eq.s32.totalorder %s25, 0
      %p46 = por %p44, %p45
      %p47 = scmp.ne.s32.totalorder %s33, %s34
      %p48 = scmp.eq.s32.totalorder %s26, 1
      %p49 = por %p47, %p48
      %p51 = scmp.ne.s32.totalorder %s34, %s50
      %p52 = scmp.eq.s32.totalorder %s26, 0
      %p53 = por %p51, %p52
      %s55 = sadd.s32 %s54, 1
      %p58 = scmp.eq.s32.totalorder %s20, 1
      %p59 = scmp.ne.s32.totalorder %s54, %s56
      %p60 = scmp.eq.s32.totalorder %s20, 0
      %p61 = por %p59, %p60
      %p62 = scmp.ne.s32.totalorder %s54, %s56
      %p63 = scmp.eq.s32.totalorder %s25, 1
      %p64 = por %p62, %p63
      %p65 = scmp.ne.s32.totalorder %s56, %s57
      %p66 = scmp.eq.s32.totalorder %s25, 0
      %p67 = por %p65, %p66
      %p68 = scmp.ne.s32.totalorder %s56, %s57
      %p69 = scmp.eq.s32.totalorder %s26, 1
      %p70 = por %p68, %p69
      %p72 = scmp.ne.s32.totalorder %s57, %s71
      %p73 = scmp.eq.s32.totalorder %s26, 0
      %p74 = por %p72, %p73
      %s76 = sadd.s32 %s75, 1
      %p79 = scmp.eq.s32.totalorder %s20, 1
      %p80 = scmp.ne.s32.totalorder %s75, %s77
      %p81 = scmp.eq.s32.totalorder %s20, 0
      %p82 = por %p80, %p81
      %p83 = scmp.ne.s32.totalorder %s75, %s77
      %p84 = scmp.eq.s32.totalorder %s25, 1
      %p85 = por %p83, %p84
      %p86 = scmp.ne.s32.totalorder %s77, %s78
      %p87 = scmp.eq.s32.totalorder %s25, 0
      %p88 = por %p86, %p87
      %p89 = scmp.ne.s32.totalorder %s77, %s78
      %p90 = scmp.eq.s32.totalorder %s26, 1
      %p91 = por %p89, %p90
      %p93 = scmp.ne.s32.totalorder %s78, %s92
      %p94 = scmp.eq.s32.totalorder %s26, 0
      %p95 = por %p93, %p94
      %s97 = sadd.s32 %s96, 1
      %p100 = scmp.eq.s32.totalorder %s20, 1
      %p101 = scmp.ne.s32.totalorder %s96, %s98
      %p102 = scmp.eq.s32.totalorder %s20, 0
      %p103 = por %p101, %p102
      %p104 = scmp.ne.s32.totalorder %s96, %s98
      %p105 = scmp.eq.s32.totalorder %s25, 1
      %p106 = por %p104, %p105
      %p107 = scmp.ne.s32.totalorder %s98, %s99
      %p108 = scmp.eq.s32.totalorder %s25, 0
      %p109 = por %p107, %p108
      %p110 = scmp.ne.s32.totalorder %s98, %s99
      %p111 = scmp.eq.s32.totalorder %s26, 1
      %p112 = por %p110, %p111
      %p114 = scmp.ne.s32.totalorder %s99, %s113
      %p115 = scmp.eq.s32.totalorder %s26, 0
      %p116 = por %p114, %p115
      %s118 = sadd.s32 %s117, 1
      %p121 = scmp.eq.s32.totalorder %s20, 1
      %p122 = scmp.ne.s32.totalorder %s117, %s119
      %p123 = scmp.eq.s32.totalorder %s20, 0
      %p124 = por %p122, %p123
      %p125 = scmp.ne.s32.totalorder %s117, %s119
      %p126 = scmp.eq.s32.totalorder %s25, 1
      %p127 = por %p125, %p126
      %p128 = scmp.ne.s32.totalorder %s119, %s120
      %p129 = scmp.eq.s32.totalorder %s25, 0
      %p130 = por %p128, %p129
      %p131 = scmp.ne.s32.totalorder %s119, %s120
      %p132 = scmp.eq.s32.totalorder %s26, 1
      %p133 = por %p131, %p132
      %p135 = scmp.ne.s32.totalorder %s120, %s134
      %p136 = scmp.eq.s32.totalorder %s26, 0
      %p137 = por %p135, %p136
      %s138 = ssub.s32 %s20, %s27
      %p139 = scmp.eq.s32.totalorder %s138, 0
      %s141 = sadd.s32 %s140, 1
      %s142 = scalar_select %p139, %s140, %s141
      %p145 = pneg %p139
      %p146 = scmp.eq.s32.totalorder %s20, 1
      %p147 = por %p145, %p146
      %p148 = scmp.ne.s32.totalorder %s140, %s143
      %p149 = scmp.eq.s32.totalorder %s20, 0
      %p150 = por %p148, %p149
      %p151 = scmp.ne.s32.totalorder %s140, %s143
      %p152 = scmp.eq.s32.totalorder %s25, 1
      %p153 = por %p151, %p152
      %p154 = scmp.ne.s32.totalorder %s143, %s144
      %p155 = scmp.eq.s32.totalorder %s25, 0
      %p156 = por %p154, %p155
      %p157 = scmp.ne.s32.totalorder %s143, %s144
      %p158 = scmp.eq.s32.totalorder %s26, 1
      %p159 = por %p157, %p158
      %p161 = scmp.ne.s32.totalorder %s144, %s160
      %p162 = scmp.eq.s32.totalorder %s26, 0
      %p163 = por %p161, %p162
      %s164 = ssub.s32 %s20, %s27
      %p165 = scmp.eq.s32.totalorder %s164, 0
      %s167 = sadd.s32 %s166, 1
      %s168 = scalar_select %p165, %s166, %s167
      %p171 = pneg %p165
      %p172 = scmp.eq.s32.totalorder %s20, 1
      %p173 = por %p171, %p172
      %p174 = scmp.ne.s32.totalorder %s166, %s169
      %p175 = scmp.eq.s32.totalorder %s20, 0
      %p176 = por %p174, %p175
      %p177 = scmp.ne.s32.totalorder %s166, %s169
      %p178 = scmp.eq.s32.totalorder %s25, 1
      %p179 = por %p177, %p178
      %p180 = scmp.ne.s32.totalorder %s169, %s170
      %p181 = scmp.eq.s32.totalorder %s25, 0
      %p182 = por %p180, %p181
      %p183 = scmp.ne.s32.totalorder %s169, %s170
      %p184 = scmp.eq.s32.totalorder %s26, 1
      %p185 = por %p183, %p184
      %p187 = scmp.ne.s32.totalorder %s170, %s186
      %p188 = scmp.eq.s32.totalorder %s26, 0
      %p189 = por %p187, %p188
      %s190 = ssub.s32 %s20, %s27
      %p191 = scmp.eq.s32.totalorder %s190, 0
      %s193 = sadd.s32 %s192, 1
      %s194 = scalar_select %p191, %s192, %s193
      %p197 = pneg %p191
      %p198 = scmp.eq.s32.totalorder %s20, 1
      %p199 = por %p197, %p198
      %p200 = scmp.ne.s32.totalorder %s192, %s195
      %p201 = scmp.eq.s32.totalorder %s20, 0
      %p202 = por %p200, %p201
      %p203 = scmp.ne.s32.totalorder %s192, %s195
      %p204 = scmp.eq.s32.totalorder %s25, 1
      %p205 = por %p203, %p204
      %p206 = scmp.ne.s32.totalorder %s195, %s196
      %p207 = scmp.eq.s32.totalorder %s25, 0
      %p208 = por %p206, %p207
      %p209 = scmp.ne.s32.totalorder %s195, %s196
      %p210 = scmp.eq.s32.totalorder %s26, 1
      %p211 = por %p209, %p210
      %p213 = scmp.ne.s32.totalorder %s196, %s212
      %p214 = scmp.eq.s32.totalorder %s26, 0
      %p215 = por %p213, %p214
      %p216 = scmp.le.s32.totalorder 1, %s20
      %p217 = scmp.lt.s32.totalorder %s20, 3
      %p218 = pnand %p216, %p217
      %p219 = pneg %p218
      // Predicated region
      $region9: #{dense_block_forward.7} parent=5 // pred_check
        _
      $region10: #{dense_block_forward.7} parent=5 // pred_check_branch
        %221 = sbr.rel (%p218) target = $region12
      $region11: #{dense_block_forward.7} parent=5 // pred_region
        %s222 = ssub.s32 %s20, 1
        // Predicated region
        $region13: #{dense_block_forward.7} parent=11 // pred_check
          %p223 = pneg %p67
        $region14: #{dense_block_forward.7} parent=11 // pred_check_branch
          %225 = sbr.rel (%p223) target = $region16
        $region15: #{dense_block_forward.7} parent=11 // pred_region
          _
        $region16: #{dense_block_forward.7} parent=11 // pred_fallthru
          _
        // Predicated region
        $region17: #{dense_block_forward.7} parent=11 // pred_check
          %p226 = pneg %p88
        $region18: #{dense_block_forward.7} parent=11 // pred_check_branch
          %228 = sbr.rel (%p226) target = $region20
        $region19: #{dense_block_forward.7} parent=11 // pred_region
          _
        $region20: #{dense_block_forward.7} parent=11 // pred_fallthru
          _
        // Predicated region
        $region21: #{dense_block_forward.7} parent=11 // pred_check
          %p229 = pneg %p109
        $region22: #{dense_block_forward.7} parent=11 // pred_check_branch
          %231 = sbr.rel (%p229) target = $region24
        $region23: #{dense_block_forward.7} parent=11 // pred_region
          _
        $region24: #{dense_block_forward.7} parent=11 // pred_fallthru
          _
        // Predicated region
        $region25: #{dense_block_forward.7} parent=11 // pred_check
          %p232 = pneg %p130
        $region26: #{dense_block_forward.7} parent=11 // pred_check_branch
          %234 = sbr.rel (%p232) target = $region28
        $region27: #{dense_block_forward.7} parent=11 // pred_region
          _
        $region28: #{dense_block_forward.7} parent=11 // pred_fallthru
          _
      $region12: #{dense_block_forward.7} parent=5 // pred_fallthru
        _
      %p235 = scmp.lt.s32.totalorder %s20, 2
      // Predicated region
      $region29: #{dense_block_forward.7} parent=5 // pred_check
        %p236 = pneg %p235
      $region30: #{dense_block_forward.7} parent=5 // pred_check_branch
        %238 = sbr.rel (%p236) target = $region32
      $region31: #{dense_block_forward.7} parent=5 // pred_region
        // Predicated region
        $region33: #{dense_block_forward.7} parent=31 // pred_check
          %p239 = pneg %p40
        $region34: #{dense_block_forward.7} parent=31 // pred_check_branch
          %241 = sbr.rel (%p239) target = $region36
        $region35: #{dense_block_forward.7} parent=31 // pred_region
          %p242 = scmp.lt.s32.totalorder %s20, 1
          %s243 = scalar_select %p242, %s20, 1
          %s244 = smul.addr %s243, 32
          %s245 = smul.addr %s244, 4
          %s246 = scalar_lea.vmem %s0, %s245
        $region36: #{dense_block_forward.7} parent=31 // pred_fallthru
          _
      $region32: #{dense_block_forward.7} parent=5 // pred_fallthru
        _
      %p247 = scmp.le.s32.totalorder 1, %s20
      %p248 = scmp.lt.s32.totalorder %s20, 3
      %p249 = pnand %p247, %p248
      %p250 = pneg %p249
      // Predicated region
      $region37: #{dense_block_forward.7} parent=5 // pred_check
        _
      $region38: #{dense_block_forward.7} parent=5 // pred_check_branch
        %252 = sbr.rel (%p249) target = $region40
      $region39: #{dense_block_forward.7} parent=5 // pred_region
        %s253 = ssub.s32 %s20, 1
        %p254 = scmp.lt.s32.totalorder %s25, 1
        %s255 = scalar_select %p254, %s25, 1
        %s256 = smul.addr %s255, 32
        %s257 = smul.addr %s256, 4
        %s258 = scalar_lea.vmem %s0, %s257
        %p259 = pneg %p46
        %p260 = pneg %p43
        %p261 = pneg %p67
        %p262 = pneg %p64
        %p263 = pneg %p88
        %p264 = pneg %p85
        %p265 = pneg %p109
        %p266 = pneg %p106
        %p267 = pneg %p130
        %p268 = pneg %p127
        %p269 = pneg %p156
        %p270 = pneg %p153
        %p271 = scmp.lt.s32.totalorder %s25, 1
        %s272 = scalar_select %p271, %s25, 1
        %s273 = smul.addr %s272, 32
        %s274 = smul.addr %s273, 4
        %s275 = scalar_lea.vmem %s5, %s274
        %p276 = pneg %p182
        %p277 = pneg %p179
        %s278 = sand.u32 %s169, 1
        %s279 = scalar_lea.sflag [#allocation4], %s278
        %s280 = sand.u32 %s169, 1
        %s281 = scalar_lea.vmem [#allocation3], %s280
        %p282 = pneg %p208
        %p283 = pneg %p205
        %s284 = sand.u32 %s195, 1
        %s285 = scalar_lea.sflag [#allocation6], %s284
        %s286 = sand.u32 %s195, 1
        %s287 = scalar_lea.vmem [#allocation5], %s286
        %p288 = scmp.lt.s32.totalorder %s25, 1
        %s289 = scalar_select %p288, %s25, 1
        %s290 = smul.addr %s289, 32
        %s291 = smul.addr %s290, 4
        %s292 = scalar_lea.vmem %s0, %s291
        %p293 = scmp.lt.s32.totalorder %s25, 1
        %s294 = scalar_select %p293, %s25, 1
        %s295 = smul.addr %s294, 32
        %s296 = smul.addr %s295, 4
        %s297 = scalar_lea.vmem %s5, %s296
        %299 = vst [vmem:[#allocation2] sm:$0xff] 0.0
        %300 = vst [vmem:[#allocation2 + $0x8] sm:$0xff] 0.0
        %301 = vst [vmem:[#allocation2 + $0x10] sm:$0x3] 0.0
        %302 = vst [vmem:[#allocation2 + $0x18] sm:$0xff] 0.0
        %303 = vst [vmem:[#allocation2 + $0x20] sm:$0xff] 0.0
        %304 = vst [vmem:[#allocation2 + $0x28] sm:$0x3] 0.0
        %305 = vst [vmem:[#allocation2 + $0x30] sm:$0xff] 0.0
        %306 = vst [vmem:[#allocation2 + $0x38] sm:$0xff] 0.0
        %307 = vst [vmem:[#allocation2 + $0x40] sm:$0x3] 0.0
        %308 = vst [vmem:[#allocation2 + $0x48] sm:$0xff] 0.0
        %309 = vst [vmem:[#allocation2 + $0x50] sm:$0xff] 0.0
        %310 = vst [vmem:[#allocation2 + $0x58] sm:$0x3] 0.0
        %311 = vst [vmem:[#allocation2 + $0x60] sm:$0xff] 0.0
        %312 = vst [vmem:[#allocation2 + $0x68] sm:$0xff] 0.0
        %313 = vst [vmem:[#allocation2 + $0x70] sm:$0x3] 0.0
        %314 = vst [vmem:[#allocation2 + $0x78] sm:$0xff] 0.0
        %315 = vst [vmem:[#allocation2 + $0x80] sm:$0xff] 0.0
        %316 = vst [vmem:[#allocation2 + $0x88] sm:$0x3] 0.0
        %317 = vst [vmem:[#allocation2 + $0x90] sm:$0xff] 0.0
        %318 = vst [vmem:[#allocation2 + $0x98] sm:$0xff] 0.0
        %319 = vst [vmem:[#allocation2 + $0xa0] sm:$0x3] 0.0
        %320 = vst [vmem:[#allocation2 + $0xa8] sm:$0xff] 0.0
        %321 = vst [vmem:[#allocation2 + $0xb0] sm:$0xff] 0.0
        %322 = vst [vmem:[#allocation2 + $0xb8] sm:$0x3] 0.0
        %323 = vst [vmem:[#allocation2 + $0xc0] sm:$0xff] 0.0
        %324 = vst [vmem:[#allocation2 + $0xc8] sm:$0xff] 0.0
        %325 = vst [vmem:[#allocation2 + $0xd0] sm:$0x3] 0.0
        %326 = vst [vmem:[#allocation2 + $0xd8] sm:$0xff] 0.0
        %327 = vst [vmem:[#allocation2 + $0xe0] sm:$0xff] 0.0
        %328 = vst [vmem:[#allocation2 + $0xe8] sm:$0x3] 0.0
        %329 = vst [vmem:[#allocation2 + $0xf0] sm:$0xff] 0.0
        %330 = vst [vmem:[#allocation2 + $0xf8] sm:$0xff] 0.0
        %331 = vst [vmem:[#allocation2 + $0x100] sm:$0x3] 0.0
        %332 = vst [vmem:[#allocation2 + $0x108] sm:$0xff] 0.0
        %333 = vst [vmem:[#allocation2 + $0x110] sm:$0xff] 0.0
        %334 = vst [vmem:[#allocation2 + $0x118] sm:$0x3] 0.0
        %335 = vst [vmem:[#allocation2 + $0x120] sm:$0xff] 0.0
        %336 = vst [vmem:[#allocation2 + $0x128] sm:$0xff] 0.0
        %337 = vst [vmem:[#allocation2 + $0x130] sm:$0x3] 0.0
        %338 = vst [vmem:[#allocation2 + $0x138] sm:$0xff] 0.0
        %339 = vst [vmem:[#allocation2 + $0x140] sm:$0xff] 0.0
        %340 = vst [vmem:[#allocation2 + $0x148] sm:$0x3] 0.0
        %341 = vst [vmem:[#allocation2 + $0x150] sm:$0xff] 0.0
        %342 = vst [vmem:[#allocation2 + $0x158] sm:$0xff] 0.0
        %343 = vst [vmem:[#allocation2 + $0x160] sm:$0x3] 0.0
        %344 = vst [vmem:[#allocation2 + $0x168] sm:$0xff] 0.0
        %345 = vst [vmem:[#allocation2 + $0x170] sm:$0xff] 0.0
        %346 = vst [vmem:[#allocation2 + $0x178] sm:$0x3] 0.0
        %347 = vst [vmem:[#allocation2 + $0x180] sm:$0xff] 0.0
        %348 = vst [vmem:[#allocation2 + $0x188] sm:$0xff] 0.0
        %349 = vst [vmem:[#allocation2 + $0x190] sm:$0x3] 0.0
        %350 = vst [vmem:[#allocation2 + $0x198] sm:$0xff] 0.0
        %351 = vst [vmem:[#allocation2 + $0x1a0] sm:$0xff] 0.0
        %352 = vst [vmem:[#allocation2 + $0x1a8] sm:$0x3] 0.0
        %v353 = vld [vmem:[%s292] sm:$0xf]
        %v354 = vld [vmem:[%s292 + $0x4] sm:$0xf]
        %v355 = vld [vmem:[%s292 + $0x8] sm:$0xf]
        %v356 = vld [vmem:[%s292 + $0xc] sm:$0xf]
        %v357 = vld [vmem:[%s292 + $0x10] sm:$0xf]
        %v358 = vld [vmem:[%s292 + $0x14] sm:$0xf]
        %v359 = vld [vmem:[%s292 + $0x18] sm:$0xf]
        %v360 = vld [vmem:[%s292 + $0x1c] sm:$0xf]
        %v361 = vld [vmem:[%s292 + $0x20] sm:$0xf]
        %v362 = vld [vmem:[%s292 + $0x24] sm:$0xf]
        %v363 = vld [vmem:[%s292 + $0x28] sm:$0xf]
        %v364 = vld [vmem:[%s292 + $0x2c] sm:$0xf]
        %v365 = vld [vmem:[%s292 + $0x30] sm:$0xf]
        %v366 = vld [vmem:[%s292 + $0x34] sm:$0xf]
        %v367 = vld [vmem:[%s292 + $0x38] sm:$0xf]
        %v368 = vld [vmem:[%s292 + $0x3c] sm:$0xf]
        %v369 = vld [vmem:[%s292 + $0x40] sm:$0xf]
        %v370 = vld [vmem:[%s292 + $0x44] sm:$0xf]
        %v371 = vld [vmem:[%s292 + $0x48] sm:$0xf]
        %v372 = vld [vmem:[%s292 + $0x4c] sm:$0xf]
        %v373 = vld [vmem:[%s292 + $0x50] sm:$0xf]
        %v374 = vld [vmem:[%s292 + $0x54] sm:$0xf]
        %v375 = vld [vmem:[%s292 + $0x58] sm:$0xf]
        %v376 = vld [vmem:[%s292 + $0x5c] sm:$0xf]
        %v377 = vld [vmem:[%s292 + $0x60] sm:$0xf]
        %v378 = vld [vmem:[%s292 + $0x64] sm:$0xf]
        %v379 = vld [vmem:[%s292 + $0x68] sm:$0xf]
        %v380 = vld [vmem:[%s292 + $0x6c] sm:$0xf]
        %v381 = vld [vmem:[%s292 + $0x70] sm:$0xf]
        %v382 = vld [vmem:[%s292 + $0x74] sm:$0xf]
        %v383 = vld [vmem:[%s292 + $0x78] sm:$0xf]
        %v384 = vld [vmem:[%s292 + $0x7c] sm:$0xf]
        %v385 = vunpack.c.l.bf16 %v353
        %v386 = vunpack.c.l.bf16 %v354
        %v387 = vunpack.c.l.bf16 %v355
        %v388 = vunpack.c.l.bf16 %v356
        %v389 = vunpack.c.l.bf16 %v357
        %v390 = vunpack.c.l.bf16 %v358
        %v391 = vunpack.c.l.bf16 %v359
        %v392 = vunpack.c.l.bf16 %v360
        %v393 = vunpack.c.l.bf16 %v361
        %v394 = vunpack.c.l.bf16 %v362
        %v395 = vunpack.c.l.bf16 %v363
        %v396 = vunpack.c.l.bf16 %v364
        %v397 = vunpack.c.l.bf16 %v365
        %v398 = vunpack.c.l.bf16 %v366
        %v399 = vunpack.c.l.bf16 %v367
        %v400 = vunpack.c.l.bf16 %v368
        %v401 = vunpack.c.l.bf16 %v369
        %v402 = vunpack.c.l.bf16 %v370
        %v403 = vunpack.c.l.bf16 %v371
        %v404 = vunpack.c.l.bf16 %v372
        %v405 = vunpack.c.l.bf16 %v373
        %v406 = vunpack.c.l.bf16 %v374
        %v407 = vunpack.c.l.bf16 %v375
        %v408 = vunpack.c.l.bf16 %v376
        %v409 = vunpack.c.l.bf16 %v377
        %v410 = vunpack.c.l.bf16 %v378
        %v411 = vunpack.c.l.bf16 %v379
        %v412 = vunpack.c.l.bf16 %v380
        %v413 = vunpack.c.l.bf16 %v381
        %v414 = vunpack.c.l.bf16 %v382
        %v415 = vunpack.c.l.bf16 %v383
        %v416 = vunpack.c.l.bf16 %v384
        %v417 = vld [vmem:[%s1] sm:$0x1]
        %v419 = vlaneseq
        %v420 = vshrl.u32 %v419, 7
        %v421 = vsub.s32 0, %v420
        %v422 = vrot.slane %v417, %v421
        %v424 = vmul.f32 %v385, %v422
        %v425 = vmul.f32 %v386, %v422
        %v426 = vmul.f32 %v387, %v422
        %v427 = vmul.f32 %v388, %v422
        %v428 = vmul.f32 %v389, %v422
        %v429 = vmul.f32 %v390, %v422
        %v430 = vmul.f32 %v391, %v422
        %v431 = vmul.f32 %v392, %v422
        %v432 = vmul.f32 %v393, %v422
        %v433 = vmul.f32 %v394, %v422
        %v434 = vmul.f32 %v395, %v422
        %v435 = vmul.f32 %v396, %v422
        %v436 = vmul.f32 %v397, %v422
        %v437 = vmul.f32 %v398, %v422
        %v438 = vmul.f32 %v399, %v422
        %v439 = vmul.f32 %v400, %v422
        %v440 = vmul.f32 %v401, %v422
        %v441 = vmul.f32 %v402, %v422
        %v442 = vmul.f32 %v403, %v422
        %v443 = vmul.f32 %v404, %v422
        %v444 = vmul.f32 %v405, %v422
        %v445 = vmul.f32 %v406, %v422
        %v446 = vmul.f32 %v407, %v422
        %v447 = vmul.f32 %v408, %v422
        %v448 = vmul.f32 %v409, %v422
        %v449 = vmul.f32 %v410, %v422
        %v450 = vmul.f32 %v411, %v422
        %v451 = vmul.f32 %v412, %v422
        %v452 = vmul.f32 %v413, %v422
        %v453 = vmul.f32 %v414, %v422
        %v454 = vmul.f32 %v415, %v422
        %v455 = vmul.f32 %v416, %v422
        %v456 = vld [vmem:[%s2] sm:$0x1]
        %v458 = vlaneseq
        %v459 = vshrl.u32 %v458, 7
        %v460 = vsub.s32 0, %v459
        %v461 = vrot.slane %v456, %v460
        %v463 = vadd.f32 %v424, %v461
        %v464 = vadd.f32 %v425, %v461
        %v465 = vadd.f32 %v426, %v461
        %v466 = vadd.f32 %v427, %v461
        %v467 = vadd.f32 %v428, %v461
        %v468 = vadd.f32 %v429, %v461
        %v469 = vadd.f32 %v430, %v461
        %v470 = vadd.f32 %v431, %v461
        %v471 = vadd.f32 %v432, %v461
        %v472 = vadd.f32 %v433, %v461
        %v473 = vadd.f32 %v434, %v461
        %v474 = vadd.f32 %v435, %v461
        %v475 = vadd.f32 %v436, %v461
        %v476 = vadd.f32 %v437, %v461
        %v477 = vadd.f32 %v438, %v461
        %v478 = vadd.f32 %v439, %v461
        %v479 = vadd.f32 %v440, %v461
        %v480 = vadd.f32 %v441, %v461
        %v481 = vadd.f32 %v442, %v461
        %v482 = vadd.f32 %v443, %v461
        %v483 = vadd.f32 %v444, %v461
        %v484 = vadd.f32 %v445, %v461
        %v485 = vadd.f32 %v446, %v461
        %v486 = vadd.f32 %v447, %v461
        %v487 = vadd.f32 %v448, %v461
        %v488 = vadd.f32 %v449, %v461
        %v489 = vadd.f32 %v450, %v461
        %v490 = vadd.f32 %v451, %v461
        %v491 = vadd.f32 %v452, %v461
        %v492 = vadd.f32 %v453, %v461
        %v493 = vadd.f32 %v454, %v461
        %v494 = vadd.f32 %v455, %v461
        %v495 = vmax.f32 %v463, 0.0
        %v496 = vmax.f32 %v464, 0.0
        %v497 = vmax.f32 %v465, 0.0
        %v498 = vmax.f32 %v466, 0.0
        %v499 = vmax.f32 %v467, 0.0
        %v500 = vmax.f32 %v468, 0.0
        %v501 = vmax.f32 %v469, 0.0
        %v502 = vmax.f32 %v470, 0.0
        %v503 = vmax.f32 %v471, 0.0
        %v504 = vmax.f32 %v472, 0.0
        %v505 = vmax.f32 %v473, 0.0
        %v506 = vmax.f32 %v474, 0.0
        %v507 = vmax.f32 %v475, 0.0
        %v508 = vmax.f32 %v476, 0.0
        %v509 = vmax.f32 %v477, 0.0
        %v510 = vmax.f32 %v478, 0.0
        %v511 = vmax.f32 %v479, 0.0
        %v512 = vmax.f32 %v480, 0.0
        %v513 = vmax.f32 %v481, 0.0
        %v514 = vmax.f32 %v482, 0.0
        %v515 = vmax.f32 %v483, 0.0
        %v516 = vmax.f32 %v484, 0.0
        %v517 = vmax.f32 %v485, 0.0
        %v518 = vmax.f32 %v486, 0.0
        %v519 = vmax.f32 %v487, 0.0
        %v520 = vmax.f32 %v488, 0.0
        %v521 = vmax.f32 %v489, 0.0
        %v522 = vmax.f32 %v490, 0.0
        %v523 = vmax.f32 %v491, 0.0
        %v524 = vmax.f32 %v492, 0.0
        %v525 = vmax.f32 %v493, 0.0
        %v526 = vmax.f32 %v494, 0.0
        %s527 = scalar_lea.vmem [#allocation2], 24
        %528 = vst [vmem:[%s527 + $0x1] sm:$0xff] %v495
        %529 = vst [vmem:[%s527 + $0x9] sm:$0xff] %v496
        %530 = vst [vmem:[%s527 + $0x19] sm:$0xff] %v497
        %531 = vst [vmem:[%s527 + $0x21] sm:$0xff] %v498
        %532 = vst [vmem:[%s527 + $0x31] sm:$0xff] %v499
        %533 = vst [vmem:[%s527 + $0x39] sm:$0xff] %v500
        %534 = vst [vmem:[%s527 + $0x49] sm:$0xff] %v501
        %535 = vst [vmem:[%s527 + $0x51] sm:$0xff] %v502
        %536 = vst [vmem:[%s527 + $0x61] sm:$0xff] %v503
        %537 = vst [vmem:[%s527 + $0x69] sm:$0xff] %v504
        %538 = vst [vmem:[%s527 + $0x79] sm:$0xff] %v505
        %539 = vst [vmem:[%s527 + $0x81] sm:$0xff] %v506
        %540 = vst [vmem:[%s527 + $0x91] sm:$0xff] %v507
        %541 = vst [vmem:[%s527 + $0x99] sm:$0xff] %v508
        %542 = vst [vmem:[%s527 + $0xa9] sm:$0xff] %v509
        %543 = vst [vmem:[%s527 + $0xb1] sm:$0xff] %v510
        %544 = vst [vmem:[%s527 + $0xc1] sm:$0xff] %v511
        %545 = vst [vmem:[%s527 + $0xc9] sm:$0xff] %v512
        %546 = vst [vmem:[%s527 + $0xd9] sm:$0xff] %v513
        %547 = vst [vmem:[%s527 + $0xe1] sm:$0xff] %v514
        %548 = vst [vmem:[%s527 + $0xf1] sm:$0xff] %v515
        %549 = vst [vmem:[%s527 + $0xf9] sm:$0xff] %v516
        %550 = vst [vmem:[%s527 + $0x109] sm:$0xff] %v517
        %551 = vst [vmem:[%s527 + $0x111] sm:$0xff] %v518
        %552 = vst [vmem:[%s527 + $0x121] sm:$0xff] %v519
        %553 = vst [vmem:[%s527 + $0x129] sm:$0xff] %v520
        %554 = vst [vmem:[%s527 + $0x139] sm:$0xff] %v521
        %555 = vst [vmem:[%s527 + $0x141] sm:$0xff] %v522
        %556 = vst [vmem:[%s527 + $0x151] sm:$0xff] %v523
        %557 = vst [vmem:[%s527 + $0x159] sm:$0xff] %v524
        %558 = vst [vmem:[%s527 + $0x169] sm:$0xff] %v525
        %559 = vst [vmem:[%s527 + $0x171] sm:$0xff] %v526
        %v560 = vld [vmem:[#allocation2] sm:$0xff]
        %v561 = vld [vmem:[#allocation2 + $0x8] sm:$0xff]
        %v562 = vld [vmem:[#allocation2 + $0x18] sm:$0xff]
        %v563 = vld [vmem:[#allocation2 + $0x20] sm:$0xff]
        %v564 = vld [vmem:[#allocation2 + $0x30] sm:$0xff]
        %v565 = vld [vmem:[#allocation2 + $0x38] sm:$0xff]
        %v566 = vld [vmem:[#allocation2 + $0x48] sm:$0xff]
        %v567 = vld [vmem:[#allocation2 + $0x50] sm:$0xff]
        %v568 = vld [vmem:[#allocation2 + $0x60] sm:$0xff]
        %v569 = vld [vmem:[#allocation2 + $0x68] sm:$0xff]
        %v570 = vld [vmem:[#allocation2 + $0x78] sm:$0xff]
        %v571 = vld [vmem:[#allocation2 + $0x80] sm:$0xff]
        %v572 = vld [vmem:[#allocation2 + $0x90] sm:$0xff]
        %v573 = vld [vmem:[#allocation2 + $0x98] sm:$0xff]
        %v574 = vld [vmem:[#allocation2 + $0xa8] sm:$0xff]
        %v575 = vld [vmem:[#allocation2 + $0xb0] sm:$0xff]
        %v576 = vld [vmem:[#allocation2 + $0xc0] sm:$0xff]
        %v577 = vld [vmem:[#allocation2 + $0xc8] sm:$0xff]
        %v578 = vld [vmem:[#allocation2 + $0xd8] sm:$0xff]
        %v579 = vld [vmem:[#allocation2 + $0xe0] sm:$0xff]
        %v580 = vld [vmem:[#allocation2 + $0xf0] sm:$0xff]
        %v581 = vld [vmem:[#allocation2 + $0xf8] sm:$0xff]
        %v582 = vld [vmem:[#allocation2 + $0x108] sm:$0xff]
        %v583 = vld [vmem:[#allocation2 + $0x110] sm:$0xff]
        %v584 = vld [vmem:[#allocation2 + $0x120] sm:$0xff]
        %v585 = vld [vmem:[#allocation2 + $0x128] sm:$0xff]
        %v586 = vld [vmem:[#allocation2 + $0x138] sm:$0xff]
        %v587 = vld [vmem:[#allocation2 + $0x140] sm:$0xff]
        %v588 = vld [vmem:[#allocation2 + $0x150] sm:$0xff]
        %v589 = vld [vmem:[#allocation2 + $0x158] sm:$0xff]
        %v590 = vld [vmem:[#allocation2 + $0x168] sm:$0xff]
        %v591 = vld [vmem:[#allocation2 + $0x170] sm:$0xff]
        %v592 = vpack.c.bf16 %v561, %v560
        %v593 = vpack.c.bf16 %v563, %v562
        %v594 = vpack.c.bf16 %v565, %v564
        %v595 = vpack.c.bf16 %v567, %v566
        %v596 = vpack.c.bf16 %v569, %v568
        %v597 = vpack.c.bf16 %v571, %v570
        %v598 = vpack.c.bf16 %v573, %v572
        %v599 = vpack.c.bf16 %v575, %v574
        %v600 = vpack.c.bf16 %v577, %v576
        %v601 = vpack.c.bf16 %v579, %v578
        %v602 = vpack.c.bf16 %v581, %v580
        %v603 = vpack.c.bf16 %v583, %v582
        %v604 = vpack.c.bf16 %v585, %v584
        %v605 = vpack.c.bf16 %v587, %v586
        %v606 = vpack.c.bf16 %v589, %v588
        %v607 = vpack.c.bf16 %v591, %v590
        %v608 = vld [vmem:[#allocation2 + $0x1] sm:$0xff]
        %v609 = vld [vmem:[#allocation2 + $0x9] sm:$0xff]
        %v610 = vld [vmem:[#allocation2 + $0x19] sm:$0xff]
        %v611 = vld [vmem:[#allocation2 + $0x21] sm:$0xff]
        %v612 = vld [vmem:[#allocation2 + $0x31] sm:$0xff]
        %v613 = vld [vmem:[#allocation2 + $0x39] sm:$0xff]
        %v614 = vld [vmem:[#allocation2 + $0x49] sm:$0xff]
        %v615 = vld [vmem:[#allocation2 + $0x51] sm:$0xff]
        %v616 = vld [vmem:[#allocation2 + $0x61] sm:$0xff]
        %v617 = vld [vmem:[#allocation2 + $0x69] sm:$0xff]
        %v618 = vld [vmem:[#allocation2 + $0x79] sm:$0xff]
        %v619 = vld [vmem:[#allocation2 + $0x81] sm:$0xff]
        %v620 = vld [vmem:[#allocation2 + $0x91] sm:$0xff]
        %v621 = vld [vmem:[#allocation2 + $0x99] sm:$0xff]
        %v622 = vld [vmem:[#allocation2 + $0xa9] sm:$0xff]
        %v623 = vld [vmem:[#allocation2 + $0xb1] sm:$0xff]
        %v624 = vld [vmem:[#allocation2 + $0xc1] sm:$0xff]
        %v625 = vld [vmem:[#allocation2 + $0xc9] sm:$0xff]
        %v626 = vld [vmem:[#allocation2 + $0xd9] sm:$0xff]
        %v627 = vld [vmem:[#allocation2 + $0xe1] sm:$0xff]
        %v628 = vld [vmem:[#allocation2 + $0xf1] sm:$0xff]
        %v629 = vld [vmem:[#allocation2 + $0xf9] sm:$0xff]
        %v630 = vld [vmem:[#allocation2 + $0x109] sm:$0xff]
        %v631 = vld [vmem:[#allocation2 + $0x111] sm:$0xff]
        %v632 = vld [vmem:[#allocation2 + $0x121] sm:$0xff]
        %v633 = vld [vmem:[#allocation2 + $0x129] sm:$0xff]
        %v634 = vld [vmem:[#allocation2 + $0x139] sm:$0xff]
        %v635 = vld [vmem:[#allocation2 + $0x141] sm:$0xff]
        %v636 = vld [vmem:[#allocation2 + $0x151] sm:$0xff]
        %v637 = vld [vmem:[#allocation2 + $0x159] sm:$0xff]
        %v638 = vld [vmem:[#allocation2 + $0x169] sm:$0xff]
        %v639 = vld [vmem:[#allocation2 + $0x171] sm:$0xff]
        %v640 = vpack.c.bf16 %v609, %v608
        %v641 = vpack.c.bf16 %v611, %v610
        %v642 = vpack.c.bf16 %v613, %v612
        %v643 = vpack.c.bf16 %v615, %v614
        %v644 = vpack.c.bf16 %v617, %v616
        %v645 = vpack.c.bf16 %v619, %v618
        %v646 = vpack.c.bf16 %v621, %v620
        %v647 = vpack.c.bf16 %v623, %v622
        %v648 = vpack.c.bf16 %v625, %v624
        %v649 = vpack.c.bf16 %v627, %v626
        %v650 = vpack.c.bf16 %v629, %v628
        %v651 = vpack.c.bf16 %v631, %v630
        %v652 = vpack.c.bf16 %v633, %v632
        %v653 = vpack.c.bf16 %v635, %v634
        %v654 = vpack.c.bf16 %v637, %v636
        %v655 = vpack.c.bf16 %v639, %v638
        %v656 = vld [vmem:[#allocation2 + $0x2] sm:$0xff]
        %v657 = vld [vmem:[#allocation2 + $0xa] sm:$0xff]
        %v658 = vld [vmem:[#allocation2 + $0x1a] sm:$0xff]
        %v659 = vld [vmem:[#allocation2 + $0x22] sm:$0xff]
        %v660 = vld [vmem:[#allocation2 + $0x32] sm:$0xff]
        %v661 = vld [vmem:[#allocation2 + $0x3a] sm:$0xff]
        %v662 = vld [vmem:[#allocation2 + $0x4a] sm:$0xff]
        %v663 = vld [vmem:[#allocation2 + $0x52] sm:$0xff]
        %v664 = vld [vmem:[#allocation2 + $0x62] sm:$0xff]
        %v665 = vld [vmem:[#allocation2 + $0x6a] sm:$0xff]
        %v666 = vld [vmem:[#allocation2 + $0x7a] sm:$0xff]
        %v667 = vld [vmem:[#allocation2 + $0x82] sm:$0xff]
        %v668 = vld [vmem:[#allocation2 + $0x92] sm:$0xff]
        %v669 = vld [vmem:[#allocation2 + $0x9a] sm:$0xff]
        %v670 = vld [vmem:[#allocation2 + $0xaa] sm:$0xff]
        %v671 = vld [vmem:[#allocation2 + $0xb2] sm:$0xff]
        %v672 = vld [vmem:[#allocation2 + $0xc2] sm:$0xff]
        %v673 = vld [vmem:[#allocation2 + $0xca] sm:$0xff]
        %v674 = vld [vmem:[#allocation2 + $0xda] sm:$0xff]
        %v675 = vld [vmem:[#allocation2 + $0xe2] sm:$0xff]
        %v676 = vld [vmem:[#allocation2 + $0xf2] sm:$0xff]
        %v677 = vld [vmem:[#allocation2 + $0xfa] sm:$0xff]
        %v678 = vld [vmem:[#allocation2 + $0x10a] sm:$0xff]
        %v679 = vld [vmem:[#allocation2 + $0x112] sm:$0xff]
        %v680 = vld [vmem:[#allocation2 + $0x122] sm:$0xff]
        %v681 = vld [vmem:[#allocation2 + $0x12a] sm:$0xff]
        %v682 = vld [vmem:[#allocation2 + $0x13a] sm:$0xff]
        %v683 = vld [vmem:[#allocation2 + $0x142] sm:$0xff]
        %v684 = vld [vmem:[#allocation2 + $0x152] sm:$0xff]
        %v685 = vld [vmem:[#allocation2 + $0x15a] sm:$0xff]
        %v686 = vld [vmem:[#allocation2 + $0x16a] sm:$0xff]
        %v687 = vld [vmem:[#allocation2 + $0x172] sm:$0xff]
        %v688 = vpack.c.bf16 %v657, %v656
        %v689 = vpack.c.bf16 %v659, %v658
        %v690 = vpack.c.bf16 %v661, %v660
        %v691 = vpack.c.bf16 %v663, %v662
        %v692 = vpack.c.bf16 %v665, %v664
        %v693 = vpack.c.bf16 %v667, %v666
        %v694 = vpack.c.bf16 %v669, %v668
        %v695 = vpack.c.bf16 %v671, %v670
        %v696 = vpack.c.bf16 %v673, %v672
        %v697 = vpack.c.bf16 %v675, %v674
        %v698 = vpack.c.bf16 %v677, %v676
        %v699 = vpack.c.bf16 %v679, %v678
        %v700 = vpack.c.bf16 %v681, %v680
        %v701 = vpack.c.bf16 %v683, %v682
        %v702 = vpack.c.bf16 %v685, %v684
        %v703 = vpack.c.bf16 %v687, %v686
        %v704 = vld [vmem:[%s527] sm:$0xff]
        %v705 = vld [vmem:[%s527 + $0x8] sm:$0xff]
        %v706 = vld [vmem:[%s527 + $0x18] sm:$0xff]
        %v707 = vld [vmem:[%s527 + $0x20] sm:$0xff]
        %v708 = vld [vmem:[%s527 + $0x30] sm:$0xff]
        %v709 = vld [vmem:[%s527 + $0x38] sm:$0xff]
        %v710 = vld [vmem:[%s527 + $0x48] sm:$0xff]
        %v711 = vld [vmem:[%s527 + $0x50] sm:$0xff]
        %v712 = vld [vmem:[%s527 + $0x60] sm:$0xff]
        %v713 = vld [vmem:[%s527 + $0x68] sm:$0xff]
        %v714 = vld [vmem:[%s527 + $0x78] sm:$0xff]
        %v715 = vld [vmem:[%s527 + $0x80] sm:$0xff]
        %v716 = vld [vmem:[%s527 + $0x90] sm:$0xff]
        %v717 = vld [vmem:[%s527 + $0x98] sm:$0xff]
        %v718 = vld [vmem:[%s527 + $0xa8] sm:$0xff]
        %v719 = vld [vmem:[%s527 + $0xb0] sm:$0xff]
        %v720 = vld [vmem:[%s527 + $0xc0] sm:$0xff]
        %v721 = vld [vmem:[%s527 + $0xc8] sm:$0xff]
        %v722 = vld [vmem:[%s527 + $0xd8] sm:$0xff]
        %v723 = vld [vmem:[%s527 + $0xe0] sm:$0xff]
        %v724 = vld [vmem:[%s527 + $0xf0] sm:$0xff]
        %v725 = vld [vmem:[%s527 + $0xf8] sm:$0xff]
        %v726 = vld [vmem:[%s527 + $0x108] sm:$0xff]
        %v727 = vld [vmem:[%s527 + $0x110] sm:$0xff]
        %v728 = vld [vmem:[%s527 + $0x120] sm:$0xff]
        %v729 = vld [vmem:[%s527 + $0x128] sm:$0xff]
        %v730 = vld [vmem:[%s527 + $0x138] sm:$0xff]
        %v731 = vld [vmem:[%s527 + $0x140] sm:$0xff]
        %v732 = vld [vmem:[%s527 + $0x150] sm:$0xff]
        %v733 = vld [vmem:[%s527 + $0x158] sm:$0xff]
        %v734 = vld [vmem:[%s527 + $0x168] sm:$0xff]
        %v735 = vld [vmem:[%s527 + $0x170] sm:$0xff]
        %v736 = vpack.c.bf16 %v705, %v704
        %v737 = vpack.c.bf16 %v707, %v706
        %v738 = vpack.c.bf16 %v709, %v708
        %v739 = vpack.c.bf16 %v711, %v710
        %v740 = vpack.c.bf16 %v713, %v712
        %v741 = vpack.c.bf16 %v715, %v714
        %v742 = vpack.c.bf16 %v717, %v716
        %v743 = vpack.c.bf16 %v719, %v718
        %v744 = vpack.c.bf16 %v721, %v720
        %v745 = vpack.c.bf16 %v723, %v722
        %v746 = vpack.c.bf16 %v725, %v724
        %v747 = vpack.c.bf16 %v727, %v726
        %v748 = vpack.c.bf16 %v729, %v728
        %v749 = vpack.c.bf16 %v731, %v730
        %v750 = vpack.c.bf16 %v733, %v732
        %v751 = vpack.c.bf16 %v735, %v734
        %v752 = vld [vmem:[%s527 + $0x1] sm:$0xff]
        %v753 = vld [vmem:[%s527 + $0x9] sm:$0xff]
        %v754 = vld [vmem:[%s527 + $0x19] sm:$0xff]
        %v755 = vld [vmem:[%s527 + $0x21] sm:$0xff]
        %v756 = vld [vmem:[%s527 + $0x31] sm:$0xff]
        %v757 = vld [vmem:[%s527 + $0x39] sm:$0xff]
        %v758 = vld [vmem:[%s527 + $0x49] sm:$0xff]
        %v759 = vld [vmem:[%s527 + $0x51] sm:$0xff]
        %v760 = vld [vmem:[%s527 + $0x61] sm:$0xff]
        %v761 = vld [vmem:[%s527 + $0x69] sm:$0xff]
        %v762 = vld [vmem:[%s527 + $0x79] sm:$0xff]
        %v763 = vld [vmem:[%s527 + $0x81] sm:$0xff]
        %v764 = vld [vmem:[%s527 + $0x91] sm:$0xff]
        %v765 = vld [vmem:[%s527 + $0x99] sm:$0xff]
        %v766 = vld [vmem:[%s527 + $0xa9] sm:$0xff]
        %v767 = vld [vmem:[%s527 + $0xb1] sm:$0xff]
        %v768 = vld [vmem:[%s527 + $0xc1] sm:$0xff]
        %v769 = vld [vmem:[%s527 + $0xc9] sm:$0xff]
        %v770 = vld [vmem:[%s527 + $0xd9] sm:$0xff]
        %v771 = vld [vmem:[%s527 + $0xe1] sm:$0xff]
        %v772 = vld [vmem:[%s527 + $0xf1] sm:$0xff]
        %v773 = vld [vmem:[%s527 + $0xf9] sm:$0xff]
        %v774 = vld [vmem:[%s527 + $0x109] sm:$0xff]
        %v775 = vld [vmem:[%s527 + $0x111] sm:$0xff]
        %v776 = vld [vmem:[%s527 + $0x121] sm:$0xff]
        %v777 = vld [vmem:[%s527 + $0x129] sm:$0xff]
        %v778 = vld [vmem:[%s527 + $0x139] sm:$0xff]
        %v779 = vld [vmem:[%s527 + $0x141] sm:$0xff]
        %v780 = vld [vmem:[%s527 + $0x151] sm:$0xff]
        %v781 = vld [vmem:[%s527 + $0x159] sm:$0xff]
        %v782 = vld [vmem:[%s527 + $0x169] sm:$0xff]
        %v783 = vld [vmem:[%s527 + $0x171] sm:$0xff]
        %v784 = vpack.c.bf16 %v753, %v752
        %v785 = vpack.c.bf16 %v755, %v754
        %v786 = vpack.c.bf16 %v757, %v756
        %v787 = vpack.c.bf16 %v759, %v758
        %v788 = vpack.c.bf16 %v761, %v760
        %v789 = vpack.c.bf16 %v763, %v762
        %v790 = vpack.c.bf16 %v765, %v764
        %v791 = vpack.c.bf16 %v767, %v766
        %v792 = vpack.c.bf16 %v769, %v768
        %v793 = vpack.c.bf16 %v771, %v770
        %v794 = vpack.c.bf16 %v773, %v772
        %v795 = vpack.c.bf16 %v775, %v774
        %v796 = vpack.c.bf16 %v777, %v776
        %v797 = vpack.c.bf16 %v779, %v778
        %v798 = vpack.c.bf16 %v781, %v780
        %v799 = vpack.c.bf16 %v783, %v782
        %v800 = vld [vmem:[%s527 + $0x2] sm:$0xff]
        %v801 = vld [vmem:[%s527 + $0xa] sm:$0xff]
        %v802 = vld [vmem:[%s527 + $0x1a] sm:$0xff]
        %v803 = vld [vmem:[%s527 + $0x22] sm:$0xff]
        %v804 = vld [vmem:[%s527 + $0x32] sm:$0xff]
        %v805 = vld [vmem:[%s527 + $0x3a] sm:$0xff]
        %v806 = vld [vmem:[%s527 + $0x4a] sm:$0xff]
        %v807 = vld [vmem:[%s527 + $0x52] sm:$0xff]
        %v808 = vld [vmem:[%s527 + $0x62] sm:$0xff]
        %v809 = vld [vmem:[%s527 + $0x6a] sm:$0xff]
        %v810 = vld [vmem:[%s527 + $0x7a] sm:$0xff]
        %v811 = vld [vmem:[%s527 + $0x82] sm:$0xff]
        %v812 = vld [vmem:[%s527 + $0x92] sm:$0xff]
        %v813 = vld [vmem:[%s527 + $0x9a] sm:$0xff]
        %v814 = vld [vmem:[%s527 + $0xaa] sm:$0xff]
        %v815 = vld [vmem:[%s527 + $0xb2] sm:$0xff]
        %v816 = vld [vmem:[%s527 + $0xc2] sm:$0xff]
        %v817 = vld [vmem:[%s527 + $0xca] sm:$0xff]
        %v818 = vld [vmem:[%s527 + $0xda] sm:$0xff]
        %v819 = vld [vmem:[%s527 + $0xe2] sm:$0xff]
        %v820 = vld [vmem:[%s527 + $0xf2] sm:$0xff]
        %v821 = vld [vmem:[%s527 + $0xfa] sm:$0xff]
        %v822 = vld [vmem:[%s527 + $0x10a] sm:$0xff]
        %v823 = vld [vmem:[%s527 + $0x112] sm:$0xff]
        %v824 = vld [vmem:[%s527 + $0x122] sm:$0xff]
        %v825 = vld [vmem:[%s527 + $0x12a] sm:$0xff]
        %v826 = vld [vmem:[%s527 + $0x13a] sm:$0xff]
        %v827 = vld [vmem:[%s527 + $0x142] sm:$0xff]
        %v828 = vld [vmem:[%s527 + $0x152] sm:$0xff]
        %v829 = vld [vmem:[%s527 + $0x15a] sm:$0xff]
        %v830 = vld [vmem:[%s527 + $0x16a] sm:$0xff]
        %v831 = vld [vmem:[%s527 + $0x172] sm:$0xff]
        %v832 = vpack.c.bf16 %v801, %v800
        %v833 = vpack.c.bf16 %v803, %v802
        %v834 = vpack.c.bf16 %v805, %v804
        %v835 = vpack.c.bf16 %v807, %v806
        %v836 = vpack.c.bf16 %v809, %v808
        %v837 = vpack.c.bf16 %v811, %v810
        %v838 = vpack.c.bf16 %v813, %v812
        %v839 = vpack.c.bf16 %v815, %v814
        %v840 = vpack.c.bf16 %v817, %v816
        %v841 = vpack.c.bf16 %v819, %v818
        %v842 = vpack.c.bf16 %v821, %v820
        %v843 = vpack.c.bf16 %v823, %v822
        %v844 = vpack.c.bf16 %v825, %v824
        %v845 = vpack.c.bf16 %v827, %v826
        %v846 = vpack.c.bf16 %v829, %v828
        %v847 = vpack.c.bf16 %v831, %v830
        %s848 = scalar_lea.vmem [#allocation2], 48
        %v849 = vld [vmem:[%s848] sm:$0xff]
        %v850 = vld [vmem:[%s848 + $0x8] sm:$0xff]
        %v851 = vld [vmem:[%s848 + $0x18] sm:$0xff]
        %v852 = vld [vmem:[%s848 + $0x20] sm:$0xff]
        %v853 = vld [vmem:[%s848 + $0x30] sm:$0xff]
        %v854 = vld [vmem:[%s848 + $0x38] sm:$0xff]
        %v855 = vld [vmem:[%s848 + $0x48] sm:$0xff]
        %v856 = vld [vmem:[%s848 + $0x50] sm:$0xff]
        %v857 = vld [vmem:[%s848 + $0x60] sm:$0xff]
        %v858 = vld [vmem:[%s848 + $0x68] sm:$0xff]
        %v859 = vld [vmem:[%s848 + $0x78] sm:$0xff]
        %v860 = vld [vmem:[%s848 + $0x80] sm:$0xff]
        %v861 = vld [vmem:[%s848 + $0x90] sm:$0xff]
        %v862 = vld [vmem:[%s848 + $0x98] sm:$0xff]
        %v863 = vld [vmem:[%s848 + $0xa8] sm:$0xff]
        %v864 = vld [vmem:[%s848 + $0xb0] sm:$0xff]
        %v865 = vld [vmem:[%s848 + $0xc0] sm:$0xff]
        %v866 = vld [vmem:[%s848 + $0xc8] sm:$0xff]
        %v867 = vld [vmem:[%s848 + $0xd8] sm:$0xff]
        %v868 = vld [vmem:[%s848 + $0xe0] sm:$0xff]
        %v869 = vld [vmem:[%s848 + $0xf0] sm:$0xff]
        %v870 = vld [vmem:[%s848 + $0xf8] sm:$0xff]
        %v871 = vld [vmem:[%s848 + $0x108] sm:$0xff]
        %v872 = vld [vmem:[%s848 + $0x110] sm:$0xff]
        %v873 = vld [vmem:[%s848 + $0x120] sm:$0xff]
        %v874 = vld [vmem:[%s848 + $0x128] sm:$0xff]
        %v875 = vld [vmem:[%s848 + $0x138] sm:$0xff]
        %v876 = vld [vmem:[%s848 + $0x140] sm:$0xff]
        %v877 = vld [vmem:[%s848 + $0x150] sm:$0xff]
        %v878 = vld [vmem:[%s848 + $0x158] sm:$0xff]
        %v879 = vld [vmem:[%s848 + $0x168] sm:$0xff]
        %v880 = vld [vmem:[%s848 + $0x170] sm:$0xff]
        %v881 = vpack.c.bf16 %v850, %v849
        %v882 = vpack.c.bf16 %v852, %v851
        %v883 = vpack.c.bf16 %v854, %v853
        %v884 = vpack.c.bf16 %v856, %v855
        %v885 = vpack.c.bf16 %v858, %v857
        %v886 = vpack.c.bf16 %v860, %v859
        %v887 = vpack.c.bf16 %v862, %v861
        %v888 = vpack.c.bf16 %v864, %v863
        %v889 = vpack.c.bf16 %v866, %v865
        %v890 = vpack.c.bf16 %v868, %v867
        %v891 = vpack.c.bf16 %v870, %v869
        %v892 = vpack.c.bf16 %v872, %v871
        %v893 = vpack.c.bf16 %v874, %v873
        %v894 = vpack.c.bf16 %v876, %v875
        %v895 = vpack.c.bf16 %v878, %v877
        %v896 = vpack.c.bf16 %v880, %v879
        %v897 = vld [vmem:[%s848 + $0x1] sm:$0xff]
        %v898 = vld [vmem:[%s848 + $0x9] sm:$0xff]
        %v899 = vld [vmem:[%s848 + $0x19] sm:$0xff]
        %v900 = vld [vmem:[%s848 + $0x21] sm:$0xff]
        %v901 = vld [vmem:[%s848 + $0x31] sm:$0xff]
        %v902 = vld [vmem:[%s848 + $0x39] sm:$0xff]
        %v903 = vld [vmem:[%s848 + $0x49] sm:$0xff]
        %v904 = vld [vmem:[%s848 + $0x51] sm:$0xff]
        %v905 = vld [vmem:[%s848 + $0x61] sm:$0xff]
        %v906 = vld [vmem:[%s848 + $0x69] sm:$0xff]
        %v907 = vld [vmem:[%s848 + $0x79] sm:$0xff]
        %v908 = vld [vmem:[%s848 + $0x81] sm:$0xff]
        %v909 = vld [vmem:[%s848 + $0x91] sm:$0xff]
        %v910 = vld [vmem:[%s848 + $0x99] sm:$0xff]
        %v911 = vld [vmem:[%s848 + $0xa9] sm:$0xff]
        %v912 = vld [vmem:[%s848 + $0xb1] sm:$0xff]
        %v913 = vld [vmem:[%s848 + $0xc1] sm:$0xff]
        %v914 = vld [vmem:[%s848 + $0xc9] sm:$0xff]
        %v915 = vld [vmem:[%s848 + $0xd9] sm:$0xff]
        %v916 = vld [vmem:[%s848 + $0xe1] sm:$0xff]
        %v917 = vld [vmem:[%s848 + $0xf1] sm:$0xff]
        %v918 = vld [vmem:[%s848 + $0xf9] sm:$0xff]
        %v919 = vld [vmem:[%s848 + $0x109] sm:$0xff]
        %v920 = vld [vmem:[%s848 + $0x111] sm:$0xff]
        %v921 = vld [vmem:[%s848 + $0x121] sm:$0xff]
        %v922 = vld [vmem:[%s848 + $0x129] sm:$0xff]
        %v923 = vld [vmem:[%s848 + $0x139] sm:$0xff]
        %v924 = vld [vmem:[%s848 + $0x141] sm:$0xff]
        %v925 = vld [vmem:[%s848 + $0x151] sm:$0xff]
        %v926 = vld [vmem:[%s848 + $0x159] sm:$0xff]
        %v927 = vld [vmem:[%s848 + $0x169] sm:$0xff]
        %v928 = vld [vmem:[%s848 + $0x171] sm:$0xff]
        %v929 = vpack.c.bf16 %v898, %v897
        %v930 = vpack.c.bf16 %v900, %v899
        %v931 = vpack.c.bf16 %v902, %v901
        %v932 = vpack.c.bf16 %v904, %v903
        %v933 = vpack.c.bf16 %v906, %v905
        %v934 = vpack.c.bf16 %v908, %v907
        %v935 = vpack.c.bf16 %v910, %v909
        %v936 = vpack.c.bf16 %v912, %v911
        %v937 = vpack.c.bf16 %v914, %v913
        %v938 = vpack.c.bf16 %v916, %v915
        %v939 = vpack.c.bf16 %v918, %v917
        %v940 = vpack.c.bf16 %v920, %v919
        %v941 = vpack.c.bf16 %v922, %v921
        %v942 = vpack.c.bf16 %v924, %v923
        %v943 = vpack.c.bf16 %v926, %v925
        %v944 = vpack.c.bf16 %v928, %v927
        %v945 = vld [vmem:[%s848 + $0x2] sm:$0xff]
        %v946 = vld [vmem:[%s848 + $0xa] sm:$0xff]
        %v947 = vld [vmem:[%s848 + $0x1a] sm:$0xff]
        %v948 = vld [vmem:[%s848 + $0x22] sm:$0xff]
        %v949 = vld [vmem:[%s848 + $0x32] sm:$0xff]
        %v950 = vld [vmem:[%s848 + $0x3a] sm:$0xff]
        %v951 = vld [vmem:[%s848 + $0x4a] sm:$0xff]
        %v952 = vld [vmem:[%s848 + $0x52] sm:$0xff]
        %v953 = vld [vmem:[%s848 + $0x62] sm:$0xff]
        %v954 = vld [vmem:[%s848 + $0x6a] sm:$0xff]
        %v955 = vld [vmem:[%s848 + $0x7a] sm:$0xff]
        %v956 = vld [vmem:[%s848 + $0x82] sm:$0xff]
        %v957 = vld [vmem:[%s848 + $0x92] sm:$0xff]
        %v958 = vld [vmem:[%s848 + $0x9a] sm:$0xff]
        %v959 = vld [vmem:[%s848 + $0xaa] sm:$0xff]
        %v960 = vld [vmem:[%s848 + $0xb2] sm:$0xff]
        %v961 = vld [vmem:[%s848 + $0xc2] sm:$0xff]
        %v962 = vld [vmem:[%s848 + $0xca] sm:$0xff]
        %v963 = vld [vmem:[%s848 + $0xda] sm:$0xff]
        %v964 = vld [vmem:[%s848 + $0xe2] sm:$0xff]
        %v965 = vld [vmem:[%s848 + $0xf2] sm:$0xff]
        %v966 = vld [vmem:[%s848 + $0xfa] sm:$0xff]
        %v967 = vld [vmem:[%s848 + $0x10a] sm:$0xff]
        %v968 = vld [vmem:[%s848 + $0x112] sm:$0xff]
        %v969 = vld [vmem:[%s848 + $0x122] sm:$0xff]
        %v970 = vld [vmem:[%s848 + $0x12a] sm:$0xff]
        %v971 = vld [vmem:[%s848 + $0x13a] sm:$0xff]
        %v972 = vld [vmem:[%s848 + $0x142] sm:$0xff]
        %v973 = vld [vmem:[%s848 + $0x152] sm:$0xff]
        %v974 = vld [vmem:[%s848 + $0x15a] sm:$0xff]
        %v975 = vld [vmem:[%s848 + $0x16a] sm:$0xff]
        %v976 = vld [vmem:[%s848 + $0x172] sm:$0xff]
        %v977 = vpack.c.bf16 %v946, %v945
        %v978 = vpack.c.bf16 %v948, %v947
        %v979 = vpack.c.bf16 %v950, %v949
        %v980 = vpack.c.bf16 %v952, %v951
        %v981 = vpack.c.bf16 %v954, %v953
        %v982 = vpack.c.bf16 %v956, %v955
        %v983 = vpack.c.bf16 %v958, %v957
        %v984 = vpack.c.bf16 %v960, %v959
        %v985 = vpack.c.bf16 %v962, %v961
        %v986 = vpack.c.bf16 %v964, %v963
        %v987 = vpack.c.bf16 %v966, %v965
        %v988 = vpack.c.bf16 %v968, %v967
        %v989 = vpack.c.bf16 %v970, %v969
        %v990 = vpack.c.bf16 %v972, %v971
        %v991 = vpack.c.bf16 %v974, %v973
        %v992 = vpack.c.bf16 %v976, %v975
        %v993 = vld [vmem:[%s3] sm:$0xf]
        %v994 = vld [vmem:[%s3 + $0x4] sm:$0xf]
        %v995 = vld [vmem:[%s3 + $0x8] sm:$0xf]
        %v996 = vld [vmem:[%s3 + $0xc] sm:$0xf]
        %v997 = vld [vmem:[%s3 + $0x10] sm:$0xf]
        %v998 = vld [vmem:[%s3 + $0x14] sm:$0xf]
        %v999 = vld [vmem:[%s3 + $0x18] sm:$0xf]
        %v1000 = vld [vmem:[%s3 + $0x1c] sm:$0xf]
        %v1001 = vld [vmem:[%s3 + $0x20] sm:$0xf]
        %v1002 = vld [vmem:[%s3 + $0x24] sm:$0xf]
        %v1003 = vld [vmem:[%s3 + $0x28] sm:$0xf]
        %v1004 = vld [vmem:[%s3 + $0x2c] sm:$0xf]
        %v1005 = vld [vmem:[%s3 + $0x30] sm:$0xf]
        %v1006 = vld [vmem:[%s3 + $0x34] sm:$0xf]
        %v1007 = vld [vmem:[%s3 + $0x38] sm:$0xf]
        %v1008 = vld [vmem:[%s3 + $0x3c] sm:$0xf]
        %v1009 = vld [vmem:[%s3 + $0x40] sm:$0xf]
        %v1010 = vld [vmem:[%s3 + $0x44] sm:$0xf]
        %v1011 = vld [vmem:[%s3 + $0x48] sm:$0xf]
        %v1012 = vld [vmem:[%s3 + $0x4c] sm:$0xf]
        %v1013 = vld [vmem:[%s3 + $0x50] sm:$0xf]
        %v1014 = vld [vmem:[%s3 + $0x54] sm:$0xf]
        %v1015 = vld [vmem:[%s3 + $0x58] sm:$0xf]
        %v1016 = vld [vmem:[%s3 + $0x5c] sm:$0xf]
        %v1017 = vld [vmem:[%s3 + $0x60] sm:$0xf]
        %v1018 = vld [vmem:[%s3 + $0x64] sm:$0xf]
        %v1019 = vld [vmem:[%s3 + $0x68] sm:$0xf]
        %v1020 = vld [vmem:[%s3 + $0x6c] sm:$0xf]
        %v1021 = vld [vmem:[%s3 + $0x70] sm:$0xf]
        %v1022 = vld [vmem:[%s3 + $0x74] sm:$0xf]
        %v1023 = vld [vmem:[%s3 + $0x78] sm:$0xf]
        %v1024 = vld [vmem:[%s3 + $0x7c] sm:$0xf]
        %v1025 = vld [vmem:[%s3 + $0x80] sm:$0xf]
        %v1026 = vld [vmem:[%s3 + $0x84] sm:$0xf]
        %v1027 = vld [vmem:[%s3 + $0x88] sm:$0xf]
        %v1028 = vld [vmem:[%s3 + $0x8c] sm:$0xf]
        %v1029 = vld [vmem:[%s3 + $0x90] sm:$0xf]
        %v1030 = vld [vmem:[%s3 + $0x94] sm:$0xf]
        %v1031 = vld [vmem:[%s3 + $0x98] sm:$0xf]
        %v1032 = vld [vmem:[%s3 + $0x9c] sm:$0xf]
        %v1033 = vld [vmem:[%s3 + $0xa0] sm:$0xf]
        %v1034 = vld [vmem:[%s3 + $0xa4] sm:$0xf]
        %v1035 = vld [vmem:[%s3 + $0xa8] sm:$0xf]
        %v1036 = vld [vmem:[%s3 + $0xac] sm:$0xf]
        %v1037 = vld [vmem:[%s3 + $0xb0] sm:$0xf]
        %v1038 = vld [vmem:[%s3 + $0xb4] sm:$0xf]
        %v1039 = vld [vmem:[%s3 + $0xb8] sm:$0xf]
        %v1040 = vld [vmem:[%s3 + $0xbc] sm:$0xf]
        %v1041 = vld [vmem:[%s3 + $0xc0] sm:$0xf]
        %v1042 = vld [vmem:[%s3 + $0xc4] sm:$0xf]
        %v1043 = vld [vmem:[%s3 + $0xc8] sm:$0xf]
        %v1044 = vld [vmem:[%s3 + $0xcc] sm:$0xf]
        %v1045 = vld [vmem:[%s3 + $0xd0] sm:$0xf]
        %v1046 = vld [vmem:[%s3 + $0xd4] sm:$0xf]
        %v1047 = vld [vmem:[%s3 + $0xd8] sm:$0xf]
        %v1048 = vld [vmem:[%s3 + $0xdc] sm:$0xf]
        %v1049 = vld [vmem:[%s3 + $0xe0] sm:$0xf]
        %v1050 = vld [vmem:[%s3 + $0xe4] sm:$0xf]
        %v1051 = vld [vmem:[%s3 + $0xe8] sm:$0xf]
        %v1052 = vld [vmem:[%s3 + $0xec] sm:$0xf]
        %v1053 = vld [vmem:[%s3 + $0xf0] sm:$0xf]
        %v1054 = vld [vmem:[%s3 + $0xf4] sm:$0xf]
        %v1055 = vld [vmem:[%s3 + $0xf8] sm:$0xf]
        %v1056 = vld [vmem:[%s3 + $0xfc] sm:$0xf]
        %v1057 = vld [vmem:[%s3 + $0x100] sm:$0xf]
        %v1058 = vld [vmem:[%s3 + $0x104] sm:$0xf]
        %v1059 = vld [vmem:[%s3 + $0x108] sm:$0xf]
        %v1060 = vld [vmem:[%s3 + $0x10c] sm:$0xf]
        %v1061 = vld [vmem:[%s3 + $0x110] sm:$0xf]
        %v1062 = vld [vmem:[%s3 + $0x114] sm:$0xf]
        %v1063 = vld [vmem:[%s3 + $0x118] sm:$0xf]
        %v1064 = vld [vmem:[%s3 + $0x11c] sm:$0xf]
        %v1065 = vld [vmem:[%s3 + $0x120] sm:$0xf]
        %v1066 = vld [vmem:[%s3 + $0x124] sm:$0xf]
        %v1067 = vld [vmem:[%s3 + $0x128] sm:$0xf]
        %v1068 = vld [vmem:[%s3 + $0x12c] sm:$0xf]
        %v1069 = vld [vmem:[%s3 + $0x130] sm:$0xf]
        %v1070 = vld [vmem:[%s3 + $0x134] sm:$0xf]
        %v1071 = vld [vmem:[%s3 + $0x138] sm:$0xf]
        %v1072 = vld [vmem:[%s3 + $0x13c] sm:$0xf]
        %v1073 = vld [vmem:[%s3 + $0x140] sm:$0xf]
        %v1074 = vld [vmem:[%s3 + $0x144] sm:$0xf]
        %v1075 = vld [vmem:[%s3 + $0x148] sm:$0xf]
        %v1076 = vld [vmem:[%s3 + $0x14c] sm:$0xf]
        %v1077 = vld [vmem:[%s3 + $0x150] sm:$0xf]
        %v1078 = vld [vmem:[%s3 + $0x154] sm:$0xf]
        %v1079 = vld [vmem:[%s3 + $0x158] sm:$0xf]
        %v1080 = vld [vmem:[%s3 + $0x15c] sm:$0xf]
        %v1081 = vld [vmem:[%s3 + $0x160] sm:$0xf]
        %v1082 = vld [vmem:[%s3 + $0x164] sm:$0xf]
        %v1083 = vld [vmem:[%s3 + $0x168] sm:$0xf]
        %v1084 = vld [vmem:[%s3 + $0x16c] sm:$0xf]
        %v1085 = vld [vmem:[%s3 + $0x170] sm:$0xf]
        %v1086 = vld [vmem:[%s3 + $0x174] sm:$0xf]
        %v1087 = vld [vmem:[%s3 + $0x178] sm:$0xf]
        %v1088 = vld [vmem:[%s3 + $0x17c] sm:$0xf]
        %v1089 = vld [vmem:[%s3 + $0x180] sm:$0xf]
        %v1090 = vld [vmem:[%s3 + $0x184] sm:$0xf]
        %v1091 = vld [vmem:[%s3 + $0x188] sm:$0xf]
        %v1092 = vld [vmem:[%s3 + $0x18c] sm:$0xf]
        %v1093 = vld [vmem:[%s3 + $0x190] sm:$0xf]
        %v1094 = vld [vmem:[%s3 + $0x194] sm:$0xf]
        %v1095 = vld [vmem:[%s3 + $0x198] sm:$0xf]
        %v1096 = vld [vmem:[%s3 + $0x19c] sm:$0xf]
        %v1097 = vld [vmem:[%s3 + $0x1a0] sm:$0xf]
        %v1098 = vld [vmem:[%s3 + $0x1a4] sm:$0xf]
        %v1099 = vld [vmem:[%s3 + $0x1a8] sm:$0xf]
        %v1100 = vld [vmem:[%s3 + $0x1ac] sm:$0xf]
        %v1101 = vld [vmem:[%s3 + $0x1b0] sm:$0xf]
        %v1102 = vld [vmem:[%s3 + $0x1b4] sm:$0xf]
        %v1103 = vld [vmem:[%s3 + $0x1b8] sm:$0xf]
        %v1104 = vld [vmem:[%s3 + $0x1bc] sm:$0xf]
        %v1105 = vld [vmem:[%s3 + $0x1c0] sm:$0xf]
        %v1106 = vld [vmem:[%s3 + $0x1c4] sm:$0xf]
        %v1107 = vld [vmem:[%s3 + $0x1c8] sm:$0xf]
        %v1108 = vld [vmem:[%s3 + $0x1cc] sm:$0xf]
        %v1109 = vld [vmem:[%s3 + $0x1d0] sm:$0xf]
        %v1110 = vld [vmem:[%s3 + $0x1d4] sm:$0xf]
        %v1111 = vld [vmem:[%s3 + $0x1d8] sm:$0xf]
        %v1112 = vld [vmem:[%s3 + $0x1dc] sm:$0xf]
        %v1113 = vld [vmem:[%s3 + $0x1e0] sm:$0xf]
        %v1114 = vld [vmem:[%s3 + $0x1e4] sm:$0xf]
        %v1115 = vld [vmem:[%s3 + $0x1e8] sm:$0xf]
        %v1116 = vld [vmem:[%s3 + $0x1ec] sm:$0xf]
        %v1117 = vld [vmem:[%s3 + $0x1f0] sm:$0xf]
        %v1118 = vld [vmem:[%s3 + $0x1f4] sm:$0xf]
        %v1119 = vld [vmem:[%s3 + $0x1f8] sm:$0xf]
        %v1120 = vld [vmem:[%s3 + $0x1fc] sm:$0xf]
        %v1121 = vld [vmem:[%s3 + $0x200] sm:$0xf]
        %v1122 = vld [vmem:[%s3 + $0x204] sm:$0xf]
        %v1123 = vld [vmem:[%s3 + $0x208] sm:$0xf]
        %v1124 = vld [vmem:[%s3 + $0x20c] sm:$0xf]
        %v1125 = vld [vmem:[%s3 + $0x210] sm:$0xf]
        %v1126 = vld [vmem:[%s3 + $0x214] sm:$0xf]
        %v1127 = vld [vmem:[%s3 + $0x218] sm:$0xf]
        %v1128 = vld [vmem:[%s3 + $0x21c] sm:$0xf]
        %v1129 = vld [vmem:[%s3 + $0x220] sm:$0xf]
        %v1130 = vld [vmem:[%s3 + $0x224] sm:$0xf]
        %v1131 = vld [vmem:[%s3 + $0x228] sm:$0xf]
        %v1132 = vld [vmem:[%s3 + $0x22c] sm:$0xf]
        %v1133 = vld [vmem:[%s3 + $0x230] sm:$0xf]
        %v1134 = vld [vmem:[%s3 + $0x234] sm:$0xf]
        %v1135 = vld [vmem:[%s3 + $0x238] sm:$0xf]
        %v1136 = vld [vmem:[%s3 + $0x23c] sm:$0xf]
        %v1137 = vld [vmem:[%s4] sm:$0x1]
        %v1139 = vlaneseq
        %v1140 = vshrl.u32 %v1139, 7
        %v1141 = vsub.s32 0, %v1140
        %v1142 = vrot.slane %v1137, %v1141
        %v1288 = vunpack.c.l.b16 %v993
        %v1289 = vunpack.c.l.b16 %v994
        %v1290 = vunpack.c.l.b16 %v995
        %v1291 = vunpack.c.l.b16 %v996
        %v1292 = vunpack.c.l.b16 %v997
        %v1293 = vunpack.c.l.b16 %v998
        %v1294 = vunpack.c.l.b16 %v999
        %v1295 = vunpack.c.l.b16 %v1000
        %v1296 = vunpack.c.l.b16 %v1001
        %v1297 = vunpack.c.l.b16 %v1002
        %v1298 = vunpack.c.l.b16 %v1003
        %v1299 = vunpack.c.l.b16 %v1004
        %v1300 = vunpack.c.l.b16 %v1005
        %v1301 = vunpack.c.l.b16 %v1006
        %v1302 = vunpack.c.l.b16 %v1007
        %v1303 = vunpack.c.l.b16 %v1008
        %v1304 = vunpack.c.l.b16 %v1009
        %v1305 = vunpack.c.l.b16 %v1010
        %v1306 = vunpack.c.l.b16 %v1011
        %v1307 = vunpack.c.l.b16 %v1012
        %v1308 = vunpack.c.l.b16 %v1013
        %v1309 = vunpack.c.l.b16 %v1014
        %v1310 = vunpack.c.l.b16 %v1015
        %v1311 = vunpack.c.l.b16 %v1016
        %v1312 = vunpack.c.l.b16 %v1017
        %v1313 = vunpack.c.l.b16 %v1018
        %v1314 = vunpack.c.l.b16 %v1019
        %v1315 = vunpack.c.l.b16 %v1020
        %v1316 = vunpack.c.l.b16 %v1021
        %v1317 = vunpack.c.l.b16 %v1022
        %v1318 = vunpack.c.l.b16 %v1023
        %v1319 = vunpack.c.l.b16 %v1024
        %v1320 = vunpack.c.l.b16 %v1025
        %v1321 = vunpack.c.l.b16 %v1026
        %v1322 = vunpack.c.l.b16 %v1027
        %v1323 = vunpack.c.l.b16 %v1028
        %v1324 = vunpack.c.l.b16 %v1029
        %v1325 = vunpack.c.l.b16 %v1030
        %v1326 = vunpack.c.l.b16 %v1031
        %v1327 = vunpack.c.l.b16 %v1032
        %v1328 = vunpack.c.l.b16 %v1033
        %v1329 = vunpack.c.l.b16 %v1034
        %v1330 = vunpack.c.l.b16 %v1035
        %v1331 = vunpack.c.l.b16 %v1036
        %v1332 = vunpack.c.l.b16 %v1037
        %v1333 = vunpack.c.l.b16 %v1038
        %v1334 = vunpack.c.l.b16 %v1039
        %v1335 = vunpack.c.l.b16 %v1040
        %v1336 = vunpack.c.l.b16 %v1041
        %v1337 = vunpack.c.l.b16 %v1042
        %v1338 = vunpack.c.l.b16 %v1043
        %v1339 = vunpack.c.l.b16 %v1044
        %v1340 = vunpack.c.l.b16 %v1045
        %v1341 = vunpack.c.l.b16 %v1046
        %v1342 = vunpack.c.l.b16 %v1047
        %v1343 = vunpack.c.l.b16 %v1048
        %v1344 = vunpack.c.l.b16 %v1049
        %v1345 = vunpack.c.l.b16 %v1050
        %v1346 = vunpack.c.l.b16 %v1051
        %v1347 = vunpack.c.l.b16 %v1052
        %v1348 = vunpack.c.l.b16 %v1053
        %v1349 = vunpack.c.l.b16 %v1054
        %v1350 = vunpack.c.l.b16 %v1055
        %v1351 = vunpack.c.l.b16 %v1056
        %v1352 = vunpack.c.l.b16 %v1057
        %v1353 = vunpack.c.l.b16 %v1058
        %v1354 = vunpack.c.l.b16 %v1059
        %v1355 = vunpack.c.l.b16 %v1060
        %v1356 = vunpack.c.l.b16 %v1061
        %v1357 = vunpack.c.l.b16 %v1062
        %v1358 = vunpack.c.l.b16 %v1063
        %v1359 = vunpack.c.l.b16 %v1064
        %v1360 = vunpack.c.l.b16 %v1065
        %v1361 = vunpack.c.l.b16 %v1066
        %v1362 = vunpack.c.l.b16 %v1067
        %v1363 = vunpack.c.l.b16 %v1068
        %v1364 = vunpack.c.l.b16 %v1069
        %v1365 = vunpack.c.l.b16 %v1070
        %v1366 = vunpack.c.l.b16 %v1071
        %v1367 = vunpack.c.l.b16 %v1072
        %v1368 = vunpack.c.l.b16 %v1073
        %v1369 = vunpack.c.l.b16 %v1074
        %v1370 = vunpack.c.l.b16 %v1075
        %v1371 = vunpack.c.l.b16 %v1076
        %v1372 = vunpack.c.l.b16 %v1077
        %v1373 = vunpack.c.l.b16 %v1078
        %v1374 = vunpack.c.l.b16 %v1079
        %v1375 = vunpack.c.l.b16 %v1080
        %v1376 = vunpack.c.l.b16 %v1081
        %v1377 = vunpack.c.l.b16 %v1082
        %v1378 = vunpack.c.l.b16 %v1083
        %v1379 = vunpack.c.l.b16 %v1084
        %v1380 = vunpack.c.l.b16 %v1085
        %v1381 = vunpack.c.l.b16 %v1086
        %v1382 = vunpack.c.l.b16 %v1087
        %v1383 = vunpack.c.l.b16 %v1088
        %v1384 = vunpack.c.l.b16 %v1089
        %v1385 = vunpack.c.l.b16 %v1090
        %v1386 = vunpack.c.l.b16 %v1091
        %v1387 = vunpack.c.l.b16 %v1092
        %v1388 = vunpack.c.l.b16 %v1093
        %v1389 = vunpack.c.l.b16 %v1094
        %v1390 = vunpack.c.l.b16 %v1095
        %v1391 = vunpack.c.l.b16 %v1096
        %v1392 = vunpack.c.l.b16 %v1097
        %v1393 = vunpack.c.l.b16 %v1098
        %v1394 = vunpack.c.l.b16 %v1099
        %v1395 = vunpack.c.l.b16 %v1100
        %v1396 = vunpack.c.l.b16 %v1101
        %v1397 = vunpack.c.l.b16 %v1102
        %v1398 = vunpack.c.l.b16 %v1103
        %v1399 = vunpack.c.l.b16 %v1104
        %v1400 = vunpack.c.l.b16 %v1105
        %v1401 = vunpack.c.l.b16 %v1106
        %v1402 = vunpack.c.l.b16 %v1107
        %v1403 = vunpack.c.l.b16 %v1108
        %v1404 = vunpack.c.l.b16 %v1109
        %v1405 = vunpack.c.l.b16 %v1110
        %v1406 = vunpack.c.l.b16 %v1111
        %v1407 = vunpack.c.l.b16 %v1112
        %v1408 = vunpack.c.l.b16 %v1113
        %v1409 = vunpack.c.l.b16 %v1114
        %v1410 = vunpack.c.l.b16 %v1115
        %v1411 = vunpack.c.l.b16 %v1116
        %v1412 = vunpack.c.l.b16 %v1117
        %v1413 = vunpack.c.l.b16 %v1118
        %v1414 = vunpack.c.l.b16 %v1119
        %v1415 = vunpack.c.l.b16 %v1120
        %v1416 = vunpack.c.l.b16 %v1121
        %v1417 = vunpack.c.l.b16 %v1122
        %v1418 = vunpack.c.l.b16 %v1123
        %v1419 = vunpack.c.l.b16 %v1124
        %v1420 = vunpack.c.l.b16 %v1125
        %v1421 = vunpack.c.l.b16 %v1126
        %v1422 = vunpack.c.l.b16 %v1127
        %v1423 = vunpack.c.l.b16 %v1128
        %v1424 = vunpack.c.l.b16 %v1129
        %v1425 = vunpack.c.l.b16 %v1130
        %v1426 = vunpack.c.l.b16 %v1131
        %v1427 = vunpack.c.l.b16 %v1132
        %v1428 = vunpack.c.l.b16 %v1133
        %v1429 = vunpack.c.l.b16 %v1134
        %v1430 = vunpack.c.l.b16 %v1135
        %v1431 = vunpack.c.l.b16 %v1136
        %v1432 = vpack.c.b16 %v1289, %v1288
        %v1433 = vpack.c.b16 %v1291, %v1290
        %v1434 = vpack.c.b16 %v1293, %v1292
        %v1435 = vpack.c.b16 %v1295, %v1294
        %v1436 = vpack.c.b16 %v1297, %v1296
        %v1437 = vpack.c.b16 %v1299, %v1298
        %v1438 = vpack.c.b16 %v1301, %v1300
        %v1439 = vpack.c.b16 %v1303, %v1302
        %v1440 = vpack.c.b16 %v1305, %v1304
        %v1441 = vpack.c.b16 %v1307, %v1306
        %v1442 = vpack.c.b16 %v1309, %v1308
        %v1443 = vpack.c.b16 %v1311, %v1310
        %v1444 = vpack.c.b16 %v1313, %v1312
        %v1445 = vpack.c.b16 %v1315, %v1314
        %v1446 = vpack.c.b16 %v1317, %v1316
        %v1447 = vpack.c.b16 %v1319, %v1318
        %v1448 = vpack.c.b16 %v1321, %v1320
        %v1449 = vpack.c.b16 %v1323, %v1322
        %v1450 = vpack.c.b16 %v1325, %v1324
        %v1451 = vpack.c.b16 %v1327, %v1326
        %v1452 = vpack.c.b16 %v1329, %v1328
        %v1453 = vpack.c.b16 %v1331, %v1330
        %v1454 = vpack.c.b16 %v1333, %v1332
        %v1455 = vpack.c.b16 %v1335, %v1334
        %v1456 = vpack.c.b16 %v1337, %v1336
        %v1457 = vpack.c.b16 %v1339, %v1338
        %v1458 = vpack.c.b16 %v1341, %v1340
        %v1459 = vpack.c.b16 %v1343, %v1342
        %v1460 = vpack.c.b16 %v1345, %v1344
        %v1461 = vpack.c.b16 %v1347, %v1346
        %v1462 = vpack.c.b16 %v1349, %v1348
        %v1463 = vpack.c.b16 %v1351, %v1350
        %v1464 = vpack.c.b16 %v1353, %v1352
        %v1465 = vpack.c.b16 %v1355, %v1354
        %v1466 = vpack.c.b16 %v1357, %v1356
        %v1467 = vpack.c.b16 %v1359, %v1358
        %v1468 = vpack.c.b16 %v1361, %v1360
        %v1469 = vpack.c.b16 %v1363, %v1362
        %v1470 = vpack.c.b16 %v1365, %v1364
        %v1471 = vpack.c.b16 %v1367, %v1366
        %v1472 = vpack.c.b16 %v1369, %v1368
        %v1473 = vpack.c.b16 %v1371, %v1370
        %v1474 = vpack.c.b16 %v1373, %v1372
        %v1475 = vpack.c.b16 %v1375, %v1374
        %v1476 = vpack.c.b16 %v1377, %v1376
        %v1477 = vpack.c.b16 %v1379, %v1378
        %v1478 = vpack.c.b16 %v1381, %v1380
        %v1479 = vpack.c.b16 %v1383, %v1382
        %v1480 = vpack.c.b16 %v1385, %v1384
        %v1481 = vpack.c.b16 %v1387, %v1386
        %v1482 = vpack.c.b16 %v1389, %v1388
        %v1483 = vpack.c.b16 %v1391, %v1390
        %v1484 = vpack.c.b16 %v1393, %v1392
        %v1485 = vpack.c.b16 %v1395, %v1394
        %v1486 = vpack.c.b16 %v1397, %v1396
        %v1487 = vpack.c.b16 %v1399, %v1398
        %v1488 = vpack.c.b16 %v1401, %v1400
        %v1489 = vpack.c.b16 %v1403, %v1402
        %v1490 = vpack.c.b16 %v1405, %v1404
        %v1491 = vpack.c.b16 %v1407, %v1406
        %v1492 = vpack.c.b16 %v1409, %v1408
        %v1493 = vpack.c.b16 %v1411, %v1410
        %v1494 = vpack.c.b16 %v1413, %v1412
        %v1495 = vpack.c.b16 %v1415, %v1414
        %v1496 = vpack.c.b16 %v1417, %v1416
        %v1497 = vpack.c.b16 %v1419, %v1418
        %v1498 = vpack.c.b16 %v1421, %v1420
        %v1499 = vpack.c.b16 %v1423, %v1422
        %v1500 = vpack.c.b16 %v1425, %v1424
        %v1501 = vpack.c.b16 %v1427, %v1426
        %v1502 = vpack.c.b16 %v1429, %v1428
        %v1503 = vpack.c.b16 %v1431, %v1430
        %1576 = vmatprep.subr.bf16.mxu0 0
        %1577 = vmatpush1.bf16.msra.mxu0 %v1439
        %1578 = vmatprep.subr.bf16.mxu0 0
        %1579 = vmatpush1.bf16.msra.mxu0 %v1438
        %1580 = vmatprep.subr.bf16.mxu0 0
        %1581 = vmatpush1.bf16.msra.mxu0 %v1437
        %1582 = vmatprep.subr.bf16.mxu0 0
        %1583 = vmatpush1.bf16.msra.mxu0 %v1436
        %1584 = vmatprep.subr.bf16.mxu0 0
        %1585 = vmatpush1.bf16.msra.mxu0 %v1435
        %1586 = vmatprep.subr.bf16.mxu0 0
        %1587 = vmatpush1.bf16.msra.mxu0 %v1434
        %1588 = vmatprep.subr.bf16.mxu0 0
        %1589 = vmatpush1.bf16.msra.mxu0 %v1433
        %1590 = vmatprep.subr.bf16.mxu0 0
        %1591 = vmatpush1.bf16.msra.mxu0 %v1432
        %1592 = vmatprep.subr.bf16.mxu0 0
        %1593 = vmatpush2.bf16.msra.mxu0 %v1447
        %1594 = vmatprep.subr.bf16.mxu0 0
        %1595 = vmatpush2.bf16.msra.mxu0 %v1446
        %1596 = vmatprep.subr.bf16.mxu0 0
        %1597 = vmatpush2.bf16.msra.mxu0 %v1445
        %1598 = vmatprep.subr.bf16.mxu0 0
        %1599 = vmatpush2.bf16.msra.mxu0 %v1444
        %1600 = vmatprep.subr.bf16.mxu0 0
        %1601 = vmatpush2.bf16.msra.mxu0 %v1443
        %1602 = vmatprep.subr.bf16.mxu0 0
        %1603 = vmatpush2.bf16.msra.mxu0 %v1442
        %1604 = vmatprep.subr.bf16.mxu0 0
        %1605 = vmatpush2.bf16.msra.mxu0 %v1441
        %1606 = vmatprep.subr.bf16.mxu0 0
        %1607 = vmatpush2.bf16.msra.mxu0 %v1440
        %1608 = vmatprep.mubr.bf16.mxu0 %v640
        %1609 = vmatmul.mubr.bf16.gmra.mxu0 %v592
        %v1610 = vpop.f32.mrf.mxu0
        %v1611 = vadd.f32 %v1142, %v1610
        %v1612 = vpop.f32.mrf.mxu0
        %v1613 = vpop.f32.mrf.mxu0
        %v1614 = vadd.f32 %v1142, %v1613
        %v1615 = vpop.f32.mrf.mxu0
        %1616 = vmatprep.mubr.bf16.mxu0 %v641
        %1617 = vmatmul.mubr.bf16.gmra.mxu0 %v593
        %v1618 = vpop.f32.mrf.mxu0
        %v1619 = vadd.f32 %v1142, %v1618
        %v1620 = vpop.f32.mrf.mxu0
        %v1621 = vpop.f32.mrf.mxu0
        %v1622 = vadd.f32 %v1142, %v1621
        %v1623 = vpop.f32.mrf.mxu0
        %1624 = vmatprep.mubr.bf16.mxu0 %v642
        %1625 = vmatmul.mubr.bf16.gmra.mxu0 %v594
        %v1626 = vpop.f32.mrf.mxu0
        %v1627 = vadd.f32 %v1142, %v1626
        %v1628 = vpop.f32.mrf.mxu0
        %v1629 = vpop.f32.mrf.mxu0
        %v1630 = vadd.f32 %v1142, %v1629
        %v1631 = vpop.f32.mrf.mxu0
        %1632 = vmatprep.mubr.bf16.mxu0 %v643
        %1633 = vmatmul.mubr.bf16.gmra.mxu0 %v595
        %v1634 = vpop.f32.mrf.mxu0
        %v1635 = vadd.f32 %v1142, %v1634
        %v1636 = vpop.f32.mrf.mxu0
        %v1637 = vpop.f32.mrf.mxu0
        %v1638 = vadd.f32 %v1142, %v1637
        %v1639 = vpop.f32.mrf.mxu0
        %1640 = vmatprep.mubr.bf16.mxu0 %v644
        %1641 = vmatmul.mubr.bf16.gmra.mxu0 %v596
        %v1642 = vpop.f32.mrf.mxu0
        %v1643 = vadd.f32 %v1142, %v1642
        %v1644 = vpop.f32.mrf.mxu0
        %v1645 = vpop.f32.mrf.mxu0
        %v1646 = vadd.f32 %v1142, %v1645
        %v1647 = vpop.f32.mrf.mxu0
        %1648 = vmatprep.mubr.bf16.mxu0 %v645
        %1649 = vmatmul.mubr.bf16.gmra.mxu0 %v597
        %v1650 = vpop.f32.mrf.mxu0
        %v1651 = vadd.f32 %v1142, %v1650
        %v1652 = vpop.f32.mrf.mxu0
        %v1653 = vpop.f32.mrf.mxu0
        %v1654 = vadd.f32 %v1142, %v1653
        %v1655 = vpop.f32.mrf.mxu0
        %1656 = vmatprep.mubr.bf16.mxu0 %v646
        %1657 = vmatmul.mubr.bf16.gmra.mxu0 %v598
        %v1658 = vpop.f32.mrf.mxu0
        %v1659 = vadd.f32 %v1142, %v1658
        %v1660 = vpop.f32.mrf.mxu0
        %v1661 = vpop.f32.mrf.mxu0
        %v1662 = vadd.f32 %v1142, %v1661
        %v1663 = vpop.f32.mrf.mxu0
        %1664 = vmatprep.mubr.bf16.mxu0 %v647
        %1665 = vmatmul.mubr.bf16.gmra.mxu0 %v599
        %v1666 = vpop.f32.mrf.mxu0
        %v1667 = vadd.f32 %v1142, %v1666
        %v1668 = vpop.f32.mrf.mxu0
        %v1669 = vpop.f32.mrf.mxu0
        %v1670 = vadd.f32 %v1142, %v1669
        %v1671 = vpop.f32.mrf.mxu0
        %1672 = vmatprep.mubr.bf16.mxu0 %v648
        %1673 = vmatmul.mubr.bf16.gmra.mxu0 %v600
        %v1674 = vpop.f32.mrf.mxu0
        %v1675 = vadd.f32 %v1142, %v1674
        %v1676 = vpop.f32.mrf.mxu0
        %v1677 = vpop.f32.mrf.mxu0
        %v1678 = vadd.f32 %v1142, %v1677
        %v1679 = vpop.f32.mrf.mxu0
        %1680 = vmatprep.mubr.bf16.mxu0 %v649
        %1681 = vmatmul.mubr.bf16.gmra.mxu0 %v601
        %v1682 = vpop.f32.mrf.mxu0
        %v1683 = vadd.f32 %v1142, %v1682
        %v1684 = vpop.f32.mrf.mxu0
        %v1685 = vpop.f32.mrf.mxu0
        %v1686 = vadd.f32 %v1142, %v1685
        %v1687 = vpop.f32.mrf.mxu0
        %1688 = vmatprep.mubr.bf16.mxu0 %v650
        %1689 = vmatmul.mubr.bf16.gmra.mxu0 %v602
        %v1690 = vpop.f32.mrf.mxu0
        %v1691 = vadd.f32 %v1142, %v1690
        %v1692 = vpop.f32.mrf.mxu0
        %v1693 = vpop.f32.mrf.mxu0
        %v1694 = vadd.f32 %v1142, %v1693
        %v1695 = vpop.f32.mrf.mxu0
        %1696 = vmatprep.mubr.bf16.mxu0 %v651
        %1697 = vmatmul.mubr.bf16.gmra.mxu0 %v603
        %v1698 = vpop.f32.mrf.mxu0
        %v1699 = vadd.f32 %v1142, %v1698
        %v1700 = vpop.f32.mrf.mxu0
        %v1701 = vpop.f32.mrf.mxu0
        %v1702 = vadd.f32 %v1142, %v1701
        %v1703 = vpop.f32.mrf.mxu0
        %1704 = vmatprep.mubr.bf16.mxu0 %v652
        %1705 = vmatmul.mubr.bf16.gmra.mxu0 %v604
        %v1706 = vpop.f32.mrf.mxu0
        %v1707 = vadd.f32 %v1142, %v1706
        %v1708 = vpop.f32.mrf.mxu0
        %v1709 = vpop.f32.mrf.mxu0
        %v1710 = vadd.f32 %v1142, %v1709
        %v1711 = vpop.f32.mrf.mxu0
        %1712 = vmatprep.mubr.bf16.mxu0 %v653
        %1713 = vmatmul.mubr.bf16.gmra.mxu0 %v605
        %v1714 = vpop.f32.mrf.mxu0
        %v1715 = vadd.f32 %v1142, %v1714
        %v1716 = vpop.f32.mrf.mxu0
        %v1717 = vpop.f32.mrf.mxu0
        %v1718 = vadd.f32 %v1142, %v1717
        %v1719 = vpop.f32.mrf.mxu0
        %1720 = vmatprep.mubr.bf16.mxu0 %v654
        %1721 = vmatmul.mubr.bf16.gmra.mxu0 %v606
        %v1722 = vpop.f32.mrf.mxu0
        %v1723 = vadd.f32 %v1142, %v1722
        %v1724 = vpop.f32.mrf.mxu0
        %v1725 = vpop.f32.mrf.mxu0
        %v1726 = vadd.f32 %v1142, %v1725
        %v1727 = vpop.f32.mrf.mxu0
        %1728 = vmatprep.mubr.bf16.mxu0 %v655
        %1729 = vmatmul.mubr.bf16.gmra.mxu0 %v607
        %v1730 = vpop.f32.mrf.mxu0
        %v1731 = vadd.f32 %v1142, %v1730
        %v1732 = vpop.f32.mrf.mxu0
        %v1733 = vpop.f32.mrf.mxu0
        %v1734 = vadd.f32 %v1142, %v1733
        %v1735 = vpop.f32.mrf.mxu0
        %1736 = vdwg.mxu0
        %1737 = vmatprep.subr.bf16.mxu0 0
        %1738 = vmatpush1.bf16.msra.mxu0 %v1455
        %1739 = vmatprep.subr.bf16.mxu0 0
        %1740 = vmatpush1.bf16.msra.mxu0 %v1454
        %1741 = vmatprep.subr.bf16.mxu0 0
        %1742 = vmatpush1.bf16.msra.mxu0 %v1453
        %1743 = vmatprep.subr.bf16.mxu0 0
        %1744 = vmatpush1.bf16.msra.mxu0 %v1452
        %1745 = vmatprep.subr.bf16.mxu0 0
        %1746 = vmatpush1.bf16.msra.mxu0 %v1451
        %1747 = vmatprep.subr.bf16.mxu0 0
        %1748 = vmatpush1.bf16.msra.mxu0 %v1450
        %1749 = vmatprep.subr.bf16.mxu0 0
        %1750 = vmatpush1.bf16.msra.mxu0 %v1449
        %1751 = vmatprep.subr.bf16.mxu0 0
        %1752 = vmatpush1.bf16.msra.mxu0 %v1448
        %1753 = vmatprep.subr.bf16.mxu0 0
        %1754 = vmatpush2.bf16.msra.mxu0 %v1463
        %1755 = vmatprep.subr.bf16.mxu0 0
        %1756 = vmatpush2.bf16.msra.mxu0 %v1462
        %1757 = vmatprep.subr.bf16.mxu0 0
        %1758 = vmatpush2.bf16.msra.mxu0 %v1461
        %1759 = vmatprep.subr.bf16.mxu0 0
        %1760 = vmatpush2.bf16.msra.mxu0 %v1460
        %1761 = vmatprep.subr.bf16.mxu0 0
        %1762 = vmatpush2.bf16.msra.mxu0 %v1459
        %1763 = vmatprep.subr.bf16.mxu0 0
        %1764 = vmatpush2.bf16.msra.mxu0 %v1458
        %1765 = vmatprep.subr.bf16.mxu0 0
        %1766 = vmatpush2.bf16.msra.mxu0 %v1457
        %1767 = vmatprep.subr.bf16.mxu0 0
        %1768 = vmatpush2.bf16.msra.mxu0 %v1456
        %1769 = vmatprep.mubr.bf16.mxu0 %v736
        %1770 = vmatmul.mubr.bf16.gmra.mxu0 %v688
        %v1771 = vpop.f32.mrf.mxu0
        %v1772 = vadd.f32 %v1611, %v1771
        %v1773 = vpop.f32.mrf.mxu0
        %v1774 = vpop.f32.mrf.mxu0
        %v1775 = vadd.f32 %v1614, %v1774
        %v1776 = vpop.f32.mrf.mxu0
        %1777 = vmatprep.mubr.bf16.mxu0 %v737
        %1778 = vmatmul.mubr.bf16.gmra.mxu0 %v689
        %v1779 = vpop.f32.mrf.mxu0
        %v1780 = vadd.f32 %v1619, %v1779
        %v1781 = vpop.f32.mrf.mxu0
        %v1782 = vpop.f32.mrf.mxu0
        %v1783 = vadd.f32 %v1622, %v1782
        %v1784 = vpop.f32.mrf.mxu0
        %1785 = vmatprep.mubr.bf16.mxu0 %v738
        %1786 = vmatmul.mubr.bf16.gmra.mxu0 %v690
        %v1787 = vpop.f32.mrf.mxu0
        %v1788 = vadd.f32 %v1627, %v1787
        %v1789 = vpop.f32.mrf.mxu0
        %v1790 = vpop.f32.mrf.mxu0
        %v1791 = vadd.f32 %v1630, %v1790
        %v1792 = vpop.f32.mrf.mxu0
        %1793 = vmatprep.mubr.bf16.mxu0 %v739
        %1794 = vmatmul.mubr.bf16.gmra.mxu0 %v691
        %v1795 = vpop.f32.mrf.mxu0
        %v1796 = vadd.f32 %v1635, %v1795
        %v1797 = vpop.f32.mrf.mxu0
        %v1798 = vpop.f32.mrf.mxu0
        %v1799 = vadd.f32 %v1638, %v1798
        %v1800 = vpop.f32.mrf.mxu0
        %1801 = vmatprep.mubr.bf16.mxu0 %v740
        %1802 = vmatmul.mubr.bf16.gmra.mxu0 %v692
        %v1803 = vpop.f32.mrf.mxu0
        %v1804 = vadd.f32 %v1643, %v1803
        %v1805 = vpop.f32.mrf.mxu0
        %v1806 = vpop.f32.mrf.mxu0
        %v1807 = vadd.f32 %v1646, %v1806
        %v1808 = vpop.f32.mrf.mxu0
        %1809 = vmatprep.mubr.bf16.mxu0 %v741
        %1810 = vmatmul.mubr.bf16.gmra.mxu0 %v693
        %v1811 = vpop.f32.mrf.mxu0
        %v1812 = vadd.f32 %v1651, %v1811
        %v1813 = vpop.f32.mrf.mxu0
        %v1814 = vpop.f32.mrf.mxu0
        %v1815 = vadd.f32 %v1654, %v1814
        %v1816 = vpop.f32.mrf.mxu0
        %1817 = vmatprep.mubr.bf16.mxu0 %v742
        %1818 = vmatmul.mubr.bf16.gmra.mxu0 %v694
        %v1819 = vpop.f32.mrf.mxu0
        %v1820 = vadd.f32 %v1659, %v1819
        %v1821 = vpop.f32.mrf.mxu0
        %v1822 = vpop.f32.mrf.mxu0
        %v1823 = vadd.f32 %v1662, %v1822
        %v1824 = vpop.f32.mrf.mxu0
        %1825 = vmatprep.mubr.bf16.mxu0 %v743
        %1826 = vmatmul.mubr.bf16.gmra.mxu0 %v695
        %v1827 = vpop.f32.mrf.mxu0
        %v1828 = vadd.f32 %v1667, %v1827
        %v1829 = vpop.f32.mrf.mxu0
        %v1830 = vpop.f32.mrf.mxu0
        %v1831 = vadd.f32 %v1670, %v1830
        %v1832 = vpop.f32.mrf.mxu0
        %1833 = vmatprep.mubr.bf16.mxu0 %v744
        %1834 = vmatmul.mubr.bf16.gmra.mxu0 %v696
        %v1835 = vpop.f32.mrf.mxu0
        %v1836 = vadd.f32 %v1675, %v1835
        %v1837 = vpop.f32.mrf.mxu0
        %v1838 = vpop.f32.mrf.mxu0
        %v1839 = vadd.f32 %v1678, %v1838
        %v1840 = vpop.f32.mrf.mxu0
        %1841 = vmatprep.mubr.bf16.mxu0 %v745
        %1842 = vmatmul.mubr.bf16.gmra.mxu0 %v697
        %v1843 = vpop.f32.mrf.mxu0
        %v1844 = vadd.f32 %v1683, %v1843
        %v1845 = vpop.f32.mrf.mxu0
        %v1846 = vpop.f32.mrf.mxu0
        %v1847 = vadd.f32 %v1686, %v1846
        %v1848 = vpop.f32.mrf.mxu0
        %1849 = vmatprep.mubr.bf16.mxu0 %v746
        %1850 = vmatmul.mubr.bf16.gmra.mxu0 %v698
        %v1851 = vpop.f32.mrf.mxu0
        %v1852 = vadd.f32 %v1691, %v1851
        %v1853 = vpop.f32.mrf.mxu0
        %v1854 = vpop.f32.mrf.mxu0
        %v1855 = vadd.f32 %v1694, %v1854
        %v1856 = vpop.f32.mrf.mxu0
        %1857 = vmatprep.mubr.bf16.mxu0 %v747
        %1858 = vmatmul.mubr.bf16.gmra.mxu0 %v699
        %v1859 = vpop.f32.mrf.mxu0
        %v1860 = vadd.f32 %v1699, %v1859
        %v1861 = vpop.f32.mrf.mxu0
        %v1862 = vpop.f32.mrf.mxu0
        %v1863 = vadd.f32 %v1702, %v1862
        %v1864 = vpop.f32.mrf.mxu0
        %1865 = vmatprep.mubr.bf16.mxu0 %v748
        %1866 = vmatmul.mubr.bf16.gmra.mxu0 %v700
        %v1867 = vpop.f32.mrf.mxu0
        %v1868 = vadd.f32 %v1707, %v1867
        %v1869 = vpop.f32.mrf.mxu0
        %v1870 = vpop.f32.mrf.mxu0
        %v1871 = vadd.f32 %v1710, %v1870
        %v1872 = vpop.f32.mrf.mxu0
        %1873 = vmatprep.mubr.bf16.mxu0 %v749
        %1874 = vmatmul.mubr.bf16.gmra.mxu0 %v701
        %v1875 = vpop.f32.mrf.mxu0
        %v1876 = vadd.f32 %v1715, %v1875
        %v1877 = vpop.f32.mrf.mxu0
        %v1878 = vpop.f32.mrf.mxu0
        %v1879 = vadd.f32 %v1718, %v1878
        %v1880 = vpop.f32.mrf.mxu0
        %1881 = vmatprep.mubr.bf16.mxu0 %v750
        %1882 = vmatmul.mubr.bf16.gmra.mxu0 %v702
        %v1883 = vpop.f32.mrf.mxu0
        %v1884 = vadd.f32 %v1723, %v1883
        %v1885 = vpop.f32.mrf.mxu0
        %v1886 = vpop.f32.mrf.mxu0
        %v1887 = vadd.f32 %v1726, %v1886
        %v1888 = vpop.f32.mrf.mxu0
        %1889 = vmatprep.mubr.bf16.mxu0 %v751
        %1890 = vmatmul.mubr.bf16.gmra.mxu0 %v703
        %v1891 = vpop.f32.mrf.mxu0
        %v1892 = vadd.f32 %v1731, %v1891
        %v1893 = vpop.f32.mrf.mxu0
        %v1894 = vpop.f32.mrf.mxu0
        %v1895 = vadd.f32 %v1734, %v1894
        %v1896 = vpop.f32.mrf.mxu0
        %1897 = vdwg.mxu0
        %1898 = vmatprep.subr.bf16.mxu0 0
        %1899 = vmatpush1.bf16.msra.mxu0 %v1471
        %1900 = vmatprep.subr.bf16.mxu0 0
        %1901 = vmatpush1.bf16.msra.mxu0 %v1470
        %1902 = vmatprep.subr.bf16.mxu0 0
        %1903 = vmatpush1.bf16.msra.mxu0 %v1469
        %1904 = vmatprep.subr.bf16.mxu0 0
        %1905 = vmatpush1.bf16.msra.mxu0 %v1468
        %1906 = vmatprep.subr.bf16.mxu0 0
        %1907 = vmatpush1.bf16.msra.mxu0 %v1467
        %1908 = vmatprep.subr.bf16.mxu0 0
        %1909 = vmatpush1.bf16.msra.mxu0 %v1466
        %1910 = vmatprep.subr.bf16.mxu0 0
        %1911 = vmatpush1.bf16.msra.mxu0 %v1465
        %1912 = vmatprep.subr.bf16.mxu0 0
        %1913 = vmatpush1.bf16.msra.mxu0 %v1464
        %1914 = vmatprep.subr.bf16.mxu0 0
        %1915 = vmatpush2.bf16.msra.mxu0 %v1479
        %1916 = vmatprep.subr.bf16.mxu0 0
        %1917 = vmatpush2.bf16.msra.mxu0 %v1478
        %1918 = vmatprep.subr.bf16.mxu0 0
        %1919 = vmatpush2.bf16.msra.mxu0 %v1477
        %1920 = vmatprep.subr.bf16.mxu0 0
        %1921 = vmatpush2.bf16.msra.mxu0 %v1476
        %1922 = vmatprep.subr.bf16.mxu0 0
        %1923 = vmatpush2.bf16.msra.mxu0 %v1475
        %1924 = vmatprep.subr.bf16.mxu0 0
        %1925 = vmatpush2.bf16.msra.mxu0 %v1474
        %1926 = vmatprep.subr.bf16.mxu0 0
        %1927 = vmatpush2.bf16.msra.mxu0 %v1473
        %1928 = vmatprep.subr.bf16.mxu0 0
        %1929 = vmatpush2.bf16.msra.mxu0 %v1472
        %1930 = vmatprep.mubr.bf16.mxu0 %v832
        %1931 = vmatmul.mubr.bf16.gmra.mxu0 %v784
        %v1932 = vpop.f32.mrf.mxu0
        %v1933 = vadd.f32 %v1772, %v1932
        %v1934 = vpop.f32.mrf.mxu0
        %v1935 = vpop.f32.mrf.mxu0
        %v1936 = vadd.f32 %v1775, %v1935
        %v1937 = vpop.f32.mrf.mxu0
        %1938 = vmatprep.mubr.bf16.mxu0 %v833
        %1939 = vmatmul.mubr.bf16.gmra.mxu0 %v785
        %v1940 = vpop.f32.mrf.mxu0
        %v1941 = vadd.f32 %v1780, %v1940
        %v1942 = vpop.f32.mrf.mxu0
        %v1943 = vpop.f32.mrf.mxu0
        %v1944 = vadd.f32 %v1783, %v1943
        %v1945 = vpop.f32.mrf.mxu0
        %1946 = vmatprep.mubr.bf16.mxu0 %v834
        %1947 = vmatmul.mubr.bf16.gmra.mxu0 %v786
        %v1948 = vpop.f32.mrf.mxu0
        %v1949 = vadd.f32 %v1788, %v1948
        %v1950 = vpop.f32.mrf.mxu0
        %v1951 = vpop.f32.mrf.mxu0
        %v1952 = vadd.f32 %v1791, %v1951
        %v1953 = vpop.f32.mrf.mxu0
        %1954 = vmatprep.mubr.bf16.mxu0 %v835
        %1955 = vmatmul.mubr.bf16.gmra.mxu0 %v787
        %v1956 = vpop.f32.mrf.mxu0
        %v1957 = vadd.f32 %v1796, %v1956
        %v1958 = vpop.f32.mrf.mxu0
        %v1959 = vpop.f32.mrf.mxu0
        %v1960 = vadd.f32 %v1799, %v1959
        %v1961 = vpop.f32.mrf.mxu0
        %1962 = vmatprep.mubr.bf16.mxu0 %v836
        %1963 = vmatmul.mubr.bf16.gmra.mxu0 %v788
        %v1964 = vpop.f32.mrf.mxu0
        %v1965 = vadd.f32 %v1804, %v1964
        %v1966 = vpop.f32.mrf.mxu0
        %v1967 = vpop.f32.mrf.mxu0
        %v1968 = vadd.f32 %v1807, %v1967
        %v1969 = vpop.f32.mrf.mxu0
        %1970 = vmatprep.mubr.bf16.mxu0 %v837
        %1971 = vmatmul.mubr.bf16.gmra.mxu0 %v789
        %v1972 = vpop.f32.mrf.mxu0
        %v1973 = vadd.f32 %v1812, %v1972
        %v1974 = vpop.f32.mrf.mxu0
        %v1975 = vpop.f32.mrf.mxu0
        %v1976 = vadd.f32 %v1815, %v1975
        %v1977 = vpop.f32.mrf.mxu0
        %1978 = vmatprep.mubr.bf16.mxu0 %v838
        %1979 = vmatmul.mubr.bf16.gmra.mxu0 %v790
        %v1980 = vpop.f32.mrf.mxu0
        %v1981 = vadd.f32 %v1820, %v1980
        %v1982 = vpop.f32.mrf.mxu0
        %v1983 = vpop.f32.mrf.mxu0
        %v1984 = vadd.f32 %v1823, %v1983
        %v1985 = vpop.f32.mrf.mxu0
        %1986 = vmatprep.mubr.bf16.mxu0 %v839
        %1987 = vmatmul.mubr.bf16.gmra.mxu0 %v791
        %v1988 = vpop.f32.mrf.mxu0
        %v1989 = vadd.f32 %v1828, %v1988
        %v1990 = vpop.f32.mrf.mxu0
        %v1991 = vpop.f32.mrf.mxu0
        %v1992 = vadd.f32 %v1831, %v1991
        %v1993 = vpop.f32.mrf.mxu0
        %1994 = vmatprep.mubr.bf16.mxu0 %v840
        %1995 = vmatmul.mubr.bf16.gmra.mxu0 %v792
        %v1996 = vpop.f32.mrf.mxu0
        %v1997 = vadd.f32 %v1836, %v1996
        %v1998 = vpop.f32.mrf.mxu0
        %v1999 = vpop.f32.mrf.mxu0
        %v2000 = vadd.f32 %v1839, %v1999
        %v2001 = vpop.f32.mrf.mxu0
        %2002 = vmatprep.mubr.bf16.mxu0 %v841
        %2003 = vmatmul.mubr.bf16.gmra.mxu0 %v793
        %v2004 = vpop.f32.mrf.mxu0
        %v2005 = vadd.f32 %v1844, %v2004
        %v2006 = vpop.f32.mrf.mxu0
        %v2007 = vpop.f32.mrf.mxu0
        %v2008 = vadd.f32 %v1847, %v2007
        %v2009 = vpop.f32.mrf.mxu0
        %2010 = vmatprep.mubr.bf16.mxu0 %v842
        %2011 = vmatmul.mubr.bf16.gmra.mxu0 %v794
        %v2012 = vpop.f32.mrf.mxu0
        %v2013 = vadd.f32 %v1852, %v2012
        %v2014 = vpop.f32.mrf.mxu0
        %v2015 = vpop.f32.mrf.mxu0
        %v2016 = vadd.f32 %v1855, %v2015
        %v2017 = vpop.f32.mrf.mxu0
        %2018 = vmatprep.mubr.bf16.mxu0 %v843
        %2019 = vmatmul.mubr.bf16.gmra.mxu0 %v795
        %v2020 = vpop.f32.mrf.mxu0
        %v2021 = vadd.f32 %v1860, %v2020
        %v2022 = vpop.f32.mrf.mxu0
        %v2023 = vpop.f32.mrf.mxu0
        %v2024 = vadd.f32 %v1863, %v2023
        %v2025 = vpop.f32.mrf.mxu0
        %2026 = vmatprep.mubr.bf16.mxu0 %v844
        %2027 = vmatmul.mubr.bf16.gmra.mxu0 %v796
        %v2028 = vpop.f32.mrf.mxu0
        %v2029 = vadd.f32 %v1868, %v2028
        %v2030 = vpop.f32.mrf.mxu0
        %v2031 = vpop.f32.mrf.mxu0
        %v2032 = vadd.f32 %v1871, %v2031
        %v2033 = vpop.f32.mrf.mxu0
        %2034 = vmatprep.mubr.bf16.mxu0 %v845
        %2035 = vmatmul.mubr.bf16.gmra.mxu0 %v797
        %v2036 = vpop.f32.mrf.mxu0
        %v2037 = vadd.f32 %v1876, %v2036
        %v2038 = vpop.f32.mrf.mxu0
        %v2039 = vpop.f32.mrf.mxu0
        %v2040 = vadd.f32 %v1879, %v2039
        %v2041 = vpop.f32.mrf.mxu0
        %2042 = vmatprep.mubr.bf16.mxu0 %v846
        %2043 = vmatmul.mubr.bf16.gmra.mxu0 %v798
        %v2044 = vpop.f32.mrf.mxu0
        %v2045 = vadd.f32 %v1884, %v2044
        %v2046 = vpop.f32.mrf.mxu0
        %v2047 = vpop.f32.mrf.mxu0
        %v2048 = vadd.f32 %v1887, %v2047
        %v2049 = vpop.f32.mrf.mxu0
        %2050 = vmatprep.mubr.bf16.mxu0 %v847
        %2051 = vmatmul.mubr.bf16.gmra.mxu0 %v799
        %v2052 = vpop.f32.mrf.mxu0
        %v2053 = vadd.f32 %v1892, %v2052
        %v2054 = vpop.f32.mrf.mxu0
        %v2055 = vpop.f32.mrf.mxu0
        %v2056 = vadd.f32 %v1895, %v2055
        %v2057 = vpop.f32.mrf.mxu0
        %2058 = vdwg.mxu0
        %2059 = vmatprep.subr.bf16.mxu0 0
        %2060 = vmatpush1.bf16.msra.mxu0 %v1487
        %2061 = vmatprep.subr.bf16.mxu0 0
        %2062 = vmatpush1.bf16.msra.mxu0 %v1486
        %2063 = vmatprep.subr.bf16.mxu0 0
        %2064 = vmatpush1.bf16.msra.mxu0 %v1485
        %2065 = vmatprep.subr.bf16.mxu0 0
        %2066 = vmatpush1.bf16.msra.mxu0 %v1484
        %2067 = vmatprep.subr.bf16.mxu0 0
        %2068 = vmatpush1.bf16.msra.mxu0 %v1483
        %2069 = vmatprep.subr.bf16.mxu0 0
        %2070 = vmatpush1.bf16.msra.mxu0 %v1482
        %2071 = vmatprep.subr.bf16.mxu0 0
        %2072 = vmatpush1.bf16.msra.mxu0 %v1481
        %2073 = vmatprep.subr.bf16.mxu0 0
        %2074 = vmatpush1.bf16.msra.mxu0 %v1480
        %2075 = vmatprep.subr.bf16.mxu0 0
        %2076 = vmatpush2.bf16.msra.mxu0 %v1495
        %2077 = vmatprep.subr.bf16.mxu0 0
        %2078 = vmatpush2.bf16.msra.mxu0 %v1494
        %2079 = vmatprep.subr.bf16.mxu0 0
        %2080 = vmatpush2.bf16.msra.mxu0 %v1493
        %2081 = vmatprep.subr.bf16.mxu0 0
        %2082 = vmatpush2.bf16.msra.mxu0 %v1492
        %2083 = vmatprep.subr.bf16.mxu0 0
        %2084 = vmatpush2.bf16.msra.mxu0 %v1491
        %2085 = vmatprep.subr.bf16.mxu0 0
        %2086 = vmatpush2.bf16.msra.mxu0 %v1490
        %2087 = vmatprep.subr.bf16.mxu0 0
        %2088 = vmatpush2.bf16.msra.mxu0 %v1489
        %2089 = vmatprep.subr.bf16.mxu0 0
        %2090 = vmatpush2.bf16.msra.mxu0 %v1488
        %2091 = vmatprep.mubr.bf16.mxu0 %v929
        %2092 = vmatmul.mubr.bf16.gmra.mxu0 %v881
        %v2093 = vpop.f32.mrf.mxu0
        %v2094 = vadd.f32 %v1933, %v2093
        %v2095 = vpop.f32.mrf.mxu0
        %v2096 = vpop.f32.mrf.mxu0
        %v2097 = vadd.f32 %v1936, %v2096
        %v2098 = vpop.f32.mrf.mxu0
        %2099 = vmatprep.mubr.bf16.mxu0 %v930
        %2100 = vmatmul.mubr.bf16.gmra.mxu0 %v882
        %v2101 = vpop.f32.mrf.mxu0
        %v2102 = vadd.f32 %v1941, %v2101
        %v2103 = vpop.f32.mrf.mxu0
        %v2104 = vpop.f32.mrf.mxu0
        %v2105 = vadd.f32 %v1944, %v2104
        %v2106 = vpop.f32.mrf.mxu0
        %2107 = vmatprep.mubr.bf16.mxu0 %v931
        %2108 = vmatmul.mubr.bf16.gmra.mxu0 %v883
        %v2109 = vpop.f32.mrf.mxu0
        %v2110 = vadd.f32 %v1949, %v2109
        %v2111 = vpop.f32.mrf.mxu0
        %v2112 = vpop.f32.mrf.mxu0
        %v2113 = vadd.f32 %v1952, %v2112
        %v2114 = vpop.f32.mrf.mxu0
        %2115 = vmatprep.mubr.bf16.mxu0 %v932
        %2116 = vmatmul.mubr.bf16.gmra.mxu0 %v884
        %v2117 = vpop.f32.mrf.mxu0
        %v2118 = vadd.f32 %v1957, %v2117
        %v2119 = vpop.f32.mrf.mxu0
        %v2120 = vpop.f32.mrf.mxu0
        %v2121 = vadd.f32 %v1960, %v2120
        %v2122 = vpop.f32.mrf.mxu0
        %2123 = vmatprep.mubr.bf16.mxu0 %v933
        %2124 = vmatmul.mubr.bf16.gmra.mxu0 %v885
        %v2125 = vpop.f32.mrf.mxu0
        %v2126 = vadd.f32 %v1965, %v2125
        %v2127 = vpop.f32.mrf.mxu0
        %v2128 = vpop.f32.mrf.mxu0
        %v2129 = vadd.f32 %v1968, %v2128
        %v2130 = vpop.f32.mrf.mxu0
        %2131 = vmatprep.mubr.bf16.mxu0 %v934
        %2132 = vmatmul.mubr.bf16.gmra.mxu0 %v886
        %v2133 = vpop.f32.mrf.mxu0
        %v2134 = vadd.f32 %v1973, %v2133
        %v2135 = vpop.f32.mrf.mxu0
        %v2136 = vpop.f32.mrf.mxu0
        %v2137 = vadd.f32 %v1976, %v2136
        %v2138 = vpop.f32.mrf.mxu0
        %2139 = vmatprep.mubr.bf16.mxu0 %v935
        %2140 = vmatmul.mubr.bf16.gmra.mxu0 %v887
        %v2141 = vpop.f32.mrf.mxu0
        %v2142 = vadd.f32 %v1981, %v2141
        %v2143 = vpop.f32.mrf.mxu0
        %v2144 = vpop.f32.mrf.mxu0
        %v2145 = vadd.f32 %v1984, %v2144
        %v2146 = vpop.f32.mrf.mxu0
        %2147 = vmatprep.mubr.bf16.mxu0 %v936
        %2148 = vmatmul.mubr.bf16.gmra.mxu0 %v888
        %v2149 = vpop.f32.mrf.mxu0
        %v2150 = vadd.f32 %v1989, %v2149
        %v2151 = vpop.f32.mrf.mxu0
        %v2152 = vpop.f32.mrf.mxu0
        %v2153 = vadd.f32 %v1992, %v2152
        %v2154 = vpop.f32.mrf.mxu0
        %2155 = vmatprep.mubr.bf16.mxu0 %v937
        %2156 = vmatmul.mubr.bf16.gmra.mxu0 %v889
        %v2157 = vpop.f32.mrf.mxu0
        %v2158 = vadd.f32 %v1997, %v2157
        %v2159 = vpop.f32.mrf.mxu0
        %v2160 = vpop.f32.mrf.mxu0
        %v2161 = vadd.f32 %v2000, %v2160
        %v2162 = vpop.f32.mrf.mxu0
        %2163 = vmatprep.mubr.bf16.mxu0 %v938
        %2164 = vmatmul.mubr.bf16.gmra.mxu0 %v890
        %v2165 = vpop.f32.mrf.mxu0
        %v2166 = vadd.f32 %v2005, %v2165
        %v2167 = vpop.f32.mrf.mxu0
        %v2168 = vpop.f32.mrf.mxu0
        %v2169 = vadd.f32 %v2008, %v2168
        %v2170 = vpop.f32.mrf.mxu0
        %2171 = vmatprep.mubr.bf16.mxu0 %v939
        %2172 = vmatmul.mubr.bf16.gmra.mxu0 %v891
        %v2173 = vpop.f32.mrf.mxu0
        %v2174 = vadd.f32 %v2013, %v2173
        %v2175 = vpop.f32.mrf.mxu0
        %v2176 = vpop.f32.mrf.mxu0
        %v2177 = vadd.f32 %v2016, %v2176
        %v2178 = vpop.f32.mrf.mxu0
        %2179 = vmatprep.mubr.bf16.mxu0 %v940
        %2180 = vmatmul.mubr.bf16.gmra.mxu0 %v892
        %v2181 = vpop.f32.mrf.mxu0
        %v2182 = vadd.f32 %v2021, %v2181
        %v2183 = vpop.f32.mrf.mxu0
        %v2184 = vpop.f32.mrf.mxu0
        %v2185 = vadd.f32 %v2024, %v2184
        %v2186 = vpop.f32.mrf.mxu0
        %2187 = vmatprep.mubr.bf16.mxu0 %v941
        %2188 = vmatmul.mubr.bf16.gmra.mxu0 %v893
        %v2189 = vpop.f32.mrf.mxu0
        %v2190 = vadd.f32 %v2029, %v2189
        %v2191 = vpop.f32.mrf.mxu0
        %v2192 = vpop.f32.mrf.mxu0
        %v2193 = vadd.f32 %v2032, %v2192
        %v2194 = vpop.f32.mrf.mxu0
        %2195 = vmatprep.mubr.bf16.mxu0 %v942
        %2196 = vmatmul.mubr.bf16.gmra.mxu0 %v894
        %v2197 = vpop.f32.mrf.mxu0
        %v2198 = vadd.f32 %v2037, %v2197
        %v2199 = vpop.f32.mrf.mxu0
        %v2200 = vpop.f32.mrf.mxu0
        %v2201 = vadd.f32 %v2040, %v2200
        %v2202 = vpop.f32.mrf.mxu0
        %2203 = vmatprep.mubr.bf16.mxu0 %v943
        %2204 = vmatmul.mubr.bf16.gmra.mxu0 %v895
        %v2205 = vpop.f32.mrf.mxu0
        %v2206 = vadd.f32 %v2045, %v2205
        %v2207 = vpop.f32.mrf.mxu0
        %v2208 = vpop.f32.mrf.mxu0
        %v2209 = vadd.f32 %v2048, %v2208
        %v2210 = vpop.f32.mrf.mxu0
        %2211 = vmatprep.mubr.bf16.mxu0 %v944
        %2212 = vmatmul.mubr.bf16.gmra.mxu0 %v896
        %v2213 = vpop.f32.mrf.mxu0
        %v2214 = vadd.f32 %v2053, %v2213
        %v2215 = vpop.f32.mrf.mxu0
        %v2216 = vpop.f32.mrf.mxu0
        %v2217 = vadd.f32 %v2056, %v2216
        %v2218 = vpop.f32.mrf.mxu0
        %2219 = vdwg.mxu0
        %2220 = vmatprep.subr.bf16.mxu0 0
        %2221 = vmatpush1.bf16.msra.mxu0 %v1503
        %2222 = vmatprep.subr.bf16.mxu0 0
        %2223 = vmatpush1.bf16.msra.mxu0 %v1502
        %2224 = vmatprep.subr.bf16.mxu0 0
        %2225 = vmatpush1.bf16.msra.mxu0 %v1501
        %2226 = vmatprep.subr.bf16.mxu0 0
        %2227 = vmatpush1.bf16.msra.mxu0 %v1500
        %2228 = vmatprep.subr.bf16.mxu0 0
        %2229 = vmatpush1.bf16.msra.mxu0 %v1499
        %2230 = vmatprep.subr.bf16.mxu0 0
        %2231 = vmatpush1.bf16.msra.mxu0 %v1498
        %2232 = vmatprep.subr.bf16.mxu0 0
        %2233 = vmatpush1.bf16.msra.mxu0 %v1497
        %2234 = vmatprep.subr.bf16.mxu0 0
        %2235 = vmatpush1.bf16.msra.mxu0 %v1496
        %2236 = vmatprep.subr.bf16.mxu0 0
        %2237 = vmatpush2.bf16.msra.mxu0 0
        %2238 = vmatprep.subr.bf16.mxu0 0
        %2239 = vmatpush2.bf16.msra.mxu0 0
        %2240 = vmatprep.subr.bf16.mxu0 0
        %2241 = vmatpush2.bf16.msra.mxu0 0
        %2242 = vmatprep.subr.bf16.mxu0 0
        %2243 = vmatpush2.bf16.msra.mxu0 0
        %2244 = vmatprep.subr.bf16.mxu0 0
        %2245 = vmatpush2.bf16.msra.mxu0 0
        %2246 = vmatprep.subr.bf16.mxu0 0
        %2247 = vmatpush2.bf16.msra.mxu0 0
        %2248 = vmatprep.subr.bf16.mxu0 0
        %2249 = vmatpush2.bf16.msra.mxu0 0
        %2250 = vmatprep.subr.bf16.mxu0 0
        %2251 = vmatpush2.bf16.msra.mxu0 0
        %2252 = vmatprep.mubr.bf16.mxu0 0
        %2253 = vmatmul.mubr.bf16.gmra.mxu0 %v977
        %v2254 = vpop.f32.mrf.mxu0
        %v2255 = vadd.f32 %v2094, %v2254
        %v2256 = vpop.f32.mrf.mxu0
        %v2257 = vpop.f32.mrf.mxu0
        %v2258 = vadd.f32 %v2097, %v2257
        %v2259 = vpop.f32.mrf.mxu0
        %2260 = vmatprep.mubr.bf16.mxu0 0
        %2261 = vmatmul.mubr.bf16.gmra.mxu0 %v978
        %v2262 = vpop.f32.mrf.mxu0
        %v2263 = vadd.f32 %v2102, %v2262
        %v2264 = vpop.f32.mrf.mxu0
        %v2265 = vpop.f32.mrf.mxu0
        %v2266 = vadd.f32 %v2105, %v2265
        %v2267 = vpop.f32.mrf.mxu0
        %2268 = vmatprep.mubr.bf16.mxu0 0
        %2269 = vmatmul.mubr.bf16.gmra.mxu0 %v979
        %v2270 = vpop.f32.mrf.mxu0
        %v2271 = vadd.f32 %v2110, %v2270
        %v2272 = vpop.f32.mrf.mxu0
        %v2273 = vpop.f32.mrf.mxu0
        %v2274 = vadd.f32 %v2113, %v2273
        %v2275 = vpop.f32.mrf.mxu0
        %2276 = vmatprep.mubr.bf16.mxu0 0
        %2277 = vmatmul.mubr.bf16.gmra.mxu0 %v980
        %v2278 = vpop.f32.mrf.mxu0
        %v2279 = vadd.f32 %v2118, %v2278
        %v2280 = vpop.f32.mrf.mxu0
        %v2281 = vpop.f32.mrf.mxu0
        %v2282 = vadd.f32 %v2121, %v2281
        %v2283 = vpop.f32.mrf.mxu0
        %2284 = vmatprep.mubr.bf16.mxu0 0
        %2285 = vmatmul.mubr.bf16.gmra.mxu0 %v981
        %v2286 = vpop.f32.mrf.mxu0
        %v2287 = vadd.f32 %v2126, %v2286
        %v2288 = vpop.f32.mrf.mxu0
        %v2289 = vpop.f32.mrf.mxu0
        %v2290 = vadd.f32 %v2129, %v2289
        %v2291 = vpop.f32.mrf.mxu0
        %2292 = vmatprep.mubr.bf16.mxu0 0
        %2293 = vmatmul.mubr.bf16.gmra.mxu0 %v982
        %v2294 = vpop.f32.mrf.mxu0
        %v2295 = vadd.f32 %v2134, %v2294
        %v2296 = vpop.f32.mrf.mxu0
        %v2297 = vpop.f32.mrf.mxu0
        %v2298 = vadd.f32 %v2137, %v2297
        %v2299 = vpop.f32.mrf.mxu0
        %2300 = vmatprep.mubr.bf16.mxu0 0
        %2301 = vmatmul.mubr.bf16.gmra.mxu0 %v983
        %v2302 = vpop.f32.mrf.mxu0
        %v2303 = vadd.f32 %v2142, %v2302
        %v2304 = vpop.f32.mrf.mxu0
        %v2305 = vpop.f32.mrf.mxu0
        %v2306 = vadd.f32 %v2145, %v2305
        %v2307 = vpop.f32.mrf.mxu0
        %2308 = vmatprep.mubr.bf16.mxu0 0
        %2309 = vmatmul.mubr.bf16.gmra.mxu0 %v984
        %v2310 = vpop.f32.mrf.mxu0
        %v2311 = vadd.f32 %v2150, %v2310
        %v2312 = vpop.f32.mrf.mxu0
        %v2313 = vpop.f32.mrf.mxu0
        %v2314 = vadd.f32 %v2153, %v2313
        %v2315 = vpop.f32.mrf.mxu0
        %2316 = vmatprep.mubr.bf16.mxu0 0
        %2317 = vmatmul.mubr.bf16.gmra.mxu0 %v985
        %v2318 = vpop.f32.mrf.mxu0
        %v2319 = vadd.f32 %v2158, %v2318
        %v2320 = vpop.f32.mrf.mxu0
        %v2321 = vpop.f32.mrf.mxu0
        %v2322 = vadd.f32 %v2161, %v2321
        %v2323 = vpop.f32.mrf.mxu0
        %2324 = vmatprep.mubr.bf16.mxu0 0
        %2325 = vmatmul.mubr.bf16.gmra.mxu0 %v986
        %v2326 = vpop.f32.mrf.mxu0
        %v2327 = vadd.f32 %v2166, %v2326
        %v2328 = vpop.f32.mrf.mxu0
        %v2329 = vpop.f32.mrf.mxu0
        %v2330 = vadd.f32 %v2169, %v2329
        %v2331 = vpop.f32.mrf.mxu0
        %2332 = vmatprep.mubr.bf16.mxu0 0
        %2333 = vmatmul.mubr.bf16.gmra.mxu0 %v987
        %v2334 = vpop.f32.mrf.mxu0
        %v2335 = vadd.f32 %v2174, %v2334
        %v2336 = vpop.f32.mrf.mxu0
        %v2337 = vpop.f32.mrf.mxu0
        %v2338 = vadd.f32 %v2177, %v2337
        %v2339 = vpop.f32.mrf.mxu0
        %2340 = vmatprep.mubr.bf16.mxu0 0
        %2341 = vmatmul.mubr.bf16.gmra.mxu0 %v988
        %v2342 = vpop.f32.mrf.mxu0
        %v2343 = vadd.f32 %v2182, %v2342
        %v2344 = vpop.f32.mrf.mxu0
        %v2345 = vpop.f32.mrf.mxu0
        %v2346 = vadd.f32 %v2185, %v2345
        %v2347 = vpop.f32.mrf.mxu0
        %2348 = vmatprep.mubr.bf16.mxu0 0
        %2349 = vmatmul.mubr.bf16.gmra.mxu0 %v989
        %v2350 = vpop.f32.mrf.mxu0
        %v2351 = vadd.f32 %v2190, %v2350
        %v2352 = vpop.f32.mrf.mxu0
        %v2353 = vpop.f32.mrf.mxu0
        %v2354 = vadd.f32 %v2193, %v2353
        %v2355 = vpop.f32.mrf.mxu0
        %2356 = vmatprep.mubr.bf16.mxu0 0
        %2357 = vmatmul.mubr.bf16.gmra.mxu0 %v990
        %v2358 = vpop.f32.mrf.mxu0
        %v2359 = vadd.f32 %v2198, %v2358
        %v2360 = vpop.f32.mrf.mxu0
        %v2361 = vpop.f32.mrf.mxu0
        %v2362 = vadd.f32 %v2201, %v2361
        %v2363 = vpop.f32.mrf.mxu0
        %2364 = vmatprep.mubr.bf16.mxu0 0
        %2365 = vmatmul.mubr.bf16.gmra.mxu0 %v991
        %v2366 = vpop.f32.mrf.mxu0
        %v2367 = vadd.f32 %v2206, %v2366
        %v2368 = vpop.f32.mrf.mxu0
        %v2369 = vpop.f32.mrf.mxu0
        %v2370 = vadd.f32 %v2209, %v2369
        %v2371 = vpop.f32.mrf.mxu0
        %2372 = vmatprep.mubr.bf16.mxu0 0
        %2373 = vmatmul.mubr.bf16.gmra.mxu0 %v992
        %v2374 = vpop.f32.mrf.mxu0
        %v2375 = vadd.f32 %v2214, %v2374
        %v2376 = vpop.f32.mrf.mxu0
        %v2377 = vpop.f32.mrf.mxu0
        %v2378 = vadd.f32 %v2217, %v2377
        %v2379 = vpop.f32.mrf.mxu0
        %2380 = vdwg.mxu0
        %vm2381 = vcmask 261120
        %v2382 = vsel %vm2381, %v2255, 0.0
        %v2383 = vsel %vm2381, %v2258, 0.0
        %v2384 = vadd.f32 %v2382, %v2383
        %v2385 = vsel %vm2381, %v2263, 0.0
        %v2386 = vadd.f32 %v2384, %v2385
        %v2387 = vsel %vm2381, %v2266, 0.0
        %v2388 = vadd.f32 %v2386, %v2387
        %v2389 = vsel %vm2381, %v2271, 0.0
        %v2390 = vadd.f32 %v2388, %v2389
        %v2391 = vsel %vm2381, %v2274, 0.0
        %v2392 = vadd.f32 %v2390, %v2391
        %v2393 = vsel %vm2381, %v2279, 0.0
        %v2394 = vadd.f32 %v2392, %v2393
        %v2395 = vsel %vm2381, %v2282, 0.0
        %v2396 = vadd.f32 %v2394, %v2395
        %v2397 = vsel %vm2381, %v2287, 0.0
        %v2398 = vadd.f32 %v2396, %v2397
        %v2399 = vsel %vm2381, %v2290, 0.0
        %v2400 = vadd.f32 %v2398, %v2399
        %v2401 = vsel %vm2381, %v2295, 0.0
        %v2402 = vadd.f32 %v2400, %v2401
        %v2403 = vsel %vm2381, %v2298, 0.0
        %v2404 = vadd.f32 %v2402, %v2403
        %v2405 = vsel %vm2381, %v2303, 0.0
        %v2406 = vadd.f32 %v2404, %v2405
        %v2407 = vsel %vm2381, %v2306, 0.0
        %v2408 = vadd.f32 %v2406, %v2407
        %v2409 = vsel %vm2381, %v2311, 0.0
        %v2410 = vadd.f32 %v2408, %v2409
        %v2411 = vsel %vm2381, %v2314, 0.0
        %v2412 = vadd.f32 %v2410, %v2411
        %v2413 = vsel %vm2381, %v2319, 0.0
        %v2414 = vadd.f32 %v2412, %v2413
        %v2415 = vsel %vm2381, %v2322, 0.0
        %v2416 = vadd.f32 %v2414, %v2415
        %v2417 = vsel %vm2381, %v2327, 0.0
        %v2418 = vadd.f32 %v2416, %v2417
        %v2419 = vsel %vm2381, %v2330, 0.0
        %v2420 = vadd.f32 %v2418, %v2419
        %v2421 = vsel %vm2381, %v2335, 0.0
        %v2422 = vadd.f32 %v2420, %v2421
        %v2423 = vsel %vm2381, %v2338, 0.0
        %v2424 = vadd.f32 %v2422, %v2423
        %v2425 = vsel %vm2381, %v2343, 0.0
        %v2426 = vadd.f32 %v2424, %v2425
        %v2427 = vsel %vm2381, %v2346, 0.0
        %v2428 = vadd.f32 %v2426, %v2427
        %v2429 = vsel %vm2381, %v2351, 0.0
        %v2430 = vadd.f32 %v2428, %v2429
        %v2431 = vsel %vm2381, %v2354, 0.0
        %v2432 = vadd.f32 %v2430, %v2431
        %v2433 = vsel %vm2381, %v2359, 0.0
        %v2434 = vadd.f32 %v2432, %v2433
        %v2435 = vsel %vm2381, %v2362, 0.0
        %v2436 = vadd.f32 %v2434, %v2435
        %v2437 = vsel %vm2381, %v2367, 0.0
        %v2438 = vadd.f32 %v2436, %v2437
        %v2439 = vsel %vm2381, %v2370, 0.0
        %v2440 = vadd.f32 %v2438, %v2439
        %v2441 = vsel %vm2381, %v2375, 0.0
        %v2442 = vadd.f32 %v2440, %v2441
        %v2443 = vsel %vm2381, %v2378, 0.0
        %v2444 = vadd.f32 %v2442, %v2443
        %v2445 = vrot.slane %v2444, 4
        %v2446 = vadd.f32 %v2444, %v2445
        %v2447 = vrot.slane %v2446, 2
        %v2448 = vadd.f32 %v2446, %v2447
        %v2449 = vrot.slane %v2448, 1
        %v2450 = vadd.f32 %v2448, %v2449
        %vm2451 = vcmask 253952
        %2452 = vst.msk [vmem:[%s281] sm:$0x1] %vm2451, %v2450
        %v2453 = vmul.f32 %v2255, %v2255
        %v2454 = vmul.f32 %v2258, %v2258
        %v2455 = vmul.f32 %v2263, %v2263
        %v2456 = vmul.f32 %v2266, %v2266
        %v2457 = vmul.f32 %v2271, %v2271
        %v2458 = vmul.f32 %v2274, %v2274
        %v2459 = vmul.f32 %v2279, %v2279
        %v2460 = vmul.f32 %v2282, %v2282
        %v2461 = vmul.f32 %v2287, %v2287
        %v2462 = vmul.f32 %v2290, %v2290
        %v2463 = vmul.f32 %v2295, %v2295
        %v2464 = vmul.f32 %v2298, %v2298
        %v2465 = vmul.f32 %v2303, %v2303
        %v2466 = vmul.f32 %v2306, %v2306
        %v2467 = vmul.f32 %v2311, %v2311
        %v2468 = vmul.f32 %v2314, %v2314
        %v2469 = vmul.f32 %v2319, %v2319
        %v2470 = vmul.f32 %v2322, %v2322
        %v2471 = vmul.f32 %v2327, %v2327
        %v2472 = vmul.f32 %v2330, %v2330
        %v2473 = vmul.f32 %v2335, %v2335
        %v2474 = vmul.f32 %v2338, %v2338
        %v2475 = vmul.f32 %v2343, %v2343
        %v2476 = vmul.f32 %v2346, %v2346
        %v2477 = vmul.f32 %v2351, %v2351
        %v2478 = vmul.f32 %v2354, %v2354
        %v2479 = vmul.f32 %v2359, %v2359
        %v2480 = vmul.f32 %v2362, %v2362
        %v2481 = vmul.f32 %v2367, %v2367
        %v2482 = vmul.f32 %v2370, %v2370
        %v2483 = vmul.f32 %v2375, %v2375
        %v2484 = vmul.f32 %v2378, %v2378
        %v2485 = vsel %vm2381, %v2453, 0.0
        %v2486 = vsel %vm2381, %v2454, 0.0
        %v2487 = vadd.f32 %v2485, %v2486
        %v2488 = vsel %vm2381, %v2455, 0.0
        %v2489 = vadd.f32 %v2487, %v2488
        %v2490 = vsel %vm2381, %v2456, 0.0
        %v2491 = vadd.f32 %v2489, %v2490
        %v2492 = vsel %vm2381, %v2457, 0.0
        %v2493 = vadd.f32 %v2491, %v2492
        %v2494 = vsel %vm2381, %v2458, 0.0
        %v2495 = vadd.f32 %v2493, %v2494
        %v2496 = vsel %vm2381, %v2459, 0.0
        %v2497 = vadd.f32 %v2495, %v2496
        %v2498 = vsel %vm2381, %v2460, 0.0
        %v2499 = vadd.f32 %v2497, %v2498
        %v2500 = vsel %vm2381, %v2461, 0.0
        %v2501 = vadd.f32 %v2499, %v2500
        %v2502 = vsel %vm2381, %v2462, 0.0
        %v2503 = vadd.f32 %v2501, %v2502
        %v2504 = vsel %vm2381, %v2463, 0.0
        %v2505 = vadd.f32 %v2503, %v2504
        %v2506 = vsel %vm2381, %v2464, 0.0
        %v2507 = vadd.f32 %v2505, %v2506
        %v2508 = vsel %vm2381, %v2465, 0.0
        %v2509 = vadd.f32 %v2507, %v2508
        %v2510 = vsel %vm2381, %v2466, 0.0
        %v2511 = vadd.f32 %v2509, %v2510
        %v2512 = vsel %vm2381, %v2467, 0.0
        %v2513 = vadd.f32 %v2511, %v2512
        %v2514 = vsel %vm2381, %v2468, 0.0
        %v2515 = vadd.f32 %v2513, %v2514
        %v2516 = vsel %vm2381, %v2469, 0.0
        %v2517 = vadd.f32 %v2515, %v2516
        %v2518 = vsel %vm2381, %v2470, 0.0
        %v2519 = vadd.f32 %v2517, %v2518
        %v2520 = vsel %vm2381, %v2471, 0.0
        %v2521 = vadd.f32 %v2519, %v2520
        %v2522 = vsel %vm2381, %v2472, 0.0
        %v2523 = vadd.f32 %v2521, %v2522
        %v2524 = vsel %vm2381, %v2473, 0.0
        %v2525 = vadd.f32 %v2523, %v2524
        %v2526 = vsel %vm2381, %v2474, 0.0
        %v2527 = vadd.f32 %v2525, %v2526
        %v2528 = vsel %vm2381, %v2475, 0.0
        %v2529 = vadd.f32 %v2527, %v2528
        %v2530 = vsel %vm2381, %v2476, 0.0
        %v2531 = vadd.f32 %v2529, %v2530
        %v2532 = vsel %vm2381, %v2477, 0.0
        %v2533 = vadd.f32 %v2531, %v2532
        %v2534 = vsel %vm2381, %v2478, 0.0
        %v2535 = vadd.f32 %v2533, %v2534
        %v2536 = vsel %vm2381, %v2479, 0.0
        %v2537 = vadd.f32 %v2535, %v2536
        %v2538 = vsel %vm2381, %v2480, 0.0
        %v2539 = vadd.f32 %v2537, %v2538
        %v2540 = vsel %vm2381, %v2481, 0.0
        %v2541 = vadd.f32 %v2539, %v2540
        %v2542 = vsel %vm2381, %v2482, 0.0
        %v2543 = vadd.f32 %v2541, %v2542
        %v2544 = vsel %vm2381, %v2483, 0.0
        %v2545 = vadd.f32 %v2543, %v2544
        %v2546 = vsel %vm2381, %v2484, 0.0
        %v2547 = vadd.f32 %v2545, %v2546
        %v2548 = vrot.slane %v2547, 4
        %v2549 = vadd.f32 %v2547, %v2548
        %v2550 = vrot.slane %v2549, 2
        %v2551 = vadd.f32 %v2549, %v2550
        %v2552 = vrot.slane %v2551, 1
        %v2553 = vadd.f32 %v2551, %v2552
        %2554 = vst.msk [vmem:[%s287] sm:$0x1] %vm2451, %v2553
        %v2555 = vpack.c.bf16 %v2258, %v2255
        %v2556 = vpack.c.bf16 %v2266, %v2263
        %v2557 = vpack.c.bf16 %v2274, %v2271
        %v2558 = vpack.c.bf16 %v2282, %v2279
        %v2559 = vpack.c.bf16 %v2290, %v2287
        %v2560 = vpack.c.bf16 %v2298, %v2295
        %v2561 = vpack.c.bf16 %v2306, %v2303
        %v2562 = vpack.c.bf16 %v2314, %v2311
        %v2563 = vpack.c.bf16 %v2322, %v2319
        %v2564 = vpack.c.bf16 %v2330, %v2327
        %v2565 = vpack.c.bf16 %v2338, %v2335
        %v2566 = vpack.c.bf16 %v2346, %v2343
        %v2567 = vpack.c.bf16 %v2354, %v2351
        %v2568 = vpack.c.bf16 %v2362, %v2359
        %v2569 = vpack.c.bf16 %v2370, %v2367
        %v2570 = vpack.c.bf16 %v2378, %v2375
        %v2587 = vunpack.c.l.b16 %v2555
        %v2588 = vunpack.c.h.b16 %v2555
        %v2589 = vunpack.c.l.b16 %v2556
        %v2590 = vunpack.c.h.b16 %v2556
        %v2591 = vunpack.c.l.b16 %v2557
        %v2592 = vunpack.c.h.b16 %v2557
        %v2593 = vunpack.c.l.b16 %v2558
        %v2594 = vunpack.c.h.b16 %v2558
        %v2595 = vunpack.c.l.b16 %v2559
        %v2596 = vunpack.c.h.b16 %v2559
        %v2597 = vunpack.c.l.b16 %v2560
        %v2598 = vunpack.c.h.b16 %v2560
        %v2599 = vunpack.c.l.b16 %v2561
        %v2600 = vunpack.c.h.b16 %v2561
        %v2601 = vunpack.c.l.b16 %v2562
        %v2602 = vunpack.c.h.b16 %v2562
        %v2603 = vunpack.c.l.b16 %v2563
        %v2604 = vunpack.c.h.b16 %v2563
        %v2605 = vunpack.c.l.b16 %v2564
        %v2606 = vunpack.c.h.b16 %v2564
        %v2607 = vunpack.c.l.b16 %v2565
        %v2608 = vunpack.c.h.b16 %v2565
        %v2609 = vunpack.c.l.b16 %v2566
        %v2610 = vunpack.c.h.b16 %v2566
        %v2611 = vunpack.c.l.b16 %v2567
        %v2612 = vunpack.c.h.b16 %v2567
        %v2613 = vunpack.c.l.b16 %v2568
        %v2614 = vunpack.c.h.b16 %v2568
        %v2615 = vunpack.c.l.b16 %v2569
        %v2616 = vunpack.c.h.b16 %v2569
        %v2617 = vunpack.c.l.b16 %v2570
        %v2618 = vunpack.c.h.b16 %v2570
        %v2619 = vpack.c.b16 %v2587, %v2587
        %v2620 = vpack.c.b16 %v2588, %v2588
        %v2621 = vpack.c.b16 %v2589, %v2589
        %v2622 = vpack.c.b16 %v2590, %v2590
        %v2623 = vpack.c.b16 %v2591, %v2591
        %v2624 = vpack.c.b16 %v2592, %v2592
        %v2625 = vpack.c.b16 %v2593, %v2593
        %v2626 = vpack.c.b16 %v2594, %v2594
        %v2627 = vpack.c.b16 %v2595, %v2595
        %v2628 = vpack.c.b16 %v2596, %v2596
        %v2629 = vpack.c.b16 %v2597, %v2597
        %v2630 = vpack.c.b16 %v2598, %v2598
        %v2631 = vpack.c.b16 %v2599, %v2599
        %v2632 = vpack.c.b16 %v2600, %v2600
        %v2633 = vpack.c.b16 %v2601, %v2601
        %v2634 = vpack.c.b16 %v2602, %v2602
        %v2635 = vpack.c.b16 %v2603, %v2603
        %v2636 = vpack.c.b16 %v2604, %v2604
        %v2637 = vpack.c.b16 %v2605, %v2605
        %v2638 = vpack.c.b16 %v2606, %v2606
        %v2639 = vpack.c.b16 %v2607, %v2607
        %v2640 = vpack.c.b16 %v2608, %v2608
        %v2641 = vpack.c.b16 %v2609, %v2609
        %v2642 = vpack.c.b16 %v2610, %v2610
        %v2643 = vpack.c.b16 %v2611, %v2611
        %v2644 = vpack.c.b16 %v2612, %v2612
        %v2645 = vpack.c.b16 %v2613, %v2613
        %v2646 = vpack.c.b16 %v2614, %v2614
        %v2647 = vpack.c.b16 %v2615, %v2615
        %v2648 = vpack.c.b16 %v2616, %v2616
        %v2649 = vpack.c.b16 %v2617, %v2617
        %v2650 = vpack.c.b16 %v2618, %v2618
        %vm2683 = vcmask 257024
        %2684 = vst.msk [vmem:[%s297] sm:$0xf] %vm2683, %v2619
        %2685 = vst.msk [vmem:[%s297 + $0x4] sm:$0xf] %vm2683, %v2620
        %2686 = vst.msk [vmem:[%s297 + $0x8] sm:$0xf] %vm2683, %v2621
        %2687 = vst.msk [vmem:[%s297 + $0xc] sm:$0xf] %vm2683, %v2622
        %2688 = vst.msk [vmem:[%s297 + $0x10] sm:$0xf] %vm2683, %v2623
        %2689 = vst.msk [vmem:[%s297 + $0x14] sm:$0xf] %vm2683, %v2624
        %2690 = vst.msk [vmem:[%s297 + $0x18] sm:$0xf] %vm2683, %v2625
        %2691 = vst.msk [vmem:[%s297 + $0x1c] sm:$0xf] %vm2683, %v2626
        %2692 = vst.msk [vmem:[%s297 + $0x20] sm:$0xf] %vm2683, %v2627
        %2693 = vst.msk [vmem:[%s297 + $0x24] sm:$0xf] %vm2683, %v2628
        %2694 = vst.msk [vmem:[%s297 + $0x28] sm:$0xf] %vm2683, %v2629
        %2695 = vst.msk [vmem:[%s297 + $0x2c] sm:$0xf] %vm2683, %v2630
        %2696 = vst.msk [vmem:[%s297 + $0x30] sm:$0xf] %vm2683, %v2631
        %2697 = vst.msk [vmem:[%s297 + $0x34] sm:$0xf] %vm2683, %v2632
        %2698 = vst.msk [vmem:[%s297 + $0x38] sm:$0xf] %vm2683, %v2633
        %2699 = vst.msk [vmem:[%s297 + $0x3c] sm:$0xf] %vm2683, %v2634
        %2700 = vst.msk [vmem:[%s297 + $0x40] sm:$0xf] %vm2683, %v2635
        %2701 = vst.msk [vmem:[%s297 + $0x44] sm:$0xf] %vm2683, %v2636
        %2702 = vst.msk [vmem:[%s297 + $0x48] sm:$0xf] %vm2683, %v2637
        %2703 = vst.msk [vmem:[%s297 + $0x4c] sm:$0xf] %vm2683, %v2638
        %2704 = vst.msk [vmem:[%s297 + $0x50] sm:$0xf] %vm2683, %v2639
        %2705 = vst.msk [vmem:[%s297 + $0x54] sm:$0xf] %vm2683, %v2640
        %2706 = vst.msk [vmem:[%s297 + $0x58] sm:$0xf] %vm2683, %v2641
        %2707 = vst.msk [vmem:[%s297 + $0x5c] sm:$0xf] %vm2683, %v2642
        %2708 = vst.msk [vmem:[%s297 + $0x60] sm:$0xf] %vm2683, %v2643
        %2709 = vst.msk [vmem:[%s297 + $0x64] sm:$0xf] %vm2683, %v2644
        %2710 = vst.msk [vmem:[%s297 + $0x68] sm:$0xf] %vm2683, %v2645
        %2711 = vst.msk [vmem:[%s297 + $0x6c] sm:$0xf] %vm2683, %v2646
        %2712 = vst.msk [vmem:[%s297 + $0x70] sm:$0xf] %vm2683, %v2647
        %2713 = vst.msk [vmem:[%s297 + $0x74] sm:$0xf] %vm2683, %v2648
        %2714 = vst.msk [vmem:[%s297 + $0x78] sm:$0xf] %vm2683, %v2649
        %2715 = vst.msk [vmem:[%s297 + $0x7c] sm:$0xf] %vm2683, %v2650
        %p2716 = scmp.lt.s32.totalorder %s25, 1
        %s2717 = scalar_select %p2716, %s25, 1
        %s2718 = smul.addr %s2717, 32
        %s2719 = smul.addr %s2718, 4
        %s2720 = scalar_lea.vmem %s5, %s2719
        %s2721 = sand.u32 %s169, 1
        %s2722 = scalar_lea.sflag [#allocation4], %s2721
        %s2723 = sand.u32 %s169, 1
        %s2724 = scalar_lea.vmem [#allocation3], %s2723
        %s2725 = sand.u32 %s195, 1
        %s2726 = scalar_lea.sflag [#allocation6], %s2725
        %s2727 = sand.u32 %s195, 1
        %s2728 = scalar_lea.vmem [#allocation5], %s2727
        // Predicated region
        $region41: #{dense_block_forward.7} parent=39 // pred_check
          %p2729 = pneg %p153
        $region42: #{dense_block_forward.7} parent=39 // pred_check_branch
          %2731 = sbr.rel (%p2729) target = $region44
        $region43: #{dense_block_forward.7} parent=39 // pred_region
          _
        $region44: #{dense_block_forward.7} parent=39 // pred_fallthru
          _
        // Predicated region
        $region45: #{dense_block_forward.7} parent=39 // pred_check
          %p2732 = pneg %p179
        $region46: #{dense_block_forward.7} parent=39 // pred_check_branch
          %2734 = sbr.rel (%p2732) target = $region48
        $region47: #{dense_block_forward.7} parent=39 // pred_region
          %s2736 = ssub.s32 16, 16
          %2737 = vsyncadd %s2722, %s2736
          %s2738 = smul.addr %s25, 16
          %s2739 = scalar_lea.hbm %s6, %s2738
          %s2741 = sshll.u32 %s2724, 4
          %s2742 = int_to_ptr.vmem [resolvable:$true] %s2741
          %2744 = dma.vmem_to_hbm [thread:$0]  %s2742, 16, %s2739, %s2722
        $region48: #{dense_block_forward.7} parent=39 // pred_fallthru
          _
        // Predicated region
        $region49: #{dense_block_forward.7} parent=39 // pred_check
          %p2745 = pneg %p205
        $region50: #{dense_block_forward.7} parent=39 // pred_check_branch
          %2747 = sbr.rel (%p2745) target = $region52
        $region51: #{dense_block_forward.7} parent=39 // pred_region
          %s2749 = ssub.s32 16, 16
          %2750 = vsyncadd %s2726, %s2749
          %s2751 = smul.addr %s25, 16
          %s2752 = scalar_lea.hbm %s7, %s2751
          %s2754 = sshll.u32 %s2728, 4
          %s2755 = int_to_ptr.vmem [resolvable:$true] %s2754
          %2757 = dma.vmem_to_hbm [thread:$0]  %s2755, 16, %s2752, %s2726
        $region52: #{dense_block_forward.7} parent=39 // pred_fallthru
          _
      $region40: #{dense_block_forward.7} parent=5 // pred_fallthru
        _
      %p2758 = scmp.le.s32.totalorder 2, %s20
      // Predicated region
      $region53: #{dense_block_forward.7} parent=5 // pred_check
        %p2759 = pneg %p2758
      $region54: #{dense_block_forward.7} parent=5 // pred_check_branch
        %2761 = sbr.rel (%p2759) target = $region56
      $region55: #{dense_block_forward.7} parent=5 // pred_region
        %s2762 = ssub.s32 %s20, 2
        // Predicated region
        $region57: #{dense_block_forward.7} parent=55 // pred_check
          %p2763 = pneg %p159
        $region58: #{dense_block_forward.7} parent=55 // pred_check_branch
          %2765 = sbr.rel (%p2763) target = $region60
        $region59: #{dense_block_forward.7} parent=55 // pred_region
          %p2766 = scmp.lt.s32.totalorder %s26, 1
          %s2767 = scalar_select %p2766, %s26, 1
          %s2768 = smul.addr %s2767, 32
          %s2769 = smul.addr %s2768, 4
          %s2770 = scalar_lea.vmem %s5, %s2769
        $region60: #{dense_block_forward.7} parent=55 // pred_fallthru
          _
        // Predicated region
        $region61: #{dense_block_forward.7} parent=55 // pred_check
          %p2771 = pneg %p185
        $region62: #{dense_block_forward.7} parent=55 // pred_check_branch
          %2773 = sbr.rel (%p2771) target = $region64
        $region63: #{dense_block_forward.7} parent=55 // pred_region
          %s2774 = sand.u32 %s170, 1
          %s2775 = scalar_lea.sflag [#allocation4], %s2774
          %s2776 = sand.u32 %s170, 1
          %s2777 = scalar_lea.vmem [#allocation3], %s2776
          %2778 = dma.done %s2775, 16
        $region64: #{dense_block_forward.7} parent=55 // pred_fallthru
          _
        // Predicated region
        $region65: #{dense_block_forward.7} parent=55 // pred_check
          %p2779 = pneg %p211
        $region66: #{dense_block_forward.7} parent=55 // pred_check_branch
          %2781 = sbr.rel (%p2779) target = $region68
        $region67: #{dense_block_forward.7} parent=55 // pred_region
          %s2782 = sand.u32 %s196, 1
          %s2783 = scalar_lea.sflag [#allocation6], %s2782
          %s2784 = sand.u32 %s196, 1
          %s2785 = scalar_lea.vmem [#allocation5], %s2784
          %2786 = dma.done %s2783, 16
        $region68: #{dense_block_forward.7} parent=55 // pred_fallthru
          _
      $region56: #{dense_block_forward.7} parent=5 // pred_fallthru
        _
    $region6: #{dense_block_forward.7} parent=1 // loop_footer
      %s24 = sadd.s32 1, %s20
    $region7: #{dense_block_forward.7} parent=1 // loop_footer_branch
      %19 = sbr.rel target = $region3
    $region8: #{dense_block_forward.7} parent=1 // loop_exit
      _
    %2787 = vsyncpa [#allocation4], 1
    %s2788 = scalar_lea.sflag [#allocation4], 1
    %2789 = vsyncpa %s2788, 1
    %2790 = vsyncpa [#allocation6], 1
    %s2791 = scalar_lea.sflag [#allocation6], 1
    %2792 = vsyncpa %s2791, 1

</llo_original>
